<compile_context>
chip_gen: v7x
topology: tpu7x:2x2x1
jax: 0.10.0
libtpu: 0.0.40
codegen_flags: <defaults>
</compile_context>

<pallas_src>
import math

import jax
import jax.numpy as jnp
from jax.experimental import pallas as pl
from jax.experimental.pallas import tpu as pltpu

# ---- small synthetic GPT-2 config (lane/sublane friendly) ----
VOCAB = 384          # multiple of 128
N_CTX = 16
D = 256              # hidden size, multiple of 128
N_HEAD = 2
HD = D // N_HEAD     # head dim = 128
N_LAYER = 2
D_MLP = 4 * D
EPS = 1e-5

_GELU_C = math.sqrt(2.0 / math.pi)


def _layer_norm(x, g, b):
    # x is f32; stats kept in f32.
    mu = jnp.mean(x, axis=-1, keepdims=True)
    var = jnp.mean((x - mu) ** 2, axis=-1, keepdims=True)
    return (x - mu) * jax.lax.rsqrt(var + EPS) * g + b


def _gelu_new(x):
    # GPT-2 "gelu_new" (tanh approximation), computed in f32.
    return 0.5 * x * (1.0 + jnp.tanh(_GELU_C * (x + 0.044715 * x ** 3)))


def gpt2_kernel(h_ref,
                ln1g_ref, ln1b_ref, wqkv_ref, bqkv_ref,
                wproj_ref, bproj_ref, ln2g_ref, ln2b_ref,
                wfc_ref, bfc_ref, wout_ref, bout_ref,
                lnfg_ref, lnfb_ref, wte_t_ref,
                o_ref):
    """Fused GPT-2 forward for one batch block: all blocks + final LN + LM head.

    h_ref:   [BB, S, D]  bf16 embeddings for this batch block
    weights: stacked per-layer, leading N_LAYER axis (bf16 matrices,
             f32 biases / LN params); wte_t_ref: [D, V] bf16 tied LM head.
    o_ref:   [BB, S, V]  f32 logits
    """
    BB, S, _ = h_ref.shape
    M = BB * S
    x = h_ref[...].astype(jnp.float32).reshape(M, D)   # residual stream (f32)
    scale = jnp.float32(HD ** -0.5)

    # Causal mask generated in-kernel (per sequence, [S, S]); hoisted.
    row = jax.lax.broadcasted_iota(jnp.int32, (S, S), 0)
    col = jax.lax.broadcasted_iota(jnp.int32, (S, S), 1)
    causal = jnp.where(col <= row, 0.0, -1e30).astype(jnp.float32)  # [S, S]

    for l in range(N_LAYER):                    # static unroll over layers
        # ---- self-attention ----
        xn = _layer_norm(x, ln1g_ref[l], ln1b_ref[l])
        qkv = jnp.dot(xn.astype(jnp.bfloat16), wqkv_ref[l],
                      preferred_element_type=jnp.float32) + bqkv_ref[l]  # [M, 3D]
        head_outs = []
        for h in range(N_HEAD):                 # static unroll over heads
            q = (qkv[:, h * HD:(h + 1) * HD] * scale
                 ).astype(jnp.bfloat16).reshape(BB, S, HD)
            k = qkv[:, D + h * HD:D + (h + 1) * HD
                    ].astype(jnp.bfloat16).reshape(BB, S, HD)
            v = qkv[:, 2 * D + h * HD:2 * D + (h + 1) * HD
                    ].astype(jnp.bfloat16).reshape(BB, S, HD)
            # per-sequence scores: [BB, S, S]
            s = jnp.einsum('bqd,bkd->bqk', q, k,
                           preferred_element_type=jnp.float32)
            s = s + causal[None]
            s = s - jnp.max(s, axis=-1, keepdims=True)
            p = jnp.exp(s)
            p = p / jnp.sum(p, axis=-1, keepdims=True)   # exact softmax
            ho = jnp.einsum('bqk,bkd->bqd', p.astype(jnp.bfloat16), v,
                            preferred_element_type=jnp.float32)  # [BB, S, HD]
            head_outs.append(ho.reshape(M, HD))
        # lane-axis concat (no cross-lane movement) + one K=256 projection
        attn_cat = jnp.concatenate(head_outs, axis=-1).astype(jnp.bfloat16)  # [M, D]
        x = x + jnp.dot(attn_cat, wproj_ref[l],
                        preferred_element_type=jnp.float32) + bproj_ref[l]

        # ---- MLP ----
        xn2 = _layer_norm(x, ln2g_ref[l], ln2b_ref[l])
        hmid = jnp.dot(xn2.astype(jnp.bfloat16), wfc_ref[l],
                       preferred_element_type=jnp.float32) + bfc_ref[l]
        hmid = _gelu_new(hmid)
        x = x + jnp.dot(hmid.astype(jnp.bfloat16), wout_ref[l],
                        preferred_element_type=jnp.float32) + bout_ref[l]

    # ---- final LayerNorm + tied-embedding LM head ----
    xn = _layer_norm(x, lnfg_ref[...], lnfb_ref[...])
    logits = jnp.dot(xn.astype(jnp.bfloat16), wte_t_ref[...],
                     preferred_element_type=jnp.float32)          # [M, V]
    o_ref[...] = logits.reshape(BB, S, VOCAB)


def init_params(key):
    std = 0.02
    kwte, kwpe, kqkv, kproj, kfc, kout = jax.random.split(key, 6)
    wte = (jax.random.normal(kwte, (VOCAB, D), jnp.float32) * std
           ).astype(jnp.bfloat16)

    def w(k, shape):
        return (jax.random.normal(k, (N_LAYER,) + shape, jnp.float32) * std
                ).astype(jnp.bfloat16)

    return {
        # embeddings (bf16); wte_t precomputed ONCE for the tied LM head
        'wte': wte,
        'wpe': (jax.random.normal(kwpe, (N_CTX, D), jnp.float32) * std
                ).astype(jnp.bfloat16),
        'wte_t': wte.T,                                   # [D, V] bf16
        # stacked per-layer weights, leading N_LAYER axis
        'ln1_g': jnp.ones((N_LAYER, 1, D), jnp.float32),
        'ln1_b': jnp.zeros((N_LAYER, 1, D), jnp.float32),
        'w_qkv': w(kqkv, (D, 3 * D)),
        'b_qkv': jnp.zeros((N_LAYER, 1, 3 * D), jnp.float32),
        'w_proj': w(kproj, (D, D)),
        'b_proj': jnp.zeros((N_LAYER, 1, D), jnp.float32),
        'ln2_g': jnp.ones((N_LAYER, 1, D), jnp.float32),
        'ln2_b': jnp.zeros((N_LAYER, 1, D), jnp.float32),
        'w_fc': w(kfc, (D, D_MLP)),
        'b_fc': jnp.zeros((N_LAYER, 1, D_MLP), jnp.float32),
        'w_out': w(kout, (D_MLP, D)),
        'b_out': jnp.zeros((N_LAYER, 1, D), jnp.float32),
        # final LN
        'lnf_g': jnp.ones((1, D), jnp.float32),
        'lnf_b': jnp.zeros((1, D), jnp.float32),
    }


def _pick_block_b(B, S, target_rows=256):
    """Batch-block size: ~target_rows rows per grid step, but keep >=2 grid
    steps when B >= 2 so v7x's two TensorCores can split the work."""
    bb = max(1, min(B, max(1, target_rows // S)))
    if B > 1:
        bb = min(bb, (B + 1) // 2)
    while B % bb:
        bb -= 1
    return bb


def _resident_spec(shape):
    """Whole-array block, constant index_map -> DMA'd once, stays in VMEM."""
    nd = len(shape)
    return pl.BlockSpec(shape, lambda i, _nd=nd: (0,) * _nd)


def gpt2_forward(input_ids, params):
    """Equivalent of TorchScriptWrapper.forward: returns logits (output[0])."""
    B, S = input_ids.shape

    # glue: token + positional embedding gather (not a Pallas hot path)
    h0 = params['wte'][input_ids] + params['wpe'][:S][None, :, :]  # [B, S, D] bf16

    weight_names = ['ln1_g', 'ln1_b', 'w_qkv', 'b_qkv', 'w_proj', 'b_proj',
                    'ln2_g', 'ln2_b', 'w_fc', 'b_fc', 'w_out', 'b_out',
                    'lnf_g', 'lnf_b', 'wte_t']
    weights = [params[n] for n in weight_names]
    args = [h0] + weights

    block_b = _pick_block_b(B, S)
    grid = (B // block_b,)
    M = B * S

    in_specs = ([pl.BlockSpec((block_b, S, D), lambda i: (i, 0, 0))]
                + [_resident_spec(w.shape) for w in weights])
    out_specs = pl.BlockSpec((block_b, S, VOCAB), lambda i: (i, 0, 0))

    # advisory cost estimate so XLA overlaps the gather with the custom call
    flops = N_LAYER * (2 * M * D * 3 * D            # qkv
                       + 2 * 2 * N_HEAD * B * S * S * HD  # scores + p@v
                       + 2 * M * D * D              # out proj
                       + 2 * 2 * M * D * D_MLP)     # mlp fc + out
    flops += 2 * M * D * VOCAB                      # lm head
    transcendentals = N_LAYER * (N_HEAD * B * S * S + M * D_MLP)
    bytes_accessed = sum(a.size * a.dtype.itemsize for a in args) + M * VOCAB * 4

    logits = pl.pallas_call(
        gpt2_kernel,
        out_shape=jax.ShapeDtypeStruct((B, S, VOCAB), jnp.float32),
        grid=grid,
        in_specs=in_specs,
        out_specs=out_specs,
        compiler_params=pltpu.CompilerParams(
            dimension_semantics=("parallel",)),
        cost_estimate=pl.CostEstimate(flops=int(flops),
                                      transcendentals=int(transcendentals),
                                      bytes_accessed=int(bytes_accessed)),
    )(*args)
    return logits
    # TODO(synk): for real GPT-2 sizes (~250 MB weights) the resident-weight
    # specs must become a layer-streamed grid axis ("arbitrary") so VMEM fits.


if __name__ == "__main__":
    root = jax.random.PRNGKey(0)
    k_params, k_ids = jax.random.split(root)
    params = init_params(k_params)

    B, S = 2, 8
    input_ids = jax.random.randint(k_ids, (B, S), 0, VOCAB, dtype=jnp.int32)

    fwd = jax.jit(gpt2_forward)
    logits = fwd(input_ids, params)
    logits = jax.block_until_ready(logits)

    assert logits.shape == (B, S, VOCAB)
    assert logits.dtype == jnp.float32
    assert bool(jnp.all(jnp.isfinite(logits)))
    print("KERNEL_OK")
</pallas_src>

<mosaic_0001>
module attributes {stable_mosaic.version = 11 : i64} {
  func.func @gpt2_kernel(%arg0: i32, %arg1: memref<1x8x256xbf16, #tpu.memory_space<vmem>>, %arg2: memref<2x1x256xf32, #tpu.memory_space<vmem>>, %arg3: memref<2x1x256xf32, #tpu.memory_space<vmem>>, %arg4: memref<2x256x768xbf16, #tpu.memory_space<vmem>>, %arg5: memref<2x1x768xf32, #tpu.memory_space<vmem>>, %arg6: memref<2x256x256xbf16, #tpu.memory_space<vmem>>, %arg7: memref<2x1x256xf32, #tpu.memory_space<vmem>>, %arg8: memref<2x1x256xf32, #tpu.memory_space<vmem>>, %arg9: memref<2x1x256xf32, #tpu.memory_space<vmem>>, %arg10: memref<2x256x1024xbf16, #tpu.memory_space<vmem>>, %arg11: memref<2x1x1024xf32, #tpu.memory_space<vmem>>, %arg12: memref<2x1024x256xbf16, #tpu.memory_space<vmem>>, %arg13: memref<2x1x256xf32, #tpu.memory_space<vmem>>, %arg14: memref<1x256xf32, #tpu.memory_space<vmem>>, %arg15: memref<1x256xf32, #tpu.memory_space<vmem>>, %arg16: memref<256x384xbf16, #tpu.memory_space<vmem>>, %arg17: memref<1x8x384xf32, #tpu.memory_space<vmem>>) attributes {dimension_semantics = [#tpu.dimension_semantics<parallel>], iteration_bounds = array<i64: 2>, scalar_prefetch = 0 : i64, scratch_operands = 0 : i64, tpu.core_type = #tpu.core_type<tc>, window_params = [{transform_indices = @transform_0, window_bounds = array<i64: 1, 8, 256>}, {pipeline_mode = #tpu.pipeline_mode<synchronous>, transform_indices = @transform_1, window_bounds = array<i64: 2, 1, 256>}, {pipeline_mode = #tpu.pipeline_mode<synchronous>, transform_indices = @transform_2, window_bounds = array<i64: 2, 1, 256>}, {pipeline_mode = #tpu.pipeline_mode<synchronous>, transform_indices = @transform_3, window_bounds = array<i64: 2, 256, 768>}, {pipeline_mode = #tpu.pipeline_mode<synchronous>, transform_indices = @transform_4, window_bounds = array<i64: 2, 1, 768>}, {pipeline_mode = #tpu.pipeline_mode<synchronous>, transform_indices = @transform_5, window_bounds = array<i64: 2, 256, 256>}, {pipeline_mode = #tpu.pipeline_mode<synchronous>, transform_indices = @transform_6, window_bounds = array<i64: 2, 1, 256>}, {pipeline_mode = #tpu.pipeline_mode<synchronous>, transform_indices = @transform_7, window_bounds = array<i64: 2, 1, 256>}, {pipeline_mode = #tpu.pipeline_mode<synchronous>, transform_indices = @transform_8, window_bounds = array<i64: 2, 1, 256>}, {pipeline_mode = #tpu.pipeline_mode<synchronous>, transform_indices = @transform_9, window_bounds = array<i64: 2, 256, 1024>}, {pipeline_mode = #tpu.pipeline_mode<synchronous>, transform_indices = @transform_10, window_bounds = array<i64: 2, 1, 1024>}, {pipeline_mode = #tpu.pipeline_mode<synchronous>, transform_indices = @transform_11, window_bounds = array<i64: 2, 1024, 256>}, {pipeline_mode = #tpu.pipeline_mode<synchronous>, transform_indices = @transform_12, window_bounds = array<i64: 2, 1, 256>}, {pipeline_mode = #tpu.pipeline_mode<synchronous>, transform_indices = @transform_13, window_bounds = array<i64: 1, 256>}, {pipeline_mode = #tpu.pipeline_mode<synchronous>, transform_indices = @transform_14, window_bounds = array<i64: 1, 256>}, {pipeline_mode = #tpu.pipeline_mode<synchronous>, transform_indices = @transform_15, window_bounds = array<i64: 256, 384>}, {transform_indices = @transform_16, window_bounds = array<i64: 1, 8, 384>}]} {
    %c0 = arith.constant 0 : index
    %c0_0 = arith.constant 0 : index
    %c0_1 = arith.constant 0 : index
    %0 = vector.load %arg1[%c0, %c0_0, %c0_1] : memref<1x8x256xbf16, #tpu.memory_space<vmem>>, vector<1x8x256xbf16>
    %1 = arith.extf %0 : vector<1x8x256xbf16> to vector<1x8x256xf32>
    %2 = vector.shape_cast %1 : vector<1x8x256xf32> to vector<8x256xf32>
    %3 = tpu.iota {dimensions = array<i32: 0>} : vector<8x8xi32>
    %4 = tpu.iota {dimensions = array<i32: 1>} : vector<8x8xi32>
    %5 = arith.cmpi sle, %4, %3 : vector<8x8xi32>
    %cst = arith.constant 0.000000e+00 : f32
    %cst_2 = arith.constant -1.000000e+30 : f32
    %6 = vector.broadcast %cst : f32 to vector<8x8xf32>
    %7 = vector.broadcast %cst_2 : f32 to vector<8x8xf32>
    %8 = arith.select %5, %6, %7 : vector<8x8xi1>, vector<8x8xf32>
    %c0_3 = arith.constant 0 : index
    %c0_4 = arith.constant 0 : index
    %c0_5 = arith.constant 0 : index
    %9 = vector.load %arg2[%c0_3, %c0_4, %c0_5] : memref<2x1x256xf32, #tpu.memory_space<vmem>>, vector<1x1x256xf32>
    %10 = vector.shape_cast %9 : vector<1x1x256xf32> to vector<1x256xf32>
    %c0_6 = arith.constant 0 : index
    %c0_7 = arith.constant 0 : index
    %c0_8 = arith.constant 0 : index
    %11 = vector.load %arg3[%c0_6, %c0_7, %c0_8] : memref<2x1x256xf32, #tpu.memory_space<vmem>>, vector<1x1x256xf32>
    %12 = vector.shape_cast %11 : vector<1x1x256xf32> to vector<1x256xf32>
    %cst_9 = arith.constant dense<0.000000e+00> : vector<8xf32>
    %13 = vector.multi_reduction <add>, %2, %cst_9 [1] : vector<8x256xf32> to vector<8xf32>
    %14 = vector.shape_cast %13 : vector<8xf32> to vector<8x1xf32>
    %cst_10 = arith.constant 2.560000e+02 : f32
    %15 = vector.broadcast %cst_10 : f32 to vector<8x1xf32>
    %16 = arith.divf %14, %15 : vector<8x1xf32>
    %17 = vector.broadcast %16 : vector<8x1xf32> to vector<8x256xf32>
    %18 = arith.subf %2, %17 : vector<8x256xf32>
    %19 = arith.mulf %18, %18 : vector<8x256xf32>
    %cst_11 = arith.constant dense<0.000000e+00> : vector<8xf32>
    %20 = vector.multi_reduction <add>, %19, %cst_11 [1] : vector<8x256xf32> to vector<8xf32>
    %21 = vector.shape_cast %20 : vector<8xf32> to vector<8x1xf32>
    %cst_12 = arith.constant 2.560000e+02 : f32
    %22 = vector.broadcast %cst_12 : f32 to vector<8x1xf32>
    %23 = arith.divf %21, %22 : vector<8x1xf32>
    %24 = vector.broadcast %16 : vector<8x1xf32> to vector<8x256xf32>
    %25 = arith.subf %2, %24 : vector<8x256xf32>
    %cst_13 = arith.constant 9.99999974E-6 : f32
    %26 = vector.broadcast %cst_13 : f32 to vector<8x1xf32>
    %27 = arith.addf %23, %26 : vector<8x1xf32>
    %28 = math.rsqrt %27 : vector<8x1xf32>
    %29 = vector.broadcast %28 : vector<8x1xf32> to vector<8x256xf32>
    %30 = arith.mulf %25, %29 : vector<8x256xf32>
    %31 = vector.broadcast %10 : vector<1x256xf32> to vector<8x256xf32>
    %32 = arith.mulf %30, %31 : vector<8x256xf32>
    %33 = vector.broadcast %12 : vector<1x256xf32> to vector<8x256xf32>
    %34 = arith.addf %32, %33 : vector<8x256xf32>
    %35 = arith.truncf %34 : vector<8x256xf32> to vector<8x256xbf16>
    %c0_14 = arith.constant 0 : index
    %c0_15 = arith.constant 0 : index
    %c0_16 = arith.constant 0 : index
    %36 = vector.load %arg4[%c0_14, %c0_15, %c0_16] : memref<2x256x768xbf16, #tpu.memory_space<vmem>>, vector<1x256x768xbf16>
    %37 = vector.shape_cast %36 : vector<1x256x768xbf16> to vector<256x768xbf16>
    %cst_17 = arith.constant dense<0.000000e+00> : vector<8x768xf32>
    %38 = tpu.matmul %35, %37, %cst_17 {dimension_numbers = #tpu.dot_dimension_numbers<[1], [0], [0], [1], [0, 0, 1, 1], [], []>} : vector<8x256xbf16>, vector<256x768xbf16>, vector<8x768xf32> -> vector<8x768xf32>
    %c0_18 = arith.constant 0 : index
    %c0_19 = arith.constant 0 : index
    %c0_20 = arith.constant 0 : index
    %39 = vector.load %arg5[%c0_18, %c0_19, %c0_20] : memref<2x1x768xf32, #tpu.memory_space<vmem>>, vector<1x1x768xf32>
    %40 = vector.shape_cast %39 : vector<1x1x768xf32> to vector<1x768xf32>
    %41 = vector.broadcast %40 : vector<1x768xf32> to vector<8x768xf32>
    %42 = arith.addf %38, %41 : vector<8x768xf32>
    %43 = vector.extract_strided_slice %42 {offsets = [0, 0], sizes = [8, 128], strides = [1, 1]} : vector<8x768xf32> to vector<8x128xf32>
    %cst_21 = arith.constant 0.0883883461 : f32
    %44 = vector.broadcast %cst_21 : f32 to vector<8x128xf32>
    %45 = arith.mulf %43, %44 : vector<8x128xf32>
    %46 = arith.truncf %45 : vector<8x128xf32> to vector<8x128xbf16>
    %47 = vector.shape_cast %46 : vector<8x128xbf16> to vector<1x8x128xbf16>
    %48 = vector.extract_strided_slice %42 {offsets = [0, 256], sizes = [8, 128], strides = [1, 1]} : vector<8x768xf32> to vector<8x128xf32>
    %49 = arith.truncf %48 : vector<8x128xf32> to vector<8x128xbf16>
    %50 = vector.shape_cast %49 : vector<8x128xbf16> to vector<1x8x128xbf16>
    %51 = vector.extract_strided_slice %42 {offsets = [0, 512], sizes = [8, 128], strides = [1, 1]} : vector<8x768xf32> to vector<8x128xf32>
    %52 = arith.truncf %51 : vector<8x128xf32> to vector<8x128xbf16>
    %53 = vector.shape_cast %52 : vector<8x128xbf16> to vector<1x8x128xbf16>
    "tpu.trace_start"() <{level = 10 : i32, message = "bqd,bkd->bqk"}> : () -> ()
    %cst_22 = arith.constant dense<0.000000e+00> : vector<1x8x8xf32>
    %54 = tpu.matmul %47, %50, %cst_22 {dimension_numbers = #tpu.dot_dimension_numbers<[2], [2], [1], [1], [0, 0, 0, 1, 1, 1], [0], [0]>} : vector<1x8x128xbf16>, vector<1x8x128xbf16>, vector<1x8x8xf32> -> vector<1x8x8xf32>
    "tpu.trace_stop"() : () -> ()
    %55 = vector.shape_cast %8 : vector<8x8xf32> to vector<1x8x8xf32>
    %56 = arith.addf %54, %55 : vector<1x8x8xf32>
    %cst_23 = arith.constant dense<0xFF800000> : vector<1x8xf32>
    %57 = vector.multi_reduction <maximumf>, %56, %cst_23 [2] : vector<1x8x8xf32> to vector<1x8xf32>
    %58 = vector.shape_cast %57 : vector<1x8xf32> to vector<1x8x1xf32>
    %59 = vector.broadcast %58 : vector<1x8x1xf32> to vector<1x8x8xf32>
    %60 = arith.subf %56, %59 : vector<1x8x8xf32>
    %61 = math.exp %60 : vector<1x8x8xf32>
    %cst_24 = arith.constant dense<0.000000e+00> : vector<1x8xf32>
    %62 = vector.multi_reduction <add>, %61, %cst_24 [2] : vector<1x8x8xf32> to vector<1x8xf32>
    %63 = vector.shape_cast %62 : vector<1x8xf32> to vector<1x8x1xf32>
    %64 = vector.broadcast %63 : vector<1x8x1xf32> to vector<1x8x8xf32>
    %65 = arith.divf %61, %64 : vector<1x8x8xf32>
    %66 = arith.truncf %65 : vector<1x8x8xf32> to vector<1x8x8xbf16>
    "tpu.trace_start"() <{level = 10 : i32, message = "bqk,bkd->bqd"}> : () -> ()
    %cst_25 = arith.constant dense<0.000000e+00> : vector<1x8x128xf32>
    %67 = tpu.matmul %66, %53, %cst_25 {dimension_numbers = #tpu.dot_dimension_numbers<[2], [1], [1], [2], [0, 0, 0, 1, 1, 2], [0], [0]>} : vector<1x8x8xbf16>, vector<1x8x128xbf16>, vector<1x8x128xf32> -> vector<1x8x128xf32>
    "tpu.trace_stop"() : () -> ()
    %68 = vector.shape_cast %67 : vector<1x8x128xf32> to vector<8x128xf32>
    %69 = vector.extract_strided_slice %42 {offsets = [0, 128], sizes = [8, 128], strides = [1, 1]} : vector<8x768xf32> to vector<8x128xf32>
    %cst_26 = arith.constant 0.0883883461 : f32
    %70 = vector.broadcast %cst_26 : f32 to vector<8x128xf32>
    %71 = arith.mulf %69, %70 : vector<8x128xf32>
    %72 = arith.truncf %71 : vector<8x128xf32> to vector<8x128xbf16>
    %73 = vector.shape_cast %72 : vector<8x128xbf16> to vector<1x8x128xbf16>
    %74 = vector.extract_strided_slice %42 {offsets = [0, 384], sizes = [8, 128], strides = [1, 1]} : vector<8x768xf32> to vector<8x128xf32>
    %75 = arith.truncf %74 : vector<8x128xf32> to vector<8x128xbf16>
    %76 = vector.shape_cast %75 : vector<8x128xbf16> to vector<1x8x128xbf16>
    %77 = vector.extract_strided_slice %42 {offsets = [0, 640], sizes = [8, 128], strides = [1, 1]} : vector<8x768xf32> to vector<8x128xf32>
    %78 = arith.truncf %77 : vector<8x128xf32> to vector<8x128xbf16>
    %79 = vector.shape_cast %78 : vector<8x128xbf16> to vector<1x8x128xbf16>
    "tpu.trace_start"() <{level = 10 : i32, message = "bqd,bkd->bqk"}> : () -> ()
    %cst_27 = arith.constant dense<0.000000e+00> : vector<1x8x8xf32>
    %80 = tpu.matmul %73, %76, %cst_27 {dimension_numbers = #tpu.dot_dimension_numbers<[2], [2], [1], [1], [0, 0, 0, 1, 1, 1], [0], [0]>} : vector<1x8x128xbf16>, vector<1x8x128xbf16>, vector<1x8x8xf32> -> vector<1x8x8xf32>
    "tpu.trace_stop"() : () -> ()
    %81 = vector.shape_cast %8 : vector<8x8xf32> to vector<1x8x8xf32>
    %82 = arith.addf %80, %81 : vector<1x8x8xf32>
    %cst_28 = arith.constant dense<0xFF800000> : vector<1x8xf32>
    %83 = vector.multi_reduction <maximumf>, %82, %cst_28 [2] : vector<1x8x8xf32> to vector<1x8xf32>
    %84 = vector.shape_cast %83 : vector<1x8xf32> to vector<1x8x1xf32>
    %85 = vector.broadcast %84 : vector<1x8x1xf32> to vector<1x8x8xf32>
    %86 = arith.subf %82, %85 : vector<1x8x8xf32>
    %87 = math.exp %86 : vector<1x8x8xf32>
    %cst_29 = arith.constant dense<0.000000e+00> : vector<1x8xf32>
    %88 = vector.multi_reduction <add>, %87, %cst_29 [2] : vector<1x8x8xf32> to vector<1x8xf32>
    %89 = vector.shape_cast %88 : vector<1x8xf32> to vector<1x8x1xf32>
    %90 = vector.broadcast %89 : vector<1x8x1xf32> to vector<1x8x8xf32>
    %91 = arith.divf %87, %90 : vector<1x8x8xf32>
    %92 = arith.truncf %91 : vector<1x8x8xf32> to vector<1x8x8xbf16>
    "tpu.trace_start"() <{level = 10 : i32, message = "bqk,bkd->bqd"}> : () -> ()
    %cst_30 = arith.constant dense<0.000000e+00> : vector<1x8x128xf32>
    %93 = tpu.matmul %92, %79, %cst_30 {dimension_numbers = #tpu.dot_dimension_numbers<[2], [1], [1], [2], [0, 0, 0, 1, 1, 2], [0], [0]>} : vector<1x8x8xbf16>, vector<1x8x128xbf16>, vector<1x8x128xf32> -> vector<1x8x128xf32>
    "tpu.trace_stop"() : () -> ()
    %94 = vector.shape_cast %93 : vector<1x8x128xf32> to vector<8x128xf32>
    %95 = tpu.concatenate %68, %94 in 1 : vector<8x128xf32>, vector<8x128xf32> -> vector<8x256xf32>
    %96 = arith.truncf %95 : vector<8x256xf32> to vector<8x256xbf16>
    %c0_31 = arith.constant 0 : index
    %c0_32 = arith.constant 0 : index
    %c0_33 = arith.constant 0 : index
    %97 = vector.load %arg6[%c0_31, %c0_32, %c0_33] : memref<2x256x256xbf16, #tpu.memory_space<vmem>>, vector<1x256x256xbf16>
    %98 = vector.shape_cast %97 : vector<1x256x256xbf16> to vector<256x256xbf16>
    %cst_34 = arith.constant dense<0.000000e+00> : vector<8x256xf32>
    %99 = tpu.matmul %96, %98, %cst_34 {dimension_numbers = #tpu.dot_dimension_numbers<[1], [0], [0], [1], [0, 0, 1, 1], [], []>} : vector<8x256xbf16>, vector<256x256xbf16>, vector<8x256xf32> -> vector<8x256xf32>
    %100 = arith.addf %2, %99 : vector<8x256xf32>
    %c0_35 = arith.constant 0 : index
    %c0_36 = arith.constant 0 : index
    %c0_37 = arith.constant 0 : index
    %101 = vector.load %arg7[%c0_35, %c0_36, %c0_37] : memref<2x1x256xf32, #tpu.memory_space<vmem>>, vector<1x1x256xf32>
    %102 = vector.shape_cast %101 : vector<1x1x256xf32> to vector<1x256xf32>
    %103 = vector.broadcast %102 : vector<1x256xf32> to vector<8x256xf32>
    %104 = arith.addf %100, %103 : vector<8x256xf32>
    %c0_38 = arith.constant 0 : index
    %c0_39 = arith.constant 0 : index
    %c0_40 = arith.constant 0 : index
    %105 = vector.load %arg8[%c0_38, %c0_39, %c0_40] : memref<2x1x256xf32, #tpu.memory_space<vmem>>, vector<1x1x256xf32>
    %106 = vector.shape_cast %105 : vector<1x1x256xf32> to vector<1x256xf32>
    %c0_41 = arith.constant 0 : index
    %c0_42 = arith.constant 0 : index
    %c0_43 = arith.constant 0 : index
    %107 = vector.load %arg9[%c0_41, %c0_42, %c0_43] : memref<2x1x256xf32, #tpu.memory_space<vmem>>, vector<1x1x256xf32>
    %108 = vector.shape_cast %107 : vector<1x1x256xf32> to vector<1x256xf32>
    %cst_44 = arith.constant dense<0.000000e+00> : vector<8xf32>
    %109 = vector.multi_reduction <add>, %104, %cst_44 [1] : vector<8x256xf32> to vector<8xf32>
    %110 = vector.shape_cast %109 : vector<8xf32> to vector<8x1xf32>
    %cst_45 = arith.constant 2.560000e+02 : f32
    %111 = vector.broadcast %cst_45 : f32 to vector<8x1xf32>
    %112 = arith.divf %110, %111 : vector<8x1xf32>
    %113 = vector.broadcast %112 : vector<8x1xf32> to vector<8x256xf32>
    %114 = arith.subf %104, %113 : vector<8x256xf32>
    %115 = arith.mulf %114, %114 : vector<8x256xf32>
    %cst_46 = arith.constant dense<0.000000e+00> : vector<8xf32>
    %116 = vector.multi_reduction <add>, %115, %cst_46 [1] : vector<8x256xf32> to vector<8xf32>
    %117 = vector.shape_cast %116 : vector<8xf32> to vector<8x1xf32>
    %cst_47 = arith.constant 2.560000e+02 : f32
    %118 = vector.broadcast %cst_47 : f32 to vector<8x1xf32>
    %119 = arith.divf %117, %118 : vector<8x1xf32>
    %120 = vector.broadcast %112 : vector<8x1xf32> to vector<8x256xf32>
    %121 = arith.subf %104, %120 : vector<8x256xf32>
    %cst_48 = arith.constant 9.99999974E-6 : f32
    %122 = vector.broadcast %cst_48 : f32 to vector<8x1xf32>
    %123 = arith.addf %119, %122 : vector<8x1xf32>
    %124 = math.rsqrt %123 : vector<8x1xf32>
    %125 = vector.broadcast %124 : vector<8x1xf32> to vector<8x256xf32>
    %126 = arith.mulf %121, %125 : vector<8x256xf32>
    %127 = vector.broadcast %106 : vector<1x256xf32> to vector<8x256xf32>
    %128 = arith.mulf %126, %127 : vector<8x256xf32>
    %129 = vector.broadcast %108 : vector<1x256xf32> to vector<8x256xf32>
    %130 = arith.addf %128, %129 : vector<8x256xf32>
    %131 = arith.truncf %130 : vector<8x256xf32> to vector<8x256xbf16>
    %c0_49 = arith.constant 0 : index
    %c0_50 = arith.constant 0 : index
    %c0_51 = arith.constant 0 : index
    %132 = vector.load %arg10[%c0_49, %c0_50, %c0_51] : memref<2x256x1024xbf16, #tpu.memory_space<vmem>>, vector<1x256x1024xbf16>
    %133 = vector.shape_cast %132 : vector<1x256x1024xbf16> to vector<256x1024xbf16>
    %cst_52 = arith.constant dense<0.000000e+00> : vector<8x1024xf32>
    %134 = tpu.matmul %131, %133, %cst_52 {dimension_numbers = #tpu.dot_dimension_numbers<[1], [0], [0], [1], [0, 0, 1, 1], [], []>} : vector<8x256xbf16>, vector<256x1024xbf16>, vector<8x1024xf32> -> vector<8x1024xf32>
    %c0_53 = arith.constant 0 : index
    %c0_54 = arith.constant 0 : index
    %c0_55 = arith.constant 0 : index
    %135 = vector.load %arg11[%c0_53, %c0_54, %c0_55] : memref<2x1x1024xf32, #tpu.memory_space<vmem>>, vector<1x1x1024xf32>
    %136 = vector.shape_cast %135 : vector<1x1x1024xf32> to vector<1x1024xf32>
    %137 = vector.broadcast %136 : vector<1x1024xf32> to vector<8x1024xf32>
    %138 = arith.addf %134, %137 : vector<8x1024xf32>
    %cst_56 = arith.constant 5.000000e-01 : f32
    %139 = vector.broadcast %cst_56 : f32 to vector<8x1024xf32>
    %140 = arith.mulf %139, %138 : vector<8x1024xf32>
    %141 = arith.mulf %138, %138 : vector<8x1024xf32>
    %142 = arith.mulf %138, %141 : vector<8x1024xf32>
    %cst_57 = arith.constant 4.471500e-02 : f32
    %143 = vector.broadcast %cst_57 : f32 to vector<8x1024xf32>
    %144 = arith.mulf %143, %142 : vector<8x1024xf32>
    %145 = arith.addf %138, %144 : vector<8x1024xf32>
    %cst_58 = arith.constant 0.797884583 : f32
    %146 = vector.broadcast %cst_58 : f32 to vector<8x1024xf32>
    %147 = arith.mulf %146, %145 : vector<8x1024xf32>
    %148 = math.tanh %147 : vector<8x1024xf32>
    %cst_59 = arith.constant 1.000000e+00 : f32
    %149 = vector.broadcast %cst_59 : f32 to vector<8x1024xf32>
    %150 = arith.addf %149, %148 : vector<8x1024xf32>
    %151 = arith.mulf %140, %150 : vector<8x1024xf32>
    %152 = arith.truncf %151 : vector<8x1024xf32> to vector<8x1024xbf16>
    %c0_60 = arith.constant 0 : index
    %c0_61 = arith.constant 0 : index
    %c0_62 = arith.constant 0 : index
    %153 = vector.load %arg12[%c0_60, %c0_61, %c0_62] : memref<2x1024x256xbf16, #tpu.memory_space<vmem>>, vector<1x1024x256xbf16>
    %154 = vector.shape_cast %153 : vector<1x1024x256xbf16> to vector<1024x256xbf16>
    %cst_63 = arith.constant dense<0.000000e+00> : vector<8x256xf32>
    %155 = tpu.matmul %152, %154, %cst_63 {dimension_numbers = #tpu.dot_dimension_numbers<[1], [0], [0], [1], [0, 0, 1, 1], [], []>} : vector<8x1024xbf16>, vector<1024x256xbf16>, vector<8x256xf32> -> vector<8x256xf32>
    %156 = arith.addf %104, %155 : vector<8x256xf32>
    %c0_64 = arith.constant 0 : index
    %c0_65 = arith.constant 0 : index
    %c0_66 = arith.constant 0 : index
    %157 = vector.load %arg13[%c0_64, %c0_65, %c0_66] : memref<2x1x256xf32, #tpu.memory_space<vmem>>, vector<1x1x256xf32>
    %158 = vector.shape_cast %157 : vector<1x1x256xf32> to vector<1x256xf32>
    %159 = vector.broadcast %158 : vector<1x256xf32> to vector<8x256xf32>
    %160 = arith.addf %156, %159 : vector<8x256xf32>
    %c1 = arith.constant 1 : index
    %c0_67 = arith.constant 0 : index
    %c0_68 = arith.constant 0 : index
    %161 = vector.load %arg2[%c1, %c0_67, %c0_68] : memref<2x1x256xf32, #tpu.memory_space<vmem>>, vector<1x1x256xf32>
    %162 = vector.shape_cast %161 : vector<1x1x256xf32> to vector<1x256xf32>
    %c1_69 = arith.constant 1 : index
    %c0_70 = arith.constant 0 : index
    %c0_71 = arith.constant 0 : index
    %163 = vector.load %arg3[%c1_69, %c0_70, %c0_71] : memref<2x1x256xf32, #tpu.memory_space<vmem>>, vector<1x1x256xf32>
    %164 = vector.shape_cast %163 : vector<1x1x256xf32> to vector<1x256xf32>
    %cst_72 = arith.constant dense<0.000000e+00> : vector<8xf32>
    %165 = vector.multi_reduction <add>, %160, %cst_72 [1] : vector<8x256xf32> to vector<8xf32>
    %166 = vector.shape_cast %165 : vector<8xf32> to vector<8x1xf32>
    %cst_73 = arith.constant 2.560000e+02 : f32
    %167 = vector.broadcast %cst_73 : f32 to vector<8x1xf32>
    %168 = arith.divf %166, %167 : vector<8x1xf32>
    %169 = vector.broadcast %168 : vector<8x1xf32> to vector<8x256xf32>
    %170 = arith.subf %160, %169 : vector<8x256xf32>
    %171 = arith.mulf %170, %170 : vector<8x256xf32>
    %cst_74 = arith.constant dense<0.000000e+00> : vector<8xf32>
    %172 = vector.multi_reduction <add>, %171, %cst_74 [1] : vector<8x256xf32> to vector<8xf32>
    %173 = vector.shape_cast %172 : vector<8xf32> to vector<8x1xf32>
    %cst_75 = arith.constant 2.560000e+02 : f32
    %174 = vector.broadcast %cst_75 : f32 to vector<8x1xf32>
    %175 = arith.divf %173, %174 : vector<8x1xf32>
    %176 = vector.broadcast %168 : vector<8x1xf32> to vector<8x256xf32>
    %177 = arith.subf %160, %176 : vector<8x256xf32>
    %cst_76 = arith.constant 9.99999974E-6 : f32
    %178 = vector.broadcast %cst_76 : f32 to vector<8x1xf32>
    %179 = arith.addf %175, %178 : vector<8x1xf32>
    %180 = math.rsqrt %179 : vector<8x1xf32>
    %181 = vector.broadcast %180 : vector<8x1xf32> to vector<8x256xf32>
    %182 = arith.mulf %177, %181 : vector<8x256xf32>
    %183 = vector.broadcast %162 : vector<1x256xf32> to vector<8x256xf32>
    %184 = arith.mulf %182, %183 : vector<8x256xf32>
    %185 = vector.broadcast %164 : vector<1x256xf32> to vector<8x256xf32>
    %186 = arith.addf %184, %185 : vector<8x256xf32>
    %187 = arith.truncf %186 : vector<8x256xf32> to vector<8x256xbf16>
    %c1_77 = arith.constant 1 : index
    %c0_78 = arith.constant 0 : index
    %c0_79 = arith.constant 0 : index
    %188 = vector.load %arg4[%c1_77, %c0_78, %c0_79] : memref<2x256x768xbf16, #tpu.memory_space<vmem>>, vector<1x256x768xbf16>
    %189 = vector.shape_cast %188 : vector<1x256x768xbf16> to vector<256x768xbf16>
    %cst_80 = arith.constant dense<0.000000e+00> : vector<8x768xf32>
    %190 = tpu.matmul %187, %189, %cst_80 {dimension_numbers = #tpu.dot_dimension_numbers<[1], [0], [0], [1], [0, 0, 1, 1], [], []>} : vector<8x256xbf16>, vector<256x768xbf16>, vector<8x768xf32> -> vector<8x768xf32>
    %c1_81 = arith.constant 1 : index
    %c0_82 = arith.constant 0 : index
    %c0_83 = arith.constant 0 : index
    %191 = vector.load %arg5[%c1_81, %c0_82, %c0_83] : memref<2x1x768xf32, #tpu.memory_space<vmem>>, vector<1x1x768xf32>
    %192 = vector.shape_cast %191 : vector<1x1x768xf32> to vector<1x768xf32>
    %193 = vector.broadcast %192 : vector<1x768xf32> to vector<8x768xf32>
    %194 = arith.addf %190, %193 : vector<8x768xf32>
    %195 = vector.extract_strided_slice %194 {offsets = [0, 0], sizes = [8, 128], strides = [1, 1]} : vector<8x768xf32> to vector<8x128xf32>
    %cst_84 = arith.constant 0.0883883461 : f32
    %196 = vector.broadcast %cst_84 : f32 to vector<8x128xf32>
    %197 = arith.mulf %195, %196 : vector<8x128xf32>
    %198 = arith.truncf %197 : vector<8x128xf32> to vector<8x128xbf16>
    %199 = vector.shape_cast %198 : vector<8x128xbf16> to vector<1x8x128xbf16>
    %200 = vector.extract_strided_slice %194 {offsets = [0, 256], sizes = [8, 128], strides = [1, 1]} : vector<8x768xf32> to vector<8x128xf32>
    %201 = arith.truncf %200 : vector<8x128xf32> to vector<8x128xbf16>
    %202 = vector.shape_cast %201 : vector<8x128xbf16> to vector<1x8x128xbf16>
    %203 = vector.extract_strided_slice %194 {offsets = [0, 512], sizes = [8, 128], strides = [1, 1]} : vector<8x768xf32> to vector<8x128xf32>
    %204 = arith.truncf %203 : vector<8x128xf32> to vector<8x128xbf16>
    %205 = vector.shape_cast %204 : vector<8x128xbf16> to vector<1x8x128xbf16>
    "tpu.trace_start"() <{level = 10 : i32, message = "bqd,bkd->bqk"}> : () -> ()
    %cst_85 = arith.constant dense<0.000000e+00> : vector<1x8x8xf32>
    %206 = tpu.matmul %199, %202, %cst_85 {dimension_numbers = #tpu.dot_dimension_numbers<[2], [2], [1], [1], [0, 0, 0, 1, 1, 1], [0], [0]>} : vector<1x8x128xbf16>, vector<1x8x128xbf16>, vector<1x8x8xf32> -> vector<1x8x8xf32>
    "tpu.trace_stop"() : () -> ()
    %207 = vector.shape_cast %8 : vector<8x8xf32> to vector<1x8x8xf32>
    %208 = arith.addf %206, %207 : vector<1x8x8xf32>
    %cst_86 = arith.constant dense<0xFF800000> : vector<1x8xf32>
    %209 = vector.multi_reduction <maximumf>, %208, %cst_86 [2] : vector<1x8x8xf32> to vector<1x8xf32>
    %210 = vector.shape_cast %209 : vector<1x8xf32> to vector<1x8x1xf32>
    %211 = vector.broadcast %210 : vector<1x8x1xf32> to vector<1x8x8xf32>
    %212 = arith.subf %208, %211 : vector<1x8x8xf32>
    %213 = math.exp %212 : vector<1x8x8xf32>
    %cst_87 = arith.constant dense<0.000000e+00> : vector<1x8xf32>
    %214 = vector.multi_reduction <add>, %213, %cst_87 [2] : vector<1x8x8xf32> to vector<1x8xf32>
    %215 = vector.shape_cast %214 : vector<1x8xf32> to vector<1x8x1xf32>
    %216 = vector.broadcast %215 : vector<1x8x1xf32> to vector<1x8x8xf32>
    %217 = arith.divf %213, %216 : vector<1x8x8xf32>
    %218 = arith.truncf %217 : vector<1x8x8xf32> to vector<1x8x8xbf16>
    "tpu.trace_start"() <{level = 10 : i32, message = "bqk,bkd->bqd"}> : () -> ()
    %cst_88 = arith.constant dense<0.000000e+00> : vector<1x8x128xf32>
    %219 = tpu.matmul %218, %205, %cst_88 {dimension_numbers = #tpu.dot_dimension_numbers<[2], [1], [1], [2], [0, 0, 0, 1, 1, 2], [0], [0]>} : vector<1x8x8xbf16>, vector<1x8x128xbf16>, vector<1x8x128xf32> -> vector<1x8x128xf32>
    "tpu.trace_stop"() : () -> ()
    %220 = vector.shape_cast %219 : vector<1x8x128xf32> to vector<8x128xf32>
    %221 = vector.extract_strided_slice %194 {offsets = [0, 128], sizes = [8, 128], strides = [1, 1]} : vector<8x768xf32> to vector<8x128xf32>
    %cst_89 = arith.constant 0.0883883461 : f32
    %222 = vector.broadcast %cst_89 : f32 to vector<8x128xf32>
    %223 = arith.mulf %221, %222 : vector<8x128xf32>
    %224 = arith.truncf %223 : vector<8x128xf32> to vector<8x128xbf16>
    %225 = vector.shape_cast %224 : vector<8x128xbf16> to vector<1x8x128xbf16>
    %226 = vector.extract_strided_slice %194 {offsets = [0, 384], sizes = [8, 128], strides = [1, 1]} : vector<8x768xf32> to vector<8x128xf32>
    %227 = arith.truncf %226 : vector<8x128xf32> to vector<8x128xbf16>
    %228 = vector.shape_cast %227 : vector<8x128xbf16> to vector<1x8x128xbf16>
    %229 = vector.extract_strided_slice %194 {offsets = [0, 640], sizes = [8, 128], strides = [1, 1]} : vector<8x768xf32> to vector<8x128xf32>
    %230 = arith.truncf %229 : vector<8x128xf32> to vector<8x128xbf16>
    %231 = vector.shape_cast %230 : vector<8x128xbf16> to vector<1x8x128xbf16>
    "tpu.trace_start"() <{level = 10 : i32, message = "bqd,bkd->bqk"}> : () -> ()
    %cst_90 = arith.constant dense<0.000000e+00> : vector<1x8x8xf32>
    %232 = tpu.matmul %225, %228, %cst_90 {dimension_numbers = #tpu.dot_dimension_numbers<[2], [2], [1], [1], [0, 0, 0, 1, 1, 1], [0], [0]>} : vector<1x8x128xbf16>, vector<1x8x128xbf16>, vector<1x8x8xf32> -> vector<1x8x8xf32>
    "tpu.trace_stop"() : () -> ()
    %233 = vector.shape_cast %8 : vector<8x8xf32> to vector<1x8x8xf32>
    %234 = arith.addf %232, %233 : vector<1x8x8xf32>
    %cst_91 = arith.constant dense<0xFF800000> : vector<1x8xf32>
    %235 = vector.multi_reduction <maximumf>, %234, %cst_91 [2] : vector<1x8x8xf32> to vector<1x8xf32>
    %236 = vector.shape_cast %235 : vector<1x8xf32> to vector<1x8x1xf32>
    %237 = vector.broadcast %236 : vector<1x8x1xf32> to vector<1x8x8xf32>
    %238 = arith.subf %234, %237 : vector<1x8x8xf32>
    %239 = math.exp %238 : vector<1x8x8xf32>
    %cst_92 = arith.constant dense<0.000000e+00> : vector<1x8xf32>
    %240 = vector.multi_reduction <add>, %239, %cst_92 [2] : vector<1x8x8xf32> to vector<1x8xf32>
    %241 = vector.shape_cast %240 : vector<1x8xf32> to vector<1x8x1xf32>
    %242 = vector.broadcast %241 : vector<1x8x1xf32> to vector<1x8x8xf32>
    %243 = arith.divf %239, %242 : vector<1x8x8xf32>
    %244 = arith.truncf %243 : vector<1x8x8xf32> to vector<1x8x8xbf16>
    "tpu.trace_start"() <{level = 10 : i32, message = "bqk,bkd->bqd"}> : () -> ()
    %cst_93 = arith.constant dense<0.000000e+00> : vector<1x8x128xf32>
    %245 = tpu.matmul %244, %231, %cst_93 {dimension_numbers = #tpu.dot_dimension_numbers<[2], [1], [1], [2], [0, 0, 0, 1, 1, 2], [0], [0]>} : vector<1x8x8xbf16>, vector<1x8x128xbf16>, vector<1x8x128xf32> -> vector<1x8x128xf32>
    "tpu.trace_stop"() : () -> ()
    %246 = vector.shape_cast %245 : vector<1x8x128xf32> to vector<8x128xf32>
    %247 = tpu.concatenate %220, %246 in 1 : vector<8x128xf32>, vector<8x128xf32> -> vector<8x256xf32>
    %248 = arith.truncf %247 : vector<8x256xf32> to vector<8x256xbf16>
    %c1_94 = arith.constant 1 : index
    %c0_95 = arith.constant 0 : index
    %c0_96 = arith.constant 0 : index
    %249 = vector.load %arg6[%c1_94, %c0_95, %c0_96] : memref<2x256x256xbf16, #tpu.memory_space<vmem>>, vector<1x256x256xbf16>
    %250 = vector.shape_cast %249 : vector<1x256x256xbf16> to vector<256x256xbf16>
    %cst_97 = arith.constant dense<0.000000e+00> : vector<8x256xf32>
    %251 = tpu.matmul %248, %250, %cst_97 {dimension_numbers = #tpu.dot_dimension_numbers<[1], [0], [0], [1], [0, 0, 1, 1], [], []>} : vector<8x256xbf16>, vector<256x256xbf16>, vector<8x256xf32> -> vector<8x256xf32>
    %252 = arith.addf %160, %251 : vector<8x256xf32>
    %c1_98 = arith.constant 1 : index
    %c0_99 = arith.constant 0 : index
    %c0_100 = arith.constant 0 : index
    %253 = vector.load %arg7[%c1_98, %c0_99, %c0_100] : memref<2x1x256xf32, #tpu.memory_space<vmem>>, vector<1x1x256xf32>
    %254 = vector.shape_cast %253 : vector<1x1x256xf32> to vector<1x256xf32>
    %255 = vector.broadcast %254 : vector<1x256xf32> to vector<8x256xf32>
    %256 = arith.addf %252, %255 : vector<8x256xf32>
    %c1_101 = arith.constant 1 : index
    %c0_102 = arith.constant 0 : index
    %c0_103 = arith.constant 0 : index
    %257 = vector.load %arg8[%c1_101, %c0_102, %c0_103] : memref<2x1x256xf32, #tpu.memory_space<vmem>>, vector<1x1x256xf32>
    %258 = vector.shape_cast %257 : vector<1x1x256xf32> to vector<1x256xf32>
    %c1_104 = arith.constant 1 : index
    %c0_105 = arith.constant 0 : index
    %c0_106 = arith.constant 0 : index
    %259 = vector.load %arg9[%c1_104, %c0_105, %c0_106] : memref<2x1x256xf32, #tpu.memory_space<vmem>>, vector<1x1x256xf32>
    %260 = vector.shape_cast %259 : vector<1x1x256xf32> to vector<1x256xf32>
    %cst_107 = arith.constant dense<0.000000e+00> : vector<8xf32>
    %261 = vector.multi_reduction <add>, %256, %cst_107 [1] : vector<8x256xf32> to vector<8xf32>
    %262 = vector.shape_cast %261 : vector<8xf32> to vector<8x1xf32>
    %cst_108 = arith.constant 2.560000e+02 : f32
    %263 = vector.broadcast %cst_108 : f32 to vector<8x1xf32>
    %264 = arith.divf %262, %263 : vector<8x1xf32>
    %265 = vector.broadcast %264 : vector<8x1xf32> to vector<8x256xf32>
    %266 = arith.subf %256, %265 : vector<8x256xf32>
    %267 = arith.mulf %266, %266 : vector<8x256xf32>
    %cst_109 = arith.constant dense<0.000000e+00> : vector<8xf32>
    %268 = vector.multi_reduction <add>, %267, %cst_109 [1] : vector<8x256xf32> to vector<8xf32>
    %269 = vector.shape_cast %268 : vector<8xf32> to vector<8x1xf32>
    %cst_110 = arith.constant 2.560000e+02 : f32
    %270 = vector.broadcast %cst_110 : f32 to vector<8x1xf32>
    %271 = arith.divf %269, %270 : vector<8x1xf32>
    %272 = vector.broadcast %264 : vector<8x1xf32> to vector<8x256xf32>
    %273 = arith.subf %256, %272 : vector<8x256xf32>
    %cst_111 = arith.constant 9.99999974E-6 : f32
    %274 = vector.broadcast %cst_111 : f32 to vector<8x1xf32>
    %275 = arith.addf %271, %274 : vector<8x1xf32>
    %276 = math.rsqrt %275 : vector<8x1xf32>
    %277 = vector.broadcast %276 : vector<8x1xf32> to vector<8x256xf32>
    %278 = arith.mulf %273, %277 : vector<8x256xf32>
    %279 = vector.broadcast %258 : vector<1x256xf32> to vector<8x256xf32>
    %280 = arith.mulf %278, %279 : vector<8x256xf32>
    %281 = vector.broadcast %260 : vector<1x256xf32> to vector<8x256xf32>
    %282 = arith.addf %280, %281 : vector<8x256xf32>
    %283 = arith.truncf %282 : vector<8x256xf32> to vector<8x256xbf16>
    %c1_112 = arith.constant 1 : index
    %c0_113 = arith.constant 0 : index
    %c0_114 = arith.constant 0 : index
    %284 = vector.load %arg10[%c1_112, %c0_113, %c0_114] : memref<2x256x1024xbf16, #tpu.memory_space<vmem>>, vector<1x256x1024xbf16>
    %285 = vector.shape_cast %284 : vector<1x256x1024xbf16> to vector<256x1024xbf16>
    %cst_115 = arith.constant dense<0.000000e+00> : vector<8x1024xf32>
    %286 = tpu.matmul %283, %285, %cst_115 {dimension_numbers = #tpu.dot_dimension_numbers<[1], [0], [0], [1], [0, 0, 1, 1], [], []>} : vector<8x256xbf16>, vector<256x1024xbf16>, vector<8x1024xf32> -> vector<8x1024xf32>
    %c1_116 = arith.constant 1 : index
    %c0_117 = arith.constant 0 : index
    %c0_118 = arith.constant 0 : index
    %287 = vector.load %arg11[%c1_116, %c0_117, %c0_118] : memref<2x1x1024xf32, #tpu.memory_space<vmem>>, vector<1x1x1024xf32>
    %288 = vector.shape_cast %287 : vector<1x1x1024xf32> to vector<1x1024xf32>
    %289 = vector.broadcast %288 : vector<1x1024xf32> to vector<8x1024xf32>
    %290 = arith.addf %286, %289 : vector<8x1024xf32>
    %cst_119 = arith.constant 5.000000e-01 : f32
    %291 = vector.broadcast %cst_119 : f32 to vector<8x1024xf32>
    %292 = arith.mulf %291, %290 : vector<8x1024xf32>
    %293 = arith.mulf %290, %290 : vector<8x1024xf32>
    %294 = arith.mulf %290, %293 : vector<8x1024xf32>
    %cst_120 = arith.constant 4.471500e-02 : f32
    %295 = vector.broadcast %cst_120 : f32 to vector<8x1024xf32>
    %296 = arith.mulf %295, %294 : vector<8x1024xf32>
    %297 = arith.addf %290, %296 : vector<8x1024xf32>
    %cst_121 = arith.constant 0.797884583 : f32
    %298 = vector.broadcast %cst_121 : f32 to vector<8x1024xf32>
    %299 = arith.mulf %298, %297 : vector<8x1024xf32>
    %300 = math.tanh %299 : vector<8x1024xf32>
    %cst_122 = arith.constant 1.000000e+00 : f32
    %301 = vector.broadcast %cst_122 : f32 to vector<8x1024xf32>
    %302 = arith.addf %301, %300 : vector<8x1024xf32>
    %303 = arith.mulf %292, %302 : vector<8x1024xf32>
    %304 = arith.truncf %303 : vector<8x1024xf32> to vector<8x1024xbf16>
    %c1_123 = arith.constant 1 : index
    %c0_124 = arith.constant 0 : index
    %c0_125 = arith.constant 0 : index
    %305 = vector.load %arg12[%c1_123, %c0_124, %c0_125] : memref<2x1024x256xbf16, #tpu.memory_space<vmem>>, vector<1x1024x256xbf16>
    %306 = vector.shape_cast %305 : vector<1x1024x256xbf16> to vector<1024x256xbf16>
    %cst_126 = arith.constant dense<0.000000e+00> : vector<8x256xf32>
    %307 = tpu.matmul %304, %306, %cst_126 {dimension_numbers = #tpu.dot_dimension_numbers<[1], [0], [0], [1], [0, 0, 1, 1], [], []>} : vector<8x1024xbf16>, vector<1024x256xbf16>, vector<8x256xf32> -> vector<8x256xf32>
    %308 = arith.addf %256, %307 : vector<8x256xf32>
    %c1_127 = arith.constant 1 : index
    %c0_128 = arith.constant 0 : index
    %c0_129 = arith.constant 0 : index
    %309 = vector.load %arg13[%c1_127, %c0_128, %c0_129] : memref<2x1x256xf32, #tpu.memory_space<vmem>>, vector<1x1x256xf32>
    %310 = vector.shape_cast %309 : vector<1x1x256xf32> to vector<1x256xf32>
    %311 = vector.broadcast %310 : vector<1x256xf32> to vector<8x256xf32>
    %312 = arith.addf %308, %311 : vector<8x256xf32>
    %c0_130 = arith.constant 0 : index
    %c0_131 = arith.constant 0 : index
    %313 = vector.load %arg14[%c0_130, %c0_131] : memref<1x256xf32, #tpu.memory_space<vmem>>, vector<1x256xf32>
    %c0_132 = arith.constant 0 : index
    %c0_133 = arith.constant 0 : index
    %314 = vector.load %arg15[%c0_132, %c0_133] : memref<1x256xf32, #tpu.memory_space<vmem>>, vector<1x256xf32>
    %cst_134 = arith.constant dense<0.000000e+00> : vector<8xf32>
    %315 = vector.multi_reduction <add>, %312, %cst_134 [1] : vector<8x256xf32> to vector<8xf32>
    %316 = vector.shape_cast %315 : vector<8xf32> to vector<8x1xf32>
    %cst_135 = arith.constant 2.560000e+02 : f32
    %317 = vector.broadcast %cst_135 : f32 to vector<8x1xf32>
    %318 = arith.divf %316, %317 : vector<8x1xf32>
    %319 = vector.broadcast %318 : vector<8x1xf32> to vector<8x256xf32>
    %320 = arith.subf %312, %319 : vector<8x256xf32>
    %321 = arith.mulf %320, %320 : vector<8x256xf32>
    %cst_136 = arith.constant dense<0.000000e+00> : vector<8xf32>
    %322 = vector.multi_reduction <add>, %321, %cst_136 [1] : vector<8x256xf32> to vector<8xf32>
    %323 = vector.shape_cast %322 : vector<8xf32> to vector<8x1xf32>
    %cst_137 = arith.constant 2.560000e+02 : f32
    %324 = vector.broadcast %cst_137 : f32 to vector<8x1xf32>
    %325 = arith.divf %323, %324 : vector<8x1xf32>
    %326 = vector.broadcast %318 : vector<8x1xf32> to vector<8x256xf32>
    %327 = arith.subf %312, %326 : vector<8x256xf32>
    %cst_138 = arith.constant 9.99999974E-6 : f32
    %328 = vector.broadcast %cst_138 : f32 to vector<8x1xf32>
    %329 = arith.addf %325, %328 : vector<8x1xf32>
    %330 = math.rsqrt %329 : vector<8x1xf32>
    %331 = vector.broadcast %330 : vector<8x1xf32> to vector<8x256xf32>
    %332 = arith.mulf %327, %331 : vector<8x256xf32>
    %333 = vector.broadcast %313 : vector<1x256xf32> to vector<8x256xf32>
    %334 = arith.mulf %332, %333 : vector<8x256xf32>
    %335 = vector.broadcast %314 : vector<1x256xf32> to vector<8x256xf32>
    %336 = arith.addf %334, %335 : vector<8x256xf32>
    %337 = arith.truncf %336 : vector<8x256xf32> to vector<8x256xbf16>
    %c0_139 = arith.constant 0 : index
    %c0_140 = arith.constant 0 : index
    %338 = vector.load %arg16[%c0_139, %c0_140] : memref<256x384xbf16, #tpu.memory_space<vmem>>, vector<256x384xbf16>
    %cst_141 = arith.constant dense<0.000000e+00> : vector<8x384xf32>
    %339 = tpu.matmul %337, %338, %cst_141 {dimension_numbers = #tpu.dot_dimension_numbers<[1], [0], [0], [1], [0, 0, 1, 1], [], []>} : vector<8x256xbf16>, vector<256x384xbf16>, vector<8x384xf32> -> vector<8x384xf32>
    %340 = vector.shape_cast %339 : vector<8x384xf32> to vector<1x8x384xf32>
    %c0_142 = arith.constant 0 : index
    %c0_143 = arith.constant 0 : index
    %c0_144 = arith.constant 0 : index
    %341 = vector.load %arg17[%c0_142, %c0_143, %c0_144] : memref<1x8x384xf32, #tpu.memory_space<vmem>>, vector<1x8x384xf32>
    tpu.vector_store %arg17[%c0_142, %c0_143, %c0_144], %340 {strides = array<i32>} : memref<1x8x384xf32, #tpu.memory_space<vmem>>, vector<1x8x384xf32>,
    return
  }
  func.func @transform_0(%arg0: i32) -> (i32, i32, i32) {
    %c0_i32 = arith.constant 0 : i32
    %c0_i32_0 = arith.constant 0 : i32
    %c0_i32_1 = arith.constant 0 : i32
    return %arg0, %c0_i32, %c0_i32_0 : i32, i32, i32
  }
  func.func @transform_1(%arg0: i32) -> (i32, i32, i32) {
    %c0_i32 = arith.constant 0 : i32
    %c0_i32_0 = arith.constant 0 : i32
    %c0_i32_1 = arith.constant 0 : i32
    %c0_i32_2 = arith.constant 0 : i32
    return %c0_i32, %c0_i32_0, %c0_i32_1 : i32, i32, i32
  }
  func.func @transform_2(%arg0: i32) -> (i32, i32, i32) {
    %c0_i32 = arith.constant 0 : i32
    %c0_i32_0 = arith.constant 0 : i32
    %c0_i32_1 = arith.constant 0 : i32
    %c0_i32_2 = arith.constant 0 : i32
    return %c0_i32, %c0_i32_0, %c0_i32_1 : i32, i32, i32
  }
  func.func @transform_3(%arg0: i32) -> (i32, i32, i32) {
    %c0_i32 = arith.constant 0 : i32
    %c0_i32_0 = arith.constant 0 : i32
    %c0_i32_1 = arith.constant 0 : i32
    %c0_i32_2 = arith.constant 0 : i32
    return %c0_i32, %c0_i32_0, %c0_i32_1 : i32, i32, i32
  }
  func.func @transform_4(%arg0: i32) -> (i32, i32, i32) {
    %c0_i32 = arith.constant 0 : i32
    %c0_i32_0 = arith.constant 0 : i32
    %c0_i32_1 = arith.constant 0 : i32
    %c0_i32_2 = arith.constant 0 : i32
    return %c0_i32, %c0_i32_0, %c0_i32_1 : i32, i32, i32
  }
  func.func @transform_5(%arg0: i32) -> (i32, i32, i32) {
    %c0_i32 = arith.constant 0 : i32
    %c0_i32_0 = arith.constant 0 : i32
    %c0_i32_1 = arith.constant 0 : i32
    %c0_i32_2 = arith.constant 0 : i32
    return %c0_i32, %c0_i32_0, %c0_i32_1 : i32, i32, i32
  }
  func.func @transform_6(%arg0: i32) -> (i32, i32, i32) {
    %c0_i32 = arith.constant 0 : i32
    %c0_i32_0 = arith.constant 0 : i32
    %c0_i32_1 = arith.constant 0 : i32
    %c0_i32_2 = arith.constant 0 : i32
    return %c0_i32, %c0_i32_0, %c0_i32_1 : i32, i32, i32
  }
  func.func @transform_7(%arg0: i32) -> (i32, i32, i32) {
    %c0_i32 = arith.constant 0 : i32
    %c0_i32_0 = arith.constant 0 : i32
    %c0_i32_1 = arith.constant 0 : i32
    %c0_i32_2 = arith.constant 0 : i32
    return %c0_i32, %c0_i32_0, %c0_i32_1 : i32, i32, i32
  }
  func.func @transform_8(%arg0: i32) -> (i32, i32, i32) {
    %c0_i32 = arith.constant 0 : i32
    %c0_i32_0 = arith.constant 0 : i32
    %c0_i32_1 = arith.constant 0 : i32
    %c0_i32_2 = arith.constant 0 : i32
    return %c0_i32, %c0_i32_0, %c0_i32_1 : i32, i32, i32
  }
  func.func @transform_9(%arg0: i32) -> (i32, i32, i32) {
    %c0_i32 = arith.constant 0 : i32
    %c0_i32_0 = arith.constant 0 : i32
    %c0_i32_1 = arith.constant 0 : i32
    %c0_i32_2 = arith.constant 0 : i32
    return %c0_i32, %c0_i32_0, %c0_i32_1 : i32, i32, i32
  }
  func.func @transform_10(%arg0: i32) -> (i32, i32, i32) {
    %c0_i32 = arith.constant 0 : i32
    %c0_i32_0 = arith.constant 0 : i32
    %c0_i32_1 = arith.constant 0 : i32
    %c0_i32_2 = arith.constant 0 : i32
    return %c0_i32, %c0_i32_0, %c0_i32_1 : i32, i32, i32
  }
  func.func @transform_11(%arg0: i32) -> (i32, i32, i32) {
    %c0_i32 = arith.constant 0 : i32
    %c0_i32_0 = arith.constant 0 : i32
    %c0_i32_1 = arith.constant 0 : i32
    %c0_i32_2 = arith.constant 0 : i32
    return %c0_i32, %c0_i32_0, %c0_i32_1 : i32, i32, i32
  }
  func.func @transform_12(%arg0: i32) -> (i32, i32, i32) {
    %c0_i32 = arith.constant 0 : i32
    %c0_i32_0 = arith.constant 0 : i32
    %c0_i32_1 = arith.constant 0 : i32
    %c0_i32_2 = arith.constant 0 : i32
    return %c0_i32, %c0_i32_0, %c0_i32_1 : i32, i32, i32
  }
  func.func @transform_13(%arg0: i32) -> (i32, i32) {
    %c0_i32 = arith.constant 0 : i32
    %c0_i32_0 = arith.constant 0 : i32
    %c0_i32_1 = arith.constant 0 : i32
    return %c0_i32, %c0_i32_0 : i32, i32
  }
  func.func @transform_14(%arg0: i32) -> (i32, i32) {
    %c0_i32 = arith.constant 0 : i32
    %c0_i32_0 = arith.constant 0 : i32
    %c0_i32_1 = arith.constant 0 : i32
    return %c0_i32, %c0_i32_0 : i32, i32
  }
  func.func @transform_15(%arg0: i32) -> (i32, i32) {
    %c0_i32 = arith.constant 0 : i32
    %c0_i32_0 = arith.constant 0 : i32
    %c0_i32_1 = arith.constant 0 : i32
    return %c0_i32, %c0_i32_0 : i32, i32
  }
  func.func @transform_16(%arg0: i32) -> (i32, i32, i32) {
    %c0_i32 = arith.constant 0 : i32
    %c0_i32_0 = arith.constant 0 : i32
    %c0_i32_1 = arith.constant 0 : i32
    return %arg0, %c0_i32, %c0_i32_0 : i32, i32, i32
  }
}

</mosaic_0001>

<llo_original>
// kernel: gpt2_forward.1
$region0: #{gpt2_forward.1}
  #allocation0 [shape = 'u32[]', space=smem, size = 0x4, offset = 0x4, fixed_abs, tag = 'smem constant byte address 0x4 - core index']
  #allocation1 [shape = 'u32[144,128]{1,0:T(1,128)}', space=vmem, size = 0x12000, scoped, tag = 'internal scratch']
  %s0 = inlined_call_operand.vmem [shape: bf16[2,8,256], index: 0, kind: input, shape index: {}]
  %s1 = inlined_call_operand.vmem [shape: f32[2,1,256], index: 1, kind: input, shape index: {}]
  %s2 = inlined_call_operand.vmem [shape: f32[2,1,256], index: 2, kind: input, shape index: {}]
  %s3 = inlined_call_operand.hbm [shape: bf16[2,256,768], index: 3, kind: input, shape index: {}]
  %s4 = inlined_call_operand.vmem [shape: f32[2,1,768], index: 4, kind: input, shape index: {}]
  %s5 = inlined_call_operand.hbm [shape: bf16[2,256,256], index: 5, kind: input, shape index: {}]
  %s6 = inlined_call_operand.vmem [shape: f32[2,1,256], index: 6, kind: input, shape index: {}]
  %s7 = inlined_call_operand.vmem [shape: f32[2,1,256], index: 7, kind: input, shape index: {}]
  %s8 = inlined_call_operand.vmem [shape: f32[2,1,256], index: 8, kind: input, shape index: {}]
  %s9 = inlined_call_operand.hbm [shape: bf16[2,256,1024], index: 9, kind: input, shape index: {}]
  %s10 = inlined_call_operand.vmem [shape: f32[2,1,1024], index: 10, kind: input, shape index: {}]
  %s11 = inlined_call_operand.hbm [shape: bf16[2,1024,256], index: 11, kind: input, shape index: {}]
  %s12 = inlined_call_operand.vmem [shape: f32[2,1,256], index: 12, kind: input, shape index: {}]
  %s13 = inlined_call_operand.vmem [shape: f32[1,256], index: 13, kind: input, shape index: {}]
  %s14 = inlined_call_operand.vmem [shape: f32[1,256], index: 14, kind: input, shape index: {}]
  %s15 = inlined_call_operand.hbm [shape: bf16[256,384], index: 15, kind: input, shape index: {}]
  %s16 = inlined_call_operand.hbm [shape: f32[2,8,384], index: 16, kind: output, shape index: {}]
  %s17 = sld [smem:[#allocation0]]
  $region117: #{gpt2_forward.1} parent=0
    _
  %s19 = ssub.s32 1, %s17
  %s20 = scalar_select 0, %s19, %s17
  $region1: #{gpt2_forward.1} parent=0
    #allocation2 [shape = 'u8[786432]{0}', space=vmem, size = 0xc0000, scoped, tag = 'input window, operand 3, single buffered']
    #allocation3 [shape = 's32[2]{0}', space=sflag, size = 0x8, scoped, tag = 'scoped memory for gpt2_forward.1']
    #allocation4 [shape = 's32[2]{0}', space=sflag, size = 0x8, scoped, tag = 'scoped memory for gpt2_forward.1']
    #allocation5 [shape = 'u8[262144]{0}', space=vmem, size = 0x40000, scoped, tag = 'input window, operand 5, single buffered']
    #allocation6 [shape = 's32[1]{0}', space=sflag, size = 0x4, scoped, tag = 'scoped memory for gpt2_forward.1']
    #allocation7 [shape = 'u8[1048576]{0}', space=vmem, size = 0x100000, scoped, tag = 'input window, operand 9, single buffered']
    #allocation8 [shape = 'u8[1048576]{0}', space=vmem, size = 0x100000, scoped, tag = 'input window, operand 11, single buffered']
    #allocation9 [shape = 's32[1]{0}', space=sflag, size = 0x4, scoped, tag = 'scoped memory for gpt2_forward.1']
    #allocation10 [shape = 'u8[196608]{0}', space=vmem, size = 0x30000, scoped, tag = 'input window, operand 15, single buffered']
    #allocation11 [shape = 'u8[24576]{0}', space=vmem, size = 0x6000, scoped, tag = 'output window, operand 0']
    %21 = vsyncpa [#allocation3], 0
    %22 = vsyncpa [#allocation6], 0
    %23 = vsyncpa [#allocation9], 0
    %24 = vsyncpa [#allocation4], 0
    %s25 = scalar_lea.sflag [#allocation4], 1
    %26 = vsyncpa %s25, 0
    loop: start=0, step=1, limit=4
    $region2: #{gpt2_forward.1} parent=1 // loop_pre_header
      _
    $region3: #{gpt2_forward.1} parent=1 // loop_header
      %s28 = sphi 0, %s32
      %p29 = scmp.ge.s32.totalorder %s28, 4
      %s38 = sphi 0, %s40
      %s41 = sphi 0, %s38
      %s42 = sphi 0, %s41
      %s58 = sphi 0, %s42
      %s62 = sphi 0, %s62
      %s64 = sphi 0, %s62
      %s65 = sphi 0, %s64
      %s79 = sphi 0, %s65
      %s83 = sphi 0, %s83
      %s85 = sphi 0, %s83
      %s86 = sphi 0, %s85
      %s100 = sphi 0, %s86
      %s104 = sphi 0, %s104
      %s106 = sphi 0, %s104
      %s107 = sphi 0, %s106
      %s121 = sphi 0, %s107
      %s125 = sphi 0, %s125
      %s127 = sphi 0, %s125
      %s128 = sphi 0, %s127
      %s142 = sphi 0, %s128
      %s146 = sphi 0, %s146
      %s148 = sphi 0, %s146
      %s149 = sphi 0, %s148
      %s163 = sphi 0, %s149
      %s167 = sphi 0, %s167
      %s169 = sphi 0, %s167
      %s170 = sphi 0, %s169
      %s184 = sphi 0, %s170
      %s188 = sphi 0, %s188
      %s190 = sphi 0, %s188
      %s191 = sphi 0, %s190
      %s205 = sphi 0, %s191
      %s209 = sphi 0, %s209
      %s211 = sphi 0, %s209
      %s212 = sphi 0, %s211
      %s226 = sphi 0, %s212
      %s230 = sphi 0, %s230
      %s232 = sphi 0, %s230
      %s233 = sphi 0, %s232
      %s247 = sphi 0, %s233
      %s251 = sphi 0, %s251
      %s253 = sphi 0, %s251
      %s254 = sphi 0, %s253
      %s268 = sphi 0, %s254
      %s272 = sphi 0, %s272
      %s274 = sphi 0, %s272
      %s275 = sphi 0, %s274
      %s289 = sphi 0, %s275
      %s293 = sphi 0, %s293
      %s295 = sphi 0, %s293
      %s296 = sphi 0, %s295
      %s310 = sphi 0, %s296
      %s314 = sphi 0, %s314
      %s316 = sphi 0, %s314
      %s317 = sphi 0, %s316
      %s331 = sphi 0, %s317
      %s335 = sphi 0, %s335
      %s337 = sphi 0, %s335
      %s338 = sphi 0, %s337
      %s352 = sphi 0, %s338
      %s356 = sphi 0, %s356
      %s358 = sphi 0, %s356
      %s359 = sphi 0, %s358
      %s373 = sphi 0, %s359
      %s379 = sphi 0, %s381
      %s382 = sphi 0, %s379
      %s383 = sphi 0, %s382
      %s399 = sphi 0, %s383
    $region4: #{gpt2_forward.1} parent=1 // loop_header_branch
      %31 = sbr.rel (%p29) target = $region8
    $region5: #{gpt2_forward.1} parent=1 // loop_body
      %s33 = ssub.s32 %s28, 1
      %s34 = ssub.s32 %s28, 2
      %s35 = sadd.s32 %s28, 1
      %s36 = ssub.s32 %s28, %s35
      %p37 = scmp.eq.s32.totalorder %s36, 0
      %s39 = sadd.s32 %s38, 1
      %s40 = scalar_select %p37, %s38, %s39
      %p43 = pneg %p37
      %p44 = scmp.eq.s32.totalorder %s28, 1
      %p45 = por %p43, %p44
      %p46 = scmp.ne.s32.totalorder %s38, %s41
      %p47 = scmp.eq.s32.totalorder %s28, 0
      %p48 = por %p46, %p47
      %p49 = scmp.ne.s32.totalorder %s38, %s41
      %p50 = scmp.eq.s32.totalorder %s33, 1
      %p51 = por %p49, %p50
      %p52 = scmp.ne.s32.totalorder %s41, %s42
      %p53 = scmp.eq.s32.totalorder %s33, 0
      %p54 = por %p52, %p53
      %p55 = scmp.ne.s32.totalorder %s41, %s42
      %p56 = scmp.eq.s32.totalorder %s34, 1
      %p57 = por %p55, %p56
      %p59 = scmp.ne.s32.totalorder %s42, %s58
      %p60 = scmp.eq.s32.totalorder %s34, 0
      %p61 = por %p59, %p60
      %s63 = sadd.s32 %s62, 1
      %p66 = scmp.eq.s32.totalorder %s28, 1
      %p67 = scmp.ne.s32.totalorder %s62, %s64
      %p68 = scmp.eq.s32.totalorder %s28, 0
      %p69 = por %p67, %p68
      %p70 = scmp.ne.s32.totalorder %s62, %s64
      %p71 = scmp.eq.s32.totalorder %s33, 1
      %p72 = por %p70, %p71
      %p73 = scmp.ne.s32.totalorder %s64, %s65
      %p74 = scmp.eq.s32.totalorder %s33, 0
      %p75 = por %p73, %p74
      %p76 = scmp.ne.s32.totalorder %s64, %s65
      %p77 = scmp.eq.s32.totalorder %s34, 1
      %p78 = por %p76, %p77
      %p80 = scmp.ne.s32.totalorder %s65, %s79
      %p81 = scmp.eq.s32.totalorder %s34, 0
      %p82 = por %p80, %p81
      %s84 = sadd.s32 %s83, 1
      %p87 = scmp.eq.s32.totalorder %s28, 1
      %p88 = scmp.ne.s32.totalorder %s83, %s85
      %p89 = scmp.eq.s32.totalorder %s28, 0
      %p90 = por %p88, %p89
      %p91 = scmp.ne.s32.totalorder %s83, %s85
      %p92 = scmp.eq.s32.totalorder %s33, 1
      %p93 = por %p91, %p92
      %p94 = scmp.ne.s32.totalorder %s85, %s86
      %p95 = scmp.eq.s32.totalorder %s33, 0
      %p96 = por %p94, %p95
      %p97 = scmp.ne.s32.totalorder %s85, %s86
      %p98 = scmp.eq.s32.totalorder %s34, 1
      %p99 = por %p97, %p98
      %p101 = scmp.ne.s32.totalorder %s86, %s100
      %p102 = scmp.eq.s32.totalorder %s34, 0
      %p103 = por %p101, %p102
      %s105 = sadd.s32 %s104, 1
      %p108 = scmp.eq.s32.totalorder %s28, 1
      %p109 = scmp.ne.s32.totalorder %s104, %s106
      %p110 = scmp.eq.s32.totalorder %s28, 0
      %p111 = por %p109, %p110
      %p112 = scmp.ne.s32.totalorder %s104, %s106
      %p113 = scmp.eq.s32.totalorder %s33, 1
      %p114 = por %p112, %p113
      %p115 = scmp.ne.s32.totalorder %s106, %s107
      %p116 = scmp.eq.s32.totalorder %s33, 0
      %p117 = por %p115, %p116
      %p118 = scmp.ne.s32.totalorder %s106, %s107
      %p119 = scmp.eq.s32.totalorder %s34, 1
      %p120 = por %p118, %p119
      %p122 = scmp.ne.s32.totalorder %s107, %s121
      %p123 = scmp.eq.s32.totalorder %s34, 0
      %p124 = por %p122, %p123
      %s126 = sadd.s32 %s125, 1
      %p129 = scmp.eq.s32.totalorder %s28, 1
      %p130 = scmp.ne.s32.totalorder %s125, %s127
      %p131 = scmp.eq.s32.totalorder %s28, 0
      %p132 = por %p130, %p131
      %p133 = scmp.ne.s32.totalorder %s125, %s127
      %p134 = scmp.eq.s32.totalorder %s33, 1
      %p135 = por %p133, %p134
      %p136 = scmp.ne.s32.totalorder %s127, %s128
      %p137 = scmp.eq.s32.totalorder %s33, 0
      %p138 = por %p136, %p137
      %p139 = scmp.ne.s32.totalorder %s127, %s128
      %p140 = scmp.eq.s32.totalorder %s34, 1
      %p141 = por %p139, %p140
      %p143 = scmp.ne.s32.totalorder %s128, %s142
      %p144 = scmp.eq.s32.totalorder %s34, 0
      %p145 = por %p143, %p144
      %s147 = sadd.s32 %s146, 1
      %p150 = scmp.eq.s32.totalorder %s28, 1
      %p151 = scmp.ne.s32.totalorder %s146, %s148
      %p152 = scmp.eq.s32.totalorder %s28, 0
      %p153 = por %p151, %p152
      %p154 = scmp.ne.s32.totalorder %s146, %s148
      %p155 = scmp.eq.s32.totalorder %s33, 1
      %p156 = por %p154, %p155
      %p157 = scmp.ne.s32.totalorder %s148, %s149
      %p158 = scmp.eq.s32.totalorder %s33, 0
      %p159 = por %p157, %p158
      %p160 = scmp.ne.s32.totalorder %s148, %s149
      %p161 = scmp.eq.s32.totalorder %s34, 1
      %p162 = por %p160, %p161
      %p164 = scmp.ne.s32.totalorder %s149, %s163
      %p165 = scmp.eq.s32.totalorder %s34, 0
      %p166 = por %p164, %p165
      %s168 = sadd.s32 %s167, 1
      %p171 = scmp.eq.s32.totalorder %s28, 1
      %p172 = scmp.ne.s32.totalorder %s167, %s169
      %p173 = scmp.eq.s32.totalorder %s28, 0
      %p174 = por %p172, %p173
      %p175 = scmp.ne.s32.totalorder %s167, %s169
      %p176 = scmp.eq.s32.totalorder %s33, 1
      %p177 = por %p175, %p176
      %p178 = scmp.ne.s32.totalorder %s169, %s170
      %p179 = scmp.eq.s32.totalorder %s33, 0
      %p180 = por %p178, %p179
      %p181 = scmp.ne.s32.totalorder %s169, %s170
      %p182 = scmp.eq.s32.totalorder %s34, 1
      %p183 = por %p181, %p182
      %p185 = scmp.ne.s32.totalorder %s170, %s184
      %p186 = scmp.eq.s32.totalorder %s34, 0
      %p187 = por %p185, %p186
      %s189 = sadd.s32 %s188, 1
      %p192 = scmp.eq.s32.totalorder %s28, 1
      %p193 = scmp.ne.s32.totalorder %s188, %s190
      %p194 = scmp.eq.s32.totalorder %s28, 0
      %p195 = por %p193, %p194
      %p196 = scmp.ne.s32.totalorder %s188, %s190
      %p197 = scmp.eq.s32.totalorder %s33, 1
      %p198 = por %p196, %p197
      %p199 = scmp.ne.s32.totalorder %s190, %s191
      %p200 = scmp.eq.s32.totalorder %s33, 0
      %p201 = por %p199, %p200
      %p202 = scmp.ne.s32.totalorder %s190, %s191
      %p203 = scmp.eq.s32.totalorder %s34, 1
      %p204 = por %p202, %p203
      %p206 = scmp.ne.s32.totalorder %s191, %s205
      %p207 = scmp.eq.s32.totalorder %s34, 0
      %p208 = por %p206, %p207
      %s210 = sadd.s32 %s209, 1
      %p213 = scmp.eq.s32.totalorder %s28, 1
      %p214 = scmp.ne.s32.totalorder %s209, %s211
      %p215 = scmp.eq.s32.totalorder %s28, 0
      %p216 = por %p214, %p215
      %p217 = scmp.ne.s32.totalorder %s209, %s211
      %p218 = scmp.eq.s32.totalorder %s33, 1
      %p219 = por %p217, %p218
      %p220 = scmp.ne.s32.totalorder %s211, %s212
      %p221 = scmp.eq.s32.totalorder %s33, 0
      %p222 = por %p220, %p221
      %p223 = scmp.ne.s32.totalorder %s211, %s212
      %p224 = scmp.eq.s32.totalorder %s34, 1
      %p225 = por %p223, %p224
      %p227 = scmp.ne.s32.totalorder %s212, %s226
      %p228 = scmp.eq.s32.totalorder %s34, 0
      %p229 = por %p227, %p228
      %s231 = sadd.s32 %s230, 1
      %p234 = scmp.eq.s32.totalorder %s28, 1
      %p235 = scmp.ne.s32.totalorder %s230, %s232
      %p236 = scmp.eq.s32.totalorder %s28, 0
      %p237 = por %p235, %p236
      %p238 = scmp.ne.s32.totalorder %s230, %s232
      %p239 = scmp.eq.s32.totalorder %s33, 1
      %p240 = por %p238, %p239
      %p241 = scmp.ne.s32.totalorder %s232, %s233
      %p242 = scmp.eq.s32.totalorder %s33, 0
      %p243 = por %p241, %p242
      %p244 = scmp.ne.s32.totalorder %s232, %s233
      %p245 = scmp.eq.s32.totalorder %s34, 1
      %p246 = por %p244, %p245
      %p248 = scmp.ne.s32.totalorder %s233, %s247
      %p249 = scmp.eq.s32.totalorder %s34, 0
      %p250 = por %p248, %p249
      %s252 = sadd.s32 %s251, 1
      %p255 = scmp.eq.s32.totalorder %s28, 1
      %p256 = scmp.ne.s32.totalorder %s251, %s253
      %p257 = scmp.eq.s32.totalorder %s28, 0
      %p258 = por %p256, %p257
      %p259 = scmp.ne.s32.totalorder %s251, %s253
      %p260 = scmp.eq.s32.totalorder %s33, 1
      %p261 = por %p259, %p260
      %p262 = scmp.ne.s32.totalorder %s253, %s254
      %p263 = scmp.eq.s32.totalorder %s33, 0
      %p264 = por %p262, %p263
      %p265 = scmp.ne.s32.totalorder %s253, %s254
      %p266 = scmp.eq.s32.totalorder %s34, 1
      %p267 = por %p265, %p266
      %p269 = scmp.ne.s32.totalorder %s254, %s268
      %p270 = scmp.eq.s32.totalorder %s34, 0
      %p271 = por %p269, %p270
      %s273 = sadd.s32 %s272, 1
      %p276 = scmp.eq.s32.totalorder %s28, 1
      %p277 = scmp.ne.s32.totalorder %s272, %s274
      %p278 = scmp.eq.s32.totalorder %s28, 0
      %p279 = por %p277, %p278
      %p280 = scmp.ne.s32.totalorder %s272, %s274
      %p281 = scmp.eq.s32.totalorder %s33, 1
      %p282 = por %p280, %p281
      %p283 = scmp.ne.s32.totalorder %s274, %s275
      %p284 = scmp.eq.s32.totalorder %s33, 0
      %p285 = por %p283, %p284
      %p286 = scmp.ne.s32.totalorder %s274, %s275
      %p287 = scmp.eq.s32.totalorder %s34, 1
      %p288 = por %p286, %p287
      %p290 = scmp.ne.s32.totalorder %s275, %s289
      %p291 = scmp.eq.s32.totalorder %s34, 0
      %p292 = por %p290, %p291
      %s294 = sadd.s32 %s293, 1
      %p297 = scmp.eq.s32.totalorder %s28, 1
      %p298 = scmp.ne.s32.totalorder %s293, %s295
      %p299 = scmp.eq.s32.totalorder %s28, 0
      %p300 = por %p298, %p299
      %p301 = scmp.ne.s32.totalorder %s293, %s295
      %p302 = scmp.eq.s32.totalorder %s33, 1
      %p303 = por %p301, %p302
      %p304 = scmp.ne.s32.totalorder %s295, %s296
      %p305 = scmp.eq.s32.totalorder %s33, 0
      %p306 = por %p304, %p305
      %p307 = scmp.ne.s32.totalorder %s295, %s296
      %p308 = scmp.eq.s32.totalorder %s34, 1
      %p309 = por %p307, %p308
      %p311 = scmp.ne.s32.totalorder %s296, %s310
      %p312 = scmp.eq.s32.totalorder %s34, 0
      %p313 = por %p311, %p312
      %s315 = sadd.s32 %s314, 1
      %p318 = scmp.eq.s32.totalorder %s28, 1
      %p319 = scmp.ne.s32.totalorder %s314, %s316
      %p320 = scmp.eq.s32.totalorder %s28, 0
      %p321 = por %p319, %p320
      %p322 = scmp.ne.s32.totalorder %s314, %s316
      %p323 = scmp.eq.s32.totalorder %s33, 1
      %p324 = por %p322, %p323
      %p325 = scmp.ne.s32.totalorder %s316, %s317
      %p326 = scmp.eq.s32.totalorder %s33, 0
      %p327 = por %p325, %p326
      %p328 = scmp.ne.s32.totalorder %s316, %s317
      %p329 = scmp.eq.s32.totalorder %s34, 1
      %p330 = por %p328, %p329
      %p332 = scmp.ne.s32.totalorder %s317, %s331
      %p333 = scmp.eq.s32.totalorder %s34, 0
      %p334 = por %p332, %p333
      %s336 = sadd.s32 %s335, 1
      %p339 = scmp.eq.s32.totalorder %s28, 1
      %p340 = scmp.ne.s32.totalorder %s335, %s337
      %p341 = scmp.eq.s32.totalorder %s28, 0
      %p342 = por %p340, %p341
      %p343 = scmp.ne.s32.totalorder %s335, %s337
      %p344 = scmp.eq.s32.totalorder %s33, 1
      %p345 = por %p343, %p344
      %p346 = scmp.ne.s32.totalorder %s337, %s338
      %p347 = scmp.eq.s32.totalorder %s33, 0
      %p348 = por %p346, %p347
      %p349 = scmp.ne.s32.totalorder %s337, %s338
      %p350 = scmp.eq.s32.totalorder %s34, 1
      %p351 = por %p349, %p350
      %p353 = scmp.ne.s32.totalorder %s338, %s352
      %p354 = scmp.eq.s32.totalorder %s34, 0
      %p355 = por %p353, %p354
      %s357 = sadd.s32 %s356, 1
      %p360 = scmp.eq.s32.totalorder %s28, 1
      %p361 = scmp.ne.s32.totalorder %s356, %s358
      %p362 = scmp.eq.s32.totalorder %s28, 0
      %p363 = por %p361, %p362
      %p364 = scmp.ne.s32.totalorder %s356, %s358
      %p365 = scmp.eq.s32.totalorder %s33, 1
      %p366 = por %p364, %p365
      %p367 = scmp.ne.s32.totalorder %s358, %s359
      %p368 = scmp.eq.s32.totalorder %s33, 0
      %p369 = por %p367, %p368
      %p370 = scmp.ne.s32.totalorder %s358, %s359
      %p371 = scmp.eq.s32.totalorder %s34, 1
      %p372 = por %p370, %p371
      %p374 = scmp.ne.s32.totalorder %s359, %s373
      %p375 = scmp.eq.s32.totalorder %s34, 0
      %p376 = por %p374, %p375
      %s377 = ssub.s32 %s28, %s35
      %p378 = scmp.eq.s32.totalorder %s377, 0
      %s380 = sadd.s32 %s379, 1
      %s381 = scalar_select %p378, %s379, %s380
      %p384 = pneg %p378
      %p385 = scmp.eq.s32.totalorder %s28, 1
      %p386 = por %p384, %p385
      %p387 = scmp.ne.s32.totalorder %s379, %s382
      %p388 = scmp.eq.s32.totalorder %s28, 0
      %p389 = por %p387, %p388
      %p390 = scmp.ne.s32.totalorder %s379, %s382
      %p391 = scmp.eq.s32.totalorder %s33, 1
      %p392 = por %p390, %p391
      %p393 = scmp.ne.s32.totalorder %s382, %s383
      %p394 = scmp.eq.s32.totalorder %s33, 0
      %p395 = por %p393, %p394
      %p396 = scmp.ne.s32.totalorder %s382, %s383
      %p397 = scmp.eq.s32.totalorder %s34, 1
      %p398 = por %p396, %p397
      %p400 = scmp.ne.s32.totalorder %s383, %s399
      %p401 = scmp.eq.s32.totalorder %s34, 0
      %p402 = por %p400, %p401
      %p403 = scmp.le.s32.totalorder 1, %s28
      %p404 = scmp.lt.s32.totalorder %s28, 3
      %p405 = pnand %p403, %p404
      %p406 = pneg %p405
      // Predicated region
      $region9: #{gpt2_forward.1} parent=5 // pred_check
        _
      $region10: #{gpt2_forward.1} parent=5 // pred_check_branch
        %408 = sbr.rel (%p405) target = $region12
      $region11: #{gpt2_forward.1} parent=5 // pred_region
        %s409 = ssub.s32 %s28, 1
        // Predicated region
        $region13: #{gpt2_forward.1} parent=11 // pred_check
          %p410 = pneg %p75
        $region14: #{gpt2_forward.1} parent=11 // pred_check_branch
          %412 = sbr.rel (%p410) target = $region16
        $region15: #{gpt2_forward.1} parent=11 // pred_region
          _
        $region16: #{gpt2_forward.1} parent=11 // pred_fallthru
          _
        // Predicated region
        $region17: #{gpt2_forward.1} parent=11 // pred_check
          %p413 = pneg %p96
        $region18: #{gpt2_forward.1} parent=11 // pred_check_branch
          %415 = sbr.rel (%p413) target = $region20
        $region19: #{gpt2_forward.1} parent=11 // pred_region
          _
        $region20: #{gpt2_forward.1} parent=11 // pred_fallthru
          _
        // Predicated region
        $region21: #{gpt2_forward.1} parent=11 // pred_check
          %p416 = pneg %p117
        $region22: #{gpt2_forward.1} parent=11 // pred_check_branch
          %418 = sbr.rel (%p416) target = $region24
        $region23: #{gpt2_forward.1} parent=11 // pred_region
          %s420 = ssub.s32 24576, 24576
          %421 = vsyncadd [#allocation3], %s420
          %s422 = sshll.u32 [#allocation2], 4
          %s423 = int_to_ptr.vmem [resolvable:$true] %s422
          %428 = dma.hbm_to_vmem [thread:$0]  %s3, 24576, %s423, [#allocation3], 384, 384, 24
        $region24: #{gpt2_forward.1} parent=11 // pred_fallthru
          _
        // Predicated region
        $region25: #{gpt2_forward.1} parent=11 // pred_check
          %p429 = pneg %p138
        $region26: #{gpt2_forward.1} parent=11 // pred_check_branch
          %431 = sbr.rel (%p429) target = $region28
        $region27: #{gpt2_forward.1} parent=11 // pred_region
          _
        $region28: #{gpt2_forward.1} parent=11 // pred_fallthru
          _
        // Predicated region
        $region29: #{gpt2_forward.1} parent=11 // pred_check
          %p432 = pneg %p159
        $region30: #{gpt2_forward.1} parent=11 // pred_check_branch
          %434 = sbr.rel (%p432) target = $region32
        $region31: #{gpt2_forward.1} parent=11 // pred_region
          %s436 = ssub.s32 8192, 8192
          %437 = vsyncadd [#allocation6], %s436
          %s438 = sshll.u32 [#allocation5], 4
          %s439 = int_to_ptr.vmem [resolvable:$true] %s438
          %444 = dma.hbm_to_vmem [thread:$0]  %s5, 8192, %s439, [#allocation6], 128, 128, 8
        $region32: #{gpt2_forward.1} parent=11 // pred_fallthru
          _
        // Predicated region
        $region33: #{gpt2_forward.1} parent=11 // pred_check
          %p445 = pneg %p180
        $region34: #{gpt2_forward.1} parent=11 // pred_check_branch
          %447 = sbr.rel (%p445) target = $region36
        $region35: #{gpt2_forward.1} parent=11 // pred_region
          _
        $region36: #{gpt2_forward.1} parent=11 // pred_fallthru
          _
        // Predicated region
        $region37: #{gpt2_forward.1} parent=11 // pred_check
          %p448 = pneg %p201
        $region38: #{gpt2_forward.1} parent=11 // pred_check_branch
          %450 = sbr.rel (%p448) target = $region40
        $region39: #{gpt2_forward.1} parent=11 // pred_region
          _
        $region40: #{gpt2_forward.1} parent=11 // pred_fallthru
          _
        // Predicated region
        $region41: #{gpt2_forward.1} parent=11 // pred_check
          %p451 = pneg %p222
        $region42: #{gpt2_forward.1} parent=11 // pred_check_branch
          %453 = sbr.rel (%p451) target = $region44
        $region43: #{gpt2_forward.1} parent=11 // pred_region
          _
        $region44: #{gpt2_forward.1} parent=11 // pred_fallthru
          _
        // Predicated region
        $region45: #{gpt2_forward.1} parent=11 // pred_check
          %p454 = pneg %p243
        $region46: #{gpt2_forward.1} parent=11 // pred_check_branch
          %456 = sbr.rel (%p454) target = $region48
        $region47: #{gpt2_forward.1} parent=11 // pred_region
          %s458 = ssub.s32 32768, 32768
          %459 = vsyncadd [#allocation6], %s458
          %s460 = sshll.u32 [#allocation7], 4
          %s461 = int_to_ptr.vmem [resolvable:$true] %s460
          %466 = dma.hbm_to_vmem [thread:$0]  %s9, 32768, %s461, [#allocation6], 512, 512, 32
        $region48: #{gpt2_forward.1} parent=11 // pred_fallthru
          _
        // Predicated region
        $region49: #{gpt2_forward.1} parent=11 // pred_check
          %p467 = pneg %p264
        $region50: #{gpt2_forward.1} parent=11 // pred_check_branch
          %469 = sbr.rel (%p467) target = $region52
        $region51: #{gpt2_forward.1} parent=11 // pred_region
          _
        $region52: #{gpt2_forward.1} parent=11 // pred_fallthru
          _
        // Predicated region
        $region53: #{gpt2_forward.1} parent=11 // pred_check
          %p470 = pneg %p285
        $region54: #{gpt2_forward.1} parent=11 // pred_check_branch
          %472 = sbr.rel (%p470) target = $region56
        $region55: #{gpt2_forward.1} parent=11 // pred_region
          %s474 = ssub.s32 32768, 32768
          %475 = vsyncadd [#allocation9], %s474
          %s476 = sshll.u32 [#allocation8], 4
          %s477 = int_to_ptr.vmem [resolvable:$true] %s476
          %482 = dma.hbm_to_vmem [thread:$0]  %s11, 32768, %s477, [#allocation9], 128, 128, 8
        $region56: #{gpt2_forward.1} parent=11 // pred_fallthru
          _
        // Predicated region
        $region57: #{gpt2_forward.1} parent=11 // pred_check
          %p483 = pneg %p306
        $region58: #{gpt2_forward.1} parent=11 // pred_check_branch
          %485 = sbr.rel (%p483) target = $region60
        $region59: #{gpt2_forward.1} parent=11 // pred_region
          _
        $region60: #{gpt2_forward.1} parent=11 // pred_fallthru
          _
        // Predicated region
        $region61: #{gpt2_forward.1} parent=11 // pred_check
          %p486 = pneg %p327
        $region62: #{gpt2_forward.1} parent=11 // pred_check_branch
          %488 = sbr.rel (%p486) target = $region64
        $region63: #{gpt2_forward.1} parent=11 // pred_region
          _
        $region64: #{gpt2_forward.1} parent=11 // pred_fallthru
          _
        // Predicated region
        $region65: #{gpt2_forward.1} parent=11 // pred_check
          %p489 = pneg %p348
        $region66: #{gpt2_forward.1} parent=11 // pred_check_branch
          %491 = sbr.rel (%p489) target = $region68
        $region67: #{gpt2_forward.1} parent=11 // pred_region
          _
        $region68: #{gpt2_forward.1} parent=11 // pred_fallthru
          _
        // Predicated region
        $region69: #{gpt2_forward.1} parent=11 // pred_check
          %p492 = pneg %p369
        $region70: #{gpt2_forward.1} parent=11 // pred_check_branch
          %494 = sbr.rel (%p492) target = $region72
        $region71: #{gpt2_forward.1} parent=11 // pred_region
          %s496 = ssub.s32 6144, 6144
          %497 = vsyncadd [#allocation9], %s496
          %s498 = sshll.u32 [#allocation10], 4
          %s499 = int_to_ptr.vmem [resolvable:$true] %s498
          %504 = dma.hbm_to_vmem [thread:$0]  %s15, 6144, %s499, [#allocation9], 192, 192, 12
        $region72: #{gpt2_forward.1} parent=11 // pred_fallthru
          _
      $region12: #{gpt2_forward.1} parent=5 // pred_fallthru
        _
      %p505 = scmp.lt.s32.totalorder %s28, 2
      // Predicated region
      $region73: #{gpt2_forward.1} parent=5 // pred_check
        %p506 = pneg %p505
      $region74: #{gpt2_forward.1} parent=5 // pred_check_branch
        %508 = sbr.rel (%p506) target = $region76
      $region75: #{gpt2_forward.1} parent=5 // pred_region
        // Predicated region
        $region77: #{gpt2_forward.1} parent=75 // pred_check
          %p509 = pneg %p48
        $region78: #{gpt2_forward.1} parent=75 // pred_check_branch
          %511 = sbr.rel (%p509) target = $region80
        $region79: #{gpt2_forward.1} parent=75 // pred_region
          %p512 = scmp.lt.s32.totalorder %s28, 1
          %s513 = scalar_select %p512, %s28, 1
          %s514 = smul.addr %s513, 2
          %s515 = smul.addr %s514, 4
          %s516 = scalar_lea.vmem %s0, %s515
        $region80: #{gpt2_forward.1} parent=75 // pred_fallthru
          _
      $region76: #{gpt2_forward.1} parent=5 // pred_fallthru
        _
      %p517 = scmp.le.s32.totalorder 1, %s28
      %p518 = scmp.lt.s32.totalorder %s28, 3
      %p519 = pnand %p517, %p518
      %p520 = pneg %p519
      // Predicated region
      $region81: #{gpt2_forward.1} parent=5 // pred_check
        _
      $region82: #{gpt2_forward.1} parent=5 // pred_check_branch
        %522 = sbr.rel (%p519) target = $region84
      $region83: #{gpt2_forward.1} parent=5 // pred_region
        %s523 = ssub.s32 %s28, 1
        // Predicated region
        $region85: #{gpt2_forward.1} parent=83 // pred_check
          %p524 = pneg %p117
        $region86: #{gpt2_forward.1} parent=83 // pred_check_branch
          %526 = sbr.rel (%p524) target = $region88
        $region87: #{gpt2_forward.1} parent=83 // pred_region
          %527 = dma.done [#allocation3], 24576
        $region88: #{gpt2_forward.1} parent=83 // pred_fallthru
          _
        // Predicated region
        $region89: #{gpt2_forward.1} parent=83 // pred_check
          %p528 = pneg %p159
        $region90: #{gpt2_forward.1} parent=83 // pred_check_branch
          %530 = sbr.rel (%p528) target = $region92
        $region91: #{gpt2_forward.1} parent=83 // pred_region
          %531 = dma.done [#allocation6], 8192
        $region92: #{gpt2_forward.1} parent=83 // pred_fallthru
          _
        // Predicated region
        $region93: #{gpt2_forward.1} parent=83 // pred_check
          %p532 = pneg %p243
        $region94: #{gpt2_forward.1} parent=83 // pred_check_branch
          %534 = sbr.rel (%p532) target = $region96
        $region95: #{gpt2_forward.1} parent=83 // pred_region
          %535 = dma.done [#allocation6], 32768
        $region96: #{gpt2_forward.1} parent=83 // pred_fallthru
          _
        // Predicated region
        $region97: #{gpt2_forward.1} parent=83 // pred_check
          %p536 = pneg %p285
        $region98: #{gpt2_forward.1} parent=83 // pred_check_branch
          %538 = sbr.rel (%p536) target = $region100
        $region99: #{gpt2_forward.1} parent=83 // pred_region
          %539 = dma.done [#allocation9], 32768
        $region100: #{gpt2_forward.1} parent=83 // pred_fallthru
          _
        // Predicated region
        $region101: #{gpt2_forward.1} parent=83 // pred_check
          %p540 = pneg %p369
        $region102: #{gpt2_forward.1} parent=83 // pred_check_branch
          %542 = sbr.rel (%p540) target = $region104
        $region103: #{gpt2_forward.1} parent=83 // pred_region
          %543 = dma.done [#allocation9], 6144
        $region104: #{gpt2_forward.1} parent=83 // pred_fallthru
          _
        %p544 = scmp.lt.s32.totalorder %s33, 1
        %s545 = scalar_select %p544, %s33, 1
        %s546 = smul.addr %s545, 2
        %s547 = smul.addr %s546, 4
        %s548 = scalar_lea.vmem %s0, %s547
        %p549 = pneg %p54
        %p550 = pneg %p51
        %p551 = pneg %p75
        %p552 = pneg %p72
        %p553 = pneg %p96
        %p554 = pneg %p93
        %p555 = pneg %p117
        %p556 = pneg %p114
        %p557 = pneg %p138
        %p558 = pneg %p135
        %p559 = pneg %p159
        %p560 = pneg %p156
        %p561 = pneg %p180
        %p562 = pneg %p177
        %p563 = pneg %p201
        %p564 = pneg %p198
        %p565 = pneg %p222
        %p566 = pneg %p219
        %p567 = pneg %p243
        %p568 = pneg %p240
        %p569 = pneg %p264
        %p570 = pneg %p261
        %p571 = pneg %p285
        %p572 = pneg %p282
        %p573 = pneg %p306
        %p574 = pneg %p303
        %p575 = pneg %p327
        %p576 = pneg %p324
        %p577 = pneg %p348
        %p578 = pneg %p345
        %p579 = pneg %p369
        %p580 = pneg %p366
        %p581 = pneg %p395
        %p582 = pneg %p392
        %s583 = sand.u32 %s382, 1
        %s584 = scalar_lea.sflag [#allocation4], %s583
        %s585 = sand.u32 %s382, 1
        %s586 = smul.addr %s585, 24
        %s587 = scalar_lea.vmem [#allocation11], %s586
        %p588 = scmp.lt.s32.totalorder %s33, 1
        %s589 = scalar_select %p588, %s33, 1
        %s590 = smul.addr %s589, 2
        %s591 = smul.addr %s590, 4
        %s592 = scalar_lea.vmem %s0, %s591
        %v594 = vld [vmem:[%s592] sm:$0xff]
        %v595 = vunpack.c.l.bf16 %v594
        %v596 = vunpack.c.h.bf16 %v594
        %v597 = vlaneseq
        %v598 = vshrl.u32 %v597, 7
        %v599 = vlaneseq
        %v600 = vand.u32 %v599, 127
        %vm601 = vcmp.le.s32.totalorder %v600, %v598
        %v602 = vsel %vm601, 0.0, -1e+30
        %v603 = vld [vmem:[%s1] sm:$0x3]
        %v604 = vld [vmem:[%s2] sm:$0x3]
        %v605 = vadd.f32 %v595, %v596
        %606 = vadd.xlane.f32.xlu0 %v605
        %v607 = vpop.xlane.xlu0 %606
        %v608 = vrcp.pop 256.0
        %v609 = vmul.f32 %v607, %v608
        %v610 = vsub.f32 %v595, %v609
        %v611 = vsub.f32 %v596, %v609
        %v612 = vmul.f32 %v610, %v610
        %v613 = vmul.f32 %v611, %v611
        %v614 = vadd.f32 %v612, %v613
        %615 = vadd.xlane.f32.xlu0 %v614
        %v616 = vpop.xlane.xlu0 %615
        %v617 = vmul.f32 %v616, %v608
        %v618 = vadd.f32 %v617, 1e-05
        %v619 = vrsqrt.pop %v618
        %v620 = vmul.f32 %v610, %v619
        %v621 = vmul.f32 %v611, %v619
        %v623 = vlaneseq
        %v624 = vshrl.u32 %v623, 7
        %v625 = vsub.s32 0, %v624
        %v626 = vrot.slane %v603, %v625
        %v627 = vlaneseq
        %v628 = vshrl.u32 %v627, 7
        %v629 = vsub.s32 1, %v628
        %v630 = vrot.slane %v603, %v629
        %v633 = vmul.f32 %v620, %v626
        %v634 = vmul.f32 %v621, %v630
        %v636 = vlaneseq
        %v637 = vshrl.u32 %v636, 7
        %v638 = vsub.s32 0, %v637
        %v639 = vrot.slane %v604, %v638
        %v640 = vlaneseq
        %v641 = vshrl.u32 %v640, 7
        %v642 = vsub.s32 1, %v641
        %v643 = vrot.slane %v604, %v642
        %v646 = vadd.f32 %v633, %v639
        %v647 = vadd.f32 %v634, %v643
        %v648 = vpack.c.bf16 %v646, %v646
        %v649 = vpack.c.bf16 %v647, %v647
        %v650 = vld [vmem:[#allocation2] sm:$0xff]
        %v651 = vld [vmem:[#allocation2 + $0x8] sm:$0xff]
        %v652 = vld [vmem:[#allocation2 + $0x10] sm:$0xff]
        %v653 = vld [vmem:[#allocation2 + $0x18] sm:$0xff]
        %v654 = vld [vmem:[#allocation2 + $0x20] sm:$0xff]
        %v655 = vld [vmem:[#allocation2 + $0x28] sm:$0xff]
        %v656 = vld [vmem:[#allocation2 + $0x30] sm:$0xff]
        %v657 = vld [vmem:[#allocation2 + $0x38] sm:$0xff]
        %v658 = vld [vmem:[#allocation2 + $0x40] sm:$0xff]
        %v659 = vld [vmem:[#allocation2 + $0x48] sm:$0xff]
        %v660 = vld [vmem:[#allocation2 + $0x50] sm:$0xff]
        %v661 = vld [vmem:[#allocation2 + $0x58] sm:$0xff]
        %v662 = vld [vmem:[#allocation2 + $0x60] sm:$0xff]
        %v663 = vld [vmem:[#allocation2 + $0x68] sm:$0xff]
        %v664 = vld [vmem:[#allocation2 + $0x70] sm:$0xff]
        %v665 = vld [vmem:[#allocation2 + $0x78] sm:$0xff]
        %v666 = vld [vmem:[#allocation2 + $0x80] sm:$0xff]
        %v667 = vld [vmem:[#allocation2 + $0x88] sm:$0xff]
        %v668 = vld [vmem:[#allocation2 + $0x90] sm:$0xff]
        %v669 = vld [vmem:[#allocation2 + $0x98] sm:$0xff]
        %v670 = vld [vmem:[#allocation2 + $0xa0] sm:$0xff]
        %v671 = vld [vmem:[#allocation2 + $0xa8] sm:$0xff]
        %v672 = vld [vmem:[#allocation2 + $0xb0] sm:$0xff]
        %v673 = vld [vmem:[#allocation2 + $0xb8] sm:$0xff]
        %v674 = vld [vmem:[#allocation2 + $0xc0] sm:$0xff]
        %v675 = vld [vmem:[#allocation2 + $0xc8] sm:$0xff]
        %v676 = vld [vmem:[#allocation2 + $0xd0] sm:$0xff]
        %v677 = vld [vmem:[#allocation2 + $0xd8] sm:$0xff]
        %v678 = vld [vmem:[#allocation2 + $0xe0] sm:$0xff]
        %v679 = vld [vmem:[#allocation2 + $0xe8] sm:$0xff]
        %v680 = vld [vmem:[#allocation2 + $0xf0] sm:$0xff]
        %v681 = vld [vmem:[#allocation2 + $0xf8] sm:$0xff]
        %v682 = vld [vmem:[#allocation2 + $0x100] sm:$0xff]
        %v683 = vld [vmem:[#allocation2 + $0x108] sm:$0xff]
        %v684 = vld [vmem:[#allocation2 + $0x110] sm:$0xff]
        %v685 = vld [vmem:[#allocation2 + $0x118] sm:$0xff]
        %v686 = vld [vmem:[#allocation2 + $0x120] sm:$0xff]
        %v687 = vld [vmem:[#allocation2 + $0x128] sm:$0xff]
        %v688 = vld [vmem:[#allocation2 + $0x130] sm:$0xff]
        %v689 = vld [vmem:[#allocation2 + $0x138] sm:$0xff]
        %v690 = vld [vmem:[#allocation2 + $0x140] sm:$0xff]
        %v691 = vld [vmem:[#allocation2 + $0x148] sm:$0xff]
        %v692 = vld [vmem:[#allocation2 + $0x150] sm:$0xff]
        %v693 = vld [vmem:[#allocation2 + $0x158] sm:$0xff]
        %v694 = vld [vmem:[#allocation2 + $0x160] sm:$0xff]
        %v695 = vld [vmem:[#allocation2 + $0x168] sm:$0xff]
        %v696 = vld [vmem:[#allocation2 + $0x170] sm:$0xff]
        %v697 = vld [vmem:[#allocation2 + $0x178] sm:$0xff]
        %v698 = vld [vmem:[#allocation2 + $0x180] sm:$0xff]
        %v699 = vld [vmem:[#allocation2 + $0x188] sm:$0xff]
        %v700 = vld [vmem:[#allocation2 + $0x190] sm:$0xff]
        %v701 = vld [vmem:[#allocation2 + $0x198] sm:$0xff]
        %v702 = vld [vmem:[#allocation2 + $0x1a0] sm:$0xff]
        %v703 = vld [vmem:[#allocation2 + $0x1a8] sm:$0xff]
        %v704 = vld [vmem:[#allocation2 + $0x1b0] sm:$0xff]
        %v705 = vld [vmem:[#allocation2 + $0x1b8] sm:$0xff]
        %v706 = vld [vmem:[#allocation2 + $0x1c0] sm:$0xff]
        %v707 = vld [vmem:[#allocation2 + $0x1c8] sm:$0xff]
        %v708 = vld [vmem:[#allocation2 + $0x1d0] sm:$0xff]
        %v709 = vld [vmem:[#allocation2 + $0x1d8] sm:$0xff]
        %v710 = vld [vmem:[#allocation2 + $0x1e0] sm:$0xff]
        %v711 = vld [vmem:[#allocation2 + $0x1e8] sm:$0xff]
        %v712 = vld [vmem:[#allocation2 + $0x1f0] sm:$0xff]
        %v713 = vld [vmem:[#allocation2 + $0x1f8] sm:$0xff]
        %v714 = vld [vmem:[#allocation2 + $0x200] sm:$0xff]
        %v715 = vld [vmem:[#allocation2 + $0x208] sm:$0xff]
        %v716 = vld [vmem:[#allocation2 + $0x210] sm:$0xff]
        %v717 = vld [vmem:[#allocation2 + $0x218] sm:$0xff]
        %v718 = vld [vmem:[#allocation2 + $0x220] sm:$0xff]
        %v719 = vld [vmem:[#allocation2 + $0x228] sm:$0xff]
        %v720 = vld [vmem:[#allocation2 + $0x230] sm:$0xff]
        %v721 = vld [vmem:[#allocation2 + $0x238] sm:$0xff]
        %v722 = vld [vmem:[#allocation2 + $0x240] sm:$0xff]
        %v723 = vld [vmem:[#allocation2 + $0x248] sm:$0xff]
        %v724 = vld [vmem:[#allocation2 + $0x250] sm:$0xff]
        %v725 = vld [vmem:[#allocation2 + $0x258] sm:$0xff]
        %v726 = vld [vmem:[#allocation2 + $0x260] sm:$0xff]
        %v727 = vld [vmem:[#allocation2 + $0x268] sm:$0xff]
        %v728 = vld [vmem:[#allocation2 + $0x270] sm:$0xff]
        %v729 = vld [vmem:[#allocation2 + $0x278] sm:$0xff]
        %v730 = vld [vmem:[#allocation2 + $0x280] sm:$0xff]
        %v731 = vld [vmem:[#allocation2 + $0x288] sm:$0xff]
        %v732 = vld [vmem:[#allocation2 + $0x290] sm:$0xff]
        %v733 = vld [vmem:[#allocation2 + $0x298] sm:$0xff]
        %v734 = vld [vmem:[#allocation2 + $0x2a0] sm:$0xff]
        %v735 = vld [vmem:[#allocation2 + $0x2a8] sm:$0xff]
        %v736 = vld [vmem:[#allocation2 + $0x2b0] sm:$0xff]
        %v737 = vld [vmem:[#allocation2 + $0x2b8] sm:$0xff]
        %v738 = vld [vmem:[#allocation2 + $0x2c0] sm:$0xff]
        %v739 = vld [vmem:[#allocation2 + $0x2c8] sm:$0xff]
        %v740 = vld [vmem:[#allocation2 + $0x2d0] sm:$0xff]
        %v741 = vld [vmem:[#allocation2 + $0x2d8] sm:$0xff]
        %v742 = vld [vmem:[#allocation2 + $0x2e0] sm:$0xff]
        %v743 = vld [vmem:[#allocation2 + $0x2e8] sm:$0xff]
        %v744 = vld [vmem:[#allocation2 + $0x2f0] sm:$0xff]
        %v745 = vld [vmem:[#allocation2 + $0x2f8] sm:$0xff]
        %v746 = vld [vmem:[%s4] sm:$0x3f]
        %v748 = vlaneseq
        %v749 = vshrl.u32 %v748, 7
        %v750 = vsub.s32 0, %v749
        %v751 = vrot.slane %v746, %v750
        %v752 = vlaneseq
        %v753 = vshrl.u32 %v752, 7
        %v754 = vsub.s32 1, %v753
        %v755 = vrot.slane %v746, %v754
        %v756 = vlaneseq
        %v757 = vshrl.u32 %v756, 7
        %v758 = vsub.s32 2, %v757
        %v759 = vrot.slane %v746, %v758
        %v760 = vlaneseq
        %v761 = vshrl.u32 %v760, 7
        %v762 = vsub.s32 3, %v761
        %v763 = vrot.slane %v746, %v762
        %v764 = vlaneseq
        %v765 = vshrl.u32 %v764, 7
        %v766 = vsub.s32 4, %v765
        %v767 = vrot.slane %v746, %v766
        %v768 = vlaneseq
        %v769 = vshrl.u32 %v768, 7
        %v770 = vsub.s32 5, %v769
        %v771 = vrot.slane %v746, %v770
        %v874 = vunpack.c.l.b16 %v650
        %v875 = vunpack.c.h.b16 %v650
        %v876 = vunpack.c.l.b16 %v651
        %v877 = vunpack.c.h.b16 %v651
        %v878 = vunpack.c.l.b16 %v652
        %v879 = vunpack.c.h.b16 %v652
        %v880 = vunpack.c.l.b16 %v653
        %v881 = vunpack.c.h.b16 %v653
        %v882 = vunpack.c.l.b16 %v654
        %v883 = vunpack.c.h.b16 %v654
        %v884 = vunpack.c.l.b16 %v655
        %v885 = vunpack.c.h.b16 %v655
        %v886 = vunpack.c.l.b16 %v656
        %v887 = vunpack.c.h.b16 %v656
        %v888 = vunpack.c.l.b16 %v657
        %v889 = vunpack.c.h.b16 %v657
        %v890 = vunpack.c.l.b16 %v658
        %v891 = vunpack.c.h.b16 %v658
        %v892 = vunpack.c.l.b16 %v659
        %v893 = vunpack.c.h.b16 %v659
        %v894 = vunpack.c.l.b16 %v660
        %v895 = vunpack.c.h.b16 %v660
        %v896 = vunpack.c.l.b16 %v661
        %v897 = vunpack.c.h.b16 %v661
        %v898 = vunpack.c.l.b16 %v662
        %v899 = vunpack.c.h.b16 %v662
        %v900 = vunpack.c.l.b16 %v663
        %v901 = vunpack.c.h.b16 %v663
        %v902 = vunpack.c.l.b16 %v664
        %v903 = vunpack.c.h.b16 %v664
        %v904 = vunpack.c.l.b16 %v665
        %v905 = vunpack.c.h.b16 %v665
        %v906 = vunpack.c.l.b16 %v666
        %v907 = vunpack.c.h.b16 %v666
        %v908 = vunpack.c.l.b16 %v667
        %v909 = vunpack.c.h.b16 %v667
        %v910 = vunpack.c.l.b16 %v668
        %v911 = vunpack.c.h.b16 %v668
        %v912 = vunpack.c.l.b16 %v669
        %v913 = vunpack.c.h.b16 %v669
        %v914 = vunpack.c.l.b16 %v670
        %v915 = vunpack.c.h.b16 %v670
        %v916 = vunpack.c.l.b16 %v671
        %v917 = vunpack.c.h.b16 %v671
        %v918 = vunpack.c.l.b16 %v672
        %v919 = vunpack.c.h.b16 %v672
        %v920 = vunpack.c.l.b16 %v673
        %v921 = vunpack.c.h.b16 %v673
        %v922 = vunpack.c.l.b16 %v674
        %v923 = vunpack.c.h.b16 %v674
        %v924 = vunpack.c.l.b16 %v675
        %v925 = vunpack.c.h.b16 %v675
        %v926 = vunpack.c.l.b16 %v676
        %v927 = vunpack.c.h.b16 %v676
        %v928 = vunpack.c.l.b16 %v677
        %v929 = vunpack.c.h.b16 %v677
        %v930 = vunpack.c.l.b16 %v678
        %v931 = vunpack.c.h.b16 %v678
        %v932 = vunpack.c.l.b16 %v679
        %v933 = vunpack.c.h.b16 %v679
        %v934 = vunpack.c.l.b16 %v680
        %v935 = vunpack.c.h.b16 %v680
        %v936 = vunpack.c.l.b16 %v681
        %v937 = vunpack.c.h.b16 %v681
        %v938 = vunpack.c.l.b16 %v682
        %v939 = vunpack.c.h.b16 %v682
        %v940 = vunpack.c.l.b16 %v683
        %v941 = vunpack.c.h.b16 %v683
        %v942 = vunpack.c.l.b16 %v684
        %v943 = vunpack.c.h.b16 %v684
        %v944 = vunpack.c.l.b16 %v685
        %v945 = vunpack.c.h.b16 %v685
        %v946 = vunpack.c.l.b16 %v686
        %v947 = vunpack.c.h.b16 %v686
        %v948 = vunpack.c.l.b16 %v687
        %v949 = vunpack.c.h.b16 %v687
        %v950 = vunpack.c.l.b16 %v688
        %v951 = vunpack.c.h.b16 %v688
        %v952 = vunpack.c.l.b16 %v689
        %v953 = vunpack.c.h.b16 %v689
        %v954 = vunpack.c.l.b16 %v690
        %v955 = vunpack.c.h.b16 %v690
        %v956 = vunpack.c.l.b16 %v691
        %v957 = vunpack.c.h.b16 %v691
        %v958 = vunpack.c.l.b16 %v692
        %v959 = vunpack.c.h.b16 %v692
        %v960 = vunpack.c.l.b16 %v693
        %v961 = vunpack.c.h.b16 %v693
        %v962 = vunpack.c.l.b16 %v694
        %v963 = vunpack.c.h.b16 %v694
        %v964 = vunpack.c.l.b16 %v695
        %v965 = vunpack.c.h.b16 %v695
        %v966 = vunpack.c.l.b16 %v696
        %v967 = vunpack.c.h.b16 %v696
        %v968 = vunpack.c.l.b16 %v697
        %v969 = vunpack.c.h.b16 %v697
        %v970 = vunpack.c.l.b16 %v698
        %v971 = vunpack.c.h.b16 %v698
        %v972 = vunpack.c.l.b16 %v699
        %v973 = vunpack.c.h.b16 %v699
        %v974 = vunpack.c.l.b16 %v700
        %v975 = vunpack.c.h.b16 %v700
        %v976 = vunpack.c.l.b16 %v701
        %v977 = vunpack.c.h.b16 %v701
        %v978 = vunpack.c.l.b16 %v702
        %v979 = vunpack.c.h.b16 %v702
        %v980 = vunpack.c.l.b16 %v703
        %v981 = vunpack.c.h.b16 %v703
        %v982 = vunpack.c.l.b16 %v704
        %v983 = vunpack.c.h.b16 %v704
        %v984 = vunpack.c.l.b16 %v705
        %v985 = vunpack.c.h.b16 %v705
        %v986 = vunpack.c.l.b16 %v706
        %v987 = vunpack.c.h.b16 %v706
        %v988 = vunpack.c.l.b16 %v707
        %v989 = vunpack.c.h.b16 %v707
        %v990 = vunpack.c.l.b16 %v708
        %v991 = vunpack.c.h.b16 %v708
        %v992 = vunpack.c.l.b16 %v709
        %v993 = vunpack.c.h.b16 %v709
        %v994 = vunpack.c.l.b16 %v710
        %v995 = vunpack.c.h.b16 %v710
        %v996 = vunpack.c.l.b16 %v711
        %v997 = vunpack.c.h.b16 %v711
        %v998 = vunpack.c.l.b16 %v712
        %v999 = vunpack.c.h.b16 %v712
        %v1000 = vunpack.c.l.b16 %v713
        %v1001 = vunpack.c.h.b16 %v713
        %v1002 = vunpack.c.l.b16 %v714
        %v1003 = vunpack.c.h.b16 %v714
        %v1004 = vunpack.c.l.b16 %v715
        %v1005 = vunpack.c.h.b16 %v715
        %v1006 = vunpack.c.l.b16 %v716
        %v1007 = vunpack.c.h.b16 %v716
        %v1008 = vunpack.c.l.b16 %v717
        %v1009 = vunpack.c.h.b16 %v717
        %v1010 = vunpack.c.l.b16 %v718
        %v1011 = vunpack.c.h.b16 %v718
        %v1012 = vunpack.c.l.b16 %v719
        %v1013 = vunpack.c.h.b16 %v719
        %v1014 = vunpack.c.l.b16 %v720
        %v1015 = vunpack.c.h.b16 %v720
        %v1016 = vunpack.c.l.b16 %v721
        %v1017 = vunpack.c.h.b16 %v721
        %v1018 = vunpack.c.l.b16 %v722
        %v1019 = vunpack.c.h.b16 %v722
        %v1020 = vunpack.c.l.b16 %v723
        %v1021 = vunpack.c.h.b16 %v723
        %v1022 = vunpack.c.l.b16 %v724
        %v1023 = vunpack.c.h.b16 %v724
        %v1024 = vunpack.c.l.b16 %v725
        %v1025 = vunpack.c.h.b16 %v725
        %v1026 = vunpack.c.l.b16 %v726
        %v1027 = vunpack.c.h.b16 %v726
        %v1028 = vunpack.c.l.b16 %v727
        %v1029 = vunpack.c.h.b16 %v727
        %v1030 = vunpack.c.l.b16 %v728
        %v1031 = vunpack.c.h.b16 %v728
        %v1032 = vunpack.c.l.b16 %v729
        %v1033 = vunpack.c.h.b16 %v729
        %v1034 = vunpack.c.l.b16 %v730
        %v1035 = vunpack.c.h.b16 %v730
        %v1036 = vunpack.c.l.b16 %v731
        %v1037 = vunpack.c.h.b16 %v731
        %v1038 = vunpack.c.l.b16 %v732
        %v1039 = vunpack.c.h.b16 %v732
        %v1040 = vunpack.c.l.b16 %v733
        %v1041 = vunpack.c.h.b16 %v733
        %v1042 = vunpack.c.l.b16 %v734
        %v1043 = vunpack.c.h.b16 %v734
        %v1044 = vunpack.c.l.b16 %v735
        %v1045 = vunpack.c.h.b16 %v735
        %v1046 = vunpack.c.l.b16 %v736
        %v1047 = vunpack.c.h.b16 %v736
        %v1048 = vunpack.c.l.b16 %v737
        %v1049 = vunpack.c.h.b16 %v737
        %v1050 = vunpack.c.l.b16 %v738
        %v1051 = vunpack.c.h.b16 %v738
        %v1052 = vunpack.c.l.b16 %v739
        %v1053 = vunpack.c.h.b16 %v739
        %v1054 = vunpack.c.l.b16 %v740
        %v1055 = vunpack.c.h.b16 %v740
        %v1056 = vunpack.c.l.b16 %v741
        %v1057 = vunpack.c.h.b16 %v741
        %v1058 = vunpack.c.l.b16 %v742
        %v1059 = vunpack.c.h.b16 %v742
        %v1060 = vunpack.c.l.b16 %v743
        %v1061 = vunpack.c.h.b16 %v743
        %v1062 = vunpack.c.l.b16 %v744
        %v1063 = vunpack.c.h.b16 %v744
        %v1064 = vunpack.c.l.b16 %v745
        %v1065 = vunpack.c.h.b16 %v745
        %v1066 = vpack.c.b16 %v880, %v874
        %v1067 = vpack.c.b16 %v881, %v875
        %v1068 = vpack.c.b16 %v882, %v876
        %v1069 = vpack.c.b16 %v883, %v877
        %v1070 = vpack.c.b16 %v884, %v878
        %v1071 = vpack.c.b16 %v885, %v879
        %v1072 = vpack.c.b16 %v892, %v886
        %v1073 = vpack.c.b16 %v893, %v887
        %v1074 = vpack.c.b16 %v894, %v888
        %v1075 = vpack.c.b16 %v895, %v889
        %v1076 = vpack.c.b16 %v896, %v890
        %v1077 = vpack.c.b16 %v897, %v891
        %v1078 = vpack.c.b16 %v904, %v898
        %v1079 = vpack.c.b16 %v905, %v899
        %v1080 = vpack.c.b16 %v906, %v900
        %v1081 = vpack.c.b16 %v907, %v901
        %v1082 = vpack.c.b16 %v908, %v902
        %v1083 = vpack.c.b16 %v909, %v903
        %v1084 = vpack.c.b16 %v916, %v910
        %v1085 = vpack.c.b16 %v917, %v911
        %v1086 = vpack.c.b16 %v918, %v912
        %v1087 = vpack.c.b16 %v919, %v913
        %v1088 = vpack.c.b16 %v920, %v914
        %v1089 = vpack.c.b16 %v921, %v915
        %v1090 = vpack.c.b16 %v928, %v922
        %v1091 = vpack.c.b16 %v929, %v923
        %v1092 = vpack.c.b16 %v930, %v924
        %v1093 = vpack.c.b16 %v931, %v925
        %v1094 = vpack.c.b16 %v932, %v926
        %v1095 = vpack.c.b16 %v933, %v927
        %v1096 = vpack.c.b16 %v940, %v934
        %v1097 = vpack.c.b16 %v941, %v935
        %v1098 = vpack.c.b16 %v942, %v936
        %v1099 = vpack.c.b16 %v943, %v937
        %v1100 = vpack.c.b16 %v944, %v938
        %v1101 = vpack.c.b16 %v945, %v939
        %v1102 = vpack.c.b16 %v952, %v946
        %v1103 = vpack.c.b16 %v953, %v947
        %v1104 = vpack.c.b16 %v954, %v948
        %v1105 = vpack.c.b16 %v955, %v949
        %v1106 = vpack.c.b16 %v956, %v950
        %v1107 = vpack.c.b16 %v957, %v951
        %v1108 = vpack.c.b16 %v964, %v958
        %v1109 = vpack.c.b16 %v965, %v959
        %v1110 = vpack.c.b16 %v966, %v960
        %v1111 = vpack.c.b16 %v967, %v961
        %v1112 = vpack.c.b16 %v968, %v962
        %v1113 = vpack.c.b16 %v969, %v963
        %v1114 = vpack.c.b16 %v976, %v970
        %v1115 = vpack.c.b16 %v977, %v971
        %v1116 = vpack.c.b16 %v978, %v972
        %v1117 = vpack.c.b16 %v979, %v973
        %v1118 = vpack.c.b16 %v980, %v974
        %v1119 = vpack.c.b16 %v981, %v975
        %v1120 = vpack.c.b16 %v988, %v982
        %v1121 = vpack.c.b16 %v989, %v983
        %v1122 = vpack.c.b16 %v990, %v984
        %v1123 = vpack.c.b16 %v991, %v985
        %v1124 = vpack.c.b16 %v992, %v986
        %v1125 = vpack.c.b16 %v993, %v987
        %v1126 = vpack.c.b16 %v1000, %v994
        %v1127 = vpack.c.b16 %v1001, %v995
        %v1128 = vpack.c.b16 %v1002, %v996
        %v1129 = vpack.c.b16 %v1003, %v997
        %v1130 = vpack.c.b16 %v1004, %v998
        %v1131 = vpack.c.b16 %v1005, %v999
        %v1132 = vpack.c.b16 %v1012, %v1006
        %v1133 = vpack.c.b16 %v1013, %v1007
        %v1134 = vpack.c.b16 %v1014, %v1008
        %v1135 = vpack.c.b16 %v1015, %v1009
        %v1136 = vpack.c.b16 %v1016, %v1010
        %v1137 = vpack.c.b16 %v1017, %v1011
        %v1138 = vpack.c.b16 %v1024, %v1018
        %v1139 = vpack.c.b16 %v1025, %v1019
        %v1140 = vpack.c.b16 %v1026, %v1020
        %v1141 = vpack.c.b16 %v1027, %v1021
        %v1142 = vpack.c.b16 %v1028, %v1022
        %v1143 = vpack.c.b16 %v1029, %v1023
        %v1144 = vpack.c.b16 %v1036, %v1030
        %v1145 = vpack.c.b16 %v1037, %v1031
        %v1146 = vpack.c.b16 %v1038, %v1032
        %v1147 = vpack.c.b16 %v1039, %v1033
        %v1148 = vpack.c.b16 %v1040, %v1034
        %v1149 = vpack.c.b16 %v1041, %v1035
        %v1150 = vpack.c.b16 %v1048, %v1042
        %v1151 = vpack.c.b16 %v1049, %v1043
        %v1152 = vpack.c.b16 %v1050, %v1044
        %v1153 = vpack.c.b16 %v1051, %v1045
        %v1154 = vpack.c.b16 %v1052, %v1046
        %v1155 = vpack.c.b16 %v1053, %v1047
        %v1156 = vpack.c.b16 %v1060, %v1054
        %v1157 = vpack.c.b16 %v1061, %v1055
        %v1158 = vpack.c.b16 %v1062, %v1056
        %v1159 = vpack.c.b16 %v1063, %v1057
        %v1160 = vpack.c.b16 %v1064, %v1058
        %v1161 = vpack.c.b16 %v1065, %v1059
        %1258 = vmatprep.subr.bf16.mxu0 %v1067
        %1259 = vmatpush1.bf16.msra.mxu0 %v1066
        %1260 = vmatprep.subr.bf16.mxu0 %v1073
        %1261 = vmatpush1.bf16.msra.mxu0 %v1072
        %1262 = vmatprep.subr.bf16.mxu0 %v1079
        %1263 = vmatpush1.bf16.msra.mxu0 %v1078
        %1264 = vmatprep.subr.bf16.mxu0 %v1085
        %1265 = vmatpush1.bf16.msra.mxu0 %v1084
        %1266 = vmatprep.subr.bf16.mxu0 %v1091
        %1267 = vmatpush1.bf16.msra.mxu0 %v1090
        %1268 = vmatprep.subr.bf16.mxu0 %v1097
        %1269 = vmatpush1.bf16.msra.mxu0 %v1096
        %1270 = vmatprep.subr.bf16.mxu0 %v1103
        %1271 = vmatpush1.bf16.msra.mxu0 %v1102
        %1272 = vmatprep.subr.bf16.mxu0 %v1109
        %1273 = vmatpush1.bf16.msra.mxu0 %v1108
        %1274 = vmatprep.subr.bf16.mxu0 %v1115
        %1275 = vmatpush1.bf16.msra.mxu0 %v1114
        %1276 = vmatprep.subr.bf16.mxu0 %v1121
        %1277 = vmatpush1.bf16.msra.mxu0 %v1120
        %1278 = vmatprep.subr.bf16.mxu0 %v1127
        %1279 = vmatpush1.bf16.msra.mxu0 %v1126
        %1280 = vmatprep.subr.bf16.mxu0 %v1133
        %1281 = vmatpush1.bf16.msra.mxu0 %v1132
        %1282 = vmatprep.subr.bf16.mxu0 %v1139
        %1283 = vmatpush1.bf16.msra.mxu0 %v1138
        %1284 = vmatprep.subr.bf16.mxu0 %v1145
        %1285 = vmatpush1.bf16.msra.mxu0 %v1144
        %1286 = vmatprep.subr.bf16.mxu0 %v1151
        %1287 = vmatpush1.bf16.msra.mxu0 %v1150
        %1288 = vmatprep.subr.bf16.mxu0 %v1157
        %1289 = vmatpush1.bf16.msra.mxu0 %v1156
        %1290 = vmatprep.mubr.bf16.mxu0 %v649
        %1291 = vmatmul.mubr.bf16.gmra.mrb[0].mxu0 %v648
        %v1292 = vpop.f32.mrb[0].mxu0
        %v1293 = vadd.f32 %v751, %v1292
        %v1294 = vpop.f32.mrb[0].mxu0
        %v1295 = vadd.f32 %v755, %v1294
        %v1296 = vpop.f32.mrb[0].mxu0
        %v1297 = vpop.f32.mrb[0].mxu0
        %1298 = vdwg.mxu0
        %1299 = vmatprep.subr.bf16.mxu0 %v1069
        %1300 = vmatpush1.bf16.msra.mxu0 %v1068
        %1301 = vmatprep.subr.bf16.mxu0 %v1075
        %1302 = vmatpush1.bf16.msra.mxu0 %v1074
        %1303 = vmatprep.subr.bf16.mxu0 %v1081
        %1304 = vmatpush1.bf16.msra.mxu0 %v1080
        %1305 = vmatprep.subr.bf16.mxu0 %v1087
        %1306 = vmatpush1.bf16.msra.mxu0 %v1086
        %1307 = vmatprep.subr.bf16.mxu0 %v1093
        %1308 = vmatpush1.bf16.msra.mxu0 %v1092
        %1309 = vmatprep.subr.bf16.mxu0 %v1099
        %1310 = vmatpush1.bf16.msra.mxu0 %v1098
        %1311 = vmatprep.subr.bf16.mxu0 %v1105
        %1312 = vmatpush1.bf16.msra.mxu0 %v1104
        %1313 = vmatprep.subr.bf16.mxu0 %v1111
        %1314 = vmatpush1.bf16.msra.mxu0 %v1110
        %1315 = vmatprep.subr.bf16.mxu0 %v1117
        %1316 = vmatpush1.bf16.msra.mxu0 %v1116
        %1317 = vmatprep.subr.bf16.mxu0 %v1123
        %1318 = vmatpush1.bf16.msra.mxu0 %v1122
        %1319 = vmatprep.subr.bf16.mxu0 %v1129
        %1320 = vmatpush1.bf16.msra.mxu0 %v1128
        %1321 = vmatprep.subr.bf16.mxu0 %v1135
        %1322 = vmatpush1.bf16.msra.mxu0 %v1134
        %1323 = vmatprep.subr.bf16.mxu0 %v1141
        %1324 = vmatpush1.bf16.msra.mxu0 %v1140
        %1325 = vmatprep.subr.bf16.mxu0 %v1147
        %1326 = vmatpush1.bf16.msra.mxu0 %v1146
        %1327 = vmatprep.subr.bf16.mxu0 %v1153
        %1328 = vmatpush1.bf16.msra.mxu0 %v1152
        %1329 = vmatprep.subr.bf16.mxu0 %v1159
        %1330 = vmatpush1.bf16.msra.mxu0 %v1158
        %1331 = vmatprep.mubr.bf16.mxu0 %v649
        %1332 = vmatmul.mubr.bf16.gmra.mrb[0].mxu0 %v648
        %v1333 = vpop.f32.mrb[0].mxu0
        %v1334 = vadd.f32 %v759, %v1333
        %v1335 = vpop.f32.mrb[0].mxu0
        %v1336 = vadd.f32 %v763, %v1335
        %v1337 = vpop.f32.mrb[0].mxu0
        %v1338 = vpop.f32.mrb[0].mxu0
        %1339 = vdwg.mxu0
        %1340 = vmatprep.subr.bf16.mxu0 %v1071
        %1341 = vmatpush1.bf16.msra.mxu0 %v1070
        %1342 = vmatprep.subr.bf16.mxu0 %v1077
        %1343 = vmatpush1.bf16.msra.mxu0 %v1076
        %1344 = vmatprep.subr.bf16.mxu0 %v1083
        %1345 = vmatpush1.bf16.msra.mxu0 %v1082
        %1346 = vmatprep.subr.bf16.mxu0 %v1089
        %1347 = vmatpush1.bf16.msra.mxu0 %v1088
        %1348 = vmatprep.subr.bf16.mxu0 %v1095
        %1349 = vmatpush1.bf16.msra.mxu0 %v1094
        %1350 = vmatprep.subr.bf16.mxu0 %v1101
        %1351 = vmatpush1.bf16.msra.mxu0 %v1100
        %1352 = vmatprep.subr.bf16.mxu0 %v1107
        %1353 = vmatpush1.bf16.msra.mxu0 %v1106
        %1354 = vmatprep.subr.bf16.mxu0 %v1113
        %1355 = vmatpush1.bf16.msra.mxu0 %v1112
        %1356 = vmatprep.subr.bf16.mxu0 %v1119
        %1357 = vmatpush1.bf16.msra.mxu0 %v1118
        %1358 = vmatprep.subr.bf16.mxu0 %v1125
        %1359 = vmatpush1.bf16.msra.mxu0 %v1124
        %1360 = vmatprep.subr.bf16.mxu0 %v1131
        %1361 = vmatpush1.bf16.msra.mxu0 %v1130
        %1362 = vmatprep.subr.bf16.mxu0 %v1137
        %1363 = vmatpush1.bf16.msra.mxu0 %v1136
        %1364 = vmatprep.subr.bf16.mxu0 %v1143
        %1365 = vmatpush1.bf16.msra.mxu0 %v1142
        %1366 = vmatprep.subr.bf16.mxu0 %v1149
        %1367 = vmatpush1.bf16.msra.mxu0 %v1148
        %1368 = vmatprep.subr.bf16.mxu0 %v1155
        %1369 = vmatpush1.bf16.msra.mxu0 %v1154
        %1370 = vmatprep.subr.bf16.mxu0 %v1161
        %1371 = vmatpush1.bf16.msra.mxu0 %v1160
        %1372 = vmatprep.mubr.bf16.mxu0 %v649
        %1373 = vmatmul.mubr.bf16.gmra.mrb[0].mxu0 %v648
        %v1374 = vpop.f32.mrb[0].mxu0
        %v1375 = vadd.f32 %v767, %v1374
        %v1376 = vpop.f32.mrb[0].mxu0
        %v1377 = vadd.f32 %v771, %v1376
        %v1378 = vpop.f32.mrb[0].mxu0
        %v1379 = vpop.f32.mrb[0].mxu0
        %1380 = vdwg.mxu0
        %v1381 = vmul.f32 %v1293, 0.088388346
        %v1382 = vpack.c.bf16 %v1381, %v1381
        %v1383 = vpack.c.bf16 %v1334, %v1334
        %v1384 = vpack.c.bf16 %v1375, %v1375
        %1385 = vmatprep.subr.bf16.mxu0 0
        %1386 = vmatpush1.bf16.xpose.msra.mxu0 %v1383
        %1387 = vmatprep.subr.bf16.mxu0 0
        %1388 = vmatpush1.bf16.xpose.msra.mxu0 0
        %1389 = vmatprep.subr.bf16.mxu0 0
        %1390 = vmatpush1.bf16.xpose.msra.mxu0 0
        %1391 = vmatprep.subr.bf16.mxu0 0
        %1392 = vmatpush1.bf16.xpose.msra.mxu0 0
        %1393 = vmatprep.subr.bf16.mxu0 0
        %1394 = vmatpush1.bf16.xpose.msra.mxu0 0
        %1395 = vmatprep.subr.bf16.mxu0 0
        %1396 = vmatpush1.bf16.xpose.msra.mxu0 0
        %1397 = vmatprep.subr.bf16.mxu0 0
        %1398 = vmatpush1.bf16.xpose.msra.mxu0 0
        %1399 = vmatprep.subr.bf16.mxu0 0
        %1400 = vmatpush1.bf16.xpose.msra.mxu0 0
        %1401 = vmatprep.subr.bf16.mxu0 0
        %1402 = vmatpush1.bf16.xpose.msra.mxu0 0
        %1403 = vmatprep.subr.bf16.mxu0 0
        %1404 = vmatpush1.bf16.xpose.msra.mxu0 0
        %1405 = vmatprep.subr.bf16.mxu0 0
        %1406 = vmatpush1.bf16.xpose.msra.mxu0 0
        %1407 = vmatprep.subr.bf16.mxu0 0
        %1408 = vmatpush1.bf16.xpose.msra.mxu0 0
        %1409 = vmatprep.subr.bf16.mxu0 0
        %1410 = vmatpush1.bf16.xpose.msra.mxu0 0
        %1411 = vmatprep.subr.bf16.mxu0 0
        %1412 = vmatpush1.bf16.xpose.msra.mxu0 0
        %1413 = vmatprep.subr.bf16.mxu0 0
        %1414 = vmatpush1.bf16.xpose.msra.mxu0 0
        %1415 = vmatprep.subr.bf16.mxu0 0
        %1416 = vmatpush1.bf16.xpose.msra.mxu0 0
        %1417 = vmatprep.mubr.bf16.mxu0 0
        %1418 = vmatmul.mubr.bf16.gmra.mrb[0].mxu0 %v1382
        %v1419 = vpop.f32.mrb[0].mxu0
        %v1420 = vadd.f32 %v602, %v1419
        %v1421 = vpop.f32.mrb[0].mxu0
        %v1422 = vpop.f32.mrb[0].mxu0
        %v1423 = vpop.f32.mrb[0].mxu0
        %1424 = vdwg.mxu0
        %vm1425 = vcmask 64512
        %v1426 = vsel %vm1425, %v1420, -inf
        %1427 = vmax.xlane.f32.xlu0 %v1426
        %v1428 = vpop.xlane.xlu0 %1427
        %v1429 = vsub.f32 %v1420, %v1428
        %v1430 = vmul.f32 %v1429, 1.442695
        %v1431 = vpow.pop %v1430
        %v1432 = vsel %vm1425, %v1431, 0.0
        %1433 = vadd.xlane.f32.xlu0 %v1432
        %v1434 = vpop.xlane.xlu0 %1433
        %v1435 = vrcp.pop %v1434
        %v1436 = vmul.f32 %v1431, %v1435
        %v1437 = vpack.c.bf16 %v1436, %v1436
        %v1439 = vsel %vm1425, %v1437, 0
        %vm1441 = vcmask 1043456
        %v1443 = vsel %vm1441, %v1384, 0
        %1445 = vmatprep.subr.bf16.mxu0 0
        %1446 = vmatpush1.bf16.msra.mxu0 %v1443
        %1447 = vmatprep.subr.bf16.mxu0 0
        %1448 = vmatpush1.bf16.msra.mxu0 0
        %1449 = vmatprep.subr.bf16.mxu0 0
        %1450 = vmatpush1.bf16.msra.mxu0 0
        %1451 = vmatprep.subr.bf16.mxu0 0
        %1452 = vmatpush1.bf16.msra.mxu0 0
        %1453 = vmatprep.subr.bf16.mxu0 0
        %1454 = vmatpush1.bf16.msra.mxu0 0
        %1455 = vmatprep.subr.bf16.mxu0 0
        %1456 = vmatpush1.bf16.msra.mxu0 0
        %1457 = vmatprep.subr.bf16.mxu0 0
        %1458 = vmatpush1.bf16.msra.mxu0 0
        %1459 = vmatprep.subr.bf16.mxu0 0
        %1460 = vmatpush1.bf16.msra.mxu0 0
        %1461 = vmatprep.subr.bf16.mxu0 0
        %1462 = vmatpush1.bf16.msra.mxu0 0
        %1463 = vmatprep.subr.bf16.mxu0 0
        %1464 = vmatpush1.bf16.msra.mxu0 0
        %1465 = vmatprep.subr.bf16.mxu0 0
        %1466 = vmatpush1.bf16.msra.mxu0 0
        %1467 = vmatprep.subr.bf16.mxu0 0
        %1468 = vmatpush1.bf16.msra.mxu0 0
        %1469 = vmatprep.subr.bf16.mxu0 0
        %1470 = vmatpush1.bf16.msra.mxu0 0
        %1471 = vmatprep.subr.bf16.mxu0 0
        %1472 = vmatpush1.bf16.msra.mxu0 0
        %1473 = vmatprep.subr.bf16.mxu0 0
        %1474 = vmatpush1.bf16.msra.mxu0 0
        %1475 = vmatprep.subr.bf16.mxu0 0
        %1476 = vmatpush1.bf16.msra.mxu0 0
        %1477 = vmatprep.mubr.bf16.mxu0 0
        %1478 = vmatmul.mubr.bf16.gmra.mrb[0].mxu0 %v1439
        %v1479 = vpop.f32.mrb[0].mxu0
        %v1480 = vadd.f32 0.0, %v1479
        %v1481 = vpop.f32.mrb[0].mxu0
        %v1482 = vpop.f32.mrb[0].mxu0
        %v1483 = vpop.f32.mrb[0].mxu0
        %1484 = vdwg.mxu0
        %v1485 = vmul.f32 %v1295, 0.088388346
        %v1486 = vpack.c.bf16 %v1485, %v1485
        %v1487 = vpack.c.bf16 %v1336, %v1336
        %v1488 = vpack.c.bf16 %v1377, %v1377
        %1489 = vmatprep.subr.bf16.mxu0 0
        %1490 = vmatpush1.bf16.xpose.msra.mxu0 %v1487
        %1491 = vmatprep.subr.bf16.mxu0 0
        %1492 = vmatpush1.bf16.xpose.msra.mxu0 0
        %1493 = vmatprep.subr.bf16.mxu0 0
        %1494 = vmatpush1.bf16.xpose.msra.mxu0 0
        %1495 = vmatprep.subr.bf16.mxu0 0
        %1496 = vmatpush1.bf16.xpose.msra.mxu0 0
        %1497 = vmatprep.subr.bf16.mxu0 0
        %1498 = vmatpush1.bf16.xpose.msra.mxu0 0
        %1499 = vmatprep.subr.bf16.mxu0 0
        %1500 = vmatpush1.bf16.xpose.msra.mxu0 0
        %1501 = vmatprep.subr.bf16.mxu0 0
        %1502 = vmatpush1.bf16.xpose.msra.mxu0 0
        %1503 = vmatprep.subr.bf16.mxu0 0
        %1504 = vmatpush1.bf16.xpose.msra.mxu0 0
        %1505 = vmatprep.subr.bf16.mxu0 0
        %1506 = vmatpush1.bf16.xpose.msra.mxu0 0
        %1507 = vmatprep.subr.bf16.mxu0 0
        %1508 = vmatpush1.bf16.xpose.msra.mxu0 0
        %1509 = vmatprep.subr.bf16.mxu0 0
        %1510 = vmatpush1.bf16.xpose.msra.mxu0 0
        %1511 = vmatprep.subr.bf16.mxu0 0
        %1512 = vmatpush1.bf16.xpose.msra.mxu0 0
        %1513 = vmatprep.subr.bf16.mxu0 0
        %1514 = vmatpush1.bf16.xpose.msra.mxu0 0
        %1515 = vmatprep.subr.bf16.mxu0 0
        %1516 = vmatpush1.bf16.xpose.msra.mxu0 0
        %1517 = vmatprep.subr.bf16.mxu0 0
        %1518 = vmatpush1.bf16.xpose.msra.mxu0 0
        %1519 = vmatprep.subr.bf16.mxu0 0
        %1520 = vmatpush1.bf16.xpose.msra.mxu0 0
        %1521 = vmatprep.mubr.bf16.mxu0 0
        %1522 = vmatmul.mubr.bf16.gmra.mrb[0].mxu0 %v1486
        %v1523 = vpop.f32.mrb[0].mxu0
        %v1524 = vadd.f32 %v602, %v1523
        %v1525 = vpop.f32.mrb[0].mxu0
        %v1526 = vpop.f32.mrb[0].mxu0
        %v1527 = vpop.f32.mrb[0].mxu0
        %1528 = vdwg.mxu0
        %v1529 = vsel %vm1425, %v1524, -inf
        %1530 = vmax.xlane.f32.xlu0 %v1529
        %v1531 = vpop.xlane.xlu0 %1530
        %v1532 = vsub.f32 %v1524, %v1531
        %v1533 = vmul.f32 %v1532, 1.442695
        %v1534 = vpow.pop %v1533
        %v1535 = vsel %vm1425, %v1534, 0.0
        %1536 = vadd.xlane.f32.xlu0 %v1535
        %v1537 = vpop.xlane.xlu0 %1536
        %v1538 = vrcp.pop %v1537
        %v1539 = vmul.f32 %v1534, %v1538
        %v1540 = vpack.c.bf16 %v1539, %v1539
        %v1542 = vsel %vm1425, %v1540, 0
        %v1545 = vsel %vm1441, %v1488, 0
        %1547 = vmatprep.subr.bf16.mxu0 0
        %1548 = vmatpush1.bf16.msra.mxu0 %v1545
        %1549 = vmatprep.subr.bf16.mxu0 0
        %1550 = vmatpush1.bf16.msra.mxu0 0
        %1551 = vmatprep.subr.bf16.mxu0 0
        %1552 = vmatpush1.bf16.msra.mxu0 0
        %1553 = vmatprep.subr.bf16.mxu0 0
        %1554 = vmatpush1.bf16.msra.mxu0 0
        %1555 = vmatprep.subr.bf16.mxu0 0
        %1556 = vmatpush1.bf16.msra.mxu0 0
        %1557 = vmatprep.subr.bf16.mxu0 0
        %1558 = vmatpush1.bf16.msra.mxu0 0
        %1559 = vmatprep.subr.bf16.mxu0 0
        %1560 = vmatpush1.bf16.msra.mxu0 0
        %1561 = vmatprep.subr.bf16.mxu0 0
        %1562 = vmatpush1.bf16.msra.mxu0 0
        %1563 = vmatprep.subr.bf16.mxu0 0
        %1564 = vmatpush1.bf16.msra.mxu0 0
        %1565 = vmatprep.subr.bf16.mxu0 0
        %1566 = vmatpush1.bf16.msra.mxu0 0
        %1567 = vmatprep.subr.bf16.mxu0 0
        %1568 = vmatpush1.bf16.msra.mxu0 0
        %1569 = vmatprep.subr.bf16.mxu0 0
        %1570 = vmatpush1.bf16.msra.mxu0 0
        %1571 = vmatprep.subr.bf16.mxu0 0
        %1572 = vmatpush1.bf16.msra.mxu0 0
        %1573 = vmatprep.subr.bf16.mxu0 0
        %1574 = vmatpush1.bf16.msra.mxu0 0
        %1575 = vmatprep.subr.bf16.mxu0 0
        %1576 = vmatpush1.bf16.msra.mxu0 0
        %1577 = vmatprep.subr.bf16.mxu0 0
        %1578 = vmatpush1.bf16.msra.mxu0 0
        %1579 = vmatprep.mubr.bf16.mxu0 0
        %1580 = vmatmul.mubr.bf16.gmra.mrb[0].mxu0 %v1542
        %v1581 = vpop.f32.mrb[0].mxu0
        %v1582 = vadd.f32 0.0, %v1581
        %v1583 = vpop.f32.mrb[0].mxu0
        %v1584 = vpop.f32.mrb[0].mxu0
        %v1585 = vpop.f32.mrb[0].mxu0
        %1586 = vdwg.mxu0
        %v1587 = vpack.c.bf16 %v1480, %v1480
        %v1588 = vpack.c.bf16 %v1582, %v1582
        %v1589 = vld [vmem:[#allocation5] sm:$0xff]
        %v1590 = vld [vmem:[#allocation5 + $0x8] sm:$0xff]
        %v1591 = vld [vmem:[#allocation5 + $0x10] sm:$0xff]
        %v1592 = vld [vmem:[#allocation5 + $0x18] sm:$0xff]
        %v1593 = vld [vmem:[#allocation5 + $0x20] sm:$0xff]
        %v1594 = vld [vmem:[#allocation5 + $0x28] sm:$0xff]
        %v1595 = vld [vmem:[#allocation5 + $0x30] sm:$0xff]
        %v1596 = vld [vmem:[#allocation5 + $0x38] sm:$0xff]
        %v1597 = vld [vmem:[#allocation5 + $0x40] sm:$0xff]
        %v1598 = vld [vmem:[#allocation5 + $0x48] sm:$0xff]
        %v1599 = vld [vmem:[#allocation5 + $0x50] sm:$0xff]
        %v1600 = vld [vmem:[#allocation5 + $0x58] sm:$0xff]
        %v1601 = vld [vmem:[#allocation5 + $0x60] sm:$0xff]
        %v1602 = vld [vmem:[#allocation5 + $0x68] sm:$0xff]
        %v1603 = vld [vmem:[#allocation5 + $0x70] sm:$0xff]
        %v1604 = vld [vmem:[#allocation5 + $0x78] sm:$0xff]
        %v1605 = vld [vmem:[#allocation5 + $0x80] sm:$0xff]
        %v1606 = vld [vmem:[#allocation5 + $0x88] sm:$0xff]
        %v1607 = vld [vmem:[#allocation5 + $0x90] sm:$0xff]
        %v1608 = vld [vmem:[#allocation5 + $0x98] sm:$0xff]
        %v1609 = vld [vmem:[#allocation5 + $0xa0] sm:$0xff]
        %v1610 = vld [vmem:[#allocation5 + $0xa8] sm:$0xff]
        %v1611 = vld [vmem:[#allocation5 + $0xb0] sm:$0xff]
        %v1612 = vld [vmem:[#allocation5 + $0xb8] sm:$0xff]
        %v1613 = vld [vmem:[#allocation5 + $0xc0] sm:$0xff]
        %v1614 = vld [vmem:[#allocation5 + $0xc8] sm:$0xff]
        %v1615 = vld [vmem:[#allocation5 + $0xd0] sm:$0xff]
        %v1616 = vld [vmem:[#allocation5 + $0xd8] sm:$0xff]
        %v1617 = vld [vmem:[#allocation5 + $0xe0] sm:$0xff]
        %v1618 = vld [vmem:[#allocation5 + $0xe8] sm:$0xff]
        %v1619 = vld [vmem:[#allocation5 + $0xf0] sm:$0xff]
        %v1620 = vld [vmem:[#allocation5 + $0xf8] sm:$0xff]
        %v1653 = vunpack.c.l.b16 %v1589
        %v1654 = vunpack.c.h.b16 %v1589
        %v1655 = vunpack.c.l.b16 %v1590
        %v1656 = vunpack.c.h.b16 %v1590
        %v1657 = vunpack.c.l.b16 %v1591
        %v1658 = vunpack.c.h.b16 %v1591
        %v1659 = vunpack.c.l.b16 %v1592
        %v1660 = vunpack.c.h.b16 %v1592
        %v1661 = vunpack.c.l.b16 %v1593
        %v1662 = vunpack.c.h.b16 %v1593
        %v1663 = vunpack.c.l.b16 %v1594
        %v1664 = vunpack.c.h.b16 %v1594
        %v1665 = vunpack.c.l.b16 %v1595
        %v1666 = vunpack.c.h.b16 %v1595
        %v1667 = vunpack.c.l.b16 %v1596
        %v1668 = vunpack.c.h.b16 %v1596
        %v1669 = vunpack.c.l.b16 %v1597
        %v1670 = vunpack.c.h.b16 %v1597
        %v1671 = vunpack.c.l.b16 %v1598
        %v1672 = vunpack.c.h.b16 %v1598
        %v1673 = vunpack.c.l.b16 %v1599
        %v1674 = vunpack.c.h.b16 %v1599
        %v1675 = vunpack.c.l.b16 %v1600
        %v1676 = vunpack.c.h.b16 %v1600
        %v1677 = vunpack.c.l.b16 %v1601
        %v1678 = vunpack.c.h.b16 %v1601
        %v1679 = vunpack.c.l.b16 %v1602
        %v1680 = vunpack.c.h.b16 %v1602
        %v1681 = vunpack.c.l.b16 %v1603
        %v1682 = vunpack.c.h.b16 %v1603
        %v1683 = vunpack.c.l.b16 %v1604
        %v1684 = vunpack.c.h.b16 %v1604
        %v1685 = vunpack.c.l.b16 %v1605
        %v1686 = vunpack.c.h.b16 %v1605
        %v1687 = vunpack.c.l.b16 %v1606
        %v1688 = vunpack.c.h.b16 %v1606
        %v1689 = vunpack.c.l.b16 %v1607
        %v1690 = vunpack.c.h.b16 %v1607
        %v1691 = vunpack.c.l.b16 %v1608
        %v1692 = vunpack.c.h.b16 %v1608
        %v1693 = vunpack.c.l.b16 %v1609
        %v1694 = vunpack.c.h.b16 %v1609
        %v1695 = vunpack.c.l.b16 %v1610
        %v1696 = vunpack.c.h.b16 %v1610
        %v1697 = vunpack.c.l.b16 %v1611
        %v1698 = vunpack.c.h.b16 %v1611
        %v1699 = vunpack.c.l.b16 %v1612
        %v1700 = vunpack.c.h.b16 %v1612
        %v1701 = vunpack.c.l.b16 %v1613
        %v1702 = vunpack.c.h.b16 %v1613
        %v1703 = vunpack.c.l.b16 %v1614
        %v1704 = vunpack.c.h.b16 %v1614
        %v1705 = vunpack.c.l.b16 %v1615
        %v1706 = vunpack.c.h.b16 %v1615
        %v1707 = vunpack.c.l.b16 %v1616
        %v1708 = vunpack.c.h.b16 %v1616
        %v1709 = vunpack.c.l.b16 %v1617
        %v1710 = vunpack.c.h.b16 %v1617
        %v1711 = vunpack.c.l.b16 %v1618
        %v1712 = vunpack.c.h.b16 %v1618
        %v1713 = vunpack.c.l.b16 %v1619
        %v1714 = vunpack.c.h.b16 %v1619
        %v1715 = vunpack.c.l.b16 %v1620
        %v1716 = vunpack.c.h.b16 %v1620
        %v1717 = vpack.c.b16 %v1655, %v1653
        %v1718 = vpack.c.b16 %v1656, %v1654
        %v1719 = vpack.c.b16 %v1659, %v1657
        %v1720 = vpack.c.b16 %v1660, %v1658
        %v1721 = vpack.c.b16 %v1663, %v1661
        %v1722 = vpack.c.b16 %v1664, %v1662
        %v1723 = vpack.c.b16 %v1667, %v1665
        %v1724 = vpack.c.b16 %v1668, %v1666
        %v1725 = vpack.c.b16 %v1671, %v1669
        %v1726 = vpack.c.b16 %v1672, %v1670
        %v1727 = vpack.c.b16 %v1675, %v1673
        %v1728 = vpack.c.b16 %v1676, %v1674
        %v1729 = vpack.c.b16 %v1679, %v1677
        %v1730 = vpack.c.b16 %v1680, %v1678
        %v1731 = vpack.c.b16 %v1683, %v1681
        %v1732 = vpack.c.b16 %v1684, %v1682
        %v1733 = vpack.c.b16 %v1687, %v1685
        %v1734 = vpack.c.b16 %v1688, %v1686
        %v1735 = vpack.c.b16 %v1691, %v1689
        %v1736 = vpack.c.b16 %v1692, %v1690
        %v1737 = vpack.c.b16 %v1695, %v1693
        %v1738 = vpack.c.b16 %v1696, %v1694
        %v1739 = vpack.c.b16 %v1699, %v1697
        %v1740 = vpack.c.b16 %v1700, %v1698
        %v1741 = vpack.c.b16 %v1703, %v1701
        %v1742 = vpack.c.b16 %v1704, %v1702
        %v1743 = vpack.c.b16 %v1707, %v1705
        %v1744 = vpack.c.b16 %v1708, %v1706
        %v1745 = vpack.c.b16 %v1711, %v1709
        %v1746 = vpack.c.b16 %v1712, %v1710
        %v1747 = vpack.c.b16 %v1715, %v1713
        %v1748 = vpack.c.b16 %v1716, %v1714
        %1781 = vmatprep.subr.bf16.mxu0 %v1718
        %1782 = vmatpush1.bf16.msra.mxu0 %v1717
        %1783 = vmatprep.subr.bf16.mxu0 %v1720
        %1784 = vmatpush1.bf16.msra.mxu0 %v1719
        %1785 = vmatprep.subr.bf16.mxu0 %v1722
        %1786 = vmatpush1.bf16.msra.mxu0 %v1721
        %1787 = vmatprep.subr.bf16.mxu0 %v1724
        %1788 = vmatpush1.bf16.msra.mxu0 %v1723
        %1789 = vmatprep.subr.bf16.mxu0 %v1726
        %1790 = vmatpush1.bf16.msra.mxu0 %v1725
        %1791 = vmatprep.subr.bf16.mxu0 %v1728
        %1792 = vmatpush1.bf16.msra.mxu0 %v1727
        %1793 = vmatprep.subr.bf16.mxu0 %v1730
        %1794 = vmatpush1.bf16.msra.mxu0 %v1729
        %1795 = vmatprep.subr.bf16.mxu0 %v1732
        %1796 = vmatpush1.bf16.msra.mxu0 %v1731
        %1797 = vmatprep.subr.bf16.mxu0 %v1734
        %1798 = vmatpush1.bf16.msra.mxu0 %v1733
        %1799 = vmatprep.subr.bf16.mxu0 %v1736
        %1800 = vmatpush1.bf16.msra.mxu0 %v1735
        %1801 = vmatprep.subr.bf16.mxu0 %v1738
        %1802 = vmatpush1.bf16.msra.mxu0 %v1737
        %1803 = vmatprep.subr.bf16.mxu0 %v1740
        %1804 = vmatpush1.bf16.msra.mxu0 %v1739
        %1805 = vmatprep.subr.bf16.mxu0 %v1742
        %1806 = vmatpush1.bf16.msra.mxu0 %v1741
        %1807 = vmatprep.subr.bf16.mxu0 %v1744
        %1808 = vmatpush1.bf16.msra.mxu0 %v1743
        %1809 = vmatprep.subr.bf16.mxu0 %v1746
        %1810 = vmatpush1.bf16.msra.mxu0 %v1745
        %1811 = vmatprep.subr.bf16.mxu0 %v1748
        %1812 = vmatpush1.bf16.msra.mxu0 %v1747
        %1813 = vmatprep.mubr.bf16.mxu0 %v1588
        %1814 = vmatmul.mubr.bf16.gmra.mrb[0].mxu0 %v1587
        %v1815 = vpop.f32.mrb[0].mxu0
        %v1816 = vadd.f32 0.0, %v1815
        %v1817 = vpop.f32.mrb[0].mxu0
        %v1818 = vadd.f32 0.0, %v1817
        %v1819 = vpop.f32.mrb[0].mxu0
        %v1820 = vpop.f32.mrb[0].mxu0
        %1821 = vdwg.mxu0
        %v1822 = vadd.f32 %v595, %v1816
        %v1823 = vadd.f32 %v596, %v1818
        %v1824 = vld [vmem:[%s6] sm:$0x3]
        %v1826 = vlaneseq
        %v1827 = vshrl.u32 %v1826, 7
        %v1828 = vsub.s32 0, %v1827
        %v1829 = vrot.slane %v1824, %v1828
        %v1830 = vlaneseq
        %v1831 = vshrl.u32 %v1830, 7
        %v1832 = vsub.s32 1, %v1831
        %v1833 = vrot.slane %v1824, %v1832
        %v1836 = vadd.f32 %v1822, %v1829
        %v1837 = vadd.f32 %v1823, %v1833
        %v1838 = vld [vmem:[%s7] sm:$0x3]
        %v1839 = vld [vmem:[%s8] sm:$0x3]
        %v1840 = vadd.f32 %v1836, %v1837
        %1841 = vadd.xlane.f32.xlu0 %v1840
        %v1842 = vpop.xlane.xlu0 %1841
        %v1843 = vmul.f32 %v1842, %v608
        %v1844 = vsub.f32 %v1836, %v1843
        %v1845 = vsub.f32 %v1837, %v1843
        %v1846 = vmul.f32 %v1844, %v1844
        %v1847 = vmul.f32 %v1845, %v1845
        %v1848 = vadd.f32 %v1846, %v1847
        %1849 = vadd.xlane.f32.xlu0 %v1848
        %v1850 = vpop.xlane.xlu0 %1849
        %v1851 = vmul.f32 %v1850, %v608
        %v1852 = vadd.f32 %v1851, 1e-05
        %v1853 = vrsqrt.pop %v1852
        %v1854 = vmul.f32 %v1844, %v1853
        %v1855 = vmul.f32 %v1845, %v1853
        %v1857 = vlaneseq
        %v1858 = vshrl.u32 %v1857, 7
        %v1859 = vsub.s32 0, %v1858
        %v1860 = vrot.slane %v1838, %v1859
        %v1861 = vlaneseq
        %v1862 = vshrl.u32 %v1861, 7
        %v1863 = vsub.s32 1, %v1862
        %v1864 = vrot.slane %v1838, %v1863
        %v1867 = vmul.f32 %v1854, %v1860
        %v1868 = vmul.f32 %v1855, %v1864
        %v1870 = vlaneseq
        %v1871 = vshrl.u32 %v1870, 7
        %v1872 = vsub.s32 0, %v1871
        %v1873 = vrot.slane %v1839, %v1872
        %v1874 = vlaneseq
        %v1875 = vshrl.u32 %v1874, 7
        %v1876 = vsub.s32 1, %v1875
        %v1877 = vrot.slane %v1839, %v1876
        %v1880 = vadd.f32 %v1867, %v1873
        %v1881 = vadd.f32 %v1868, %v1877
        %v1882 = vpack.c.bf16 %v1880, %v1880
        %v1883 = vpack.c.bf16 %v1881, %v1881
        %v1884 = vld [vmem:[#allocation7] sm:$0xff]
        %v1885 = vld [vmem:[#allocation7 + $0x8] sm:$0xff]
        %v1886 = vld [vmem:[#allocation7 + $0x10] sm:$0xff]
        %v1887 = vld [vmem:[#allocation7 + $0x18] sm:$0xff]
        %v1888 = vld [vmem:[#allocation7 + $0x20] sm:$0xff]
        %v1889 = vld [vmem:[#allocation7 + $0x28] sm:$0xff]
        %v1890 = vld [vmem:[#allocation7 + $0x30] sm:$0xff]
        %v1891 = vld [vmem:[#allocation7 + $0x38] sm:$0xff]
        %v1892 = vld [vmem:[#allocation7 + $0x40] sm:$0xff]
        %v1893 = vld [vmem:[#allocation7 + $0x48] sm:$0xff]
        %v1894 = vld [vmem:[#allocation7 + $0x50] sm:$0xff]
        %v1895 = vld [vmem:[#allocation7 + $0x58] sm:$0xff]
        %v1896 = vld [vmem:[#allocation7 + $0x60] sm:$0xff]
        %v1897 = vld [vmem:[#allocation7 + $0x68] sm:$0xff]
        %v1898 = vld [vmem:[#allocation7 + $0x70] sm:$0xff]
        %v1899 = vld [vmem:[#allocation7 + $0x78] sm:$0xff]
        %v1900 = vld [vmem:[#allocation7 + $0x80] sm:$0xff]
        %v1901 = vld [vmem:[#allocation7 + $0x88] sm:$0xff]
        %v1902 = vld [vmem:[#allocation7 + $0x90] sm:$0xff]
        %v1903 = vld [vmem:[#allocation7 + $0x98] sm:$0xff]
        %v1904 = vld [vmem:[#allocation7 + $0xa0] sm:$0xff]
        %v1905 = vld [vmem:[#allocation7 + $0xa8] sm:$0xff]
        %v1906 = vld [vmem:[#allocation7 + $0xb0] sm:$0xff]
        %v1907 = vld [vmem:[#allocation7 + $0xb8] sm:$0xff]
        %v1908 = vld [vmem:[#allocation7 + $0xc0] sm:$0xff]
        %v1909 = vld [vmem:[#allocation7 + $0xc8] sm:$0xff]
        %v1910 = vld [vmem:[#allocation7 + $0xd0] sm:$0xff]
        %v1911 = vld [vmem:[#allocation7 + $0xd8] sm:$0xff]
        %v1912 = vld [vmem:[#allocation7 + $0xe0] sm:$0xff]
        %v1913 = vld [vmem:[#allocation7 + $0xe8] sm:$0xff]
        %v1914 = vld [vmem:[#allocation7 + $0xf0] sm:$0xff]
        %v1915 = vld [vmem:[#allocation7 + $0xf8] sm:$0xff]
        %v1916 = vld [vmem:[#allocation7 + $0x100] sm:$0xff]
        %v1917 = vld [vmem:[#allocation7 + $0x108] sm:$0xff]
        %v1918 = vld [vmem:[#allocation7 + $0x110] sm:$0xff]
        %v1919 = vld [vmem:[#allocation7 + $0x118] sm:$0xff]
        %v1920 = vld [vmem:[#allocation7 + $0x120] sm:$0xff]
        %v1921 = vld [vmem:[#allocation7 + $0x128] sm:$0xff]
        %v1922 = vld [vmem:[#allocation7 + $0x130] sm:$0xff]
        %v1923 = vld [vmem:[#allocation7 + $0x138] sm:$0xff]
        %v1924 = vld [vmem:[#allocation7 + $0x140] sm:$0xff]
        %v1925 = vld [vmem:[#allocation7 + $0x148] sm:$0xff]
        %v1926 = vld [vmem:[#allocation7 + $0x150] sm:$0xff]
        %v1927 = vld [vmem:[#allocation7 + $0x158] sm:$0xff]
        %v1928 = vld [vmem:[#allocation7 + $0x160] sm:$0xff]
        %v1929 = vld [vmem:[#allocation7 + $0x168] sm:$0xff]
        %v1930 = vld [vmem:[#allocation7 + $0x170] sm:$0xff]
        %v1931 = vld [vmem:[#allocation7 + $0x178] sm:$0xff]
        %v1932 = vld [vmem:[#allocation7 + $0x180] sm:$0xff]
        %v1933 = vld [vmem:[#allocation7 + $0x188] sm:$0xff]
        %v1934 = vld [vmem:[#allocation7 + $0x190] sm:$0xff]
        %v1935 = vld [vmem:[#allocation7 + $0x198] sm:$0xff]
        %v1936 = vld [vmem:[#allocation7 + $0x1a0] sm:$0xff]
        %v1937 = vld [vmem:[#allocation7 + $0x1a8] sm:$0xff]
        %v1938 = vld [vmem:[#allocation7 + $0x1b0] sm:$0xff]
        %v1939 = vld [vmem:[#allocation7 + $0x1b8] sm:$0xff]
        %v1940 = vld [vmem:[#allocation7 + $0x1c0] sm:$0xff]
        %v1941 = vld [vmem:[#allocation7 + $0x1c8] sm:$0xff]
        %v1942 = vld [vmem:[#allocation7 + $0x1d0] sm:$0xff]
        %v1943 = vld [vmem:[#allocation7 + $0x1d8] sm:$0xff]
        %v1944 = vld [vmem:[#allocation7 + $0x1e0] sm:$0xff]
        %v1945 = vld [vmem:[#allocation7 + $0x1e8] sm:$0xff]
        %v1946 = vld [vmem:[#allocation7 + $0x1f0] sm:$0xff]
        %v1947 = vld [vmem:[#allocation7 + $0x1f8] sm:$0xff]
        %v1948 = vld [vmem:[#allocation7 + $0x200] sm:$0xff]
        %v1949 = vld [vmem:[#allocation7 + $0x208] sm:$0xff]
        %v1950 = vld [vmem:[#allocation7 + $0x210] sm:$0xff]
        %v1951 = vld [vmem:[#allocation7 + $0x218] sm:$0xff]
        %v1952 = vld [vmem:[#allocation7 + $0x220] sm:$0xff]
        %v1953 = vld [vmem:[#allocation7 + $0x228] sm:$0xff]
        %v1954 = vld [vmem:[#allocation7 + $0x230] sm:$0xff]
        %v1955 = vld [vmem:[#allocation7 + $0x238] sm:$0xff]
        %v1956 = vld [vmem:[#allocation7 + $0x240] sm:$0xff]
        %v1957 = vld [vmem:[#allocation7 + $0x248] sm:$0xff]
        %v1958 = vld [vmem:[#allocation7 + $0x250] sm:$0xff]
        %v1959 = vld [vmem:[#allocation7 + $0x258] sm:$0xff]
        %v1960 = vld [vmem:[#allocation7 + $0x260] sm:$0xff]
        %v1961 = vld [vmem:[#allocation7 + $0x268] sm:$0xff]
        %v1962 = vld [vmem:[#allocation7 + $0x270] sm:$0xff]
        %v1963 = vld [vmem:[#allocation7 + $0x278] sm:$0xff]
        %v1964 = vld [vmem:[#allocation7 + $0x280] sm:$0xff]
        %v1965 = vld [vmem:[#allocation7 + $0x288] sm:$0xff]
        %v1966 = vld [vmem:[#allocation7 + $0x290] sm:$0xff]
        %v1967 = vld [vmem:[#allocation7 + $0x298] sm:$0xff]
        %v1968 = vld [vmem:[#allocation7 + $0x2a0] sm:$0xff]
        %v1969 = vld [vmem:[#allocation7 + $0x2a8] sm:$0xff]
        %v1970 = vld [vmem:[#allocation7 + $0x2b0] sm:$0xff]
        %v1971 = vld [vmem:[#allocation7 + $0x2b8] sm:$0xff]
        %v1972 = vld [vmem:[#allocation7 + $0x2c0] sm:$0xff]
        %v1973 = vld [vmem:[#allocation7 + $0x2c8] sm:$0xff]
        %v1974 = vld [vmem:[#allocation7 + $0x2d0] sm:$0xff]
        %v1975 = vld [vmem:[#allocation7 + $0x2d8] sm:$0xff]
        %v1976 = vld [vmem:[#allocation7 + $0x2e0] sm:$0xff]
        %v1977 = vld [vmem:[#allocation7 + $0x2e8] sm:$0xff]
        %v1978 = vld [vmem:[#allocation7 + $0x2f0] sm:$0xff]
        %v1979 = vld [vmem:[#allocation7 + $0x2f8] sm:$0xff]
        %v1980 = vld [vmem:[#allocation7 + $0x300] sm:$0xff]
        %v1981 = vld [vmem:[#allocation7 + $0x308] sm:$0xff]
        %v1982 = vld [vmem:[#allocation7 + $0x310] sm:$0xff]
        %v1983 = vld [vmem:[#allocation7 + $0x318] sm:$0xff]
        %v1984 = vld [vmem:[#allocation7 + $0x320] sm:$0xff]
        %v1985 = vld [vmem:[#allocation7 + $0x328] sm:$0xff]
        %v1986 = vld [vmem:[#allocation7 + $0x330] sm:$0xff]
        %v1987 = vld [vmem:[#allocation7 + $0x338] sm:$0xff]
        %v1988 = vld [vmem:[#allocation7 + $0x340] sm:$0xff]
        %v1989 = vld [vmem:[#allocation7 + $0x348] sm:$0xff]
        %v1990 = vld [vmem:[#allocation7 + $0x350] sm:$0xff]
        %v1991 = vld [vmem:[#allocation7 + $0x358] sm:$0xff]
        %v1992 = vld [vmem:[#allocation7 + $0x360] sm:$0xff]
        %v1993 = vld [vmem:[#allocation7 + $0x368] sm:$0xff]
        %v1994 = vld [vmem:[#allocation7 + $0x370] sm:$0xff]
        %v1995 = vld [vmem:[#allocation7 + $0x378] sm:$0xff]
        %v1996 = vld [vmem:[#allocation7 + $0x380] sm:$0xff]
        %v1997 = vld [vmem:[#allocation7 + $0x388] sm:$0xff]
        %v1998 = vld [vmem:[#allocation7 + $0x390] sm:$0xff]
        %v1999 = vld [vmem:[#allocation7 + $0x398] sm:$0xff]
        %v2000 = vld [vmem:[#allocation7 + $0x3a0] sm:$0xff]
        %v2001 = vld [vmem:[#allocation7 + $0x3a8] sm:$0xff]
        %v2002 = vld [vmem:[#allocation7 + $0x3b0] sm:$0xff]
        %v2003 = vld [vmem:[#allocation7 + $0x3b8] sm:$0xff]
        %v2004 = vld [vmem:[#allocation7 + $0x3c0] sm:$0xff]
        %v2005 = vld [vmem:[#allocation7 + $0x3c8] sm:$0xff]
        %v2006 = vld [vmem:[#allocation7 + $0x3d0] sm:$0xff]
        %v2007 = vld [vmem:[#allocation7 + $0x3d8] sm:$0xff]
        %v2008 = vld [vmem:[#allocation7 + $0x3e0] sm:$0xff]
        %v2009 = vld [vmem:[#allocation7 + $0x3e8] sm:$0xff]
        %v2010 = vld [vmem:[#allocation7 + $0x3f0] sm:$0xff]
        %v2011 = vld [vmem:[#allocation7 + $0x3f8] sm:$0xff]
        %v2012 = vld [vmem:[%s10] sm:$0xff]
        %v2014 = vlaneseq
        %v2015 = vshrl.u32 %v2014, 7
        %v2016 = vsub.s32 0, %v2015
        %v2017 = vrot.slane %v2012, %v2016
        %v2018 = vlaneseq
        %v2019 = vshrl.u32 %v2018, 7
        %v2020 = vsub.s32 1, %v2019
        %v2021 = vrot.slane %v2012, %v2020
        %v2022 = vlaneseq
        %v2023 = vshrl.u32 %v2022, 7
        %v2024 = vsub.s32 2, %v2023
        %v2025 = vrot.slane %v2012, %v2024
        %v2026 = vlaneseq
        %v2027 = vshrl.u32 %v2026, 7
        %v2028 = vsub.s32 3, %v2027
        %v2029 = vrot.slane %v2012, %v2028
        %v2030 = vlaneseq
        %v2031 = vshrl.u32 %v2030, 7
        %v2032 = vsub.s32 4, %v2031
        %v2033 = vrot.slane %v2012, %v2032
        %v2034 = vlaneseq
        %v2035 = vshrl.u32 %v2034, 7
        %v2036 = vsub.s32 5, %v2035
        %v2037 = vrot.slane %v2012, %v2036
        %v2038 = vlaneseq
        %v2039 = vshrl.u32 %v2038, 7
        %v2040 = vsub.s32 6, %v2039
        %v2041 = vrot.slane %v2012, %v2040
        %v2042 = vlaneseq
        %v2043 = vshrl.u32 %v2042, 7
        %v2044 = vsub.s32 7, %v2043
        %v2045 = vrot.slane %v2012, %v2044
        %v2182 = vunpack.c.l.b16 %v1884
        %v2183 = vunpack.c.h.b16 %v1884
        %v2184 = vunpack.c.l.b16 %v1885
        %v2185 = vunpack.c.h.b16 %v1885
        %v2186 = vunpack.c.l.b16 %v1886
        %v2187 = vunpack.c.h.b16 %v1886
        %v2188 = vunpack.c.l.b16 %v1887
        %v2189 = vunpack.c.h.b16 %v1887
        %v2190 = vunpack.c.l.b16 %v1888
        %v2191 = vunpack.c.h.b16 %v1888
        %v2192 = vunpack.c.l.b16 %v1889
        %v2193 = vunpack.c.h.b16 %v1889
        %v2194 = vunpack.c.l.b16 %v1890
        %v2195 = vunpack.c.h.b16 %v1890
        %v2196 = vunpack.c.l.b16 %v1891
        %v2197 = vunpack.c.h.b16 %v1891
        %v2198 = vunpack.c.l.b16 %v1892
        %v2199 = vunpack.c.h.b16 %v1892
        %v2200 = vunpack.c.l.b16 %v1893
        %v2201 = vunpack.c.h.b16 %v1893
        %v2202 = vunpack.c.l.b16 %v1894
        %v2203 = vunpack.c.h.b16 %v1894
        %v2204 = vunpack.c.l.b16 %v1895
        %v2205 = vunpack.c.h.b16 %v1895
        %v2206 = vunpack.c.l.b16 %v1896
        %v2207 = vunpack.c.h.b16 %v1896
        %v2208 = vunpack.c.l.b16 %v1897
        %v2209 = vunpack.c.h.b16 %v1897
        %v2210 = vunpack.c.l.b16 %v1898
        %v2211 = vunpack.c.h.b16 %v1898
        %v2212 = vunpack.c.l.b16 %v1899
        %v2213 = vunpack.c.h.b16 %v1899
        %v2214 = vunpack.c.l.b16 %v1900
        %v2215 = vunpack.c.h.b16 %v1900
        %v2216 = vunpack.c.l.b16 %v1901
        %v2217 = vunpack.c.h.b16 %v1901
        %v2218 = vunpack.c.l.b16 %v1902
        %v2219 = vunpack.c.h.b16 %v1902
        %v2220 = vunpack.c.l.b16 %v1903
        %v2221 = vunpack.c.h.b16 %v1903
        %v2222 = vunpack.c.l.b16 %v1904
        %v2223 = vunpack.c.h.b16 %v1904
        %v2224 = vunpack.c.l.b16 %v1905
        %v2225 = vunpack.c.h.b16 %v1905
        %v2226 = vunpack.c.l.b16 %v1906
        %v2227 = vunpack.c.h.b16 %v1906
        %v2228 = vunpack.c.l.b16 %v1907
        %v2229 = vunpack.c.h.b16 %v1907
        %v2230 = vunpack.c.l.b16 %v1908
        %v2231 = vunpack.c.h.b16 %v1908
        %v2232 = vunpack.c.l.b16 %v1909
        %v2233 = vunpack.c.h.b16 %v1909
        %v2234 = vunpack.c.l.b16 %v1910
        %v2235 = vunpack.c.h.b16 %v1910
        %v2236 = vunpack.c.l.b16 %v1911
        %v2237 = vunpack.c.h.b16 %v1911
        %v2238 = vunpack.c.l.b16 %v1912
        %v2239 = vunpack.c.h.b16 %v1912
        %v2240 = vunpack.c.l.b16 %v1913
        %v2241 = vunpack.c.h.b16 %v1913
        %v2242 = vunpack.c.l.b16 %v1914
        %v2243 = vunpack.c.h.b16 %v1914
        %v2244 = vunpack.c.l.b16 %v1915
        %v2245 = vunpack.c.h.b16 %v1915
        %v2246 = vunpack.c.l.b16 %v1916
        %v2247 = vunpack.c.h.b16 %v1916
        %v2248 = vunpack.c.l.b16 %v1917
        %v2249 = vunpack.c.h.b16 %v1917
        %v2250 = vunpack.c.l.b16 %v1918
        %v2251 = vunpack.c.h.b16 %v1918
        %v2252 = vunpack.c.l.b16 %v1919
        %v2253 = vunpack.c.h.b16 %v1919
        %v2254 = vunpack.c.l.b16 %v1920
        %v2255 = vunpack.c.h.b16 %v1920
        %v2256 = vunpack.c.l.b16 %v1921
        %v2257 = vunpack.c.h.b16 %v1921
        %v2258 = vunpack.c.l.b16 %v1922
        %v2259 = vunpack.c.h.b16 %v1922
        %v2260 = vunpack.c.l.b16 %v1923
        %v2261 = vunpack.c.h.b16 %v1923
        %v2262 = vunpack.c.l.b16 %v1924
        %v2263 = vunpack.c.h.b16 %v1924
        %v2264 = vunpack.c.l.b16 %v1925
        %v2265 = vunpack.c.h.b16 %v1925
        %v2266 = vunpack.c.l.b16 %v1926
        %v2267 = vunpack.c.h.b16 %v1926
        %v2268 = vunpack.c.l.b16 %v1927
        %v2269 = vunpack.c.h.b16 %v1927
        %v2270 = vunpack.c.l.b16 %v1928
        %v2271 = vunpack.c.h.b16 %v1928
        %v2272 = vunpack.c.l.b16 %v1929
        %v2273 = vunpack.c.h.b16 %v1929
        %v2274 = vunpack.c.l.b16 %v1930
        %v2275 = vunpack.c.h.b16 %v1930
        %v2276 = vunpack.c.l.b16 %v1931
        %v2277 = vunpack.c.h.b16 %v1931
        %v2278 = vunpack.c.l.b16 %v1932
        %v2279 = vunpack.c.h.b16 %v1932
        %v2280 = vunpack.c.l.b16 %v1933
        %v2281 = vunpack.c.h.b16 %v1933
        %v2282 = vunpack.c.l.b16 %v1934
        %v2283 = vunpack.c.h.b16 %v1934
        %v2284 = vunpack.c.l.b16 %v1935
        %v2285 = vunpack.c.h.b16 %v1935
        %v2286 = vunpack.c.l.b16 %v1936
        %v2287 = vunpack.c.h.b16 %v1936
        %v2288 = vunpack.c.l.b16 %v1937
        %v2289 = vunpack.c.h.b16 %v1937
        %v2290 = vunpack.c.l.b16 %v1938
        %v2291 = vunpack.c.h.b16 %v1938
        %v2292 = vunpack.c.l.b16 %v1939
        %v2293 = vunpack.c.h.b16 %v1939
        %v2294 = vunpack.c.l.b16 %v1940
        %v2295 = vunpack.c.h.b16 %v1940
        %v2296 = vunpack.c.l.b16 %v1941
        %v2297 = vunpack.c.h.b16 %v1941
        %v2298 = vunpack.c.l.b16 %v1942
        %v2299 = vunpack.c.h.b16 %v1942
        %v2300 = vunpack.c.l.b16 %v1943
        %v2301 = vunpack.c.h.b16 %v1943
        %v2302 = vunpack.c.l.b16 %v1944
        %v2303 = vunpack.c.h.b16 %v1944
        %v2304 = vunpack.c.l.b16 %v1945
        %v2305 = vunpack.c.h.b16 %v1945
        %v2306 = vunpack.c.l.b16 %v1946
        %v2307 = vunpack.c.h.b16 %v1946
        %v2308 = vunpack.c.l.b16 %v1947
        %v2309 = vunpack.c.h.b16 %v1947
        %v2310 = vunpack.c.l.b16 %v1948
        %v2311 = vunpack.c.h.b16 %v1948
        %v2312 = vunpack.c.l.b16 %v1949
        %v2313 = vunpack.c.h.b16 %v1949
        %v2314 = vunpack.c.l.b16 %v1950
        %v2315 = vunpack.c.h.b16 %v1950
        %v2316 = vunpack.c.l.b16 %v1951
        %v2317 = vunpack.c.h.b16 %v1951
        %v2318 = vunpack.c.l.b16 %v1952
        %v2319 = vunpack.c.h.b16 %v1952
        %v2320 = vunpack.c.l.b16 %v1953
        %v2321 = vunpack.c.h.b16 %v1953
        %v2322 = vunpack.c.l.b16 %v1954
        %v2323 = vunpack.c.h.b16 %v1954
        %v2324 = vunpack.c.l.b16 %v1955
        %v2325 = vunpack.c.h.b16 %v1955
        %v2326 = vunpack.c.l.b16 %v1956
        %v2327 = vunpack.c.h.b16 %v1956
        %v2328 = vunpack.c.l.b16 %v1957
        %v2329 = vunpack.c.h.b16 %v1957
        %v2330 = vunpack.c.l.b16 %v1958
        %v2331 = vunpack.c.h.b16 %v1958
        %v2332 = vunpack.c.l.b16 %v1959
        %v2333 = vunpack.c.h.b16 %v1959
        %v2334 = vunpack.c.l.b16 %v1960
        %v2335 = vunpack.c.h.b16 %v1960
        %v2336 = vunpack.c.l.b16 %v1961
        %v2337 = vunpack.c.h.b16 %v1961
        %v2338 = vunpack.c.l.b16 %v1962
        %v2339 = vunpack.c.h.b16 %v1962
        %v2340 = vunpack.c.l.b16 %v1963
        %v2341 = vunpack.c.h.b16 %v1963
        %v2342 = vunpack.c.l.b16 %v1964
        %v2343 = vunpack.c.h.b16 %v1964
        %v2344 = vunpack.c.l.b16 %v1965
        %v2345 = vunpack.c.h.b16 %v1965
        %v2346 = vunpack.c.l.b16 %v1966
        %v2347 = vunpack.c.h.b16 %v1966
        %v2348 = vunpack.c.l.b16 %v1967
        %v2349 = vunpack.c.h.b16 %v1967
        %v2350 = vunpack.c.l.b16 %v1968
        %v2351 = vunpack.c.h.b16 %v1968
        %v2352 = vunpack.c.l.b16 %v1969
        %v2353 = vunpack.c.h.b16 %v1969
        %v2354 = vunpack.c.l.b16 %v1970
        %v2355 = vunpack.c.h.b16 %v1970
        %v2356 = vunpack.c.l.b16 %v1971
        %v2357 = vunpack.c.h.b16 %v1971
        %v2358 = vunpack.c.l.b16 %v1972
        %v2359 = vunpack.c.h.b16 %v1972
        %v2360 = vunpack.c.l.b16 %v1973
        %v2361 = vunpack.c.h.b16 %v1973
        %v2362 = vunpack.c.l.b16 %v1974
        %v2363 = vunpack.c.h.b16 %v1974
        %v2364 = vunpack.c.l.b16 %v1975
        %v2365 = vunpack.c.h.b16 %v1975
        %v2366 = vunpack.c.l.b16 %v1976
        %v2367 = vunpack.c.h.b16 %v1976
        %v2368 = vunpack.c.l.b16 %v1977
        %v2369 = vunpack.c.h.b16 %v1977
        %v2370 = vunpack.c.l.b16 %v1978
        %v2371 = vunpack.c.h.b16 %v1978
        %v2372 = vunpack.c.l.b16 %v1979
        %v2373 = vunpack.c.h.b16 %v1979
        %v2374 = vunpack.c.l.b16 %v1980
        %v2375 = vunpack.c.h.b16 %v1980
        %v2376 = vunpack.c.l.b16 %v1981
        %v2377 = vunpack.c.h.b16 %v1981
        %v2378 = vunpack.c.l.b16 %v1982
        %v2379 = vunpack.c.h.b16 %v1982
        %v2380 = vunpack.c.l.b16 %v1983
        %v2381 = vunpack.c.h.b16 %v1983
        %v2382 = vunpack.c.l.b16 %v1984
        %v2383 = vunpack.c.h.b16 %v1984
        %v2384 = vunpack.c.l.b16 %v1985
        %v2385 = vunpack.c.h.b16 %v1985
        %v2386 = vunpack.c.l.b16 %v1986
        %v2387 = vunpack.c.h.b16 %v1986
        %v2388 = vunpack.c.l.b16 %v1987
        %v2389 = vunpack.c.h.b16 %v1987
        %v2390 = vunpack.c.l.b16 %v1988
        %v2391 = vunpack.c.h.b16 %v1988
        %v2392 = vunpack.c.l.b16 %v1989
        %v2393 = vunpack.c.h.b16 %v1989
        %v2394 = vunpack.c.l.b16 %v1990
        %v2395 = vunpack.c.h.b16 %v1990
        %v2396 = vunpack.c.l.b16 %v1991
        %v2397 = vunpack.c.h.b16 %v1991
        %v2398 = vunpack.c.l.b16 %v1992
        %v2399 = vunpack.c.h.b16 %v1992
        %v2400 = vunpack.c.l.b16 %v1993
        %v2401 = vunpack.c.h.b16 %v1993
        %v2402 = vunpack.c.l.b16 %v1994
        %v2403 = vunpack.c.h.b16 %v1994
        %v2404 = vunpack.c.l.b16 %v1995
        %v2405 = vunpack.c.h.b16 %v1995
        %v2406 = vunpack.c.l.b16 %v1996
        %v2407 = vunpack.c.h.b16 %v1996
        %v2408 = vunpack.c.l.b16 %v1997
        %v2409 = vunpack.c.h.b16 %v1997
        %v2410 = vunpack.c.l.b16 %v1998
        %v2411 = vunpack.c.h.b16 %v1998
        %v2412 = vunpack.c.l.b16 %v1999
        %v2413 = vunpack.c.h.b16 %v1999
        %v2414 = vunpack.c.l.b16 %v2000
        %v2415 = vunpack.c.h.b16 %v2000
        %v2416 = vunpack.c.l.b16 %v2001
        %v2417 = vunpack.c.h.b16 %v2001
        %v2418 = vunpack.c.l.b16 %v2002
        %v2419 = vunpack.c.h.b16 %v2002
        %v2420 = vunpack.c.l.b16 %v2003
        %v2421 = vunpack.c.h.b16 %v2003
        %v2422 = vunpack.c.l.b16 %v2004
        %v2423 = vunpack.c.h.b16 %v2004
        %v2424 = vunpack.c.l.b16 %v2005
        %v2425 = vunpack.c.h.b16 %v2005
        %v2426 = vunpack.c.l.b16 %v2006
        %v2427 = vunpack.c.h.b16 %v2006
        %v2428 = vunpack.c.l.b16 %v2007
        %v2429 = vunpack.c.h.b16 %v2007
        %v2430 = vunpack.c.l.b16 %v2008
        %v2431 = vunpack.c.h.b16 %v2008
        %v2432 = vunpack.c.l.b16 %v2009
        %v2433 = vunpack.c.h.b16 %v2009
        %v2434 = vunpack.c.l.b16 %v2010
        %v2435 = vunpack.c.h.b16 %v2010
        %v2436 = vunpack.c.l.b16 %v2011
        %v2437 = vunpack.c.h.b16 %v2011
        %v2438 = vpack.c.b16 %v2190, %v2182
        %v2439 = vpack.c.b16 %v2191, %v2183
        %v2440 = vpack.c.b16 %v2192, %v2184
        %v2441 = vpack.c.b16 %v2193, %v2185
        %v2442 = vpack.c.b16 %v2194, %v2186
        %v2443 = vpack.c.b16 %v2195, %v2187
        %v2444 = vpack.c.b16 %v2196, %v2188
        %v2445 = vpack.c.b16 %v2197, %v2189
        %v2446 = vpack.c.b16 %v2206, %v2198
        %v2447 = vpack.c.b16 %v2207, %v2199
        %v2448 = vpack.c.b16 %v2208, %v2200
        %v2449 = vpack.c.b16 %v2209, %v2201
        %v2450 = vpack.c.b16 %v2210, %v2202
        %v2451 = vpack.c.b16 %v2211, %v2203
        %v2452 = vpack.c.b16 %v2212, %v2204
        %v2453 = vpack.c.b16 %v2213, %v2205
        %v2454 = vpack.c.b16 %v2222, %v2214
        %v2455 = vpack.c.b16 %v2223, %v2215
        %v2456 = vpack.c.b16 %v2224, %v2216
        %v2457 = vpack.c.b16 %v2225, %v2217
        %v2458 = vpack.c.b16 %v2226, %v2218
        %v2459 = vpack.c.b16 %v2227, %v2219
        %v2460 = vpack.c.b16 %v2228, %v2220
        %v2461 = vpack.c.b16 %v2229, %v2221
        %v2462 = vpack.c.b16 %v2238, %v2230
        %v2463 = vpack.c.b16 %v2239, %v2231
        %v2464 = vpack.c.b16 %v2240, %v2232
        %v2465 = vpack.c.b16 %v2241, %v2233
        %v2466 = vpack.c.b16 %v2242, %v2234
        %v2467 = vpack.c.b16 %v2243, %v2235
        %v2468 = vpack.c.b16 %v2244, %v2236
        %v2469 = vpack.c.b16 %v2245, %v2237
        %v2470 = vpack.c.b16 %v2254, %v2246
        %v2471 = vpack.c.b16 %v2255, %v2247
        %v2472 = vpack.c.b16 %v2256, %v2248
        %v2473 = vpack.c.b16 %v2257, %v2249
        %v2474 = vpack.c.b16 %v2258, %v2250
        %v2475 = vpack.c.b16 %v2259, %v2251
        %v2476 = vpack.c.b16 %v2260, %v2252
        %v2477 = vpack.c.b16 %v2261, %v2253
        %v2478 = vpack.c.b16 %v2270, %v2262
        %v2479 = vpack.c.b16 %v2271, %v2263
        %v2480 = vpack.c.b16 %v2272, %v2264
        %v2481 = vpack.c.b16 %v2273, %v2265
        %v2482 = vpack.c.b16 %v2274, %v2266
        %v2483 = vpack.c.b16 %v2275, %v2267
        %v2484 = vpack.c.b16 %v2276, %v2268
        %v2485 = vpack.c.b16 %v2277, %v2269
        %v2486 = vpack.c.b16 %v2286, %v2278
        %v2487 = vpack.c.b16 %v2287, %v2279
        %v2488 = vpack.c.b16 %v2288, %v2280
        %v2489 = vpack.c.b16 %v2289, %v2281
        %v2490 = vpack.c.b16 %v2290, %v2282
        %v2491 = vpack.c.b16 %v2291, %v2283
        %v2492 = vpack.c.b16 %v2292, %v2284
        %v2493 = vpack.c.b16 %v2293, %v2285
        %v2494 = vpack.c.b16 %v2302, %v2294
        %v2495 = vpack.c.b16 %v2303, %v2295
        %v2496 = vpack.c.b16 %v2304, %v2296
        %v2497 = vpack.c.b16 %v2305, %v2297
        %v2498 = vpack.c.b16 %v2306, %v2298
        %v2499 = vpack.c.b16 %v2307, %v2299
        %v2500 = vpack.c.b16 %v2308, %v2300
        %v2501 = vpack.c.b16 %v2309, %v2301
        %v2502 = vpack.c.b16 %v2318, %v2310
        %v2503 = vpack.c.b16 %v2319, %v2311
        %v2504 = vpack.c.b16 %v2320, %v2312
        %v2505 = vpack.c.b16 %v2321, %v2313
        %v2506 = vpack.c.b16 %v2322, %v2314
        %v2507 = vpack.c.b16 %v2323, %v2315
        %v2508 = vpack.c.b16 %v2324, %v2316
        %v2509 = vpack.c.b16 %v2325, %v2317
        %v2510 = vpack.c.b16 %v2334, %v2326
        %v2511 = vpack.c.b16 %v2335, %v2327
        %v2512 = vpack.c.b16 %v2336, %v2328
        %v2513 = vpack.c.b16 %v2337, %v2329
        %v2514 = vpack.c.b16 %v2338, %v2330
        %v2515 = vpack.c.b16 %v2339, %v2331
        %v2516 = vpack.c.b16 %v2340, %v2332
        %v2517 = vpack.c.b16 %v2341, %v2333
        %v2518 = vpack.c.b16 %v2350, %v2342
        %v2519 = vpack.c.b16 %v2351, %v2343
        %v2520 = vpack.c.b16 %v2352, %v2344
        %v2521 = vpack.c.b16 %v2353, %v2345
        %v2522 = vpack.c.b16 %v2354, %v2346
        %v2523 = vpack.c.b16 %v2355, %v2347
        %v2524 = vpack.c.b16 %v2356, %v2348
        %v2525 = vpack.c.b16 %v2357, %v2349
        %v2526 = vpack.c.b16 %v2366, %v2358
        %v2527 = vpack.c.b16 %v2367, %v2359
        %v2528 = vpack.c.b16 %v2368, %v2360
        %v2529 = vpack.c.b16 %v2369, %v2361
        %v2530 = vpack.c.b16 %v2370, %v2362
        %v2531 = vpack.c.b16 %v2371, %v2363
        %v2532 = vpack.c.b16 %v2372, %v2364
        %v2533 = vpack.c.b16 %v2373, %v2365
        %v2534 = vpack.c.b16 %v2382, %v2374
        %v2535 = vpack.c.b16 %v2383, %v2375
        %v2536 = vpack.c.b16 %v2384, %v2376
        %v2537 = vpack.c.b16 %v2385, %v2377
        %v2538 = vpack.c.b16 %v2386, %v2378
        %v2539 = vpack.c.b16 %v2387, %v2379
        %v2540 = vpack.c.b16 %v2388, %v2380
        %v2541 = vpack.c.b16 %v2389, %v2381
        %v2542 = vpack.c.b16 %v2398, %v2390
        %v2543 = vpack.c.b16 %v2399, %v2391
        %v2544 = vpack.c.b16 %v2400, %v2392
        %v2545 = vpack.c.b16 %v2401, %v2393
        %v2546 = vpack.c.b16 %v2402, %v2394
        %v2547 = vpack.c.b16 %v2403, %v2395
        %v2548 = vpack.c.b16 %v2404, %v2396
        %v2549 = vpack.c.b16 %v2405, %v2397
        %v2550 = vpack.c.b16 %v2414, %v2406
        %v2551 = vpack.c.b16 %v2415, %v2407
        %v2552 = vpack.c.b16 %v2416, %v2408
        %v2553 = vpack.c.b16 %v2417, %v2409
        %v2554 = vpack.c.b16 %v2418, %v2410
        %v2555 = vpack.c.b16 %v2419, %v2411
        %v2556 = vpack.c.b16 %v2420, %v2412
        %v2557 = vpack.c.b16 %v2421, %v2413
        %v2558 = vpack.c.b16 %v2430, %v2422
        %v2559 = vpack.c.b16 %v2431, %v2423
        %v2560 = vpack.c.b16 %v2432, %v2424
        %v2561 = vpack.c.b16 %v2433, %v2425
        %v2562 = vpack.c.b16 %v2434, %v2426
        %v2563 = vpack.c.b16 %v2435, %v2427
        %v2564 = vpack.c.b16 %v2436, %v2428
        %v2565 = vpack.c.b16 %v2437, %v2429
        %2694 = vmatprep.subr.bf16.mxu0 %v2439
        %2695 = vmatpush1.bf16.msra.mxu0 %v2438
        %2696 = vmatprep.subr.bf16.mxu0 %v2447
        %2697 = vmatpush1.bf16.msra.mxu0 %v2446
        %2698 = vmatprep.subr.bf16.mxu0 %v2455
        %2699 = vmatpush1.bf16.msra.mxu0 %v2454
        %2700 = vmatprep.subr.bf16.mxu0 %v2463
        %2701 = vmatpush1.bf16.msra.mxu0 %v2462
        %2702 = vmatprep.subr.bf16.mxu0 %v2471
        %2703 = vmatpush1.bf16.msra.mxu0 %v2470
        %2704 = vmatprep.subr.bf16.mxu0 %v2479
        %2705 = vmatpush1.bf16.msra.mxu0 %v2478
        %2706 = vmatprep.subr.bf16.mxu0 %v2487
        %2707 = vmatpush1.bf16.msra.mxu0 %v2486
        %2708 = vmatprep.subr.bf16.mxu0 %v2495
        %2709 = vmatpush1.bf16.msra.mxu0 %v2494
        %2710 = vmatprep.subr.bf16.mxu0 %v2503
        %2711 = vmatpush1.bf16.msra.mxu0 %v2502
        %2712 = vmatprep.subr.bf16.mxu0 %v2511
        %2713 = vmatpush1.bf16.msra.mxu0 %v2510
        %2714 = vmatprep.subr.bf16.mxu0 %v2519
        %2715 = vmatpush1.bf16.msra.mxu0 %v2518
        %2716 = vmatprep.subr.bf16.mxu0 %v2527
        %2717 = vmatpush1.bf16.msra.mxu0 %v2526
        %2718 = vmatprep.subr.bf16.mxu0 %v2535
        %2719 = vmatpush1.bf16.msra.mxu0 %v2534
        %2720 = vmatprep.subr.bf16.mxu0 %v2543
        %2721 = vmatpush1.bf16.msra.mxu0 %v2542
        %2722 = vmatprep.subr.bf16.mxu0 %v2551
        %2723 = vmatpush1.bf16.msra.mxu0 %v2550
        %2724 = vmatprep.subr.bf16.mxu0 %v2559
        %2725 = vmatpush1.bf16.msra.mxu0 %v2558
        %2726 = vmatprep.mubr.bf16.mxu0 %v1883
        %2727 = vmatmul.mubr.bf16.gmra.mrb[0].mxu0 %v1882
        %v2728 = vpop.f32.mrb[0].mxu0
        %v2729 = vadd.f32 %v2017, %v2728
        %v2730 = vpop.f32.mrb[0].mxu0
        %v2731 = vadd.f32 %v2021, %v2730
        %v2732 = vpop.f32.mrb[0].mxu0
        %v2733 = vpop.f32.mrb[0].mxu0
        %2734 = vdwg.mxu0
        %2735 = vmatprep.subr.bf16.mxu0 %v2441
        %2736 = vmatpush1.bf16.msra.mxu0 %v2440
        %2737 = vmatprep.subr.bf16.mxu0 %v2449
        %2738 = vmatpush1.bf16.msra.mxu0 %v2448
        %2739 = vmatprep.subr.bf16.mxu0 %v2457
        %2740 = vmatpush1.bf16.msra.mxu0 %v2456
        %2741 = vmatprep.subr.bf16.mxu0 %v2465
        %2742 = vmatpush1.bf16.msra.mxu0 %v2464
        %2743 = vmatprep.subr.bf16.mxu0 %v2473
        %2744 = vmatpush1.bf16.msra.mxu0 %v2472
        %2745 = vmatprep.subr.bf16.mxu0 %v2481
        %2746 = vmatpush1.bf16.msra.mxu0 %v2480
        %2747 = vmatprep.subr.bf16.mxu0 %v2489
        %2748 = vmatpush1.bf16.msra.mxu0 %v2488
        %2749 = vmatprep.subr.bf16.mxu0 %v2497
        %2750 = vmatpush1.bf16.msra.mxu0 %v2496
        %2751 = vmatprep.subr.bf16.mxu0 %v2505
        %2752 = vmatpush1.bf16.msra.mxu0 %v2504
        %2753 = vmatprep.subr.bf16.mxu0 %v2513
        %2754 = vmatpush1.bf16.msra.mxu0 %v2512
        %2755 = vmatprep.subr.bf16.mxu0 %v2521
        %2756 = vmatpush1.bf16.msra.mxu0 %v2520
        %2757 = vmatprep.subr.bf16.mxu0 %v2529
        %2758 = vmatpush1.bf16.msra.mxu0 %v2528
        %2759 = vmatprep.subr.bf16.mxu0 %v2537
        %2760 = vmatpush1.bf16.msra.mxu0 %v2536
        %2761 = vmatprep.subr.bf16.mxu0 %v2545
        %2762 = vmatpush1.bf16.msra.mxu0 %v2544
        %2763 = vmatprep.subr.bf16.mxu0 %v2553
        %2764 = vmatpush1.bf16.msra.mxu0 %v2552
        %2765 = vmatprep.subr.bf16.mxu0 %v2561
        %2766 = vmatpush1.bf16.msra.mxu0 %v2560
        %2767 = vmatprep.mubr.bf16.mxu0 %v1883
        %2768 = vmatmul.mubr.bf16.gmra.mrb[0].mxu0 %v1882
        %v2769 = vpop.f32.mrb[0].mxu0
        %v2770 = vadd.f32 %v2025, %v2769
        %v2771 = vpop.f32.mrb[0].mxu0
        %v2772 = vadd.f32 %v2029, %v2771
        %v2773 = vpop.f32.mrb[0].mxu0
        %v2774 = vpop.f32.mrb[0].mxu0
        %2775 = vdwg.mxu0
        %2776 = vmatprep.subr.bf16.mxu0 %v2443
        %2777 = vmatpush1.bf16.msra.mxu0 %v2442
        %2778 = vmatprep.subr.bf16.mxu0 %v2451
        %2779 = vmatpush1.bf16.msra.mxu0 %v2450
        %2780 = vmatprep.subr.bf16.mxu0 %v2459
        %2781 = vmatpush1.bf16.msra.mxu0 %v2458
        %2782 = vmatprep.subr.bf16.mxu0 %v2467
        %2783 = vmatpush1.bf16.msra.mxu0 %v2466
        %2784 = vmatprep.subr.bf16.mxu0 %v2475
        %2785 = vmatpush1.bf16.msra.mxu0 %v2474
        %2786 = vmatprep.subr.bf16.mxu0 %v2483
        %2787 = vmatpush1.bf16.msra.mxu0 %v2482
        %2788 = vmatprep.subr.bf16.mxu0 %v2491
        %2789 = vmatpush1.bf16.msra.mxu0 %v2490
        %2790 = vmatprep.subr.bf16.mxu0 %v2499
        %2791 = vmatpush1.bf16.msra.mxu0 %v2498
        %2792 = vmatprep.subr.bf16.mxu0 %v2507
        %2793 = vmatpush1.bf16.msra.mxu0 %v2506
        %2794 = vmatprep.subr.bf16.mxu0 %v2515
        %2795 = vmatpush1.bf16.msra.mxu0 %v2514
        %2796 = vmatprep.subr.bf16.mxu0 %v2523
        %2797 = vmatpush1.bf16.msra.mxu0 %v2522
        %2798 = vmatprep.subr.bf16.mxu0 %v2531
        %2799 = vmatpush1.bf16.msra.mxu0 %v2530
        %2800 = vmatprep.subr.bf16.mxu0 %v2539
        %2801 = vmatpush1.bf16.msra.mxu0 %v2538
        %2802 = vmatprep.subr.bf16.mxu0 %v2547
        %2803 = vmatpush1.bf16.msra.mxu0 %v2546
        %2804 = vmatprep.subr.bf16.mxu0 %v2555
        %2805 = vmatpush1.bf16.msra.mxu0 %v2554
        %2806 = vmatprep.subr.bf16.mxu0 %v2563
        %2807 = vmatpush1.bf16.msra.mxu0 %v2562
        %2808 = vmatprep.mubr.bf16.mxu0 %v1883
        %2809 = vmatmul.mubr.bf16.gmra.mrb[0].mxu0 %v1882
        %v2810 = vpop.f32.mrb[0].mxu0
        %v2811 = vadd.f32 %v2033, %v2810
        %v2812 = vpop.f32.mrb[0].mxu0
        %v2813 = vadd.f32 %v2037, %v2812
        %v2814 = vpop.f32.mrb[0].mxu0
        %v2815 = vpop.f32.mrb[0].mxu0
        %2816 = vdwg.mxu0
        %2817 = vmatprep.subr.bf16.mxu0 %v2445
        %2818 = vmatpush1.bf16.msra.mxu0 %v2444
        %2819 = vmatprep.subr.bf16.mxu0 %v2453
        %2820 = vmatpush1.bf16.msra.mxu0 %v2452
        %2821 = vmatprep.subr.bf16.mxu0 %v2461
        %2822 = vmatpush1.bf16.msra.mxu0 %v2460
        %2823 = vmatprep.subr.bf16.mxu0 %v2469
        %2824 = vmatpush1.bf16.msra.mxu0 %v2468
        %2825 = vmatprep.subr.bf16.mxu0 %v2477
        %2826 = vmatpush1.bf16.msra.mxu0 %v2476
        %2827 = vmatprep.subr.bf16.mxu0 %v2485
        %2828 = vmatpush1.bf16.msra.mxu0 %v2484
        %2829 = vmatprep.subr.bf16.mxu0 %v2493
        %2830 = vmatpush1.bf16.msra.mxu0 %v2492
        %2831 = vmatprep.subr.bf16.mxu0 %v2501
        %2832 = vmatpush1.bf16.msra.mxu0 %v2500
        %2833 = vmatprep.subr.bf16.mxu0 %v2509
        %2834 = vmatpush1.bf16.msra.mxu0 %v2508
        %2835 = vmatprep.subr.bf16.mxu0 %v2517
        %2836 = vmatpush1.bf16.msra.mxu0 %v2516
        %2837 = vmatprep.subr.bf16.mxu0 %v2525
        %2838 = vmatpush1.bf16.msra.mxu0 %v2524
        %2839 = vmatprep.subr.bf16.mxu0 %v2533
        %2840 = vmatpush1.bf16.msra.mxu0 %v2532
        %2841 = vmatprep.subr.bf16.mxu0 %v2541
        %2842 = vmatpush1.bf16.msra.mxu0 %v2540
        %2843 = vmatprep.subr.bf16.mxu0 %v2549
        %2844 = vmatpush1.bf16.msra.mxu0 %v2548
        %2845 = vmatprep.subr.bf16.mxu0 %v2557
        %2846 = vmatpush1.bf16.msra.mxu0 %v2556
        %2847 = vmatprep.subr.bf16.mxu0 %v2565
        %2848 = vmatpush1.bf16.msra.mxu0 %v2564
        %2849 = vmatprep.mubr.bf16.mxu0 %v1883
        %2850 = vmatmul.mubr.bf16.gmra.mrb[0].mxu0 %v1882
        %v2851 = vpop.f32.mrb[0].mxu0
        %v2852 = vadd.f32 %v2041, %v2851
        %v2853 = vpop.f32.mrb[0].mxu0
        %v2854 = vadd.f32 %v2045, %v2853
        %v2855 = vpop.f32.mrb[0].mxu0
        %v2856 = vpop.f32.mrb[0].mxu0
        %2857 = vdwg.mxu0
        %v2858 = vmul.f32 %v2729, 0.5
        %v2859 = vmul.f32 %v2731, 0.5
        %v2860 = vmul.f32 %v2770, 0.5
        %v2861 = vmul.f32 %v2772, 0.5
        %v2862 = vmul.f32 %v2811, 0.5
        %v2863 = vmul.f32 %v2813, 0.5
        %v2864 = vmul.f32 %v2852, 0.5
        %v2865 = vmul.f32 %v2854, 0.5
        %v2866 = vmul.f32 %v2729, %v2729
        %v2867 = vmul.f32 %v2731, %v2731
        %v2868 = vmul.f32 %v2770, %v2770
        %v2869 = vmul.f32 %v2772, %v2772
        %v2870 = vmul.f32 %v2811, %v2811
        %v2871 = vmul.f32 %v2813, %v2813
        %v2872 = vmul.f32 %v2852, %v2852
        %v2873 = vmul.f32 %v2854, %v2854
        %v2874 = vmul.f32 %v2729, %v2866
        %v2875 = vmul.f32 %v2731, %v2867
        %v2876 = vmul.f32 %v2770, %v2868
        %v2877 = vmul.f32 %v2772, %v2869
        %v2878 = vmul.f32 %v2811, %v2870
        %v2879 = vmul.f32 %v2813, %v2871
        %v2880 = vmul.f32 %v2852, %v2872
        %v2881 = vmul.f32 %v2854, %v2873
        %v2882 = vmul.f32 %v2874, 0.044715
        %v2883 = vmul.f32 %v2875, 0.044715
        %v2884 = vmul.f32 %v2876, 0.044715
        %v2885 = vmul.f32 %v2877, 0.044715
        %v2886 = vmul.f32 %v2878, 0.044715
        %v2887 = vmul.f32 %v2879, 0.044715
        %v2888 = vmul.f32 %v2880, 0.044715
        %v2889 = vmul.f32 %v2881, 0.044715
        %v2890 = vadd.f32 %v2729, %v2882
        %v2891 = vadd.f32 %v2731, %v2883
        %v2892 = vadd.f32 %v2770, %v2884
        %v2893 = vadd.f32 %v2772, %v2885
        %v2894 = vadd.f32 %v2811, %v2886
        %v2895 = vadd.f32 %v2813, %v2887
        %v2896 = vadd.f32 %v2852, %v2888
        %v2897 = vadd.f32 %v2854, %v2889
        %v2898 = vmul.f32 %v2890, 0.7978846
        %v2899 = vmul.f32 %v2891, 0.7978846
        %v2900 = vmul.f32 %v2892, 0.7978846
        %v2901 = vmul.f32 %v2893, 0.7978846
        %v2902 = vmul.f32 %v2894, 0.7978846
        %v2903 = vmul.f32 %v2895, 0.7978846
        %v2904 = vmul.f32 %v2896, 0.7978846
        %v2905 = vmul.f32 %v2897, 0.7978846
        %v2906 = vtanh.pop %v2898
        %v2907 = vtanh.pop %v2899
        %v2908 = vtanh.pop %v2900
        %v2909 = vtanh.pop %v2901
        %v2910 = vtanh.pop %v2902
        %v2911 = vtanh.pop %v2903
        %v2912 = vtanh.pop %v2904
        %v2913 = vtanh.pop %v2905
        %v2914 = vadd.f32 %v2906, 1.0
        %v2915 = vadd.f32 %v2907, 1.0
        %v2916 = vadd.f32 %v2908, 1.0
        %v2917 = vadd.f32 %v2909, 1.0
        %v2918 = vadd.f32 %v2910, 1.0
        %v2919 = vadd.f32 %v2911, 1.0
        %v2920 = vadd.f32 %v2912, 1.0
        %v2921 = vadd.f32 %v2913, 1.0
        %v2922 = vmul.f32 %v2858, %v2914
        %v2923 = vmul.f32 %v2859, %v2915
        %v2924 = vmul.f32 %v2860, %v2916
        %v2925 = vmul.f32 %v2861, %v2917
        %v2926 = vmul.f32 %v2862, %v2918
        %v2927 = vmul.f32 %v2863, %v2919
        %v2928 = vmul.f32 %v2864, %v2920
        %v2929 = vmul.f32 %v2865, %v2921
        %v2930 = vpack.c.bf16 %v2922, %v2922
        %v2931 = vpack.c.bf16 %v2923, %v2923
        %v2932 = vpack.c.bf16 %v2924, %v2924
        %v2933 = vpack.c.bf16 %v2925, %v2925
        %v2934 = vpack.c.bf16 %v2926, %v2926
        %v2935 = vpack.c.bf16 %v2927, %v2927
        %v2936 = vpack.c.bf16 %v2928, %v2928
        %v2937 = vpack.c.bf16 %v2929, %v2929
        %v2938 = vld [vmem:[#allocation8] sm:$0xff]
        %v2939 = vld [vmem:[#allocation8 + $0x8] sm:$0xff]
        %v2940 = vld [vmem:[#allocation8 + $0x10] sm:$0xff]
        %v2941 = vld [vmem:[#allocation8 + $0x18] sm:$0xff]
        %v2942 = vld [vmem:[#allocation8 + $0x20] sm:$0xff]
        %v2943 = vld [vmem:[#allocation8 + $0x28] sm:$0xff]
        %v2944 = vld [vmem:[#allocation8 + $0x30] sm:$0xff]
        %v2945 = vld [vmem:[#allocation8 + $0x38] sm:$0xff]
        %v2946 = vld [vmem:[#allocation8 + $0x40] sm:$0xff]
        %v2947 = vld [vmem:[#allocation8 + $0x48] sm:$0xff]
        %v2948 = vld [vmem:[#allocation8 + $0x50] sm:$0xff]
        %v2949 = vld [vmem:[#allocation8 + $0x58] sm:$0xff]
        %v2950 = vld [vmem:[#allocation8 + $0x60] sm:$0xff]
        %v2951 = vld [vmem:[#allocation8 + $0x68] sm:$0xff]
        %v2952 = vld [vmem:[#allocation8 + $0x70] sm:$0xff]
        %v2953 = vld [vmem:[#allocation8 + $0x78] sm:$0xff]
        %v2954 = vld [vmem:[#allocation8 + $0x80] sm:$0xff]
        %v2955 = vld [vmem:[#allocation8 + $0x88] sm:$0xff]
        %v2956 = vld [vmem:[#allocation8 + $0x90] sm:$0xff]
        %v2957 = vld [vmem:[#allocation8 + $0x98] sm:$0xff]
        %v2958 = vld [vmem:[#allocation8 + $0xa0] sm:$0xff]
        %v2959 = vld [vmem:[#allocation8 + $0xa8] sm:$0xff]
        %v2960 = vld [vmem:[#allocation8 + $0xb0] sm:$0xff]
        %v2961 = vld [vmem:[#allocation8 + $0xb8] sm:$0xff]
        %v2962 = vld [vmem:[#allocation8 + $0xc0] sm:$0xff]
        %v2963 = vld [vmem:[#allocation8 + $0xc8] sm:$0xff]
        %v2964 = vld [vmem:[#allocation8 + $0xd0] sm:$0xff]
        %v2965 = vld [vmem:[#allocation8 + $0xd8] sm:$0xff]
        %v2966 = vld [vmem:[#allocation8 + $0xe0] sm:$0xff]
        %v2967 = vld [vmem:[#allocation8 + $0xe8] sm:$0xff]
        %v2968 = vld [vmem:[#allocation8 + $0xf0] sm:$0xff]
        %v2969 = vld [vmem:[#allocation8 + $0xf8] sm:$0xff]
        %v2970 = vld [vmem:[#allocation8 + $0x100] sm:$0xff]
        %v2971 = vld [vmem:[#allocation8 + $0x108] sm:$0xff]
        %v2972 = vld [vmem:[#allocation8 + $0x110] sm:$0xff]
        %v2973 = vld [vmem:[#allocation8 + $0x118] sm:$0xff]
        %v2974 = vld [vmem:[#allocation8 + $0x120] sm:$0xff]
        %v2975 = vld [vmem:[#allocation8 + $0x128] sm:$0xff]
        %v2976 = vld [vmem:[#allocation8 + $0x130] sm:$0xff]
        %v2977 = vld [vmem:[#allocation8 + $0x138] sm:$0xff]
        %v2978 = vld [vmem:[#allocation8 + $0x140] sm:$0xff]
        %v2979 = vld [vmem:[#allocation8 + $0x148] sm:$0xff]
        %v2980 = vld [vmem:[#allocation8 + $0x150] sm:$0xff]
        %v2981 = vld [vmem:[#allocation8 + $0x158] sm:$0xff]
        %v2982 = vld [vmem:[#allocation8 + $0x160] sm:$0xff]
        %v2983 = vld [vmem:[#allocation8 + $0x168] sm:$0xff]
        %v2984 = vld [vmem:[#allocation8 + $0x170] sm:$0xff]
        %v2985 = vld [vmem:[#allocation8 + $0x178] sm:$0xff]
        %v2986 = vld [vmem:[#allocation8 + $0x180] sm:$0xff]
        %v2987 = vld [vmem:[#allocation8 + $0x188] sm:$0xff]
        %v2988 = vld [vmem:[#allocation8 + $0x190] sm:$0xff]
        %v2989 = vld [vmem:[#allocation8 + $0x198] sm:$0xff]
        %v2990 = vld [vmem:[#allocation8 + $0x1a0] sm:$0xff]
        %v2991 = vld [vmem:[#allocation8 + $0x1a8] sm:$0xff]
        %v2992 = vld [vmem:[#allocation8 + $0x1b0] sm:$0xff]
        %v2993 = vld [vmem:[#allocation8 + $0x1b8] sm:$0xff]
        %v2994 = vld [vmem:[#allocation8 + $0x1c0] sm:$0xff]
        %v2995 = vld [vmem:[#allocation8 + $0x1c8] sm:$0xff]
        %v2996 = vld [vmem:[#allocation8 + $0x1d0] sm:$0xff]
        %v2997 = vld [vmem:[#allocation8 + $0x1d8] sm:$0xff]
        %v2998 = vld [vmem:[#allocation8 + $0x1e0] sm:$0xff]
        %v2999 = vld [vmem:[#allocation8 + $0x1e8] sm:$0xff]
        %v3000 = vld [vmem:[#allocation8 + $0x1f0] sm:$0xff]
        %v3001 = vld [vmem:[#allocation8 + $0x1f8] sm:$0xff]
        %v3002 = vld [vmem:[#allocation8 + $0x200] sm:$0xff]
        %v3003 = vld [vmem:[#allocation8 + $0x208] sm:$0xff]
        %v3004 = vld [vmem:[#allocation8 + $0x210] sm:$0xff]
        %v3005 = vld [vmem:[#allocation8 + $0x218] sm:$0xff]
        %v3006 = vld [vmem:[#allocation8 + $0x220] sm:$0xff]
        %v3007 = vld [vmem:[#allocation8 + $0x228] sm:$0xff]
        %v3008 = vld [vmem:[#allocation8 + $0x230] sm:$0xff]
        %v3009 = vld [vmem:[#allocation8 + $0x238] sm:$0xff]
        %v3010 = vld [vmem:[#allocation8 + $0x240] sm:$0xff]
        %v3011 = vld [vmem:[#allocation8 + $0x248] sm:$0xff]
        %v3012 = vld [vmem:[#allocation8 + $0x250] sm:$0xff]
        %v3013 = vld [vmem:[#allocation8 + $0x258] sm:$0xff]
        %v3014 = vld [vmem:[#allocation8 + $0x260] sm:$0xff]
        %v3015 = vld [vmem:[#allocation8 + $0x268] sm:$0xff]
        %v3016 = vld [vmem:[#allocation8 + $0x270] sm:$0xff]
        %v3017 = vld [vmem:[#allocation8 + $0x278] sm:$0xff]
        %v3018 = vld [vmem:[#allocation8 + $0x280] sm:$0xff]
        %v3019 = vld [vmem:[#allocation8 + $0x288] sm:$0xff]
        %v3020 = vld [vmem:[#allocation8 + $0x290] sm:$0xff]
        %v3021 = vld [vmem:[#allocation8 + $0x298] sm:$0xff]
        %v3022 = vld [vmem:[#allocation8 + $0x2a0] sm:$0xff]
        %v3023 = vld [vmem:[#allocation8 + $0x2a8] sm:$0xff]
        %v3024 = vld [vmem:[#allocation8 + $0x2b0] sm:$0xff]
        %v3025 = vld [vmem:[#allocation8 + $0x2b8] sm:$0xff]
        %v3026 = vld [vmem:[#allocation8 + $0x2c0] sm:$0xff]
        %v3027 = vld [vmem:[#allocation8 + $0x2c8] sm:$0xff]
        %v3028 = vld [vmem:[#allocation8 + $0x2d0] sm:$0xff]
        %v3029 = vld [vmem:[#allocation8 + $0x2d8] sm:$0xff]
        %v3030 = vld [vmem:[#allocation8 + $0x2e0] sm:$0xff]
        %v3031 = vld [vmem:[#allocation8 + $0x2e8] sm:$0xff]
        %v3032 = vld [vmem:[#allocation8 + $0x2f0] sm:$0xff]
        %v3033 = vld [vmem:[#allocation8 + $0x2f8] sm:$0xff]
        %v3034 = vld [vmem:[#allocation8 + $0x300] sm:$0xff]
        %v3035 = vld [vmem:[#allocation8 + $0x308] sm:$0xff]
        %v3036 = vld [vmem:[#allocation8 + $0x310] sm:$0xff]
        %v3037 = vld [vmem:[#allocation8 + $0x318] sm:$0xff]
        %v3038 = vld [vmem:[#allocation8 + $0x320] sm:$0xff]
        %v3039 = vld [vmem:[#allocation8 + $0x328] sm:$0xff]
        %v3040 = vld [vmem:[#allocation8 + $0x330] sm:$0xff]
        %v3041 = vld [vmem:[#allocation8 + $0x338] sm:$0xff]
        %v3042 = vld [vmem:[#allocation8 + $0x340] sm:$0xff]
        %v3043 = vld [vmem:[#allocation8 + $0x348] sm:$0xff]
        %v3044 = vld [vmem:[#allocation8 + $0x350] sm:$0xff]
        %v3045 = vld [vmem:[#allocation8 + $0x358] sm:$0xff]
        %v3046 = vld [vmem:[#allocation8 + $0x360] sm:$0xff]
        %v3047 = vld [vmem:[#allocation8 + $0x368] sm:$0xff]
        %v3048 = vld [vmem:[#allocation8 + $0x370] sm:$0xff]
        %v3049 = vld [vmem:[#allocation8 + $0x378] sm:$0xff]
        %v3050 = vld [vmem:[#allocation8 + $0x380] sm:$0xff]
        %v3051 = vld [vmem:[#allocation8 + $0x388] sm:$0xff]
        %v3052 = vld [vmem:[#allocation8 + $0x390] sm:$0xff]
        %v3053 = vld [vmem:[#allocation8 + $0x398] sm:$0xff]
        %v3054 = vld [vmem:[#allocation8 + $0x3a0] sm:$0xff]
        %v3055 = vld [vmem:[#allocation8 + $0x3a8] sm:$0xff]
        %v3056 = vld [vmem:[#allocation8 + $0x3b0] sm:$0xff]
        %v3057 = vld [vmem:[#allocation8 + $0x3b8] sm:$0xff]
        %v3058 = vld [vmem:[#allocation8 + $0x3c0] sm:$0xff]
        %v3059 = vld [vmem:[#allocation8 + $0x3c8] sm:$0xff]
        %v3060 = vld [vmem:[#allocation8 + $0x3d0] sm:$0xff]
        %v3061 = vld [vmem:[#allocation8 + $0x3d8] sm:$0xff]
        %v3062 = vld [vmem:[#allocation8 + $0x3e0] sm:$0xff]
        %v3063 = vld [vmem:[#allocation8 + $0x3e8] sm:$0xff]
        %v3064 = vld [vmem:[#allocation8 + $0x3f0] sm:$0xff]
        %v3065 = vld [vmem:[#allocation8 + $0x3f8] sm:$0xff]
        %v3194 = vunpack.c.l.b16 %v2938
        %v3195 = vunpack.c.h.b16 %v2938
        %v3196 = vunpack.c.l.b16 %v2939
        %v3197 = vunpack.c.h.b16 %v2939
        %v3198 = vunpack.c.l.b16 %v2940
        %v3199 = vunpack.c.h.b16 %v2940
        %v3200 = vunpack.c.l.b16 %v2941
        %v3201 = vunpack.c.h.b16 %v2941
        %v3202 = vunpack.c.l.b16 %v2942
        %v3203 = vunpack.c.h.b16 %v2942
        %v3204 = vunpack.c.l.b16 %v2943
        %v3205 = vunpack.c.h.b16 %v2943
        %v3206 = vunpack.c.l.b16 %v2944
        %v3207 = vunpack.c.h.b16 %v2944
        %v3208 = vunpack.c.l.b16 %v2945
        %v3209 = vunpack.c.h.b16 %v2945
        %v3210 = vunpack.c.l.b16 %v2946
        %v3211 = vunpack.c.h.b16 %v2946
        %v3212 = vunpack.c.l.b16 %v2947
        %v3213 = vunpack.c.h.b16 %v2947
        %v3214 = vunpack.c.l.b16 %v2948
        %v3215 = vunpack.c.h.b16 %v2948
        %v3216 = vunpack.c.l.b16 %v2949
        %v3217 = vunpack.c.h.b16 %v2949
        %v3218 = vunpack.c.l.b16 %v2950
        %v3219 = vunpack.c.h.b16 %v2950
        %v3220 = vunpack.c.l.b16 %v2951
        %v3221 = vunpack.c.h.b16 %v2951
        %v3222 = vunpack.c.l.b16 %v2952
        %v3223 = vunpack.c.h.b16 %v2952
        %v3224 = vunpack.c.l.b16 %v2953
        %v3225 = vunpack.c.h.b16 %v2953
        %v3226 = vunpack.c.l.b16 %v2954
        %v3227 = vunpack.c.h.b16 %v2954
        %v3228 = vunpack.c.l.b16 %v2955
        %v3229 = vunpack.c.h.b16 %v2955
        %v3230 = vunpack.c.l.b16 %v2956
        %v3231 = vunpack.c.h.b16 %v2956
        %v3232 = vunpack.c.l.b16 %v2957
        %v3233 = vunpack.c.h.b16 %v2957
        %v3234 = vunpack.c.l.b16 %v2958
        %v3235 = vunpack.c.h.b16 %v2958
        %v3236 = vunpack.c.l.b16 %v2959
        %v3237 = vunpack.c.h.b16 %v2959
        %v3238 = vunpack.c.l.b16 %v2960
        %v3239 = vunpack.c.h.b16 %v2960
        %v3240 = vunpack.c.l.b16 %v2961
        %v3241 = vunpack.c.h.b16 %v2961
        %v3242 = vunpack.c.l.b16 %v2962
        %v3243 = vunpack.c.h.b16 %v2962
        %v3244 = vunpack.c.l.b16 %v2963
        %v3245 = vunpack.c.h.b16 %v2963
        %v3246 = vunpack.c.l.b16 %v2964
        %v3247 = vunpack.c.h.b16 %v2964
        %v3248 = vunpack.c.l.b16 %v2965
        %v3249 = vunpack.c.h.b16 %v2965
        %v3250 = vunpack.c.l.b16 %v2966
        %v3251 = vunpack.c.h.b16 %v2966
        %v3252 = vunpack.c.l.b16 %v2967
        %v3253 = vunpack.c.h.b16 %v2967
        %v3254 = vunpack.c.l.b16 %v2968
        %v3255 = vunpack.c.h.b16 %v2968
        %v3256 = vunpack.c.l.b16 %v2969
        %v3257 = vunpack.c.h.b16 %v2969
        %v3258 = vunpack.c.l.b16 %v2970
        %v3259 = vunpack.c.h.b16 %v2970
        %v3260 = vunpack.c.l.b16 %v2971
        %v3261 = vunpack.c.h.b16 %v2971
        %v3262 = vunpack.c.l.b16 %v2972
        %v3263 = vunpack.c.h.b16 %v2972
        %v3264 = vunpack.c.l.b16 %v2973
        %v3265 = vunpack.c.h.b16 %v2973
        %v3266 = vunpack.c.l.b16 %v2974
        %v3267 = vunpack.c.h.b16 %v2974
        %v3268 = vunpack.c.l.b16 %v2975
        %v3269 = vunpack.c.h.b16 %v2975
        %v3270 = vunpack.c.l.b16 %v2976
        %v3271 = vunpack.c.h.b16 %v2976
        %v3272 = vunpack.c.l.b16 %v2977
        %v3273 = vunpack.c.h.b16 %v2977
        %v3274 = vunpack.c.l.b16 %v2978
        %v3275 = vunpack.c.h.b16 %v2978
        %v3276 = vunpack.c.l.b16 %v2979
        %v3277 = vunpack.c.h.b16 %v2979
        %v3278 = vunpack.c.l.b16 %v2980
        %v3279 = vunpack.c.h.b16 %v2980
        %v3280 = vunpack.c.l.b16 %v2981
        %v3281 = vunpack.c.h.b16 %v2981
        %v3282 = vunpack.c.l.b16 %v2982
        %v3283 = vunpack.c.h.b16 %v2982
        %v3284 = vunpack.c.l.b16 %v2983
        %v3285 = vunpack.c.h.b16 %v2983
        %v3286 = vunpack.c.l.b16 %v2984
        %v3287 = vunpack.c.h.b16 %v2984
        %v3288 = vunpack.c.l.b16 %v2985
        %v3289 = vunpack.c.h.b16 %v2985
        %v3290 = vunpack.c.l.b16 %v2986
        %v3291 = vunpack.c.h.b16 %v2986
        %v3292 = vunpack.c.l.b16 %v2987
        %v3293 = vunpack.c.h.b16 %v2987
        %v3294 = vunpack.c.l.b16 %v2988
        %v3295 = vunpack.c.h.b16 %v2988
        %v3296 = vunpack.c.l.b16 %v2989
        %v3297 = vunpack.c.h.b16 %v2989
        %v3298 = vunpack.c.l.b16 %v2990
        %v3299 = vunpack.c.h.b16 %v2990
        %v3300 = vunpack.c.l.b16 %v2991
        %v3301 = vunpack.c.h.b16 %v2991
        %v3302 = vunpack.c.l.b16 %v2992
        %v3303 = vunpack.c.h.b16 %v2992
        %v3304 = vunpack.c.l.b16 %v2993
        %v3305 = vunpack.c.h.b16 %v2993
        %v3306 = vunpack.c.l.b16 %v2994
        %v3307 = vunpack.c.h.b16 %v2994
        %v3308 = vunpack.c.l.b16 %v2995
        %v3309 = vunpack.c.h.b16 %v2995
        %v3310 = vunpack.c.l.b16 %v2996
        %v3311 = vunpack.c.h.b16 %v2996
        %v3312 = vunpack.c.l.b16 %v2997
        %v3313 = vunpack.c.h.b16 %v2997
        %v3314 = vunpack.c.l.b16 %v2998
        %v3315 = vunpack.c.h.b16 %v2998
        %v3316 = vunpack.c.l.b16 %v2999
        %v3317 = vunpack.c.h.b16 %v2999
        %v3318 = vunpack.c.l.b16 %v3000
        %v3319 = vunpack.c.h.b16 %v3000
        %v3320 = vunpack.c.l.b16 %v3001
        %v3321 = vunpack.c.h.b16 %v3001
        %v3322 = vunpack.c.l.b16 %v3002
        %v3323 = vunpack.c.h.b16 %v3002
        %v3324 = vunpack.c.l.b16 %v3003
        %v3325 = vunpack.c.h.b16 %v3003
        %v3326 = vunpack.c.l.b16 %v3004
        %v3327 = vunpack.c.h.b16 %v3004
        %v3328 = vunpack.c.l.b16 %v3005
        %v3329 = vunpack.c.h.b16 %v3005
        %v3330 = vunpack.c.l.b16 %v3006
        %v3331 = vunpack.c.h.b16 %v3006
        %v3332 = vunpack.c.l.b16 %v3007
        %v3333 = vunpack.c.h.b16 %v3007
        %v3334 = vunpack.c.l.b16 %v3008
        %v3335 = vunpack.c.h.b16 %v3008
        %v3336 = vunpack.c.l.b16 %v3009
        %v3337 = vunpack.c.h.b16 %v3009
        %v3338 = vunpack.c.l.b16 %v3010
        %v3339 = vunpack.c.h.b16 %v3010
        %v3340 = vunpack.c.l.b16 %v3011
        %v3341 = vunpack.c.h.b16 %v3011
        %v3342 = vunpack.c.l.b16 %v3012
        %v3343 = vunpack.c.h.b16 %v3012
        %v3344 = vunpack.c.l.b16 %v3013
        %v3345 = vunpack.c.h.b16 %v3013
        %v3346 = vunpack.c.l.b16 %v3014
        %v3347 = vunpack.c.h.b16 %v3014
        %v3348 = vunpack.c.l.b16 %v3015
        %v3349 = vunpack.c.h.b16 %v3015
        %v3350 = vunpack.c.l.b16 %v3016
        %v3351 = vunpack.c.h.b16 %v3016
        %v3352 = vunpack.c.l.b16 %v3017
        %v3353 = vunpack.c.h.b16 %v3017
        %v3354 = vunpack.c.l.b16 %v3018
        %v3355 = vunpack.c.h.b16 %v3018
        %v3356 = vunpack.c.l.b16 %v3019
        %v3357 = vunpack.c.h.b16 %v3019
        %v3358 = vunpack.c.l.b16 %v3020
        %v3359 = vunpack.c.h.b16 %v3020
        %v3360 = vunpack.c.l.b16 %v3021
        %v3361 = vunpack.c.h.b16 %v3021
        %v3362 = vunpack.c.l.b16 %v3022
        %v3363 = vunpack.c.h.b16 %v3022
        %v3364 = vunpack.c.l.b16 %v3023
        %v3365 = vunpack.c.h.b16 %v3023
        %v3366 = vunpack.c.l.b16 %v3024
        %v3367 = vunpack.c.h.b16 %v3024
        %v3368 = vunpack.c.l.b16 %v3025
        %v3369 = vunpack.c.h.b16 %v3025
        %v3370 = vunpack.c.l.b16 %v3026
        %v3371 = vunpack.c.h.b16 %v3026
        %v3372 = vunpack.c.l.b16 %v3027
        %v3373 = vunpack.c.h.b16 %v3027
        %v3374 = vunpack.c.l.b16 %v3028
        %v3375 = vunpack.c.h.b16 %v3028
        %v3376 = vunpack.c.l.b16 %v3029
        %v3377 = vunpack.c.h.b16 %v3029
        %v3378 = vunpack.c.l.b16 %v3030
        %v3379 = vunpack.c.h.b16 %v3030
        %v3380 = vunpack.c.l.b16 %v3031
        %v3381 = vunpack.c.h.b16 %v3031
        %v3382 = vunpack.c.l.b16 %v3032
        %v3383 = vunpack.c.h.b16 %v3032
        %v3384 = vunpack.c.l.b16 %v3033
        %v3385 = vunpack.c.h.b16 %v3033
        %v3386 = vunpack.c.l.b16 %v3034
        %v3387 = vunpack.c.h.b16 %v3034
        %v3388 = vunpack.c.l.b16 %v3035
        %v3389 = vunpack.c.h.b16 %v3035
        %v3390 = vunpack.c.l.b16 %v3036
        %v3391 = vunpack.c.h.b16 %v3036
        %v3392 = vunpack.c.l.b16 %v3037
        %v3393 = vunpack.c.h.b16 %v3037
        %v3394 = vunpack.c.l.b16 %v3038
        %v3395 = vunpack.c.h.b16 %v3038
        %v3396 = vunpack.c.l.b16 %v3039
        %v3397 = vunpack.c.h.b16 %v3039
        %v3398 = vunpack.c.l.b16 %v3040
        %v3399 = vunpack.c.h.b16 %v3040
        %v3400 = vunpack.c.l.b16 %v3041
        %v3401 = vunpack.c.h.b16 %v3041
        %v3402 = vunpack.c.l.b16 %v3042
        %v3403 = vunpack.c.h.b16 %v3042
        %v3404 = vunpack.c.l.b16 %v3043
        %v3405 = vunpack.c.h.b16 %v3043
        %v3406 = vunpack.c.l.b16 %v3044
        %v3407 = vunpack.c.h.b16 %v3044
        %v3408 = vunpack.c.l.b16 %v3045
        %v3409 = vunpack.c.h.b16 %v3045
        %v3410 = vunpack.c.l.b16 %v3046
        %v3411 = vunpack.c.h.b16 %v3046
        %v3412 = vunpack.c.l.b16 %v3047
        %v3413 = vunpack.c.h.b16 %v3047
        %v3414 = vunpack.c.l.b16 %v3048
        %v3415 = vunpack.c.h.b16 %v3048
        %v3416 = vunpack.c.l.b16 %v3049
        %v3417 = vunpack.c.h.b16 %v3049
        %v3418 = vunpack.c.l.b16 %v3050
        %v3419 = vunpack.c.h.b16 %v3050
        %v3420 = vunpack.c.l.b16 %v3051
        %v3421 = vunpack.c.h.b16 %v3051
        %v3422 = vunpack.c.l.b16 %v3052
        %v3423 = vunpack.c.h.b16 %v3052
        %v3424 = vunpack.c.l.b16 %v3053
        %v3425 = vunpack.c.h.b16 %v3053
        %v3426 = vunpack.c.l.b16 %v3054
        %v3427 = vunpack.c.h.b16 %v3054
        %v3428 = vunpack.c.l.b16 %v3055
        %v3429 = vunpack.c.h.b16 %v3055
        %v3430 = vunpack.c.l.b16 %v3056
        %v3431 = vunpack.c.h.b16 %v3056
        %v3432 = vunpack.c.l.b16 %v3057
        %v3433 = vunpack.c.h.b16 %v3057
        %v3434 = vunpack.c.l.b16 %v3058
        %v3435 = vunpack.c.h.b16 %v3058
        %v3436 = vunpack.c.l.b16 %v3059
        %v3437 = vunpack.c.h.b16 %v3059
        %v3438 = vunpack.c.l.b16 %v3060
        %v3439 = vunpack.c.h.b16 %v3060
        %v3440 = vunpack.c.l.b16 %v3061
        %v3441 = vunpack.c.h.b16 %v3061
        %v3442 = vunpack.c.l.b16 %v3062
        %v3443 = vunpack.c.h.b16 %v3062
        %v3444 = vunpack.c.l.b16 %v3063
        %v3445 = vunpack.c.h.b16 %v3063
        %v3446 = vunpack.c.l.b16 %v3064
        %v3447 = vunpack.c.h.b16 %v3064
        %v3448 = vunpack.c.l.b16 %v3065
        %v3449 = vunpack.c.h.b16 %v3065
        %v3450 = vpack.c.b16 %v3196, %v3194
        %v3451 = vpack.c.b16 %v3197, %v3195
        %v3452 = vpack.c.b16 %v3200, %v3198
        %v3453 = vpack.c.b16 %v3201, %v3199
        %v3454 = vpack.c.b16 %v3204, %v3202
        %v3455 = vpack.c.b16 %v3205, %v3203
        %v3456 = vpack.c.b16 %v3208, %v3206
        %v3457 = vpack.c.b16 %v3209, %v3207
        %v3458 = vpack.c.b16 %v3212, %v3210
        %v3459 = vpack.c.b16 %v3213, %v3211
        %v3460 = vpack.c.b16 %v3216, %v3214
        %v3461 = vpack.c.b16 %v3217, %v3215
        %v3462 = vpack.c.b16 %v3220, %v3218
        %v3463 = vpack.c.b16 %v3221, %v3219
        %v3464 = vpack.c.b16 %v3224, %v3222
        %v3465 = vpack.c.b16 %v3225, %v3223
        %v3466 = vpack.c.b16 %v3228, %v3226
        %v3467 = vpack.c.b16 %v3229, %v3227
        %v3468 = vpack.c.b16 %v3232, %v3230
        %v3469 = vpack.c.b16 %v3233, %v3231
        %v3470 = vpack.c.b16 %v3236, %v3234
        %v3471 = vpack.c.b16 %v3237, %v3235
        %v3472 = vpack.c.b16 %v3240, %v3238
        %v3473 = vpack.c.b16 %v3241, %v3239
        %v3474 = vpack.c.b16 %v3244, %v3242
        %v3475 = vpack.c.b16 %v3245, %v3243
        %v3476 = vpack.c.b16 %v3248, %v3246
        %v3477 = vpack.c.b16 %v3249, %v3247
        %v3478 = vpack.c.b16 %v3252, %v3250
        %v3479 = vpack.c.b16 %v3253, %v3251
        %v3480 = vpack.c.b16 %v3256, %v3254
        %v3481 = vpack.c.b16 %v3257, %v3255
        %v3482 = vpack.c.b16 %v3260, %v3258
        %v3483 = vpack.c.b16 %v3261, %v3259
        %v3484 = vpack.c.b16 %v3264, %v3262
        %v3485 = vpack.c.b16 %v3265, %v3263
        %v3486 = vpack.c.b16 %v3268, %v3266
        %v3487 = vpack.c.b16 %v3269, %v3267
        %v3488 = vpack.c.b16 %v3272, %v3270
        %v3489 = vpack.c.b16 %v3273, %v3271
        %v3490 = vpack.c.b16 %v3276, %v3274
        %v3491 = vpack.c.b16 %v3277, %v3275
        %v3492 = vpack.c.b16 %v3280, %v3278
        %v3493 = vpack.c.b16 %v3281, %v3279
        %v3494 = vpack.c.b16 %v3284, %v3282
        %v3495 = vpack.c.b16 %v3285, %v3283
        %v3496 = vpack.c.b16 %v3288, %v3286
        %v3497 = vpack.c.b16 %v3289, %v3287
        %v3498 = vpack.c.b16 %v3292, %v3290
        %v3499 = vpack.c.b16 %v3293, %v3291
        %v3500 = vpack.c.b16 %v3296, %v3294
        %v3501 = vpack.c.b16 %v3297, %v3295
        %v3502 = vpack.c.b16 %v3300, %v3298
        %v3503 = vpack.c.b16 %v3301, %v3299
        %v3504 = vpack.c.b16 %v3304, %v3302
        %v3505 = vpack.c.b16 %v3305, %v3303
        %v3506 = vpack.c.b16 %v3308, %v3306
        %v3507 = vpack.c.b16 %v3309, %v3307
        %v3508 = vpack.c.b16 %v3312, %v3310
        %v3509 = vpack.c.b16 %v3313, %v3311
        %v3510 = vpack.c.b16 %v3316, %v3314
        %v3511 = vpack.c.b16 %v3317, %v3315
        %v3512 = vpack.c.b16 %v3320, %v3318
        %v3513 = vpack.c.b16 %v3321, %v3319
        %v3514 = vpack.c.b16 %v3324, %v3322
        %v3515 = vpack.c.b16 %v3325, %v3323
        %v3516 = vpack.c.b16 %v3328, %v3326
        %v3517 = vpack.c.b16 %v3329, %v3327
        %v3518 = vpack.c.b16 %v3332, %v3330
        %v3519 = vpack.c.b16 %v3333, %v3331
        %v3520 = vpack.c.b16 %v3336, %v3334
        %v3521 = vpack.c.b16 %v3337, %v3335
        %v3522 = vpack.c.b16 %v3340, %v3338
        %v3523 = vpack.c.b16 %v3341, %v3339
        %v3524 = vpack.c.b16 %v3344, %v3342
        %v3525 = vpack.c.b16 %v3345, %v3343
        %v3526 = vpack.c.b16 %v3348, %v3346
        %v3527 = vpack.c.b16 %v3349, %v3347
        %v3528 = vpack.c.b16 %v3352, %v3350
        %v3529 = vpack.c.b16 %v3353, %v3351
        %v3530 = vpack.c.b16 %v3356, %v3354
        %v3531 = vpack.c.b16 %v3357, %v3355
        %v3532 = vpack.c.b16 %v3360, %v3358
        %v3533 = vpack.c.b16 %v3361, %v3359
        %v3534 = vpack.c.b16 %v3364, %v3362
        %v3535 = vpack.c.b16 %v3365, %v3363
        %v3536 = vpack.c.b16 %v3368, %v3366
        %v3537 = vpack.c.b16 %v3369, %v3367
        %v3538 = vpack.c.b16 %v3372, %v3370
        %v3539 = vpack.c.b16 %v3373, %v3371
        %v3540 = vpack.c.b16 %v3376, %v3374
        %v3541 = vpack.c.b16 %v3377, %v3375
        %v3542 = vpack.c.b16 %v3380, %v3378
        %v3543 = vpack.c.b16 %v3381, %v3379
        %v3544 = vpack.c.b16 %v3384, %v3382
        %v3545 = vpack.c.b16 %v3385, %v3383
        %v3546 = vpack.c.b16 %v3388, %v3386
        %v3547 = vpack.c.b16 %v3389, %v3387
        %v3548 = vpack.c.b16 %v3392, %v3390
        %v3549 = vpack.c.b16 %v3393, %v3391
        %v3550 = vpack.c.b16 %v3396, %v3394
        %v3551 = vpack.c.b16 %v3397, %v3395
        %v3552 = vpack.c.b16 %v3400, %v3398
        %v3553 = vpack.c.b16 %v3401, %v3399
        %v3554 = vpack.c.b16 %v3404, %v3402
        %v3555 = vpack.c.b16 %v3405, %v3403
        %v3556 = vpack.c.b16 %v3408, %v3406
        %v3557 = vpack.c.b16 %v3409, %v3407
        %v3558 = vpack.c.b16 %v3412, %v3410
        %v3559 = vpack.c.b16 %v3413, %v3411
        %v3560 = vpack.c.b16 %v3416, %v3414
        %v3561 = vpack.c.b16 %v3417, %v3415
        %v3562 = vpack.c.b16 %v3420, %v3418
        %v3563 = vpack.c.b16 %v3421, %v3419
        %v3564 = vpack.c.b16 %v3424, %v3422
        %v3565 = vpack.c.b16 %v3425, %v3423
        %v3566 = vpack.c.b16 %v3428, %v3426
        %v3567 = vpack.c.b16 %v3429, %v3427
        %v3568 = vpack.c.b16 %v3432, %v3430
        %v3569 = vpack.c.b16 %v3433, %v3431
        %v3570 = vpack.c.b16 %v3436, %v3434
        %v3571 = vpack.c.b16 %v3437, %v3435
        %v3572 = vpack.c.b16 %v3440, %v3438
        %v3573 = vpack.c.b16 %v3441, %v3439
        %v3574 = vpack.c.b16 %v3444, %v3442
        %v3575 = vpack.c.b16 %v3445, %v3443
        %v3576 = vpack.c.b16 %v3448, %v3446
        %v3577 = vpack.c.b16 %v3449, %v3447
        %3706 = vmatprep.subr.bf16.mxu0 %v3451
        %3707 = vmatpush1.bf16.msra.mxu0 %v3450
        %3708 = vmatprep.subr.bf16.mxu0 %v3453
        %3709 = vmatpush1.bf16.msra.mxu0 %v3452
        %3710 = vmatprep.subr.bf16.mxu0 %v3455
        %3711 = vmatpush1.bf16.msra.mxu0 %v3454
        %3712 = vmatprep.subr.bf16.mxu0 %v3457
        %3713 = vmatpush1.bf16.msra.mxu0 %v3456
        %3714 = vmatprep.subr.bf16.mxu0 %v3459
        %3715 = vmatpush1.bf16.msra.mxu0 %v3458
        %3716 = vmatprep.subr.bf16.mxu0 %v3461
        %3717 = vmatpush1.bf16.msra.mxu0 %v3460
        %3718 = vmatprep.subr.bf16.mxu0 %v3463
        %3719 = vmatpush1.bf16.msra.mxu0 %v3462
        %3720 = vmatprep.subr.bf16.mxu0 %v3465
        %3721 = vmatpush1.bf16.msra.mxu0 %v3464
        %3722 = vmatprep.subr.bf16.mxu0 %v3467
        %3723 = vmatpush1.bf16.msra.mxu0 %v3466
        %3724 = vmatprep.subr.bf16.mxu0 %v3469
        %3725 = vmatpush1.bf16.msra.mxu0 %v3468
        %3726 = vmatprep.subr.bf16.mxu0 %v3471
        %3727 = vmatpush1.bf16.msra.mxu0 %v3470
        %3728 = vmatprep.subr.bf16.mxu0 %v3473
        %3729 = vmatpush1.bf16.msra.mxu0 %v3472
        %3730 = vmatprep.subr.bf16.mxu0 %v3475
        %3731 = vmatpush1.bf16.msra.mxu0 %v3474
        %3732 = vmatprep.subr.bf16.mxu0 %v3477
        %3733 = vmatpush1.bf16.msra.mxu0 %v3476
        %3734 = vmatprep.subr.bf16.mxu0 %v3479
        %3735 = vmatpush1.bf16.msra.mxu0 %v3478
        %3736 = vmatprep.subr.bf16.mxu0 %v3481
        %3737 = vmatpush1.bf16.msra.mxu0 %v3480
        %3738 = vmatprep.mubr.bf16.mxu0 %v2931
        %3739 = vmatmul.mubr.bf16.gmra.mrb[0].mxu0 %v2930
        %v3740 = vpop.f32.mrb[0].mxu0
        %v3741 = vadd.f32 0.0, %v3740
        %v3742 = vpop.f32.mrb[0].mxu0
        %v3743 = vadd.f32 0.0, %v3742
        %v3744 = vpop.f32.mrb[0].mxu0
        %v3745 = vpop.f32.mrb[0].mxu0
        %3746 = vdwg.mxu0
        %3747 = vmatprep.subr.bf16.mxu0 %v3483
        %3748 = vmatpush1.bf16.msra.mxu0 %v3482
        %3749 = vmatprep.subr.bf16.mxu0 %v3485
        %3750 = vmatpush1.bf16.msra.mxu0 %v3484
        %3751 = vmatprep.subr.bf16.mxu0 %v3487
        %3752 = vmatpush1.bf16.msra.mxu0 %v3486
        %3753 = vmatprep.subr.bf16.mxu0 %v3489
        %3754 = vmatpush1.bf16.msra.mxu0 %v3488
        %3755 = vmatprep.subr.bf16.mxu0 %v3491
        %3756 = vmatpush1.bf16.msra.mxu0 %v3490
        %3757 = vmatprep.subr.bf16.mxu0 %v3493
        %3758 = vmatpush1.bf16.msra.mxu0 %v3492
        %3759 = vmatprep.subr.bf16.mxu0 %v3495
        %3760 = vmatpush1.bf16.msra.mxu0 %v3494
        %3761 = vmatprep.subr.bf16.mxu0 %v3497
        %3762 = vmatpush1.bf16.msra.mxu0 %v3496
        %3763 = vmatprep.subr.bf16.mxu0 %v3499
        %3764 = vmatpush1.bf16.msra.mxu0 %v3498
        %3765 = vmatprep.subr.bf16.mxu0 %v3501
        %3766 = vmatpush1.bf16.msra.mxu0 %v3500
        %3767 = vmatprep.subr.bf16.mxu0 %v3503
        %3768 = vmatpush1.bf16.msra.mxu0 %v3502
        %3769 = vmatprep.subr.bf16.mxu0 %v3505
        %3770 = vmatpush1.bf16.msra.mxu0 %v3504
        %3771 = vmatprep.subr.bf16.mxu0 %v3507
        %3772 = vmatpush1.bf16.msra.mxu0 %v3506
        %3773 = vmatprep.subr.bf16.mxu0 %v3509
        %3774 = vmatpush1.bf16.msra.mxu0 %v3508
        %3775 = vmatprep.subr.bf16.mxu0 %v3511
        %3776 = vmatpush1.bf16.msra.mxu0 %v3510
        %3777 = vmatprep.subr.bf16.mxu0 %v3513
        %3778 = vmatpush1.bf16.msra.mxu0 %v3512
        %3779 = vmatprep.mubr.bf16.mxu0 %v2933
        %3780 = vmatmul.mubr.bf16.gmra.mrb[0].mxu0 %v2932
        %v3781 = vpop.f32.mrb[0].mxu0
        %v3782 = vadd.f32 %v3741, %v3781
        %v3783 = vpop.f32.mrb[0].mxu0
        %v3784 = vadd.f32 %v3743, %v3783
        %v3785 = vpop.f32.mrb[0].mxu0
        %v3786 = vpop.f32.mrb[0].mxu0
        %3787 = vdwg.mxu0
        %3788 = vmatprep.subr.bf16.mxu0 %v3515
        %3789 = vmatpush1.bf16.msra.mxu0 %v3514
        %3790 = vmatprep.subr.bf16.mxu0 %v3517
        %3791 = vmatpush1.bf16.msra.mxu0 %v3516
        %3792 = vmatprep.subr.bf16.mxu0 %v3519
        %3793 = vmatpush1.bf16.msra.mxu0 %v3518
        %3794 = vmatprep.subr.bf16.mxu0 %v3521
        %3795 = vmatpush1.bf16.msra.mxu0 %v3520
        %3796 = vmatprep.subr.bf16.mxu0 %v3523
        %3797 = vmatpush1.bf16.msra.mxu0 %v3522
        %3798 = vmatprep.subr.bf16.mxu0 %v3525
        %3799 = vmatpush1.bf16.msra.mxu0 %v3524
        %3800 = vmatprep.subr.bf16.mxu0 %v3527
        %3801 = vmatpush1.bf16.msra.mxu0 %v3526
        %3802 = vmatprep.subr.bf16.mxu0 %v3529
        %3803 = vmatpush1.bf16.msra.mxu0 %v3528
        %3804 = vmatprep.subr.bf16.mxu0 %v3531
        %3805 = vmatpush1.bf16.msra.mxu0 %v3530
        %3806 = vmatprep.subr.bf16.mxu0 %v3533
        %3807 = vmatpush1.bf16.msra.mxu0 %v3532
        %3808 = vmatprep.subr.bf16.mxu0 %v3535
        %3809 = vmatpush1.bf16.msra.mxu0 %v3534
        %3810 = vmatprep.subr.bf16.mxu0 %v3537
        %3811 = vmatpush1.bf16.msra.mxu0 %v3536
        %3812 = vmatprep.subr.bf16.mxu0 %v3539
        %3813 = vmatpush1.bf16.msra.mxu0 %v3538
        %3814 = vmatprep.subr.bf16.mxu0 %v3541
        %3815 = vmatpush1.bf16.msra.mxu0 %v3540
        %3816 = vmatprep.subr.bf16.mxu0 %v3543
        %3817 = vmatpush1.bf16.msra.mxu0 %v3542
        %3818 = vmatprep.subr.bf16.mxu0 %v3545
        %3819 = vmatpush1.bf16.msra.mxu0 %v3544
        %3820 = vmatprep.mubr.bf16.mxu0 %v2935
        %3821 = vmatmul.mubr.bf16.gmra.mrb[0].mxu0 %v2934
        %v3822 = vpop.f32.mrb[0].mxu0
        %v3823 = vadd.f32 %v3782, %v3822
        %v3824 = vpop.f32.mrb[0].mxu0
        %v3825 = vadd.f32 %v3784, %v3824
        %v3826 = vpop.f32.mrb[0].mxu0
        %v3827 = vpop.f32.mrb[0].mxu0
        %3828 = vdwg.mxu0
        %3829 = vmatprep.subr.bf16.mxu0 %v3547
        %3830 = vmatpush1.bf16.msra.mxu0 %v3546
        %3831 = vmatprep.subr.bf16.mxu0 %v3549
        %3832 = vmatpush1.bf16.msra.mxu0 %v3548
        %3833 = vmatprep.subr.bf16.mxu0 %v3551
        %3834 = vmatpush1.bf16.msra.mxu0 %v3550
        %3835 = vmatprep.subr.bf16.mxu0 %v3553
        %3836 = vmatpush1.bf16.msra.mxu0 %v3552
        %3837 = vmatprep.subr.bf16.mxu0 %v3555
        %3838 = vmatpush1.bf16.msra.mxu0 %v3554
        %3839 = vmatprep.subr.bf16.mxu0 %v3557
        %3840 = vmatpush1.bf16.msra.mxu0 %v3556
        %3841 = vmatprep.subr.bf16.mxu0 %v3559
        %3842 = vmatpush1.bf16.msra.mxu0 %v3558
        %3843 = vmatprep.subr.bf16.mxu0 %v3561
        %3844 = vmatpush1.bf16.msra.mxu0 %v3560
        %3845 = vmatprep.subr.bf16.mxu0 %v3563
        %3846 = vmatpush1.bf16.msra.mxu0 %v3562
        %3847 = vmatprep.subr.bf16.mxu0 %v3565
        %3848 = vmatpush1.bf16.msra.mxu0 %v3564
        %3849 = vmatprep.subr.bf16.mxu0 %v3567
        %3850 = vmatpush1.bf16.msra.mxu0 %v3566
        %3851 = vmatprep.subr.bf16.mxu0 %v3569
        %3852 = vmatpush1.bf16.msra.mxu0 %v3568
        %3853 = vmatprep.subr.bf16.mxu0 %v3571
        %3854 = vmatpush1.bf16.msra.mxu0 %v3570
        %3855 = vmatprep.subr.bf16.mxu0 %v3573
        %3856 = vmatpush1.bf16.msra.mxu0 %v3572
        %3857 = vmatprep.subr.bf16.mxu0 %v3575
        %3858 = vmatpush1.bf16.msra.mxu0 %v3574
        %3859 = vmatprep.subr.bf16.mxu0 %v3577
        %3860 = vmatpush1.bf16.msra.mxu0 %v3576
        %3861 = vmatprep.mubr.bf16.mxu0 %v2937
        %3862 = vmatmul.mubr.bf16.gmra.mrb[0].mxu0 %v2936
        %v3863 = vpop.f32.mrb[0].mxu0
        %v3864 = vadd.f32 %v3823, %v3863
        %v3865 = vpop.f32.mrb[0].mxu0
        %v3866 = vadd.f32 %v3825, %v3865
        %v3867 = vpop.f32.mrb[0].mxu0
        %v3868 = vpop.f32.mrb[0].mxu0
        %3869 = vdwg.mxu0
        %v3870 = vadd.f32 %v1836, %v3864
        %v3871 = vadd.f32 %v1837, %v3866
        %v3872 = vld [vmem:[%s12] sm:$0x3]
        %v3874 = vlaneseq
        %v3875 = vshrl.u32 %v3874, 7
        %v3876 = vsub.s32 0, %v3875
        %v3877 = vrot.slane %v3872, %v3876
        %v3878 = vlaneseq
        %v3879 = vshrl.u32 %v3878, 7
        %v3880 = vsub.s32 1, %v3879
        %v3881 = vrot.slane %v3872, %v3880
        %v3884 = vadd.f32 %v3870, %v3877
        %v3885 = vadd.f32 %v3871, %v3881
        %s3886 = scalar_lea.vmem %s1, 2
        %v3887 = vld [vmem:[%s3886] sm:$0x3]
        %s3888 = scalar_lea.vmem %s2, 2
        %v3889 = vld [vmem:[%s3888] sm:$0x3]
        %v3890 = vadd.f32 %v3884, %v3885
        %3891 = vadd.xlane.f32.xlu0 %v3890
        %v3892 = vpop.xlane.xlu0 %3891
        %v3893 = vmul.f32 %v3892, %v608
        %v3894 = vsub.f32 %v3884, %v3893
        %v3895 = vsub.f32 %v3885, %v3893
        %v3896 = vmul.f32 %v3894, %v3894
        %v3897 = vmul.f32 %v3895, %v3895
        %v3898 = vadd.f32 %v3896, %v3897
        %3899 = vadd.xlane.f32.xlu0 %v3898
        %v3900 = vpop.xlane.xlu0 %3899
        %v3901 = vmul.f32 %v3900, %v608
        %v3902 = vadd.f32 %v3901, 1e-05
        %v3903 = vrsqrt.pop %v3902
        %v3904 = vmul.f32 %v3894, %v3903
        %v3905 = vmul.f32 %v3895, %v3903
        %v3907 = vlaneseq
        %v3908 = vshrl.u32 %v3907, 7
        %v3909 = vsub.s32 0, %v3908
        %v3910 = vrot.slane %v3887, %v3909
        %v3911 = vlaneseq
        %v3912 = vshrl.u32 %v3911, 7
        %v3913 = vsub.s32 1, %v3912
        %v3914 = vrot.slane %v3887, %v3913
        %v3917 = vmul.f32 %v3904, %v3910
        %v3918 = vmul.f32 %v3905, %v3914
        %v3920 = vlaneseq
        %v3921 = vshrl.u32 %v3920, 7
        %v3922 = vsub.s32 0, %v3921
        %v3923 = vrot.slane %v3889, %v3922
        %v3924 = vlaneseq
        %v3925 = vshrl.u32 %v3924, 7
        %v3926 = vsub.s32 1, %v3925
        %v3927 = vrot.slane %v3889, %v3926
        %v3930 = vadd.f32 %v3917, %v3923
        %v3931 = vadd.f32 %v3918, %v3927
        %v3932 = vpack.c.bf16 %v3930, %v3930
        %v3933 = vpack.c.bf16 %v3931, %v3931
        %s3934 = scalar_lea.vmem [#allocation2], 768
        %v3935 = vld [vmem:[%s3934] sm:$0xff]
        %v3936 = vld [vmem:[%s3934 + $0x8] sm:$0xff]
        %v3937 = vld [vmem:[%s3934 + $0x10] sm:$0xff]
        %v3938 = vld [vmem:[%s3934 + $0x18] sm:$0xff]
        %v3939 = vld [vmem:[%s3934 + $0x20] sm:$0xff]
        %v3940 = vld [vmem:[%s3934 + $0x28] sm:$0xff]
        %v3941 = vld [vmem:[%s3934 + $0x30] sm:$0xff]
        %v3942 = vld [vmem:[%s3934 + $0x38] sm:$0xff]
        %v3943 = vld [vmem:[%s3934 + $0x40] sm:$0xff]
        %v3944 = vld [vmem:[%s3934 + $0x48] sm:$0xff]
        %v3945 = vld [vmem:[%s3934 + $0x50] sm:$0xff]
        %v3946 = vld [vmem:[%s3934 + $0x58] sm:$0xff]
        %v3947 = vld [vmem:[%s3934 + $0x60] sm:$0xff]
        %v3948 = vld [vmem:[%s3934 + $0x68] sm:$0xff]
        %v3949 = vld [vmem:[%s3934 + $0x70] sm:$0xff]
        %v3950 = vld [vmem:[%s3934 + $0x78] sm:$0xff]
        %v3951 = vld [vmem:[%s3934 + $0x80] sm:$0xff]
        %v3952 = vld [vmem:[%s3934 + $0x88] sm:$0xff]
        %v3953 = vld [vmem:[%s3934 + $0x90] sm:$0xff]
        %v3954 = vld [vmem:[%s3934 + $0x98] sm:$0xff]
        %v3955 = vld [vmem:[%s3934 + $0xa0] sm:$0xff]
        %v3956 = vld [vmem:[%s3934 + $0xa8] sm:$0xff]
        %v3957 = vld [vmem:[%s3934 + $0xb0] sm:$0xff]
        %v3958 = vld [vmem:[%s3934 + $0xb8] sm:$0xff]
        %v3959 = vld [vmem:[%s3934 + $0xc0] sm:$0xff]
        %v3960 = vld [vmem:[%s3934 + $0xc8] sm:$0xff]
        %v3961 = vld [vmem:[%s3934 + $0xd0] sm:$0xff]
        %v3962 = vld [vmem:[%s3934 + $0xd8] sm:$0xff]
        %v3963 = vld [vmem:[%s3934 + $0xe0] sm:$0xff]
        %v3964 = vld [vmem:[%s3934 + $0xe8] sm:$0xff]
        %v3965 = vld [vmem:[%s3934 + $0xf0] sm:$0xff]
        %v3966 = vld [vmem:[%s3934 + $0xf8] sm:$0xff]
        %v3967 = vld [vmem:[%s3934 + $0x100] sm:$0xff]
        %v3968 = vld [vmem:[%s3934 + $0x108] sm:$0xff]
        %v3969 = vld [vmem:[%s3934 + $0x110] sm:$0xff]
        %v3970 = vld [vmem:[%s3934 + $0x118] sm:$0xff]
        %v3971 = vld [vmem:[%s3934 + $0x120] sm:$0xff]
        %v3972 = vld [vmem:[%s3934 + $0x128] sm:$0xff]
        %v3973 = vld [vmem:[%s3934 + $0x130] sm:$0xff]
        %v3974 = vld [vmem:[%s3934 + $0x138] sm:$0xff]
        %v3975 = vld [vmem:[%s3934 + $0x140] sm:$0xff]
        %v3976 = vld [vmem:[%s3934 + $0x148] sm:$0xff]
        %v3977 = vld [vmem:[%s3934 + $0x150] sm:$0xff]
        %v3978 = vld [vmem:[%s3934 + $0x158] sm:$0xff]
        %v3979 = vld [vmem:[%s3934 + $0x160] sm:$0xff]
        %v3980 = vld [vmem:[%s3934 + $0x168] sm:$0xff]
        %v3981 = vld [vmem:[%s3934 + $0x170] sm:$0xff]
        %v3982 = vld [vmem:[%s3934 + $0x178] sm:$0xff]
        %v3983 = vld [vmem:[%s3934 + $0x180] sm:$0xff]
        %v3984 = vld [vmem:[%s3934 + $0x188] sm:$0xff]
        %v3985 = vld [vmem:[%s3934 + $0x190] sm:$0xff]
        %v3986 = vld [vmem:[%s3934 + $0x198] sm:$0xff]
        %v3987 = vld [vmem:[%s3934 + $0x1a0] sm:$0xff]
        %v3988 = vld [vmem:[%s3934 + $0x1a8] sm:$0xff]
        %v3989 = vld [vmem:[%s3934 + $0x1b0] sm:$0xff]
        %v3990 = vld [vmem:[%s3934 + $0x1b8] sm:$0xff]
        %v3991 = vld [vmem:[%s3934 + $0x1c0] sm:$0xff]
        %v3992 = vld [vmem:[%s3934 + $0x1c8] sm:$0xff]
        %v3993 = vld [vmem:[%s3934 + $0x1d0] sm:$0xff]
        %v3994 = vld [vmem:[%s3934 + $0x1d8] sm:$0xff]
        %v3995 = vld [vmem:[%s3934 + $0x1e0] sm:$0xff]
        %v3996 = vld [vmem:[%s3934 + $0x1e8] sm:$0xff]
        %v3997 = vld [vmem:[%s3934 + $0x1f0] sm:$0xff]
        %v3998 = vld [vmem:[%s3934 + $0x1f8] sm:$0xff]
        %v3999 = vld [vmem:[%s3934 + $0x200] sm:$0xff]
        %v4000 = vld [vmem:[%s3934 + $0x208] sm:$0xff]
        %v4001 = vld [vmem:[%s3934 + $0x210] sm:$0xff]
        %v4002 = vld [vmem:[%s3934 + $0x218] sm:$0xff]
        %v4003 = vld [vmem:[%s3934 + $0x220] sm:$0xff]
        %v4004 = vld [vmem:[%s3934 + $0x228] sm:$0xff]
        %v4005 = vld [vmem:[%s3934 + $0x230] sm:$0xff]
        %v4006 = vld [vmem:[%s3934 + $0x238] sm:$0xff]
        %v4007 = vld [vmem:[%s3934 + $0x240] sm:$0xff]
        %v4008 = vld [vmem:[%s3934 + $0x248] sm:$0xff]
        %v4009 = vld [vmem:[%s3934 + $0x250] sm:$0xff]
        %v4010 = vld [vmem:[%s3934 + $0x258] sm:$0xff]
        %v4011 = vld [vmem:[%s3934 + $0x260] sm:$0xff]
        %v4012 = vld [vmem:[%s3934 + $0x268] sm:$0xff]
        %v4013 = vld [vmem:[%s3934 + $0x270] sm:$0xff]
        %v4014 = vld [vmem:[%s3934 + $0x278] sm:$0xff]
        %v4015 = vld [vmem:[%s3934 + $0x280] sm:$0xff]
        %v4016 = vld [vmem:[%s3934 + $0x288] sm:$0xff]
        %v4017 = vld [vmem:[%s3934 + $0x290] sm:$0xff]
        %v4018 = vld [vmem:[%s3934 + $0x298] sm:$0xff]
        %v4019 = vld [vmem:[%s3934 + $0x2a0] sm:$0xff]
        %v4020 = vld [vmem:[%s3934 + $0x2a8] sm:$0xff]
        %v4021 = vld [vmem:[%s3934 + $0x2b0] sm:$0xff]
        %v4022 = vld [vmem:[%s3934 + $0x2b8] sm:$0xff]
        %v4023 = vld [vmem:[%s3934 + $0x2c0] sm:$0xff]
        %v4024 = vld [vmem:[%s3934 + $0x2c8] sm:$0xff]
        %v4025 = vld [vmem:[%s3934 + $0x2d0] sm:$0xff]
        %v4026 = vld [vmem:[%s3934 + $0x2d8] sm:$0xff]
        %v4027 = vld [vmem:[%s3934 + $0x2e0] sm:$0xff]
        %v4028 = vld [vmem:[%s3934 + $0x2e8] sm:$0xff]
        %v4029 = vld [vmem:[%s3934 + $0x2f0] sm:$0xff]
        %v4030 = vld [vmem:[%s3934 + $0x2f8] sm:$0xff]
        %s4031 = scalar_lea.vmem %s4, 6
        %v4032 = vld [vmem:[%s4031] sm:$0x3f]
        %v4034 = vlaneseq
        %v4035 = vshrl.u32 %v4034, 7
        %v4036 = vsub.s32 0, %v4035
        %v4037 = vrot.slane %v4032, %v4036
        %v4038 = vlaneseq
        %v4039 = vshrl.u32 %v4038, 7
        %v4040 = vsub.s32 1, %v4039
        %v4041 = vrot.slane %v4032, %v4040
        %v4042 = vlaneseq
        %v4043 = vshrl.u32 %v4042, 7
        %v4044 = vsub.s32 2, %v4043
        %v4045 = vrot.slane %v4032, %v4044
        %v4046 = vlaneseq
        %v4047 = vshrl.u32 %v4046, 7
        %v4048 = vsub.s32 3, %v4047
        %v4049 = vrot.slane %v4032, %v4048
        %v4050 = vlaneseq
        %v4051 = vshrl.u32 %v4050, 7
        %v4052 = vsub.s32 4, %v4051
        %v4053 = vrot.slane %v4032, %v4052
        %v4054 = vlaneseq
        %v4055 = vshrl.u32 %v4054, 7
        %v4056 = vsub.s32 5, %v4055
        %v4057 = vrot.slane %v4032, %v4056
        %v4160 = vunpack.c.l.b16 %v3935
        %v4161 = vunpack.c.h.b16 %v3935
        %v4162 = vunpack.c.l.b16 %v3936
        %v4163 = vunpack.c.h.b16 %v3936
        %v4164 = vunpack.c.l.b16 %v3937
        %v4165 = vunpack.c.h.b16 %v3937
        %v4166 = vunpack.c.l.b16 %v3938
        %v4167 = vunpack.c.h.b16 %v3938
        %v4168 = vunpack.c.l.b16 %v3939
        %v4169 = vunpack.c.h.b16 %v3939
        %v4170 = vunpack.c.l.b16 %v3940
        %v4171 = vunpack.c.h.b16 %v3940
        %v4172 = vunpack.c.l.b16 %v3941
        %v4173 = vunpack.c.h.b16 %v3941
        %v4174 = vunpack.c.l.b16 %v3942
        %v4175 = vunpack.c.h.b16 %v3942
        %v4176 = vunpack.c.l.b16 %v3943
        %v4177 = vunpack.c.h.b16 %v3943
        %v4178 = vunpack.c.l.b16 %v3944
        %v4179 = vunpack.c.h.b16 %v3944
        %v4180 = vunpack.c.l.b16 %v3945
        %v4181 = vunpack.c.h.b16 %v3945
        %v4182 = vunpack.c.l.b16 %v3946
        %v4183 = vunpack.c.h.b16 %v3946
        %v4184 = vunpack.c.l.b16 %v3947
        %v4185 = vunpack.c.h.b16 %v3947
        %v4186 = vunpack.c.l.b16 %v3948
        %v4187 = vunpack.c.h.b16 %v3948
        %v4188 = vunpack.c.l.b16 %v3949
        %v4189 = vunpack.c.h.b16 %v3949
        %v4190 = vunpack.c.l.b16 %v3950
        %v4191 = vunpack.c.h.b16 %v3950
        %v4192 = vunpack.c.l.b16 %v3951
        %v4193 = vunpack.c.h.b16 %v3951
        %v4194 = vunpack.c.l.b16 %v3952
        %v4195 = vunpack.c.h.b16 %v3952
        %v4196 = vunpack.c.l.b16 %v3953
        %v4197 = vunpack.c.h.b16 %v3953
        %v4198 = vunpack.c.l.b16 %v3954
        %v4199 = vunpack.c.h.b16 %v3954
        %v4200 = vunpack.c.l.b16 %v3955
        %v4201 = vunpack.c.h.b16 %v3955
        %v4202 = vunpack.c.l.b16 %v3956
        %v4203 = vunpack.c.h.b16 %v3956
        %v4204 = vunpack.c.l.b16 %v3957
        %v4205 = vunpack.c.h.b16 %v3957
        %v4206 = vunpack.c.l.b16 %v3958
        %v4207 = vunpack.c.h.b16 %v3958
        %v4208 = vunpack.c.l.b16 %v3959
        %v4209 = vunpack.c.h.b16 %v3959
        %v4210 = vunpack.c.l.b16 %v3960
        %v4211 = vunpack.c.h.b16 %v3960
        %v4212 = vunpack.c.l.b16 %v3961
        %v4213 = vunpack.c.h.b16 %v3961
        %v4214 = vunpack.c.l.b16 %v3962
        %v4215 = vunpack.c.h.b16 %v3962
        %v4216 = vunpack.c.l.b16 %v3963
        %v4217 = vunpack.c.h.b16 %v3963
        %v4218 = vunpack.c.l.b16 %v3964
        %v4219 = vunpack.c.h.b16 %v3964
        %v4220 = vunpack.c.l.b16 %v3965
        %v4221 = vunpack.c.h.b16 %v3965
        %v4222 = vunpack.c.l.b16 %v3966
        %v4223 = vunpack.c.h.b16 %v3966
        %v4224 = vunpack.c.l.b16 %v3967
        %v4225 = vunpack.c.h.b16 %v3967
        %v4226 = vunpack.c.l.b16 %v3968
        %v4227 = vunpack.c.h.b16 %v3968
        %v4228 = vunpack.c.l.b16 %v3969
        %v4229 = vunpack.c.h.b16 %v3969
        %v4230 = vunpack.c.l.b16 %v3970
        %v4231 = vunpack.c.h.b16 %v3970
        %v4232 = vunpack.c.l.b16 %v3971
        %v4233 = vunpack.c.h.b16 %v3971
        %v4234 = vunpack.c.l.b16 %v3972
        %v4235 = vunpack.c.h.b16 %v3972
        %v4236 = vunpack.c.l.b16 %v3973
        %v4237 = vunpack.c.h.b16 %v3973
        %v4238 = vunpack.c.l.b16 %v3974
        %v4239 = vunpack.c.h.b16 %v3974
        %v4240 = vunpack.c.l.b16 %v3975
        %v4241 = vunpack.c.h.b16 %v3975
        %v4242 = vunpack.c.l.b16 %v3976
        %v4243 = vunpack.c.h.b16 %v3976
        %v4244 = vunpack.c.l.b16 %v3977
        %v4245 = vunpack.c.h.b16 %v3977
        %v4246 = vunpack.c.l.b16 %v3978
        %v4247 = vunpack.c.h.b16 %v3978
        %v4248 = vunpack.c.l.b16 %v3979
        %v4249 = vunpack.c.h.b16 %v3979
        %v4250 = vunpack.c.l.b16 %v3980
        %v4251 = vunpack.c.h.b16 %v3980
        %v4252 = vunpack.c.l.b16 %v3981
        %v4253 = vunpack.c.h.b16 %v3981
        %v4254 = vunpack.c.l.b16 %v3982
        %v4255 = vunpack.c.h.b16 %v3982
        %v4256 = vunpack.c.l.b16 %v3983
        %v4257 = vunpack.c.h.b16 %v3983
        %v4258 = vunpack.c.l.b16 %v3984
        %v4259 = vunpack.c.h.b16 %v3984
        %v4260 = vunpack.c.l.b16 %v3985
        %v4261 = vunpack.c.h.b16 %v3985
        %v4262 = vunpack.c.l.b16 %v3986
        %v4263 = vunpack.c.h.b16 %v3986
        %v4264 = vunpack.c.l.b16 %v3987
        %v4265 = vunpack.c.h.b16 %v3987
        %v4266 = vunpack.c.l.b16 %v3988
        %v4267 = vunpack.c.h.b16 %v3988
        %v4268 = vunpack.c.l.b16 %v3989
        %v4269 = vunpack.c.h.b16 %v3989
        %v4270 = vunpack.c.l.b16 %v3990
        %v4271 = vunpack.c.h.b16 %v3990
        %v4272 = vunpack.c.l.b16 %v3991
        %v4273 = vunpack.c.h.b16 %v3991
        %v4274 = vunpack.c.l.b16 %v3992
        %v4275 = vunpack.c.h.b16 %v3992
        %v4276 = vunpack.c.l.b16 %v3993
        %v4277 = vunpack.c.h.b16 %v3993
        %v4278 = vunpack.c.l.b16 %v3994
        %v4279 = vunpack.c.h.b16 %v3994
        %v4280 = vunpack.c.l.b16 %v3995
        %v4281 = vunpack.c.h.b16 %v3995
        %v4282 = vunpack.c.l.b16 %v3996
        %v4283 = vunpack.c.h.b16 %v3996
        %v4284 = vunpack.c.l.b16 %v3997
        %v4285 = vunpack.c.h.b16 %v3997
        %v4286 = vunpack.c.l.b16 %v3998
        %v4287 = vunpack.c.h.b16 %v3998
        %v4288 = vunpack.c.l.b16 %v3999
        %v4289 = vunpack.c.h.b16 %v3999
        %v4290 = vunpack.c.l.b16 %v4000
        %v4291 = vunpack.c.h.b16 %v4000
        %v4292 = vunpack.c.l.b16 %v4001
        %v4293 = vunpack.c.h.b16 %v4001
        %v4294 = vunpack.c.l.b16 %v4002
        %v4295 = vunpack.c.h.b16 %v4002
        %v4296 = vunpack.c.l.b16 %v4003
        %v4297 = vunpack.c.h.b16 %v4003
        %v4298 = vunpack.c.l.b16 %v4004
        %v4299 = vunpack.c.h.b16 %v4004
        %v4300 = vunpack.c.l.b16 %v4005
        %v4301 = vunpack.c.h.b16 %v4005
        %v4302 = vunpack.c.l.b16 %v4006
        %v4303 = vunpack.c.h.b16 %v4006
        %v4304 = vunpack.c.l.b16 %v4007
        %v4305 = vunpack.c.h.b16 %v4007
        %v4306 = vunpack.c.l.b16 %v4008
        %v4307 = vunpack.c.h.b16 %v4008
        %v4308 = vunpack.c.l.b16 %v4009
        %v4309 = vunpack.c.h.b16 %v4009
        %v4310 = vunpack.c.l.b16 %v4010
        %v4311 = vunpack.c.h.b16 %v4010
        %v4312 = vunpack.c.l.b16 %v4011
        %v4313 = vunpack.c.h.b16 %v4011
        %v4314 = vunpack.c.l.b16 %v4012
        %v4315 = vunpack.c.h.b16 %v4012
        %v4316 = vunpack.c.l.b16 %v4013
        %v4317 = vunpack.c.h.b16 %v4013
        %v4318 = vunpack.c.l.b16 %v4014
        %v4319 = vunpack.c.h.b16 %v4014
        %v4320 = vunpack.c.l.b16 %v4015
        %v4321 = vunpack.c.h.b16 %v4015
        %v4322 = vunpack.c.l.b16 %v4016
        %v4323 = vunpack.c.h.b16 %v4016
        %v4324 = vunpack.c.l.b16 %v4017
        %v4325 = vunpack.c.h.b16 %v4017
        %v4326 = vunpack.c.l.b16 %v4018
        %v4327 = vunpack.c.h.b16 %v4018
        %v4328 = vunpack.c.l.b16 %v4019
        %v4329 = vunpack.c.h.b16 %v4019
        %v4330 = vunpack.c.l.b16 %v4020
        %v4331 = vunpack.c.h.b16 %v4020
        %v4332 = vunpack.c.l.b16 %v4021
        %v4333 = vunpack.c.h.b16 %v4021
        %v4334 = vunpack.c.l.b16 %v4022
        %v4335 = vunpack.c.h.b16 %v4022
        %v4336 = vunpack.c.l.b16 %v4023
        %v4337 = vunpack.c.h.b16 %v4023
        %v4338 = vunpack.c.l.b16 %v4024
        %v4339 = vunpack.c.h.b16 %v4024
        %v4340 = vunpack.c.l.b16 %v4025
        %v4341 = vunpack.c.h.b16 %v4025
        %v4342 = vunpack.c.l.b16 %v4026
        %v4343 = vunpack.c.h.b16 %v4026
        %v4344 = vunpack.c.l.b16 %v4027
        %v4345 = vunpack.c.h.b16 %v4027
        %v4346 = vunpack.c.l.b16 %v4028
        %v4347 = vunpack.c.h.b16 %v4028
        %v4348 = vunpack.c.l.b16 %v4029
        %v4349 = vunpack.c.h.b16 %v4029
        %v4350 = vunpack.c.l.b16 %v4030
        %v4351 = vunpack.c.h.b16 %v4030
        %v4352 = vpack.c.b16 %v4166, %v4160
        %v4353 = vpack.c.b16 %v4167, %v4161
        %v4354 = vpack.c.b16 %v4168, %v4162
        %v4355 = vpack.c.b16 %v4169, %v4163
        %v4356 = vpack.c.b16 %v4170, %v4164
        %v4357 = vpack.c.b16 %v4171, %v4165
        %v4358 = vpack.c.b16 %v4178, %v4172
        %v4359 = vpack.c.b16 %v4179, %v4173
        %v4360 = vpack.c.b16 %v4180, %v4174
        %v4361 = vpack.c.b16 %v4181, %v4175
        %v4362 = vpack.c.b16 %v4182, %v4176
        %v4363 = vpack.c.b16 %v4183, %v4177
        %v4364 = vpack.c.b16 %v4190, %v4184
        %v4365 = vpack.c.b16 %v4191, %v4185
        %v4366 = vpack.c.b16 %v4192, %v4186
        %v4367 = vpack.c.b16 %v4193, %v4187
        %v4368 = vpack.c.b16 %v4194, %v4188
        %v4369 = vpack.c.b16 %v4195, %v4189
        %v4370 = vpack.c.b16 %v4202, %v4196
        %v4371 = vpack.c.b16 %v4203, %v4197
        %v4372 = vpack.c.b16 %v4204, %v4198
        %v4373 = vpack.c.b16 %v4205, %v4199
        %v4374 = vpack.c.b16 %v4206, %v4200
        %v4375 = vpack.c.b16 %v4207, %v4201
        %v4376 = vpack.c.b16 %v4214, %v4208
        %v4377 = vpack.c.b16 %v4215, %v4209
        %v4378 = vpack.c.b16 %v4216, %v4210
        %v4379 = vpack.c.b16 %v4217, %v4211
        %v4380 = vpack.c.b16 %v4218, %v4212
        %v4381 = vpack.c.b16 %v4219, %v4213
        %v4382 = vpack.c.b16 %v4226, %v4220
        %v4383 = vpack.c.b16 %v4227, %v4221
        %v4384 = vpack.c.b16 %v4228, %v4222
        %v4385 = vpack.c.b16 %v4229, %v4223
        %v4386 = vpack.c.b16 %v4230, %v4224
        %v4387 = vpack.c.b16 %v4231, %v4225
        %v4388 = vpack.c.b16 %v4238, %v4232
        %v4389 = vpack.c.b16 %v4239, %v4233
        %v4390 = vpack.c.b16 %v4240, %v4234
        %v4391 = vpack.c.b16 %v4241, %v4235
        %v4392 = vpack.c.b16 %v4242, %v4236
        %v4393 = vpack.c.b16 %v4243, %v4237
        %v4394 = vpack.c.b16 %v4250, %v4244
        %v4395 = vpack.c.b16 %v4251, %v4245
        %v4396 = vpack.c.b16 %v4252, %v4246
        %v4397 = vpack.c.b16 %v4253, %v4247
        %v4398 = vpack.c.b16 %v4254, %v4248
        %v4399 = vpack.c.b16 %v4255, %v4249
        %v4400 = vpack.c.b16 %v4262, %v4256
        %v4401 = vpack.c.b16 %v4263, %v4257
        %v4402 = vpack.c.b16 %v4264, %v4258
        %v4403 = vpack.c.b16 %v4265, %v4259
        %v4404 = vpack.c.b16 %v4266, %v4260
        %v4405 = vpack.c.b16 %v4267, %v4261
        %v4406 = vpack.c.b16 %v4274, %v4268
        %v4407 = vpack.c.b16 %v4275, %v4269
        %v4408 = vpack.c.b16 %v4276, %v4270
        %v4409 = vpack.c.b16 %v4277, %v4271
        %v4410 = vpack.c.b16 %v4278, %v4272
        %v4411 = vpack.c.b16 %v4279, %v4273
        %v4412 = vpack.c.b16 %v4286, %v4280
        %v4413 = vpack.c.b16 %v4287, %v4281
        %v4414 = vpack.c.b16 %v4288, %v4282
        %v4415 = vpack.c.b16 %v4289, %v4283
        %v4416 = vpack.c.b16 %v4290, %v4284
        %v4417 = vpack.c.b16 %v4291, %v4285
        %v4418 = vpack.c.b16 %v4298, %v4292
        %v4419 = vpack.c.b16 %v4299, %v4293
        %v4420 = vpack.c.b16 %v4300, %v4294
        %v4421 = vpack.c.b16 %v4301, %v4295
        %v4422 = vpack.c.b16 %v4302, %v4296
        %v4423 = vpack.c.b16 %v4303, %v4297
        %v4424 = vpack.c.b16 %v4310, %v4304
        %v4425 = vpack.c.b16 %v4311, %v4305
        %v4426 = vpack.c.b16 %v4312, %v4306
        %v4427 = vpack.c.b16 %v4313, %v4307
        %v4428 = vpack.c.b16 %v4314, %v4308
        %v4429 = vpack.c.b16 %v4315, %v4309
        %v4430 = vpack.c.b16 %v4322, %v4316
        %v4431 = vpack.c.b16 %v4323, %v4317
        %v4432 = vpack.c.b16 %v4324, %v4318
        %v4433 = vpack.c.b16 %v4325, %v4319
        %v4434 = vpack.c.b16 %v4326, %v4320
        %v4435 = vpack.c.b16 %v4327, %v4321
        %v4436 = vpack.c.b16 %v4334, %v4328
        %v4437 = vpack.c.b16 %v4335, %v4329
        %v4438 = vpack.c.b16 %v4336, %v4330
        %v4439 = vpack.c.b16 %v4337, %v4331
        %v4440 = vpack.c.b16 %v4338, %v4332
        %v4441 = vpack.c.b16 %v4339, %v4333
        %v4442 = vpack.c.b16 %v4346, %v4340
        %v4443 = vpack.c.b16 %v4347, %v4341
        %v4444 = vpack.c.b16 %v4348, %v4342
        %v4445 = vpack.c.b16 %v4349, %v4343
        %v4446 = vpack.c.b16 %v4350, %v4344
        %v4447 = vpack.c.b16 %v4351, %v4345
        %4544 = vmatprep.subr.bf16.mxu0 %v4353
        %4545 = vmatpush1.bf16.msra.mxu0 %v4352
        %4546 = vmatprep.subr.bf16.mxu0 %v4359
        %4547 = vmatpush1.bf16.msra.mxu0 %v4358
        %4548 = vmatprep.subr.bf16.mxu0 %v4365
        %4549 = vmatpush1.bf16.msra.mxu0 %v4364
        %4550 = vmatprep.subr.bf16.mxu0 %v4371
        %4551 = vmatpush1.bf16.msra.mxu0 %v4370
        %4552 = vmatprep.subr.bf16.mxu0 %v4377
        %4553 = vmatpush1.bf16.msra.mxu0 %v4376
        %4554 = vmatprep.subr.bf16.mxu0 %v4383
        %4555 = vmatpush1.bf16.msra.mxu0 %v4382
        %4556 = vmatprep.subr.bf16.mxu0 %v4389
        %4557 = vmatpush1.bf16.msra.mxu0 %v4388
        %4558 = vmatprep.subr.bf16.mxu0 %v4395
        %4559 = vmatpush1.bf16.msra.mxu0 %v4394
        %4560 = vmatprep.subr.bf16.mxu0 %v4401
        %4561 = vmatpush1.bf16.msra.mxu0 %v4400
        %4562 = vmatprep.subr.bf16.mxu0 %v4407
        %4563 = vmatpush1.bf16.msra.mxu0 %v4406
        %4564 = vmatprep.subr.bf16.mxu0 %v4413
        %4565 = vmatpush1.bf16.msra.mxu0 %v4412
        %4566 = vmatprep.subr.bf16.mxu0 %v4419
        %4567 = vmatpush1.bf16.msra.mxu0 %v4418
        %4568 = vmatprep.subr.bf16.mxu0 %v4425
        %4569 = vmatpush1.bf16.msra.mxu0 %v4424
        %4570 = vmatprep.subr.bf16.mxu0 %v4431
        %4571 = vmatpush1.bf16.msra.mxu0 %v4430
        %4572 = vmatprep.subr.bf16.mxu0 %v4437
        %4573 = vmatpush1.bf16.msra.mxu0 %v4436
        %4574 = vmatprep.subr.bf16.mxu0 %v4443
        %4575 = vmatpush1.bf16.msra.mxu0 %v4442
        %4576 = vmatprep.mubr.bf16.mxu0 %v3933
        %4577 = vmatmul.mubr.bf16.gmra.mrb[0].mxu0 %v3932
        %v4578 = vpop.f32.mrb[0].mxu0
        %v4579 = vadd.f32 %v4037, %v4578
        %v4580 = vpop.f32.mrb[0].mxu0
        %v4581 = vadd.f32 %v4041, %v4580
        %v4582 = vpop.f32.mrb[0].mxu0
        %v4583 = vpop.f32.mrb[0].mxu0
        %4584 = vdwg.mxu0
        %4585 = vmatprep.subr.bf16.mxu0 %v4355
        %4586 = vmatpush1.bf16.msra.mxu0 %v4354
        %4587 = vmatprep.subr.bf16.mxu0 %v4361
        %4588 = vmatpush1.bf16.msra.mxu0 %v4360
        %4589 = vmatprep.subr.bf16.mxu0 %v4367
        %4590 = vmatpush1.bf16.msra.mxu0 %v4366
        %4591 = vmatprep.subr.bf16.mxu0 %v4373
        %4592 = vmatpush1.bf16.msra.mxu0 %v4372
        %4593 = vmatprep.subr.bf16.mxu0 %v4379
        %4594 = vmatpush1.bf16.msra.mxu0 %v4378
        %4595 = vmatprep.subr.bf16.mxu0 %v4385
        %4596 = vmatpush1.bf16.msra.mxu0 %v4384
        %4597 = vmatprep.subr.bf16.mxu0 %v4391
        %4598 = vmatpush1.bf16.msra.mxu0 %v4390
        %4599 = vmatprep.subr.bf16.mxu0 %v4397
        %4600 = vmatpush1.bf16.msra.mxu0 %v4396
        %4601 = vmatprep.subr.bf16.mxu0 %v4403
        %4602 = vmatpush1.bf16.msra.mxu0 %v4402
        %4603 = vmatprep.subr.bf16.mxu0 %v4409
        %4604 = vmatpush1.bf16.msra.mxu0 %v4408
        %4605 = vmatprep.subr.bf16.mxu0 %v4415
        %4606 = vmatpush1.bf16.msra.mxu0 %v4414
        %4607 = vmatprep.subr.bf16.mxu0 %v4421
        %4608 = vmatpush1.bf16.msra.mxu0 %v4420
        %4609 = vmatprep.subr.bf16.mxu0 %v4427
        %4610 = vmatpush1.bf16.msra.mxu0 %v4426
        %4611 = vmatprep.subr.bf16.mxu0 %v4433
        %4612 = vmatpush1.bf16.msra.mxu0 %v4432
        %4613 = vmatprep.subr.bf16.mxu0 %v4439
        %4614 = vmatpush1.bf16.msra.mxu0 %v4438
        %4615 = vmatprep.subr.bf16.mxu0 %v4445
        %4616 = vmatpush1.bf16.msra.mxu0 %v4444
        %4617 = vmatprep.mubr.bf16.mxu0 %v3933
        %4618 = vmatmul.mubr.bf16.gmra.mrb[0].mxu0 %v3932
        %v4619 = vpop.f32.mrb[0].mxu0
        %v4620 = vadd.f32 %v4045, %v4619
        %v4621 = vpop.f32.mrb[0].mxu0
        %v4622 = vadd.f32 %v4049, %v4621
        %v4623 = vpop.f32.mrb[0].mxu0
        %v4624 = vpop.f32.mrb[0].mxu0
        %4625 = vdwg.mxu0
        %4626 = vmatprep.subr.bf16.mxu0 %v4357
        %4627 = vmatpush1.bf16.msra.mxu0 %v4356
        %4628 = vmatprep.subr.bf16.mxu0 %v4363
        %4629 = vmatpush1.bf16.msra.mxu0 %v4362
        %4630 = vmatprep.subr.bf16.mxu0 %v4369
        %4631 = vmatpush1.bf16.msra.mxu0 %v4368
        %4632 = vmatprep.subr.bf16.mxu0 %v4375
        %4633 = vmatpush1.bf16.msra.mxu0 %v4374
        %4634 = vmatprep.subr.bf16.mxu0 %v4381
        %4635 = vmatpush1.bf16.msra.mxu0 %v4380
        %4636 = vmatprep.subr.bf16.mxu0 %v4387
        %4637 = vmatpush1.bf16.msra.mxu0 %v4386
        %4638 = vmatprep.subr.bf16.mxu0 %v4393
        %4639 = vmatpush1.bf16.msra.mxu0 %v4392
        %4640 = vmatprep.subr.bf16.mxu0 %v4399
        %4641 = vmatpush1.bf16.msra.mxu0 %v4398
        %4642 = vmatprep.subr.bf16.mxu0 %v4405
        %4643 = vmatpush1.bf16.msra.mxu0 %v4404
        %4644 = vmatprep.subr.bf16.mxu0 %v4411
        %4645 = vmatpush1.bf16.msra.mxu0 %v4410
        %4646 = vmatprep.subr.bf16.mxu0 %v4417
        %4647 = vmatpush1.bf16.msra.mxu0 %v4416
        %4648 = vmatprep.subr.bf16.mxu0 %v4423
        %4649 = vmatpush1.bf16.msra.mxu0 %v4422
        %4650 = vmatprep.subr.bf16.mxu0 %v4429
        %4651 = vmatpush1.bf16.msra.mxu0 %v4428
        %4652 = vmatprep.subr.bf16.mxu0 %v4435
        %4653 = vmatpush1.bf16.msra.mxu0 %v4434
        %4654 = vmatprep.subr.bf16.mxu0 %v4441
        %4655 = vmatpush1.bf16.msra.mxu0 %v4440
        %4656 = vmatprep.subr.bf16.mxu0 %v4447
        %4657 = vmatpush1.bf16.msra.mxu0 %v4446
        %4658 = vmatprep.mubr.bf16.mxu0 %v3933
        %4659 = vmatmul.mubr.bf16.gmra.mrb[0].mxu0 %v3932
        %v4660 = vpop.f32.mrb[0].mxu0
        %v4661 = vadd.f32 %v4053, %v4660
        %v4662 = vpop.f32.mrb[0].mxu0
        %v4663 = vadd.f32 %v4057, %v4662
        %v4664 = vpop.f32.mrb[0].mxu0
        %v4665 = vpop.f32.mrb[0].mxu0
        %4666 = vdwg.mxu0
        %v4667 = vmul.f32 %v4579, 0.088388346
        %v4668 = vpack.c.bf16 %v4667, %v4667
        %v4669 = vpack.c.bf16 %v4620, %v4620
        %v4670 = vpack.c.bf16 %v4661, %v4661
        %4671 = vmatprep.subr.bf16.mxu0 0
        %4672 = vmatpush1.bf16.xpose.msra.mxu0 %v4669
        %4673 = vmatprep.subr.bf16.mxu0 0
        %4674 = vmatpush1.bf16.xpose.msra.mxu0 0
        %4675 = vmatprep.subr.bf16.mxu0 0
        %4676 = vmatpush1.bf16.xpose.msra.mxu0 0
        %4677 = vmatprep.subr.bf16.mxu0 0
        %4678 = vmatpush1.bf16.xpose.msra.mxu0 0
        %4679 = vmatprep.subr.bf16.mxu0 0
        %4680 = vmatpush1.bf16.xpose.msra.mxu0 0
        %4681 = vmatprep.subr.bf16.mxu0 0
        %4682 = vmatpush1.bf16.xpose.msra.mxu0 0
        %4683 = vmatprep.subr.bf16.mxu0 0
        %4684 = vmatpush1.bf16.xpose.msra.mxu0 0
        %4685 = vmatprep.subr.bf16.mxu0 0
        %4686 = vmatpush1.bf16.xpose.msra.mxu0 0
        %4687 = vmatprep.subr.bf16.mxu0 0
        %4688 = vmatpush1.bf16.xpose.msra.mxu0 0
        %4689 = vmatprep.subr.bf16.mxu0 0
        %4690 = vmatpush1.bf16.xpose.msra.mxu0 0
        %4691 = vmatprep.subr.bf16.mxu0 0
        %4692 = vmatpush1.bf16.xpose.msra.mxu0 0
        %4693 = vmatprep.subr.bf16.mxu0 0
        %4694 = vmatpush1.bf16.xpose.msra.mxu0 0
        %4695 = vmatprep.subr.bf16.mxu0 0
        %4696 = vmatpush1.bf16.xpose.msra.mxu0 0
        %4697 = vmatprep.subr.bf16.mxu0 0
        %4698 = vmatpush1.bf16.xpose.msra.mxu0 0
        %4699 = vmatprep.subr.bf16.mxu0 0
        %4700 = vmatpush1.bf16.xpose.msra.mxu0 0
        %4701 = vmatprep.subr.bf16.mxu0 0
        %4702 = vmatpush1.bf16.xpose.msra.mxu0 0
        %4703 = vmatprep.mubr.bf16.mxu0 0
        %4704 = vmatmul.mubr.bf16.gmra.mrb[0].mxu0 %v4668
        %v4705 = vpop.f32.mrb[0].mxu0
        %v4706 = vadd.f32 %v602, %v4705
        %v4707 = vpop.f32.mrb[0].mxu0
        %v4708 = vpop.f32.mrb[0].mxu0
        %v4709 = vpop.f32.mrb[0].mxu0
        %4710 = vdwg.mxu0
        %v4711 = vsel %vm1425, %v4706, -inf
        %4712 = vmax.xlane.f32.xlu0 %v4711
        %v4713 = vpop.xlane.xlu0 %4712
        %v4714 = vsub.f32 %v4706, %v4713
        %v4715 = vmul.f32 %v4714, 1.442695
        %v4716 = vpow.pop %v4715
        %v4717 = vsel %vm1425, %v4716, 0.0
        %4718 = vadd.xlane.f32.xlu0 %v4717
        %v4719 = vpop.xlane.xlu0 %4718
        %v4720 = vrcp.pop %v4719
        %v4721 = vmul.f32 %v4716, %v4720
        %v4722 = vpack.c.bf16 %v4721, %v4721
        %v4724 = vsel %vm1425, %v4722, 0
        %v4727 = vsel %vm1441, %v4670, 0
        %4729 = vmatprep.subr.bf16.mxu0 0
        %4730 = vmatpush1.bf16.msra.mxu0 %v4727
        %4731 = vmatprep.subr.bf16.mxu0 0
        %4732 = vmatpush1.bf16.msra.mxu0 0
        %4733 = vmatprep.subr.bf16.mxu0 0
        %4734 = vmatpush1.bf16.msra.mxu0 0
        %4735 = vmatprep.subr.bf16.mxu0 0
        %4736 = vmatpush1.bf16.msra.mxu0 0
        %4737 = vmatprep.subr.bf16.mxu0 0
        %4738 = vmatpush1.bf16.msra.mxu0 0
        %4739 = vmatprep.subr.bf16.mxu0 0
        %4740 = vmatpush1.bf16.msra.mxu0 0
        %4741 = vmatprep.subr.bf16.mxu0 0
        %4742 = vmatpush1.bf16.msra.mxu0 0
        %4743 = vmatprep.subr.bf16.mxu0 0
        %4744 = vmatpush1.bf16.msra.mxu0 0
        %4745 = vmatprep.subr.bf16.mxu0 0
        %4746 = vmatpush1.bf16.msra.mxu0 0
        %4747 = vmatprep.subr.bf16.mxu0 0
        %4748 = vmatpush1.bf16.msra.mxu0 0
        %4749 = vmatprep.subr.bf16.mxu0 0
        %4750 = vmatpush1.bf16.msra.mxu0 0
        %4751 = vmatprep.subr.bf16.mxu0 0
        %4752 = vmatpush1.bf16.msra.mxu0 0
        %4753 = vmatprep.subr.bf16.mxu0 0
        %4754 = vmatpush1.bf16.msra.mxu0 0
        %4755 = vmatprep.subr.bf16.mxu0 0
        %4756 = vmatpush1.bf16.msra.mxu0 0
        %4757 = vmatprep.subr.bf16.mxu0 0
        %4758 = vmatpush1.bf16.msra.mxu0 0
        %4759 = vmatprep.subr.bf16.mxu0 0
        %4760 = vmatpush1.bf16.msra.mxu0 0
        %4761 = vmatprep.mubr.bf16.mxu0 0
        %4762 = vmatmul.mubr.bf16.gmra.mrb[0].mxu0 %v4724
        %v4763 = vpop.f32.mrb[0].mxu0
        %v4764 = vadd.f32 0.0, %v4763
        %v4765 = vpop.f32.mrb[0].mxu0
        %v4766 = vpop.f32.mrb[0].mxu0
        %v4767 = vpop.f32.mrb[0].mxu0
        %4768 = vdwg.mxu0
        %v4769 = vmul.f32 %v4581, 0.088388346
        %v4770 = vpack.c.bf16 %v4769, %v4769
        %v4771 = vpack.c.bf16 %v4622, %v4622
        %v4772 = vpack.c.bf16 %v4663, %v4663
        %4773 = vmatprep.subr.bf16.mxu0 0
        %4774 = vmatpush1.bf16.xpose.msra.mxu0 %v4771
        %4775 = vmatprep.subr.bf16.mxu0 0
        %4776 = vmatpush1.bf16.xpose.msra.mxu0 0
        %4777 = vmatprep.subr.bf16.mxu0 0
        %4778 = vmatpush1.bf16.xpose.msra.mxu0 0
        %4779 = vmatprep.subr.bf16.mxu0 0
        %4780 = vmatpush1.bf16.xpose.msra.mxu0 0
        %4781 = vmatprep.subr.bf16.mxu0 0
        %4782 = vmatpush1.bf16.xpose.msra.mxu0 0
        %4783 = vmatprep.subr.bf16.mxu0 0
        %4784 = vmatpush1.bf16.xpose.msra.mxu0 0
        %4785 = vmatprep.subr.bf16.mxu0 0
        %4786 = vmatpush1.bf16.xpose.msra.mxu0 0
        %4787 = vmatprep.subr.bf16.mxu0 0
        %4788 = vmatpush1.bf16.xpose.msra.mxu0 0
        %4789 = vmatprep.subr.bf16.mxu0 0
        %4790 = vmatpush1.bf16.xpose.msra.mxu0 0
        %4791 = vmatprep.subr.bf16.mxu0 0
        %4792 = vmatpush1.bf16.xpose.msra.mxu0 0
        %4793 = vmatprep.subr.bf16.mxu0 0
        %4794 = vmatpush1.bf16.xpose.msra.mxu0 0
        %4795 = vmatprep.subr.bf16.mxu0 0
        %4796 = vmatpush1.bf16.xpose.msra.mxu0 0
        %4797 = vmatprep.subr.bf16.mxu0 0
        %4798 = vmatpush1.bf16.xpose.msra.mxu0 0
        %4799 = vmatprep.subr.bf16.mxu0 0
        %4800 = vmatpush1.bf16.xpose.msra.mxu0 0
        %4801 = vmatprep.subr.bf16.mxu0 0
        %4802 = vmatpush1.bf16.xpose.msra.mxu0 0
        %4803 = vmatprep.subr.bf16.mxu0 0
        %4804 = vmatpush1.bf16.xpose.msra.mxu0 0
        %4805 = vmatprep.mubr.bf16.mxu0 0
        %4806 = vmatmul.mubr.bf16.gmra.mrb[0].mxu0 %v4770
        %v4807 = vpop.f32.mrb[0].mxu0
        %v4808 = vadd.f32 %v602, %v4807
        %v4809 = vpop.f32.mrb[0].mxu0
        %v4810 = vpop.f32.mrb[0].mxu0
        %v4811 = vpop.f32.mrb[0].mxu0
        %4812 = vdwg.mxu0
        %v4813 = vsel %vm1425, %v4808, -inf
        %4814 = vmax.xlane.f32.xlu0 %v4813
        %v4815 = vpop.xlane.xlu0 %4814
        %v4816 = vsub.f32 %v4808, %v4815
        %v4817 = vmul.f32 %v4816, 1.442695
        %v4818 = vpow.pop %v4817
        %v4819 = vsel %vm1425, %v4818, 0.0
        %4820 = vadd.xlane.f32.xlu0 %v4819
        %v4821 = vpop.xlane.xlu0 %4820
        %v4822 = vrcp.pop %v4821
        %v4823 = vmul.f32 %v4818, %v4822
        %v4824 = vpack.c.bf16 %v4823, %v4823
        %v4826 = vsel %vm1425, %v4824, 0
        %v4829 = vsel %vm1441, %v4772, 0
        %4831 = vmatprep.subr.bf16.mxu0 0
        %4832 = vmatpush1.bf16.msra.mxu0 %v4829
        %4833 = vmatprep.subr.bf16.mxu0 0
        %4834 = vmatpush1.bf16.msra.mxu0 0
        %4835 = vmatprep.subr.bf16.mxu0 0
        %4836 = vmatpush1.bf16.msra.mxu0 0
        %4837 = vmatprep.subr.bf16.mxu0 0
        %4838 = vmatpush1.bf16.msra.mxu0 0
        %4839 = vmatprep.subr.bf16.mxu0 0
        %4840 = vmatpush1.bf16.msra.mxu0 0
        %4841 = vmatprep.subr.bf16.mxu0 0
        %4842 = vmatpush1.bf16.msra.mxu0 0
        %4843 = vmatprep.subr.bf16.mxu0 0
        %4844 = vmatpush1.bf16.msra.mxu0 0
        %4845 = vmatprep.subr.bf16.mxu0 0
        %4846 = vmatpush1.bf16.msra.mxu0 0
        %4847 = vmatprep.subr.bf16.mxu0 0
        %4848 = vmatpush1.bf16.msra.mxu0 0
        %4849 = vmatprep.subr.bf16.mxu0 0
        %4850 = vmatpush1.bf16.msra.mxu0 0
        %4851 = vmatprep.subr.bf16.mxu0 0
        %4852 = vmatpush1.bf16.msra.mxu0 0
        %4853 = vmatprep.subr.bf16.mxu0 0
        %4854 = vmatpush1.bf16.msra.mxu0 0
        %4855 = vmatprep.subr.bf16.mxu0 0
        %4856 = vmatpush1.bf16.msra.mxu0 0
        %4857 = vmatprep.subr.bf16.mxu0 0
        %4858 = vmatpush1.bf16.msra.mxu0 0
        %4859 = vmatprep.subr.bf16.mxu0 0
        %4860 = vmatpush1.bf16.msra.mxu0 0
        %4861 = vmatprep.subr.bf16.mxu0 0
        %4862 = vmatpush1.bf16.msra.mxu0 0
        %4863 = vmatprep.mubr.bf16.mxu0 0
        %4864 = vmatmul.mubr.bf16.gmra.mrb[0].mxu0 %v4826
        %v4865 = vpop.f32.mrb[0].mxu0
        %v4866 = vadd.f32 0.0, %v4865
        %v4867 = vpop.f32.mrb[0].mxu0
        %v4868 = vpop.f32.mrb[0].mxu0
        %v4869 = vpop.f32.mrb[0].mxu0
        %4870 = vdwg.mxu0
        %v4871 = vpack.c.bf16 %v4764, %v4764
        %v4872 = vpack.c.bf16 %v4866, %v4866
        %s4873 = scalar_lea.vmem [#allocation5], 256
        %v4874 = vld [vmem:[%s4873] sm:$0xff]
        %v4875 = vld [vmem:[%s4873 + $0x8] sm:$0xff]
        %v4876 = vld [vmem:[%s4873 + $0x10] sm:$0xff]
        %v4877 = vld [vmem:[%s4873 + $0x18] sm:$0xff]
        %v4878 = vld [vmem:[%s4873 + $0x20] sm:$0xff]
        %v4879 = vld [vmem:[%s4873 + $0x28] sm:$0xff]
        %v4880 = vld [vmem:[%s4873 + $0x30] sm:$0xff]
        %v4881 = vld [vmem:[%s4873 + $0x38] sm:$0xff]
        %v4882 = vld [vmem:[%s4873 + $0x40] sm:$0xff]
        %v4883 = vld [vmem:[%s4873 + $0x48] sm:$0xff]
        %v4884 = vld [vmem:[%s4873 + $0x50] sm:$0xff]
        %v4885 = vld [vmem:[%s4873 + $0x58] sm:$0xff]
        %v4886 = vld [vmem:[%s4873 + $0x60] sm:$0xff]
        %v4887 = vld [vmem:[%s4873 + $0x68] sm:$0xff]
        %v4888 = vld [vmem:[%s4873 + $0x70] sm:$0xff]
        %v4889 = vld [vmem:[%s4873 + $0x78] sm:$0xff]
        %v4890 = vld [vmem:[%s4873 + $0x80] sm:$0xff]
        %v4891 = vld [vmem:[%s4873 + $0x88] sm:$0xff]
        %v4892 = vld [vmem:[%s4873 + $0x90] sm:$0xff]
        %v4893 = vld [vmem:[%s4873 + $0x98] sm:$0xff]
        %v4894 = vld [vmem:[%s4873 + $0xa0] sm:$0xff]
        %v4895 = vld [vmem:[%s4873 + $0xa8] sm:$0xff]
        %v4896 = vld [vmem:[%s4873 + $0xb0] sm:$0xff]
        %v4897 = vld [vmem:[%s4873 + $0xb8] sm:$0xff]
        %v4898 = vld [vmem:[%s4873 + $0xc0] sm:$0xff]
        %v4899 = vld [vmem:[%s4873 + $0xc8] sm:$0xff]
        %v4900 = vld [vmem:[%s4873 + $0xd0] sm:$0xff]
        %v4901 = vld [vmem:[%s4873 + $0xd8] sm:$0xff]
        %v4902 = vld [vmem:[%s4873 + $0xe0] sm:$0xff]
        %v4903 = vld [vmem:[%s4873 + $0xe8] sm:$0xff]
        %v4904 = vld [vmem:[%s4873 + $0xf0] sm:$0xff]
        %v4905 = vld [vmem:[%s4873 + $0xf8] sm:$0xff]
        %v4938 = vunpack.c.l.b16 %v4874
        %v4939 = vunpack.c.h.b16 %v4874
        %v4940 = vunpack.c.l.b16 %v4875
        %v4941 = vunpack.c.h.b16 %v4875
        %v4942 = vunpack.c.l.b16 %v4876
        %v4943 = vunpack.c.h.b16 %v4876
        %v4944 = vunpack.c.l.b16 %v4877
        %v4945 = vunpack.c.h.b16 %v4877
        %v4946 = vunpack.c.l.b16 %v4878
        %v4947 = vunpack.c.h.b16 %v4878
        %v4948 = vunpack.c.l.b16 %v4879
        %v4949 = vunpack.c.h.b16 %v4879
        %v4950 = vunpack.c.l.b16 %v4880
        %v4951 = vunpack.c.h.b16 %v4880
        %v4952 = vunpack.c.l.b16 %v4881
        %v4953 = vunpack.c.h.b16 %v4881
        %v4954 = vunpack.c.l.b16 %v4882
        %v4955 = vunpack.c.h.b16 %v4882
        %v4956 = vunpack.c.l.b16 %v4883
        %v4957 = vunpack.c.h.b16 %v4883
        %v4958 = vunpack.c.l.b16 %v4884
        %v4959 = vunpack.c.h.b16 %v4884
        %v4960 = vunpack.c.l.b16 %v4885
        %v4961 = vunpack.c.h.b16 %v4885
        %v4962 = vunpack.c.l.b16 %v4886
        %v4963 = vunpack.c.h.b16 %v4886
        %v4964 = vunpack.c.l.b16 %v4887
        %v4965 = vunpack.c.h.b16 %v4887
        %v4966 = vunpack.c.l.b16 %v4888
        %v4967 = vunpack.c.h.b16 %v4888
        %v4968 = vunpack.c.l.b16 %v4889
        %v4969 = vunpack.c.h.b16 %v4889
        %v4970 = vunpack.c.l.b16 %v4890
        %v4971 = vunpack.c.h.b16 %v4890
        %v4972 = vunpack.c.l.b16 %v4891
        %v4973 = vunpack.c.h.b16 %v4891
        %v4974 = vunpack.c.l.b16 %v4892
        %v4975 = vunpack.c.h.b16 %v4892
        %v4976 = vunpack.c.l.b16 %v4893
        %v4977 = vunpack.c.h.b16 %v4893
        %v4978 = vunpack.c.l.b16 %v4894
        %v4979 = vunpack.c.h.b16 %v4894
        %v4980 = vunpack.c.l.b16 %v4895
        %v4981 = vunpack.c.h.b16 %v4895
        %v4982 = vunpack.c.l.b16 %v4896
        %v4983 = vunpack.c.h.b16 %v4896
        %v4984 = vunpack.c.l.b16 %v4897
        %v4985 = vunpack.c.h.b16 %v4897
        %v4986 = vunpack.c.l.b16 %v4898
        %v4987 = vunpack.c.h.b16 %v4898
        %v4988 = vunpack.c.l.b16 %v4899
        %v4989 = vunpack.c.h.b16 %v4899
        %v4990 = vunpack.c.l.b16 %v4900
        %v4991 = vunpack.c.h.b16 %v4900
        %v4992 = vunpack.c.l.b16 %v4901
        %v4993 = vunpack.c.h.b16 %v4901
        %v4994 = vunpack.c.l.b16 %v4902
        %v4995 = vunpack.c.h.b16 %v4902
        %v4996 = vunpack.c.l.b16 %v4903
        %v4997 = vunpack.c.h.b16 %v4903
        %v4998 = vunpack.c.l.b16 %v4904
        %v4999 = vunpack.c.h.b16 %v4904
        %v5000 = vunpack.c.l.b16 %v4905
        %v5001 = vunpack.c.h.b16 %v4905
        %v5002 = vpack.c.b16 %v4940, %v4938
        %v5003 = vpack.c.b16 %v4941, %v4939
        %v5004 = vpack.c.b16 %v4944, %v4942
        %v5005 = vpack.c.b16 %v4945, %v4943
        %v5006 = vpack.c.b16 %v4948, %v4946
        %v5007 = vpack.c.b16 %v4949, %v4947
        %v5008 = vpack.c.b16 %v4952, %v4950
        %v5009 = vpack.c.b16 %v4953, %v4951
        %v5010 = vpack.c.b16 %v4956, %v4954
        %v5011 = vpack.c.b16 %v4957, %v4955
        %v5012 = vpack.c.b16 %v4960, %v4958
        %v5013 = vpack.c.b16 %v4961, %v4959
        %v5014 = vpack.c.b16 %v4964, %v4962
        %v5015 = vpack.c.b16 %v4965, %v4963
        %v5016 = vpack.c.b16 %v4968, %v4966
        %v5017 = vpack.c.b16 %v4969, %v4967
        %v5018 = vpack.c.b16 %v4972, %v4970
        %v5019 = vpack.c.b16 %v4973, %v4971
        %v5020 = vpack.c.b16 %v4976, %v4974
        %v5021 = vpack.c.b16 %v4977, %v4975
        %v5022 = vpack.c.b16 %v4980, %v4978
        %v5023 = vpack.c.b16 %v4981, %v4979
        %v5024 = vpack.c.b16 %v4984, %v4982
        %v5025 = vpack.c.b16 %v4985, %v4983
        %v5026 = vpack.c.b16 %v4988, %v4986
        %v5027 = vpack.c.b16 %v4989, %v4987
        %v5028 = vpack.c.b16 %v4992, %v4990
        %v5029 = vpack.c.b16 %v4993, %v4991
        %v5030 = vpack.c.b16 %v4996, %v4994
        %v5031 = vpack.c.b16 %v4997, %v4995
        %v5032 = vpack.c.b16 %v5000, %v4998
        %v5033 = vpack.c.b16 %v5001, %v4999
        %5066 = vmatprep.subr.bf16.mxu0 %v5003
        %5067 = vmatpush1.bf16.msra.mxu0 %v5002
        %5068 = vmatprep.subr.bf16.mxu0 %v5005
        %5069 = vmatpush1.bf16.msra.mxu0 %v5004
        %5070 = vmatprep.subr.bf16.mxu0 %v5007
        %5071 = vmatpush1.bf16.msra.mxu0 %v5006
        %5072 = vmatprep.subr.bf16.mxu0 %v5009
        %5073 = vmatpush1.bf16.msra.mxu0 %v5008
        %5074 = vmatprep.subr.bf16.mxu0 %v5011
        %5075 = vmatpush1.bf16.msra.mxu0 %v5010
        %5076 = vmatprep.subr.bf16.mxu0 %v5013
        %5077 = vmatpush1.bf16.msra.mxu0 %v5012
        %5078 = vmatprep.subr.bf16.mxu0 %v5015
        %5079 = vmatpush1.bf16.msra.mxu0 %v5014
        %5080 = vmatprep.subr.bf16.mxu0 %v5017
        %5081 = vmatpush1.bf16.msra.mxu0 %v5016
        %5082 = vmatprep.subr.bf16.mxu0 %v5019
        %5083 = vmatpush1.bf16.msra.mxu0 %v5018
        %5084 = vmatprep.subr.bf16.mxu0 %v5021
        %5085 = vmatpush1.bf16.msra.mxu0 %v5020
        %5086 = vmatprep.subr.bf16.mxu0 %v5023
        %5087 = vmatpush1.bf16.msra.mxu0 %v5022
        %5088 = vmatprep.subr.bf16.mxu0 %v5025
        %5089 = vmatpush1.bf16.msra.mxu0 %v5024
        %5090 = vmatprep.subr.bf16.mxu0 %v5027
        %5091 = vmatpush1.bf16.msra.mxu0 %v5026
        %5092 = vmatprep.subr.bf16.mxu0 %v5029
        %5093 = vmatpush1.bf16.msra.mxu0 %v5028
        %5094 = vmatprep.subr.bf16.mxu0 %v5031
        %5095 = vmatpush1.bf16.msra.mxu0 %v5030
        %5096 = vmatprep.subr.bf16.mxu0 %v5033
        %5097 = vmatpush1.bf16.msra.mxu0 %v5032
        %5098 = vmatprep.mubr.bf16.mxu0 %v4872
        %5099 = vmatmul.mubr.bf16.gmra.mrb[0].mxu0 %v4871
        %v5100 = vpop.f32.mrb[0].mxu0
        %v5101 = vadd.f32 0.0, %v5100
        %v5102 = vpop.f32.mrb[0].mxu0
        %v5103 = vadd.f32 0.0, %v5102
        %v5104 = vpop.f32.mrb[0].mxu0
        %v5105 = vpop.f32.mrb[0].mxu0
        %5106 = vdwg.mxu0
        %v5107 = vadd.f32 %v3884, %v5101
        %v5108 = vadd.f32 %v3885, %v5103
        %s5109 = scalar_lea.vmem %s6, 2
        %v5110 = vld [vmem:[%s5109] sm:$0x3]
        %v5112 = vlaneseq
        %v5113 = vshrl.u32 %v5112, 7
        %v5114 = vsub.s32 0, %v5113
        %v5115 = vrot.slane %v5110, %v5114
        %v5116 = vlaneseq
        %v5117 = vshrl.u32 %v5116, 7
        %v5118 = vsub.s32 1, %v5117
        %v5119 = vrot.slane %v5110, %v5118
        %v5122 = vadd.f32 %v5107, %v5115
        %v5123 = vadd.f32 %v5108, %v5119
        %s5124 = scalar_lea.vmem %s7, 2
        %v5125 = vld [vmem:[%s5124] sm:$0x3]
        %s5126 = scalar_lea.vmem %s8, 2
        %v5127 = vld [vmem:[%s5126] sm:$0x3]
        %v5128 = vadd.f32 %v5122, %v5123
        %5129 = vadd.xlane.f32.xlu0 %v5128
        %v5130 = vpop.xlane.xlu0 %5129
        %v5131 = vmul.f32 %v5130, %v608
        %v5132 = vsub.f32 %v5122, %v5131
        %v5133 = vsub.f32 %v5123, %v5131
        %v5134 = vmul.f32 %v5132, %v5132
        %v5135 = vmul.f32 %v5133, %v5133
        %v5136 = vadd.f32 %v5134, %v5135
        %5137 = vadd.xlane.f32.xlu0 %v5136
        %v5138 = vpop.xlane.xlu0 %5137
        %v5139 = vmul.f32 %v5138, %v608
        %v5140 = vadd.f32 %v5139, 1e-05
        %v5141 = vrsqrt.pop %v5140
        %v5142 = vmul.f32 %v5132, %v5141
        %v5143 = vmul.f32 %v5133, %v5141
        %v5145 = vlaneseq
        %v5146 = vshrl.u32 %v5145, 7
        %v5147 = vsub.s32 0, %v5146
        %v5148 = vrot.slane %v5125, %v5147
        %v5149 = vlaneseq
        %v5150 = vshrl.u32 %v5149, 7
        %v5151 = vsub.s32 1, %v5150
        %v5152 = vrot.slane %v5125, %v5151
        %v5155 = vmul.f32 %v5142, %v5148
        %v5156 = vmul.f32 %v5143, %v5152
        %v5158 = vlaneseq
        %v5159 = vshrl.u32 %v5158, 7
        %v5160 = vsub.s32 0, %v5159
        %v5161 = vrot.slane %v5127, %v5160
        %v5162 = vlaneseq
        %v5163 = vshrl.u32 %v5162, 7
        %v5164 = vsub.s32 1, %v5163
        %v5165 = vrot.slane %v5127, %v5164
        %v5168 = vadd.f32 %v5155, %v5161
        %v5169 = vadd.f32 %v5156, %v5165
        %v5170 = vpack.c.bf16 %v5168, %v5168
        %v5171 = vpack.c.bf16 %v5169, %v5169
        %s5172 = scalar_lea.vmem [#allocation7], 1024
        %v5173 = vld [vmem:[%s5172] sm:$0xff]
        %v5174 = vld [vmem:[%s5172 + $0x8] sm:$0xff]
        %v5175 = vld [vmem:[%s5172 + $0x10] sm:$0xff]
        %v5176 = vld [vmem:[%s5172 + $0x18] sm:$0xff]
        %v5177 = vld [vmem:[%s5172 + $0x20] sm:$0xff]
        %v5178 = vld [vmem:[%s5172 + $0x28] sm:$0xff]
        %v5179 = vld [vmem:[%s5172 + $0x30] sm:$0xff]
        %v5180 = vld [vmem:[%s5172 + $0x38] sm:$0xff]
        %v5181 = vld [vmem:[%s5172 + $0x40] sm:$0xff]
        %v5182 = vld [vmem:[%s5172 + $0x48] sm:$0xff]
        %v5183 = vld [vmem:[%s5172 + $0x50] sm:$0xff]
        %v5184 = vld [vmem:[%s5172 + $0x58] sm:$0xff]
        %v5185 = vld [vmem:[%s5172 + $0x60] sm:$0xff]
        %v5186 = vld [vmem:[%s5172 + $0x68] sm:$0xff]
        %v5187 = vld [vmem:[%s5172 + $0x70] sm:$0xff]
        %v5188 = vld [vmem:[%s5172 + $0x78] sm:$0xff]
        %v5189 = vld [vmem:[%s5172 + $0x80] sm:$0xff]
        %v5190 = vld [vmem:[%s5172 + $0x88] sm:$0xff]
        %v5191 = vld [vmem:[%s5172 + $0x90] sm:$0xff]
        %v5192 = vld [vmem:[%s5172 + $0x98] sm:$0xff]
        %v5193 = vld [vmem:[%s5172 + $0xa0] sm:$0xff]
        %v5194 = vld [vmem:[%s5172 + $0xa8] sm:$0xff]
        %v5195 = vld [vmem:[%s5172 + $0xb0] sm:$0xff]
        %v5196 = vld [vmem:[%s5172 + $0xb8] sm:$0xff]
        %v5197 = vld [vmem:[%s5172 + $0xc0] sm:$0xff]
        %v5198 = vld [vmem:[%s5172 + $0xc8] sm:$0xff]
        %v5199 = vld [vmem:[%s5172 + $0xd0] sm:$0xff]
        %v5200 = vld [vmem:[%s5172 + $0xd8] sm:$0xff]
        %v5201 = vld [vmem:[%s5172 + $0xe0] sm:$0xff]
        %v5202 = vld [vmem:[%s5172 + $0xe8] sm:$0xff]
        %v5203 = vld [vmem:[%s5172 + $0xf0] sm:$0xff]
        %v5204 = vld [vmem:[%s5172 + $0xf8] sm:$0xff]
        %v5205 = vld [vmem:[%s5172 + $0x100] sm:$0xff]
        %v5206 = vld [vmem:[%s5172 + $0x108] sm:$0xff]
        %v5207 = vld [vmem:[%s5172 + $0x110] sm:$0xff]
        %v5208 = vld [vmem:[%s5172 + $0x118] sm:$0xff]
        %v5209 = vld [vmem:[%s5172 + $0x120] sm:$0xff]
        %v5210 = vld [vmem:[%s5172 + $0x128] sm:$0xff]
        %v5211 = vld [vmem:[%s5172 + $0x130] sm:$0xff]
        %v5212 = vld [vmem:[%s5172 + $0x138] sm:$0xff]
        %v5213 = vld [vmem:[%s5172 + $0x140] sm:$0xff]
        %v5214 = vld [vmem:[%s5172 + $0x148] sm:$0xff]
        %v5215 = vld [vmem:[%s5172 + $0x150] sm:$0xff]
        %v5216 = vld [vmem:[%s5172 + $0x158] sm:$0xff]
        %v5217 = vld [vmem:[%s5172 + $0x160] sm:$0xff]
        %v5218 = vld [vmem:[%s5172 + $0x168] sm:$0xff]
        %v5219 = vld [vmem:[%s5172 + $0x170] sm:$0xff]
        %v5220 = vld [vmem:[%s5172 + $0x178] sm:$0xff]
        %v5221 = vld [vmem:[%s5172 + $0x180] sm:$0xff]
        %v5222 = vld [vmem:[%s5172 + $0x188] sm:$0xff]
        %v5223 = vld [vmem:[%s5172 + $0x190] sm:$0xff]
        %v5224 = vld [vmem:[%s5172 + $0x198] sm:$0xff]
        %v5225 = vld [vmem:[%s5172 + $0x1a0] sm:$0xff]
        %v5226 = vld [vmem:[%s5172 + $0x1a8] sm:$0xff]
        %v5227 = vld [vmem:[%s5172 + $0x1b0] sm:$0xff]
        %v5228 = vld [vmem:[%s5172 + $0x1b8] sm:$0xff]
        %v5229 = vld [vmem:[%s5172 + $0x1c0] sm:$0xff]
        %v5230 = vld [vmem:[%s5172 + $0x1c8] sm:$0xff]
        %v5231 = vld [vmem:[%s5172 + $0x1d0] sm:$0xff]
        %v5232 = vld [vmem:[%s5172 + $0x1d8] sm:$0xff]
        %v5233 = vld [vmem:[%s5172 + $0x1e0] sm:$0xff]
        %v5234 = vld [vmem:[%s5172 + $0x1e8] sm:$0xff]
        %v5235 = vld [vmem:[%s5172 + $0x1f0] sm:$0xff]
        %v5236 = vld [vmem:[%s5172 + $0x1f8] sm:$0xff]
        %v5237 = vld [vmem:[%s5172 + $0x200] sm:$0xff]
        %v5238 = vld [vmem:[%s5172 + $0x208] sm:$0xff]
        %v5239 = vld [vmem:[%s5172 + $0x210] sm:$0xff]
        %v5240 = vld [vmem:[%s5172 + $0x218] sm:$0xff]
        %v5241 = vld [vmem:[%s5172 + $0x220] sm:$0xff]
        %v5242 = vld [vmem:[%s5172 + $0x228] sm:$0xff]
        %v5243 = vld [vmem:[%s5172 + $0x230] sm:$0xff]
        %v5244 = vld [vmem:[%s5172 + $0x238] sm:$0xff]
        %v5245 = vld [vmem:[%s5172 + $0x240] sm:$0xff]
        %v5246 = vld [vmem:[%s5172 + $0x248] sm:$0xff]
        %v5247 = vld [vmem:[%s5172 + $0x250] sm:$0xff]
        %v5248 = vld [vmem:[%s5172 + $0x258] sm:$0xff]
        %v5249 = vld [vmem:[%s5172 + $0x260] sm:$0xff]
        %v5250 = vld [vmem:[%s5172 + $0x268] sm:$0xff]
        %v5251 = vld [vmem:[%s5172 + $0x270] sm:$0xff]
        %v5252 = vld [vmem:[%s5172 + $0x278] sm:$0xff]
        %v5253 = vld [vmem:[%s5172 + $0x280] sm:$0xff]
        %v5254 = vld [vmem:[%s5172 + $0x288] sm:$0xff]
        %v5255 = vld [vmem:[%s5172 + $0x290] sm:$0xff]
        %v5256 = vld [vmem:[%s5172 + $0x298] sm:$0xff]
        %v5257 = vld [vmem:[%s5172 + $0x2a0] sm:$0xff]
        %v5258 = vld [vmem:[%s5172 + $0x2a8] sm:$0xff]
        %v5259 = vld [vmem:[%s5172 + $0x2b0] sm:$0xff]
        %v5260 = vld [vmem:[%s5172 + $0x2b8] sm:$0xff]
        %v5261 = vld [vmem:[%s5172 + $0x2c0] sm:$0xff]
        %v5262 = vld [vmem:[%s5172 + $0x2c8] sm:$0xff]
        %v5263 = vld [vmem:[%s5172 + $0x2d0] sm:$0xff]
        %v5264 = vld [vmem:[%s5172 + $0x2d8] sm:$0xff]
        %v5265 = vld [vmem:[%s5172 + $0x2e0] sm:$0xff]
        %v5266 = vld [vmem:[%s5172 + $0x2e8] sm:$0xff]
        %v5267 = vld [vmem:[%s5172 + $0x2f0] sm:$0xff]
        %v5268 = vld [vmem:[%s5172 + $0x2f8] sm:$0xff]
        %v5269 = vld [vmem:[%s5172 + $0x300] sm:$0xff]
        %v5270 = vld [vmem:[%s5172 + $0x308] sm:$0xff]
        %v5271 = vld [vmem:[%s5172 + $0x310] sm:$0xff]
        %v5272 = vld [vmem:[%s5172 + $0x318] sm:$0xff]
        %v5273 = vld [vmem:[%s5172 + $0x320] sm:$0xff]
        %v5274 = vld [vmem:[%s5172 + $0x328] sm:$0xff]
        %v5275 = vld [vmem:[%s5172 + $0x330] sm:$0xff]
        %v5276 = vld [vmem:[%s5172 + $0x338] sm:$0xff]
        %v5277 = vld [vmem:[%s5172 + $0x340] sm:$0xff]
        %v5278 = vld [vmem:[%s5172 + $0x348] sm:$0xff]
        %v5279 = vld [vmem:[%s5172 + $0x350] sm:$0xff]
        %v5280 = vld [vmem:[%s5172 + $0x358] sm:$0xff]
        %v5281 = vld [vmem:[%s5172 + $0x360] sm:$0xff]
        %v5282 = vld [vmem:[%s5172 + $0x368] sm:$0xff]
        %v5283 = vld [vmem:[%s5172 + $0x370] sm:$0xff]
        %v5284 = vld [vmem:[%s5172 + $0x378] sm:$0xff]
        %v5285 = vld [vmem:[%s5172 + $0x380] sm:$0xff]
        %v5286 = vld [vmem:[%s5172 + $0x388] sm:$0xff]
        %v5287 = vld [vmem:[%s5172 + $0x390] sm:$0xff]
        %v5288 = vld [vmem:[%s5172 + $0x398] sm:$0xff]
        %v5289 = vld [vmem:[%s5172 + $0x3a0] sm:$0xff]
        %v5290 = vld [vmem:[%s5172 + $0x3a8] sm:$0xff]
        %v5291 = vld [vmem:[%s5172 + $0x3b0] sm:$0xff]
        %v5292 = vld [vmem:[%s5172 + $0x3b8] sm:$0xff]
        %v5293 = vld [vmem:[%s5172 + $0x3c0] sm:$0xff]
        %v5294 = vld [vmem:[%s5172 + $0x3c8] sm:$0xff]
        %v5295 = vld [vmem:[%s5172 + $0x3d0] sm:$0xff]
        %v5296 = vld [vmem:[%s5172 + $0x3d8] sm:$0xff]
        %v5297 = vld [vmem:[%s5172 + $0x3e0] sm:$0xff]
        %v5298 = vld [vmem:[%s5172 + $0x3e8] sm:$0xff]
        %v5299 = vld [vmem:[%s5172 + $0x3f0] sm:$0xff]
        %v5300 = vld [vmem:[%s5172 + $0x3f8] sm:$0xff]
        %s5301 = scalar_lea.vmem %s10, 8
        %v5302 = vld [vmem:[%s5301] sm:$0xff]
        %v5304 = vlaneseq
        %v5305 = vshrl.u32 %v5304, 7
        %v5306 = vsub.s32 0, %v5305
        %v5307 = vrot.slane %v5302, %v5306
        %v5308 = vlaneseq
        %v5309 = vshrl.u32 %v5308, 7
        %v5310 = vsub.s32 1, %v5309
        %v5311 = vrot.slane %v5302, %v5310
        %v5312 = vlaneseq
        %v5313 = vshrl.u32 %v5312, 7
        %v5314 = vsub.s32 2, %v5313
        %v5315 = vrot.slane %v5302, %v5314
        %v5316 = vlaneseq
        %v5317 = vshrl.u32 %v5316, 7
        %v5318 = vsub.s32 3, %v5317
        %v5319 = vrot.slane %v5302, %v5318
        %v5320 = vlaneseq
        %v5321 = vshrl.u32 %v5320, 7
        %v5322 = vsub.s32 4, %v5321
        %v5323 = vrot.slane %v5302, %v5322
        %v5324 = vlaneseq
        %v5325 = vshrl.u32 %v5324, 7
        %v5326 = vsub.s32 5, %v5325
        %v5327 = vrot.slane %v5302, %v5326
        %v5328 = vlaneseq
        %v5329 = vshrl.u32 %v5328, 7
        %v5330 = vsub.s32 6, %v5329
        %v5331 = vrot.slane %v5302, %v5330
        %v5332 = vlaneseq
        %v5333 = vshrl.u32 %v5332, 7
        %v5334 = vsub.s32 7, %v5333
        %v5335 = vrot.slane %v5302, %v5334
        %v5472 = vunpack.c.l.b16 %v5173
        %v5473 = vunpack.c.h.b16 %v5173
        %v5474 = vunpack.c.l.b16 %v5174
        %v5475 = vunpack.c.h.b16 %v5174
        %v5476 = vunpack.c.l.b16 %v5175
        %v5477 = vunpack.c.h.b16 %v5175
        %v5478 = vunpack.c.l.b16 %v5176
        %v5479 = vunpack.c.h.b16 %v5176
        %v5480 = vunpack.c.l.b16 %v5177
        %v5481 = vunpack.c.h.b16 %v5177
        %v5482 = vunpack.c.l.b16 %v5178
        %v5483 = vunpack.c.h.b16 %v5178
        %v5484 = vunpack.c.l.b16 %v5179
        %v5485 = vunpack.c.h.b16 %v5179
        %v5486 = vunpack.c.l.b16 %v5180
        %v5487 = vunpack.c.h.b16 %v5180
        %v5488 = vunpack.c.l.b16 %v5181
        %v5489 = vunpack.c.h.b16 %v5181
        %v5490 = vunpack.c.l.b16 %v5182
        %v5491 = vunpack.c.h.b16 %v5182
        %v5492 = vunpack.c.l.b16 %v5183
        %v5493 = vunpack.c.h.b16 %v5183
        %v5494 = vunpack.c.l.b16 %v5184
        %v5495 = vunpack.c.h.b16 %v5184
        %v5496 = vunpack.c.l.b16 %v5185
        %v5497 = vunpack.c.h.b16 %v5185
        %v5498 = vunpack.c.l.b16 %v5186
        %v5499 = vunpack.c.h.b16 %v5186
        %v5500 = vunpack.c.l.b16 %v5187
        %v5501 = vunpack.c.h.b16 %v5187
        %v5502 = vunpack.c.l.b16 %v5188
        %v5503 = vunpack.c.h.b16 %v5188
        %v5504 = vunpack.c.l.b16 %v5189
        %v5505 = vunpack.c.h.b16 %v5189
        %v5506 = vunpack.c.l.b16 %v5190
        %v5507 = vunpack.c.h.b16 %v5190
        %v5508 = vunpack.c.l.b16 %v5191
        %v5509 = vunpack.c.h.b16 %v5191
        %v5510 = vunpack.c.l.b16 %v5192
        %v5511 = vunpack.c.h.b16 %v5192
        %v5512 = vunpack.c.l.b16 %v5193
        %v5513 = vunpack.c.h.b16 %v5193
        %v5514 = vunpack.c.l.b16 %v5194
        %v5515 = vunpack.c.h.b16 %v5194
        %v5516 = vunpack.c.l.b16 %v5195
        %v5517 = vunpack.c.h.b16 %v5195
        %v5518 = vunpack.c.l.b16 %v5196
        %v5519 = vunpack.c.h.b16 %v5196
        %v5520 = vunpack.c.l.b16 %v5197
        %v5521 = vunpack.c.h.b16 %v5197
        %v5522 = vunpack.c.l.b16 %v5198
        %v5523 = vunpack.c.h.b16 %v5198
        %v5524 = vunpack.c.l.b16 %v5199
        %v5525 = vunpack.c.h.b16 %v5199
        %v5526 = vunpack.c.l.b16 %v5200
        %v5527 = vunpack.c.h.b16 %v5200
        %v5528 = vunpack.c.l.b16 %v5201
        %v5529 = vunpack.c.h.b16 %v5201
        %v5530 = vunpack.c.l.b16 %v5202
        %v5531 = vunpack.c.h.b16 %v5202
        %v5532 = vunpack.c.l.b16 %v5203
        %v5533 = vunpack.c.h.b16 %v5203
        %v5534 = vunpack.c.l.b16 %v5204
        %v5535 = vunpack.c.h.b16 %v5204
        %v5536 = vunpack.c.l.b16 %v5205
        %v5537 = vunpack.c.h.b16 %v5205
        %v5538 = vunpack.c.l.b16 %v5206
        %v5539 = vunpack.c.h.b16 %v5206
        %v5540 = vunpack.c.l.b16 %v5207
        %v5541 = vunpack.c.h.b16 %v5207
        %v5542 = vunpack.c.l.b16 %v5208
        %v5543 = vunpack.c.h.b16 %v5208
        %v5544 = vunpack.c.l.b16 %v5209
        %v5545 = vunpack.c.h.b16 %v5209
        %v5546 = vunpack.c.l.b16 %v5210
        %v5547 = vunpack.c.h.b16 %v5210
        %v5548 = vunpack.c.l.b16 %v5211
        %v5549 = vunpack.c.h.b16 %v5211
        %v5550 = vunpack.c.l.b16 %v5212
        %v5551 = vunpack.c.h.b16 %v5212
        %v5552 = vunpack.c.l.b16 %v5213
        %v5553 = vunpack.c.h.b16 %v5213
        %v5554 = vunpack.c.l.b16 %v5214
        %v5555 = vunpack.c.h.b16 %v5214
        %v5556 = vunpack.c.l.b16 %v5215
        %v5557 = vunpack.c.h.b16 %v5215
        %v5558 = vunpack.c.l.b16 %v5216
        %v5559 = vunpack.c.h.b16 %v5216
        %v5560 = vunpack.c.l.b16 %v5217
        %v5561 = vunpack.c.h.b16 %v5217
        %v5562 = vunpack.c.l.b16 %v5218
        %v5563 = vunpack.c.h.b16 %v5218
        %v5564 = vunpack.c.l.b16 %v5219
        %v5565 = vunpack.c.h.b16 %v5219
        %v5566 = vunpack.c.l.b16 %v5220
        %v5567 = vunpack.c.h.b16 %v5220
        %v5568 = vunpack.c.l.b16 %v5221
        %v5569 = vunpack.c.h.b16 %v5221
        %v5570 = vunpack.c.l.b16 %v5222
        %v5571 = vunpack.c.h.b16 %v5222
        %v5572 = vunpack.c.l.b16 %v5223
        %v5573 = vunpack.c.h.b16 %v5223
        %v5574 = vunpack.c.l.b16 %v5224
        %v5575 = vunpack.c.h.b16 %v5224
        %v5576 = vunpack.c.l.b16 %v5225
        %v5577 = vunpack.c.h.b16 %v5225
        %v5578 = vunpack.c.l.b16 %v5226
        %v5579 = vunpack.c.h.b16 %v5226
        %v5580 = vunpack.c.l.b16 %v5227
        %v5581 = vunpack.c.h.b16 %v5227
        %v5582 = vunpack.c.l.b16 %v5228
        %v5583 = vunpack.c.h.b16 %v5228
        %v5584 = vunpack.c.l.b16 %v5229
        %v5585 = vunpack.c.h.b16 %v5229
        %v5586 = vunpack.c.l.b16 %v5230
        %v5587 = vunpack.c.h.b16 %v5230
        %v5588 = vunpack.c.l.b16 %v5231
        %v5589 = vunpack.c.h.b16 %v5231
        %v5590 = vunpack.c.l.b16 %v5232
        %v5591 = vunpack.c.h.b16 %v5232
        %v5592 = vunpack.c.l.b16 %v5233
        %v5593 = vunpack.c.h.b16 %v5233
        %v5594 = vunpack.c.l.b16 %v5234
        %v5595 = vunpack.c.h.b16 %v5234
        %v5596 = vunpack.c.l.b16 %v5235
        %v5597 = vunpack.c.h.b16 %v5235
        %v5598 = vunpack.c.l.b16 %v5236
        %v5599 = vunpack.c.h.b16 %v5236
        %v5600 = vunpack.c.l.b16 %v5237
        %v5601 = vunpack.c.h.b16 %v5237
        %v5602 = vunpack.c.l.b16 %v5238
        %v5603 = vunpack.c.h.b16 %v5238
        %v5604 = vunpack.c.l.b16 %v5239
        %v5605 = vunpack.c.h.b16 %v5239
        %v5606 = vunpack.c.l.b16 %v5240
        %v5607 = vunpack.c.h.b16 %v5240
        %v5608 = vunpack.c.l.b16 %v5241
        %v5609 = vunpack.c.h.b16 %v5241
        %v5610 = vunpack.c.l.b16 %v5242
        %v5611 = vunpack.c.h.b16 %v5242
        %v5612 = vunpack.c.l.b16 %v5243
        %v5613 = vunpack.c.h.b16 %v5243
        %v5614 = vunpack.c.l.b16 %v5244
        %v5615 = vunpack.c.h.b16 %v5244
        %v5616 = vunpack.c.l.b16 %v5245
        %v5617 = vunpack.c.h.b16 %v5245
        %v5618 = vunpack.c.l.b16 %v5246
        %v5619 = vunpack.c.h.b16 %v5246
        %v5620 = vunpack.c.l.b16 %v5247
        %v5621 = vunpack.c.h.b16 %v5247
        %v5622 = vunpack.c.l.b16 %v5248
        %v5623 = vunpack.c.h.b16 %v5248
        %v5624 = vunpack.c.l.b16 %v5249
        %v5625 = vunpack.c.h.b16 %v5249
        %v5626 = vunpack.c.l.b16 %v5250
        %v5627 = vunpack.c.h.b16 %v5250
        %v5628 = vunpack.c.l.b16 %v5251
        %v5629 = vunpack.c.h.b16 %v5251
        %v5630 = vunpack.c.l.b16 %v5252
        %v5631 = vunpack.c.h.b16 %v5252
        %v5632 = vunpack.c.l.b16 %v5253
        %v5633 = vunpack.c.h.b16 %v5253
        %v5634 = vunpack.c.l.b16 %v5254
        %v5635 = vunpack.c.h.b16 %v5254
        %v5636 = vunpack.c.l.b16 %v5255
        %v5637 = vunpack.c.h.b16 %v5255
        %v5638 = vunpack.c.l.b16 %v5256
        %v5639 = vunpack.c.h.b16 %v5256
        %v5640 = vunpack.c.l.b16 %v5257
        %v5641 = vunpack.c.h.b16 %v5257
        %v5642 = vunpack.c.l.b16 %v5258
        %v5643 = vunpack.c.h.b16 %v5258
        %v5644 = vunpack.c.l.b16 %v5259
        %v5645 = vunpack.c.h.b16 %v5259
        %v5646 = vunpack.c.l.b16 %v5260
        %v5647 = vunpack.c.h.b16 %v5260
        %v5648 = vunpack.c.l.b16 %v5261
        %v5649 = vunpack.c.h.b16 %v5261
        %v5650 = vunpack.c.l.b16 %v5262
        %v5651 = vunpack.c.h.b16 %v5262
        %v5652 = vunpack.c.l.b16 %v5263
        %v5653 = vunpack.c.h.b16 %v5263
        %v5654 = vunpack.c.l.b16 %v5264
        %v5655 = vunpack.c.h.b16 %v5264
        %v5656 = vunpack.c.l.b16 %v5265
        %v5657 = vunpack.c.h.b16 %v5265
        %v5658 = vunpack.c.l.b16 %v5266
        %v5659 = vunpack.c.h.b16 %v5266
        %v5660 = vunpack.c.l.b16 %v5267
        %v5661 = vunpack.c.h.b16 %v5267
        %v5662 = vunpack.c.l.b16 %v5268
        %v5663 = vunpack.c.h.b16 %v5268
        %v5664 = vunpack.c.l.b16 %v5269
        %v5665 = vunpack.c.h.b16 %v5269
        %v5666 = vunpack.c.l.b16 %v5270
        %v5667 = vunpack.c.h.b16 %v5270
        %v5668 = vunpack.c.l.b16 %v5271
        %v5669 = vunpack.c.h.b16 %v5271
        %v5670 = vunpack.c.l.b16 %v5272
        %v5671 = vunpack.c.h.b16 %v5272
        %v5672 = vunpack.c.l.b16 %v5273
        %v5673 = vunpack.c.h.b16 %v5273
        %v5674 = vunpack.c.l.b16 %v5274
        %v5675 = vunpack.c.h.b16 %v5274
        %v5676 = vunpack.c.l.b16 %v5275
        %v5677 = vunpack.c.h.b16 %v5275
        %v5678 = vunpack.c.l.b16 %v5276
        %v5679 = vunpack.c.h.b16 %v5276
        %v5680 = vunpack.c.l.b16 %v5277
        %v5681 = vunpack.c.h.b16 %v5277
        %v5682 = vunpack.c.l.b16 %v5278
        %v5683 = vunpack.c.h.b16 %v5278
        %v5684 = vunpack.c.l.b16 %v5279
        %v5685 = vunpack.c.h.b16 %v5279
        %v5686 = vunpack.c.l.b16 %v5280
        %v5687 = vunpack.c.h.b16 %v5280
        %v5688 = vunpack.c.l.b16 %v5281
        %v5689 = vunpack.c.h.b16 %v5281
        %v5690 = vunpack.c.l.b16 %v5282
        %v5691 = vunpack.c.h.b16 %v5282
        %v5692 = vunpack.c.l.b16 %v5283
        %v5693 = vunpack.c.h.b16 %v5283
        %v5694 = vunpack.c.l.b16 %v5284
        %v5695 = vunpack.c.h.b16 %v5284
        %v5696 = vunpack.c.l.b16 %v5285
        %v5697 = vunpack.c.h.b16 %v5285
        %v5698 = vunpack.c.l.b16 %v5286
        %v5699 = vunpack.c.h.b16 %v5286
        %v5700 = vunpack.c.l.b16 %v5287
        %v5701 = vunpack.c.h.b16 %v5287
        %v5702 = vunpack.c.l.b16 %v5288
        %v5703 = vunpack.c.h.b16 %v5288
        %v5704 = vunpack.c.l.b16 %v5289
        %v5705 = vunpack.c.h.b16 %v5289
        %v5706 = vunpack.c.l.b16 %v5290
        %v5707 = vunpack.c.h.b16 %v5290
        %v5708 = vunpack.c.l.b16 %v5291
        %v5709 = vunpack.c.h.b16 %v5291
        %v5710 = vunpack.c.l.b16 %v5292
        %v5711 = vunpack.c.h.b16 %v5292
        %v5712 = vunpack.c.l.b16 %v5293
        %v5713 = vunpack.c.h.b16 %v5293
        %v5714 = vunpack.c.l.b16 %v5294
        %v5715 = vunpack.c.h.b16 %v5294
        %v5716 = vunpack.c.l.b16 %v5295
        %v5717 = vunpack.c.h.b16 %v5295
        %v5718 = vunpack.c.l.b16 %v5296
        %v5719 = vunpack.c.h.b16 %v5296
        %v5720 = vunpack.c.l.b16 %v5297
        %v5721 = vunpack.c.h.b16 %v5297
        %v5722 = vunpack.c.l.b16 %v5298
        %v5723 = vunpack.c.h.b16 %v5298
        %v5724 = vunpack.c.l.b16 %v5299
        %v5725 = vunpack.c.h.b16 %v5299
        %v5726 = vunpack.c.l.b16 %v5300
        %v5727 = vunpack.c.h.b16 %v5300
        %v5728 = vpack.c.b16 %v5480, %v5472
        %v5729 = vpack.c.b16 %v5481, %v5473
        %v5730 = vpack.c.b16 %v5482, %v5474
        %v5731 = vpack.c.b16 %v5483, %v5475
        %v5732 = vpack.c.b16 %v5484, %v5476
        %v5733 = vpack.c.b16 %v5485, %v5477
        %v5734 = vpack.c.b16 %v5486, %v5478
        %v5735 = vpack.c.b16 %v5487, %v5479
        %v5736 = vpack.c.b16 %v5496, %v5488
        %v5737 = vpack.c.b16 %v5497, %v5489
        %v5738 = vpack.c.b16 %v5498, %v5490
        %v5739 = vpack.c.b16 %v5499, %v5491
        %v5740 = vpack.c.b16 %v5500, %v5492
        %v5741 = vpack.c.b16 %v5501, %v5493
        %v5742 = vpack.c.b16 %v5502, %v5494
        %v5743 = vpack.c.b16 %v5503, %v5495
        %v5744 = vpack.c.b16 %v5512, %v5504
        %v5745 = vpack.c.b16 %v5513, %v5505
        %v5746 = vpack.c.b16 %v5514, %v5506
        %v5747 = vpack.c.b16 %v5515, %v5507
        %v5748 = vpack.c.b16 %v5516, %v5508
        %v5749 = vpack.c.b16 %v5517, %v5509
        %v5750 = vpack.c.b16 %v5518, %v5510
        %v5751 = vpack.c.b16 %v5519, %v5511
        %v5752 = vpack.c.b16 %v5528, %v5520
        %v5753 = vpack.c.b16 %v5529, %v5521
        %v5754 = vpack.c.b16 %v5530, %v5522
        %v5755 = vpack.c.b16 %v5531, %v5523
        %v5756 = vpack.c.b16 %v5532, %v5524
        %v5757 = vpack.c.b16 %v5533, %v5525
        %v5758 = vpack.c.b16 %v5534, %v5526
        %v5759 = vpack.c.b16 %v5535, %v5527
        %v5760 = vpack.c.b16 %v5544, %v5536
        %v5761 = vpack.c.b16 %v5545, %v5537
        %v5762 = vpack.c.b16 %v5546, %v5538
        %v5763 = vpack.c.b16 %v5547, %v5539
        %v5764 = vpack.c.b16 %v5548, %v5540
        %v5765 = vpack.c.b16 %v5549, %v5541
        %v5766 = vpack.c.b16 %v5550, %v5542
        %v5767 = vpack.c.b16 %v5551, %v5543
        %v5768 = vpack.c.b16 %v5560, %v5552
        %v5769 = vpack.c.b16 %v5561, %v5553
        %v5770 = vpack.c.b16 %v5562, %v5554
        %v5771 = vpack.c.b16 %v5563, %v5555
        %v5772 = vpack.c.b16 %v5564, %v5556
        %v5773 = vpack.c.b16 %v5565, %v5557
        %v5774 = vpack.c.b16 %v5566, %v5558
        %v5775 = vpack.c.b16 %v5567, %v5559
        %v5776 = vpack.c.b16 %v5576, %v5568
        %v5777 = vpack.c.b16 %v5577, %v5569
        %v5778 = vpack.c.b16 %v5578, %v5570
        %v5779 = vpack.c.b16 %v5579, %v5571
        %v5780 = vpack.c.b16 %v5580, %v5572
        %v5781 = vpack.c.b16 %v5581, %v5573
        %v5782 = vpack.c.b16 %v5582, %v5574
        %v5783 = vpack.c.b16 %v5583, %v5575
        %v5784 = vpack.c.b16 %v5592, %v5584
        %v5785 = vpack.c.b16 %v5593, %v5585
        %v5786 = vpack.c.b16 %v5594, %v5586
        %v5787 = vpack.c.b16 %v5595, %v5587
        %v5788 = vpack.c.b16 %v5596, %v5588
        %v5789 = vpack.c.b16 %v5597, %v5589
        %v5790 = vpack.c.b16 %v5598, %v5590
        %v5791 = vpack.c.b16 %v5599, %v5591
        %v5792 = vpack.c.b16 %v5608, %v5600
        %v5793 = vpack.c.b16 %v5609, %v5601
        %v5794 = vpack.c.b16 %v5610, %v5602
        %v5795 = vpack.c.b16 %v5611, %v5603
        %v5796 = vpack.c.b16 %v5612, %v5604
        %v5797 = vpack.c.b16 %v5613, %v5605
        %v5798 = vpack.c.b16 %v5614, %v5606
        %v5799 = vpack.c.b16 %v5615, %v5607
        %v5800 = vpack.c.b16 %v5624, %v5616
        %v5801 = vpack.c.b16 %v5625, %v5617
        %v5802 = vpack.c.b16 %v5626, %v5618
        %v5803 = vpack.c.b16 %v5627, %v5619
        %v5804 = vpack.c.b16 %v5628, %v5620
        %v5805 = vpack.c.b16 %v5629, %v5621
        %v5806 = vpack.c.b16 %v5630, %v5622
        %v5807 = vpack.c.b16 %v5631, %v5623
        %v5808 = vpack.c.b16 %v5640, %v5632
        %v5809 = vpack.c.b16 %v5641, %v5633
        %v5810 = vpack.c.b16 %v5642, %v5634
        %v5811 = vpack.c.b16 %v5643, %v5635
        %v5812 = vpack.c.b16 %v5644, %v5636
        %v5813 = vpack.c.b16 %v5645, %v5637
        %v5814 = vpack.c.b16 %v5646, %v5638
        %v5815 = vpack.c.b16 %v5647, %v5639
        %v5816 = vpack.c.b16 %v5656, %v5648
        %v5817 = vpack.c.b16 %v5657, %v5649
        %v5818 = vpack.c.b16 %v5658, %v5650
        %v5819 = vpack.c.b16 %v5659, %v5651
        %v5820 = vpack.c.b16 %v5660, %v5652
        %v5821 = vpack.c.b16 %v5661, %v5653
        %v5822 = vpack.c.b16 %v5662, %v5654
        %v5823 = vpack.c.b16 %v5663, %v5655
        %v5824 = vpack.c.b16 %v5672, %v5664
        %v5825 = vpack.c.b16 %v5673, %v5665
        %v5826 = vpack.c.b16 %v5674, %v5666
        %v5827 = vpack.c.b16 %v5675, %v5667
        %v5828 = vpack.c.b16 %v5676, %v5668
        %v5829 = vpack.c.b16 %v5677, %v5669
        %v5830 = vpack.c.b16 %v5678, %v5670
        %v5831 = vpack.c.b16 %v5679, %v5671
        %v5832 = vpack.c.b16 %v5688, %v5680
        %v5833 = vpack.c.b16 %v5689, %v5681
        %v5834 = vpack.c.b16 %v5690, %v5682
        %v5835 = vpack.c.b16 %v5691, %v5683
        %v5836 = vpack.c.b16 %v5692, %v5684
        %v5837 = vpack.c.b16 %v5693, %v5685
        %v5838 = vpack.c.b16 %v5694, %v5686
        %v5839 = vpack.c.b16 %v5695, %v5687
        %v5840 = vpack.c.b16 %v5704, %v5696
        %v5841 = vpack.c.b16 %v5705, %v5697
        %v5842 = vpack.c.b16 %v5706, %v5698
        %v5843 = vpack.c.b16 %v5707, %v5699
        %v5844 = vpack.c.b16 %v5708, %v5700
        %v5845 = vpack.c.b16 %v5709, %v5701
        %v5846 = vpack.c.b16 %v5710, %v5702
        %v5847 = vpack.c.b16 %v5711, %v5703
        %v5848 = vpack.c.b16 %v5720, %v5712
        %v5849 = vpack.c.b16 %v5721, %v5713
        %v5850 = vpack.c.b16 %v5722, %v5714
        %v5851 = vpack.c.b16 %v5723, %v5715
        %v5852 = vpack.c.b16 %v5724, %v5716
        %v5853 = vpack.c.b16 %v5725, %v5717
        %v5854 = vpack.c.b16 %v5726, %v5718
        %v5855 = vpack.c.b16 %v5727, %v5719
        %5984 = vmatprep.subr.bf16.mxu0 %v5729
        %5985 = vmatpush1.bf16.msra.mxu0 %v5728
        %5986 = vmatprep.subr.bf16.mxu0 %v5737
        %5987 = vmatpush1.bf16.msra.mxu0 %v5736
        %5988 = vmatprep.subr.bf16.mxu0 %v5745
        %5989 = vmatpush1.bf16.msra.mxu0 %v5744
        %5990 = vmatprep.subr.bf16.mxu0 %v5753
        %5991 = vmatpush1.bf16.msra.mxu0 %v5752
        %5992 = vmatprep.subr.bf16.mxu0 %v5761
        %5993 = vmatpush1.bf16.msra.mxu0 %v5760
        %5994 = vmatprep.subr.bf16.mxu0 %v5769
        %5995 = vmatpush1.bf16.msra.mxu0 %v5768
        %5996 = vmatprep.subr.bf16.mxu0 %v5777
        %5997 = vmatpush1.bf16.msra.mxu0 %v5776
        %5998 = vmatprep.subr.bf16.mxu0 %v5785
        %5999 = vmatpush1.bf16.msra.mxu0 %v5784
        %6000 = vmatprep.subr.bf16.mxu0 %v5793
        %6001 = vmatpush1.bf16.msra.mxu0 %v5792
        %6002 = vmatprep.subr.bf16.mxu0 %v5801
        %6003 = vmatpush1.bf16.msra.mxu0 %v5800
        %6004 = vmatprep.subr.bf16.mxu0 %v5809
        %6005 = vmatpush1.bf16.msra.mxu0 %v5808
        %6006 = vmatprep.subr.bf16.mxu0 %v5817
        %6007 = vmatpush1.bf16.msra.mxu0 %v5816
        %6008 = vmatprep.subr.bf16.mxu0 %v5825
        %6009 = vmatpush1.bf16.msra.mxu0 %v5824
        %6010 = vmatprep.subr.bf16.mxu0 %v5833
        %6011 = vmatpush1.bf16.msra.mxu0 %v5832
        %6012 = vmatprep.subr.bf16.mxu0 %v5841
        %6013 = vmatpush1.bf16.msra.mxu0 %v5840
        %6014 = vmatprep.subr.bf16.mxu0 %v5849
        %6015 = vmatpush1.bf16.msra.mxu0 %v5848
        %6016 = vmatprep.mubr.bf16.mxu0 %v5171
        %6017 = vmatmul.mubr.bf16.gmra.mrb[0].mxu0 %v5170
        %v6018 = vpop.f32.mrb[0].mxu0
        %v6019 = vadd.f32 %v5307, %v6018
        %v6020 = vpop.f32.mrb[0].mxu0
        %v6021 = vadd.f32 %v5311, %v6020
        %v6022 = vpop.f32.mrb[0].mxu0
        %v6023 = vpop.f32.mrb[0].mxu0
        %6024 = vdwg.mxu0
        %6025 = vmatprep.subr.bf16.mxu0 %v5731
        %6026 = vmatpush1.bf16.msra.mxu0 %v5730
        %6027 = vmatprep.subr.bf16.mxu0 %v5739
        %6028 = vmatpush1.bf16.msra.mxu0 %v5738
        %6029 = vmatprep.subr.bf16.mxu0 %v5747
        %6030 = vmatpush1.bf16.msra.mxu0 %v5746
        %6031 = vmatprep.subr.bf16.mxu0 %v5755
        %6032 = vmatpush1.bf16.msra.mxu0 %v5754
        %6033 = vmatprep.subr.bf16.mxu0 %v5763
        %6034 = vmatpush1.bf16.msra.mxu0 %v5762
        %6035 = vmatprep.subr.bf16.mxu0 %v5771
        %6036 = vmatpush1.bf16.msra.mxu0 %v5770
        %6037 = vmatprep.subr.bf16.mxu0 %v5779
        %6038 = vmatpush1.bf16.msra.mxu0 %v5778
        %6039 = vmatprep.subr.bf16.mxu0 %v5787
        %6040 = vmatpush1.bf16.msra.mxu0 %v5786
        %6041 = vmatprep.subr.bf16.mxu0 %v5795
        %6042 = vmatpush1.bf16.msra.mxu0 %v5794
        %6043 = vmatprep.subr.bf16.mxu0 %v5803
        %6044 = vmatpush1.bf16.msra.mxu0 %v5802
        %6045 = vmatprep.subr.bf16.mxu0 %v5811
        %6046 = vmatpush1.bf16.msra.mxu0 %v5810
        %6047 = vmatprep.subr.bf16.mxu0 %v5819
        %6048 = vmatpush1.bf16.msra.mxu0 %v5818
        %6049 = vmatprep.subr.bf16.mxu0 %v5827
        %6050 = vmatpush1.bf16.msra.mxu0 %v5826
        %6051 = vmatprep.subr.bf16.mxu0 %v5835
        %6052 = vmatpush1.bf16.msra.mxu0 %v5834
        %6053 = vmatprep.subr.bf16.mxu0 %v5843
        %6054 = vmatpush1.bf16.msra.mxu0 %v5842
        %6055 = vmatprep.subr.bf16.mxu0 %v5851
        %6056 = vmatpush1.bf16.msra.mxu0 %v5850
        %6057 = vmatprep.mubr.bf16.mxu0 %v5171
        %6058 = vmatmul.mubr.bf16.gmra.mrb[0].mxu0 %v5170
        %v6059 = vpop.f32.mrb[0].mxu0
        %v6060 = vadd.f32 %v5315, %v6059
        %v6061 = vpop.f32.mrb[0].mxu0
        %v6062 = vadd.f32 %v5319, %v6061
        %v6063 = vpop.f32.mrb[0].mxu0
        %v6064 = vpop.f32.mrb[0].mxu0
        %6065 = vdwg.mxu0
        %6066 = vmatprep.subr.bf16.mxu0 %v5733
        %6067 = vmatpush1.bf16.msra.mxu0 %v5732
        %6068 = vmatprep.subr.bf16.mxu0 %v5741
        %6069 = vmatpush1.bf16.msra.mxu0 %v5740
        %6070 = vmatprep.subr.bf16.mxu0 %v5749
        %6071 = vmatpush1.bf16.msra.mxu0 %v5748
        %6072 = vmatprep.subr.bf16.mxu0 %v5757
        %6073 = vmatpush1.bf16.msra.mxu0 %v5756
        %6074 = vmatprep.subr.bf16.mxu0 %v5765
        %6075 = vmatpush1.bf16.msra.mxu0 %v5764
        %6076 = vmatprep.subr.bf16.mxu0 %v5773
        %6077 = vmatpush1.bf16.msra.mxu0 %v5772
        %6078 = vmatprep.subr.bf16.mxu0 %v5781
        %6079 = vmatpush1.bf16.msra.mxu0 %v5780
        %6080 = vmatprep.subr.bf16.mxu0 %v5789
        %6081 = vmatpush1.bf16.msra.mxu0 %v5788
        %6082 = vmatprep.subr.bf16.mxu0 %v5797
        %6083 = vmatpush1.bf16.msra.mxu0 %v5796
        %6084 = vmatprep.subr.bf16.mxu0 %v5805
        %6085 = vmatpush1.bf16.msra.mxu0 %v5804
        %6086 = vmatprep.subr.bf16.mxu0 %v5813
        %6087 = vmatpush1.bf16.msra.mxu0 %v5812
        %6088 = vmatprep.subr.bf16.mxu0 %v5821
        %6089 = vmatpush1.bf16.msra.mxu0 %v5820
        %6090 = vmatprep.subr.bf16.mxu0 %v5829
        %6091 = vmatpush1.bf16.msra.mxu0 %v5828
        %6092 = vmatprep.subr.bf16.mxu0 %v5837
        %6093 = vmatpush1.bf16.msra.mxu0 %v5836
        %6094 = vmatprep.subr.bf16.mxu0 %v5845
        %6095 = vmatpush1.bf16.msra.mxu0 %v5844
        %6096 = vmatprep.subr.bf16.mxu0 %v5853
        %6097 = vmatpush1.bf16.msra.mxu0 %v5852
        %6098 = vmatprep.mubr.bf16.mxu0 %v5171
        %6099 = vmatmul.mubr.bf16.gmra.mrb[0].mxu0 %v5170
        %v6100 = vpop.f32.mrb[0].mxu0
        %v6101 = vadd.f32 %v5323, %v6100
        %v6102 = vpop.f32.mrb[0].mxu0
        %v6103 = vadd.f32 %v5327, %v6102
        %v6104 = vpop.f32.mrb[0].mxu0
        %v6105 = vpop.f32.mrb[0].mxu0
        %6106 = vdwg.mxu0
        %6107 = vmatprep.subr.bf16.mxu0 %v5735
        %6108 = vmatpush1.bf16.msra.mxu0 %v5734
        %6109 = vmatprep.subr.bf16.mxu0 %v5743
        %6110 = vmatpush1.bf16.msra.mxu0 %v5742
        %6111 = vmatprep.subr.bf16.mxu0 %v5751
        %6112 = vmatpush1.bf16.msra.mxu0 %v5750
        %6113 = vmatprep.subr.bf16.mxu0 %v5759
        %6114 = vmatpush1.bf16.msra.mxu0 %v5758
        %6115 = vmatprep.subr.bf16.mxu0 %v5767
        %6116 = vmatpush1.bf16.msra.mxu0 %v5766
        %6117 = vmatprep.subr.bf16.mxu0 %v5775
        %6118 = vmatpush1.bf16.msra.mxu0 %v5774
        %6119 = vmatprep.subr.bf16.mxu0 %v5783
        %6120 = vmatpush1.bf16.msra.mxu0 %v5782
        %6121 = vmatprep.subr.bf16.mxu0 %v5791
        %6122 = vmatpush1.bf16.msra.mxu0 %v5790
        %6123 = vmatprep.subr.bf16.mxu0 %v5799
        %6124 = vmatpush1.bf16.msra.mxu0 %v5798
        %6125 = vmatprep.subr.bf16.mxu0 %v5807
        %6126 = vmatpush1.bf16.msra.mxu0 %v5806
        %6127 = vmatprep.subr.bf16.mxu0 %v5815
        %6128 = vmatpush1.bf16.msra.mxu0 %v5814
        %6129 = vmatprep.subr.bf16.mxu0 %v5823
        %6130 = vmatpush1.bf16.msra.mxu0 %v5822
        %6131 = vmatprep.subr.bf16.mxu0 %v5831
        %6132 = vmatpush1.bf16.msra.mxu0 %v5830
        %6133 = vmatprep.subr.bf16.mxu0 %v5839
        %6134 = vmatpush1.bf16.msra.mxu0 %v5838
        %6135 = vmatprep.subr.bf16.mxu0 %v5847
        %6136 = vmatpush1.bf16.msra.mxu0 %v5846
        %6137 = vmatprep.subr.bf16.mxu0 %v5855
        %6138 = vmatpush1.bf16.msra.mxu0 %v5854
        %6139 = vmatprep.mubr.bf16.mxu0 %v5171
        %6140 = vmatmul.mubr.bf16.gmra.mrb[0].mxu0 %v5170
        %v6141 = vpop.f32.mrb[0].mxu0
        %v6142 = vadd.f32 %v5331, %v6141
        %v6143 = vpop.f32.mrb[0].mxu0
        %v6144 = vadd.f32 %v5335, %v6143
        %v6145 = vpop.f32.mrb[0].mxu0
        %v6146 = vpop.f32.mrb[0].mxu0
        %6147 = vdwg.mxu0
        %v6148 = vmul.f32 %v6019, 0.5
        %v6149 = vmul.f32 %v6021, 0.5
        %v6150 = vmul.f32 %v6060, 0.5
        %v6151 = vmul.f32 %v6062, 0.5
        %v6152 = vmul.f32 %v6101, 0.5
        %v6153 = vmul.f32 %v6103, 0.5
        %v6154 = vmul.f32 %v6142, 0.5
        %v6155 = vmul.f32 %v6144, 0.5
        %v6156 = vmul.f32 %v6019, %v6019
        %v6157 = vmul.f32 %v6021, %v6021
        %v6158 = vmul.f32 %v6060, %v6060
        %v6159 = vmul.f32 %v6062, %v6062
        %v6160 = vmul.f32 %v6101, %v6101
        %v6161 = vmul.f32 %v6103, %v6103
        %v6162 = vmul.f32 %v6142, %v6142
        %v6163 = vmul.f32 %v6144, %v6144
        %v6164 = vmul.f32 %v6019, %v6156
        %v6165 = vmul.f32 %v6021, %v6157
        %v6166 = vmul.f32 %v6060, %v6158
        %v6167 = vmul.f32 %v6062, %v6159
        %v6168 = vmul.f32 %v6101, %v6160
        %v6169 = vmul.f32 %v6103, %v6161
        %v6170 = vmul.f32 %v6142, %v6162
        %v6171 = vmul.f32 %v6144, %v6163
        %v6172 = vmul.f32 %v6164, 0.044715
        %v6173 = vmul.f32 %v6165, 0.044715
        %v6174 = vmul.f32 %v6166, 0.044715
        %v6175 = vmul.f32 %v6167, 0.044715
        %v6176 = vmul.f32 %v6168, 0.044715
        %v6177 = vmul.f32 %v6169, 0.044715
        %v6178 = vmul.f32 %v6170, 0.044715
        %v6179 = vmul.f32 %v6171, 0.044715
        %v6180 = vadd.f32 %v6019, %v6172
        %v6181 = vadd.f32 %v6021, %v6173
        %v6182 = vadd.f32 %v6060, %v6174
        %v6183 = vadd.f32 %v6062, %v6175
        %v6184 = vadd.f32 %v6101, %v6176
        %v6185 = vadd.f32 %v6103, %v6177
        %v6186 = vadd.f32 %v6142, %v6178
        %v6187 = vadd.f32 %v6144, %v6179
        %v6188 = vmul.f32 %v6180, 0.7978846
        %v6189 = vmul.f32 %v6181, 0.7978846
        %v6190 = vmul.f32 %v6182, 0.7978846
        %v6191 = vmul.f32 %v6183, 0.7978846
        %v6192 = vmul.f32 %v6184, 0.7978846
        %v6193 = vmul.f32 %v6185, 0.7978846
        %v6194 = vmul.f32 %v6186, 0.7978846
        %v6195 = vmul.f32 %v6187, 0.7978846
        %v6196 = vtanh.pop %v6188
        %v6197 = vtanh.pop %v6189
        %v6198 = vtanh.pop %v6190
        %v6199 = vtanh.pop %v6191
        %v6200 = vtanh.pop %v6192
        %v6201 = vtanh.pop %v6193
        %v6202 = vtanh.pop %v6194
        %v6203 = vtanh.pop %v6195
        %v6204 = vadd.f32 %v6196, 1.0
        %v6205 = vadd.f32 %v6197, 1.0
        %v6206 = vadd.f32 %v6198, 1.0
        %v6207 = vadd.f32 %v6199, 1.0
        %v6208 = vadd.f32 %v6200, 1.0
        %v6209 = vadd.f32 %v6201, 1.0
        %v6210 = vadd.f32 %v6202, 1.0
        %v6211 = vadd.f32 %v6203, 1.0
        %v6212 = vmul.f32 %v6148, %v6204
        %v6213 = vmul.f32 %v6149, %v6205
        %v6214 = vmul.f32 %v6150, %v6206
        %v6215 = vmul.f32 %v6151, %v6207
        %v6216 = vmul.f32 %v6152, %v6208
        %v6217 = vmul.f32 %v6153, %v6209
        %v6218 = vmul.f32 %v6154, %v6210
        %v6219 = vmul.f32 %v6155, %v6211
        %v6220 = vpack.c.bf16 %v6212, %v6212
        %v6221 = vpack.c.bf16 %v6213, %v6213
        %v6222 = vpack.c.bf16 %v6214, %v6214
        %v6223 = vpack.c.bf16 %v6215, %v6215
        %v6224 = vpack.c.bf16 %v6216, %v6216
        %v6225 = vpack.c.bf16 %v6217, %v6217
        %v6226 = vpack.c.bf16 %v6218, %v6218
        %v6227 = vpack.c.bf16 %v6219, %v6219
        %s6228 = scalar_lea.vmem [#allocation8], 1024
        %v6229 = vld [vmem:[%s6228] sm:$0xff]
        %v6230 = vld [vmem:[%s6228 + $0x8] sm:$0xff]
        %v6231 = vld [vmem:[%s6228 + $0x10] sm:$0xff]
        %v6232 = vld [vmem:[%s6228 + $0x18] sm:$0xff]
        %v6233 = vld [vmem:[%s6228 + $0x20] sm:$0xff]
        %v6234 = vld [vmem:[%s6228 + $0x28] sm:$0xff]
        %v6235 = vld [vmem:[%s6228 + $0x30] sm:$0xff]
        %v6236 = vld [vmem:[%s6228 + $0x38] sm:$0xff]
        %v6237 = vld [vmem:[%s6228 + $0x40] sm:$0xff]
        %v6238 = vld [vmem:[%s6228 + $0x48] sm:$0xff]
        %v6239 = vld [vmem:[%s6228 + $0x50] sm:$0xff]
        %v6240 = vld [vmem:[%s6228 + $0x58] sm:$0xff]
        %v6241 = vld [vmem:[%s6228 + $0x60] sm:$0xff]
        %v6242 = vld [vmem:[%s6228 + $0x68] sm:$0xff]
        %v6243 = vld [vmem:[%s6228 + $0x70] sm:$0xff]
        %v6244 = vld [vmem:[%s6228 + $0x78] sm:$0xff]
        %v6245 = vld [vmem:[%s6228 + $0x80] sm:$0xff]
        %v6246 = vld [vmem:[%s6228 + $0x88] sm:$0xff]
        %v6247 = vld [vmem:[%s6228 + $0x90] sm:$0xff]
        %v6248 = vld [vmem:[%s6228 + $0x98] sm:$0xff]
        %v6249 = vld [vmem:[%s6228 + $0xa0] sm:$0xff]
        %v6250 = vld [vmem:[%s6228 + $0xa8] sm:$0xff]
        %v6251 = vld [vmem:[%s6228 + $0xb0] sm:$0xff]
        %v6252 = vld [vmem:[%s6228 + $0xb8] sm:$0xff]
        %v6253 = vld [vmem:[%s6228 + $0xc0] sm:$0xff]
        %v6254 = vld [vmem:[%s6228 + $0xc8] sm:$0xff]
        %v6255 = vld [vmem:[%s6228 + $0xd0] sm:$0xff]
        %v6256 = vld [vmem:[%s6228 + $0xd8] sm:$0xff]
        %v6257 = vld [vmem:[%s6228 + $0xe0] sm:$0xff]
        %v6258 = vld [vmem:[%s6228 + $0xe8] sm:$0xff]
        %v6259 = vld [vmem:[%s6228 + $0xf0] sm:$0xff]
        %v6260 = vld [vmem:[%s6228 + $0xf8] sm:$0xff]
        %v6261 = vld [vmem:[%s6228 + $0x100] sm:$0xff]
        %v6262 = vld [vmem:[%s6228 + $0x108] sm:$0xff]
        %v6263 = vld [vmem:[%s6228 + $0x110] sm:$0xff]
        %v6264 = vld [vmem:[%s6228 + $0x118] sm:$0xff]
        %v6265 = vld [vmem:[%s6228 + $0x120] sm:$0xff]
        %v6266 = vld [vmem:[%s6228 + $0x128] sm:$0xff]
        %v6267 = vld [vmem:[%s6228 + $0x130] sm:$0xff]
        %v6268 = vld [vmem:[%s6228 + $0x138] sm:$0xff]
        %v6269 = vld [vmem:[%s6228 + $0x140] sm:$0xff]
        %v6270 = vld [vmem:[%s6228 + $0x148] sm:$0xff]
        %v6271 = vld [vmem:[%s6228 + $0x150] sm:$0xff]
        %v6272 = vld [vmem:[%s6228 + $0x158] sm:$0xff]
        %v6273 = vld [vmem:[%s6228 + $0x160] sm:$0xff]
        %v6274 = vld [vmem:[%s6228 + $0x168] sm:$0xff]
        %v6275 = vld [vmem:[%s6228 + $0x170] sm:$0xff]
        %v6276 = vld [vmem:[%s6228 + $0x178] sm:$0xff]
        %v6277 = vld [vmem:[%s6228 + $0x180] sm:$0xff]
        %v6278 = vld [vmem:[%s6228 + $0x188] sm:$0xff]
        %v6279 = vld [vmem:[%s6228 + $0x190] sm:$0xff]
        %v6280 = vld [vmem:[%s6228 + $0x198] sm:$0xff]
        %v6281 = vld [vmem:[%s6228 + $0x1a0] sm:$0xff]
        %v6282 = vld [vmem:[%s6228 + $0x1a8] sm:$0xff]
        %v6283 = vld [vmem:[%s6228 + $0x1b0] sm:$0xff]
        %v6284 = vld [vmem:[%s6228 + $0x1b8] sm:$0xff]
        %v6285 = vld [vmem:[%s6228 + $0x1c0] sm:$0xff]
        %v6286 = vld [vmem:[%s6228 + $0x1c8] sm:$0xff]
        %v6287 = vld [vmem:[%s6228 + $0x1d0] sm:$0xff]
        %v6288 = vld [vmem:[%s6228 + $0x1d8] sm:$0xff]
        %v6289 = vld [vmem:[%s6228 + $0x1e0] sm:$0xff]
        %v6290 = vld [vmem:[%s6228 + $0x1e8] sm:$0xff]
        %v6291 = vld [vmem:[%s6228 + $0x1f0] sm:$0xff]
        %v6292 = vld [vmem:[%s6228 + $0x1f8] sm:$0xff]
        %v6293 = vld [vmem:[%s6228 + $0x200] sm:$0xff]
        %v6294 = vld [vmem:[%s6228 + $0x208] sm:$0xff]
        %v6295 = vld [vmem:[%s6228 + $0x210] sm:$0xff]
        %v6296 = vld [vmem:[%s6228 + $0x218] sm:$0xff]
        %v6297 = vld [vmem:[%s6228 + $0x220] sm:$0xff]
        %v6298 = vld [vmem:[%s6228 + $0x228] sm:$0xff]
        %v6299 = vld [vmem:[%s6228 + $0x230] sm:$0xff]
        %v6300 = vld [vmem:[%s6228 + $0x238] sm:$0xff]
        %v6301 = vld [vmem:[%s6228 + $0x240] sm:$0xff]
        %v6302 = vld [vmem:[%s6228 + $0x248] sm:$0xff]
        %v6303 = vld [vmem:[%s6228 + $0x250] sm:$0xff]
        %v6304 = vld [vmem:[%s6228 + $0x258] sm:$0xff]
        %v6305 = vld [vmem:[%s6228 + $0x260] sm:$0xff]
        %v6306 = vld [vmem:[%s6228 + $0x268] sm:$0xff]
        %v6307 = vld [vmem:[%s6228 + $0x270] sm:$0xff]
        %v6308 = vld [vmem:[%s6228 + $0x278] sm:$0xff]
        %v6309 = vld [vmem:[%s6228 + $0x280] sm:$0xff]
        %v6310 = vld [vmem:[%s6228 + $0x288] sm:$0xff]
        %v6311 = vld [vmem:[%s6228 + $0x290] sm:$0xff]
        %v6312 = vld [vmem:[%s6228 + $0x298] sm:$0xff]
        %v6313 = vld [vmem:[%s6228 + $0x2a0] sm:$0xff]
        %v6314 = vld [vmem:[%s6228 + $0x2a8] sm:$0xff]
        %v6315 = vld [vmem:[%s6228 + $0x2b0] sm:$0xff]
        %v6316 = vld [vmem:[%s6228 + $0x2b8] sm:$0xff]
        %v6317 = vld [vmem:[%s6228 + $0x2c0] sm:$0xff]
        %v6318 = vld [vmem:[%s6228 + $0x2c8] sm:$0xff]
        %v6319 = vld [vmem:[%s6228 + $0x2d0] sm:$0xff]
        %v6320 = vld [vmem:[%s6228 + $0x2d8] sm:$0xff]
        %v6321 = vld [vmem:[%s6228 + $0x2e0] sm:$0xff]
        %v6322 = vld [vmem:[%s6228 + $0x2e8] sm:$0xff]
        %v6323 = vld [vmem:[%s6228 + $0x2f0] sm:$0xff]
        %v6324 = vld [vmem:[%s6228 + $0x2f8] sm:$0xff]
        %v6325 = vld [vmem:[%s6228 + $0x300] sm:$0xff]
        %v6326 = vld [vmem:[%s6228 + $0x308] sm:$0xff]
        %v6327 = vld [vmem:[%s6228 + $0x310] sm:$0xff]
        %v6328 = vld [vmem:[%s6228 + $0x318] sm:$0xff]
        %v6329 = vld [vmem:[%s6228 + $0x320] sm:$0xff]
        %v6330 = vld [vmem:[%s6228 + $0x328] sm:$0xff]
        %v6331 = vld [vmem:[%s6228 + $0x330] sm:$0xff]
        %v6332 = vld [vmem:[%s6228 + $0x338] sm:$0xff]
        %v6333 = vld [vmem:[%s6228 + $0x340] sm:$0xff]
        %v6334 = vld [vmem:[%s6228 + $0x348] sm:$0xff]
        %v6335 = vld [vmem:[%s6228 + $0x350] sm:$0xff]
        %v6336 = vld [vmem:[%s6228 + $0x358] sm:$0xff]
        %v6337 = vld [vmem:[%s6228 + $0x360] sm:$0xff]
        %v6338 = vld [vmem:[%s6228 + $0x368] sm:$0xff]
        %v6339 = vld [vmem:[%s6228 + $0x370] sm:$0xff]
        %v6340 = vld [vmem:[%s6228 + $0x378] sm:$0xff]
        %v6341 = vld [vmem:[%s6228 + $0x380] sm:$0xff]
        %v6342 = vld [vmem:[%s6228 + $0x388] sm:$0xff]
        %v6343 = vld [vmem:[%s6228 + $0x390] sm:$0xff]
        %v6344 = vld [vmem:[%s6228 + $0x398] sm:$0xff]
        %v6345 = vld [vmem:[%s6228 + $0x3a0] sm:$0xff]
        %v6346 = vld [vmem:[%s6228 + $0x3a8] sm:$0xff]
        %v6347 = vld [vmem:[%s6228 + $0x3b0] sm:$0xff]
        %v6348 = vld [vmem:[%s6228 + $0x3b8] sm:$0xff]
        %v6349 = vld [vmem:[%s6228 + $0x3c0] sm:$0xff]
        %v6350 = vld [vmem:[%s6228 + $0x3c8] sm:$0xff]
        %v6351 = vld [vmem:[%s6228 + $0x3d0] sm:$0xff]
        %v6352 = vld [vmem:[%s6228 + $0x3d8] sm:$0xff]
        %v6353 = vld [vmem:[%s6228 + $0x3e0] sm:$0xff]
        %v6354 = vld [vmem:[%s6228 + $0x3e8] sm:$0xff]
        %v6355 = vld [vmem:[%s6228 + $0x3f0] sm:$0xff]
        %v6356 = vld [vmem:[%s6228 + $0x3f8] sm:$0xff]
        %v6485 = vunpack.c.l.b16 %v6229
        %v6486 = vunpack.c.h.b16 %v6229
        %v6487 = vunpack.c.l.b16 %v6230
        %v6488 = vunpack.c.h.b16 %v6230
        %v6489 = vunpack.c.l.b16 %v6231
        %v6490 = vunpack.c.h.b16 %v6231
        %v6491 = vunpack.c.l.b16 %v6232
        %v6492 = vunpack.c.h.b16 %v6232
        %v6493 = vunpack.c.l.b16 %v6233
        %v6494 = vunpack.c.h.b16 %v6233
        %v6495 = vunpack.c.l.b16 %v6234
        %v6496 = vunpack.c.h.b16 %v6234
        %v6497 = vunpack.c.l.b16 %v6235
        %v6498 = vunpack.c.h.b16 %v6235
        %v6499 = vunpack.c.l.b16 %v6236
        %v6500 = vunpack.c.h.b16 %v6236
        %v6501 = vunpack.c.l.b16 %v6237
        %v6502 = vunpack.c.h.b16 %v6237
        %v6503 = vunpack.c.l.b16 %v6238
        %v6504 = vunpack.c.h.b16 %v6238
        %v6505 = vunpack.c.l.b16 %v6239
        %v6506 = vunpack.c.h.b16 %v6239
        %v6507 = vunpack.c.l.b16 %v6240
        %v6508 = vunpack.c.h.b16 %v6240
        %v6509 = vunpack.c.l.b16 %v6241
        %v6510 = vunpack.c.h.b16 %v6241
        %v6511 = vunpack.c.l.b16 %v6242
        %v6512 = vunpack.c.h.b16 %v6242
        %v6513 = vunpack.c.l.b16 %v6243
        %v6514 = vunpack.c.h.b16 %v6243
        %v6515 = vunpack.c.l.b16 %v6244
        %v6516 = vunpack.c.h.b16 %v6244
        %v6517 = vunpack.c.l.b16 %v6245
        %v6518 = vunpack.c.h.b16 %v6245
        %v6519 = vunpack.c.l.b16 %v6246
        %v6520 = vunpack.c.h.b16 %v6246
        %v6521 = vunpack.c.l.b16 %v6247
        %v6522 = vunpack.c.h.b16 %v6247
        %v6523 = vunpack.c.l.b16 %v6248
        %v6524 = vunpack.c.h.b16 %v6248
        %v6525 = vunpack.c.l.b16 %v6249
        %v6526 = vunpack.c.h.b16 %v6249
        %v6527 = vunpack.c.l.b16 %v6250
        %v6528 = vunpack.c.h.b16 %v6250
        %v6529 = vunpack.c.l.b16 %v6251
        %v6530 = vunpack.c.h.b16 %v6251
        %v6531 = vunpack.c.l.b16 %v6252
        %v6532 = vunpack.c.h.b16 %v6252
        %v6533 = vunpack.c.l.b16 %v6253
        %v6534 = vunpack.c.h.b16 %v6253
        %v6535 = vunpack.c.l.b16 %v6254
        %v6536 = vunpack.c.h.b16 %v6254
        %v6537 = vunpack.c.l.b16 %v6255
        %v6538 = vunpack.c.h.b16 %v6255
        %v6539 = vunpack.c.l.b16 %v6256
        %v6540 = vunpack.c.h.b16 %v6256
        %v6541 = vunpack.c.l.b16 %v6257
        %v6542 = vunpack.c.h.b16 %v6257
        %v6543 = vunpack.c.l.b16 %v6258
        %v6544 = vunpack.c.h.b16 %v6258
        %v6545 = vunpack.c.l.b16 %v6259
        %v6546 = vunpack.c.h.b16 %v6259
        %v6547 = vunpack.c.l.b16 %v6260
        %v6548 = vunpack.c.h.b16 %v6260
        %v6549 = vunpack.c.l.b16 %v6261
        %v6550 = vunpack.c.h.b16 %v6261
        %v6551 = vunpack.c.l.b16 %v6262
        %v6552 = vunpack.c.h.b16 %v6262
        %v6553 = vunpack.c.l.b16 %v6263
        %v6554 = vunpack.c.h.b16 %v6263
        %v6555 = vunpack.c.l.b16 %v6264
        %v6556 = vunpack.c.h.b16 %v6264
        %v6557 = vunpack.c.l.b16 %v6265
        %v6558 = vunpack.c.h.b16 %v6265
        %v6559 = vunpack.c.l.b16 %v6266
        %v6560 = vunpack.c.h.b16 %v6266
        %v6561 = vunpack.c.l.b16 %v6267
        %v6562 = vunpack.c.h.b16 %v6267
        %v6563 = vunpack.c.l.b16 %v6268
        %v6564 = vunpack.c.h.b16 %v6268
        %v6565 = vunpack.c.l.b16 %v6269
        %v6566 = vunpack.c.h.b16 %v6269
        %v6567 = vunpack.c.l.b16 %v6270
        %v6568 = vunpack.c.h.b16 %v6270
        %v6569 = vunpack.c.l.b16 %v6271
        %v6570 = vunpack.c.h.b16 %v6271
        %v6571 = vunpack.c.l.b16 %v6272
        %v6572 = vunpack.c.h.b16 %v6272
        %v6573 = vunpack.c.l.b16 %v6273
        %v6574 = vunpack.c.h.b16 %v6273
        %v6575 = vunpack.c.l.b16 %v6274
        %v6576 = vunpack.c.h.b16 %v6274
        %v6577 = vunpack.c.l.b16 %v6275
        %v6578 = vunpack.c.h.b16 %v6275
        %v6579 = vunpack.c.l.b16 %v6276
        %v6580 = vunpack.c.h.b16 %v6276
        %v6581 = vunpack.c.l.b16 %v6277
        %v6582 = vunpack.c.h.b16 %v6277
        %v6583 = vunpack.c.l.b16 %v6278
        %v6584 = vunpack.c.h.b16 %v6278
        %v6585 = vunpack.c.l.b16 %v6279
        %v6586 = vunpack.c.h.b16 %v6279
        %v6587 = vunpack.c.l.b16 %v6280
        %v6588 = vunpack.c.h.b16 %v6280
        %v6589 = vunpack.c.l.b16 %v6281
        %v6590 = vunpack.c.h.b16 %v6281
        %v6591 = vunpack.c.l.b16 %v6282
        %v6592 = vunpack.c.h.b16 %v6282
        %v6593 = vunpack.c.l.b16 %v6283
        %v6594 = vunpack.c.h.b16 %v6283
        %v6595 = vunpack.c.l.b16 %v6284
        %v6596 = vunpack.c.h.b16 %v6284
        %v6597 = vunpack.c.l.b16 %v6285
        %v6598 = vunpack.c.h.b16 %v6285
        %v6599 = vunpack.c.l.b16 %v6286
        %v6600 = vunpack.c.h.b16 %v6286
        %v6601 = vunpack.c.l.b16 %v6287
        %v6602 = vunpack.c.h.b16 %v6287
        %v6603 = vunpack.c.l.b16 %v6288
        %v6604 = vunpack.c.h.b16 %v6288
        %v6605 = vunpack.c.l.b16 %v6289
        %v6606 = vunpack.c.h.b16 %v6289
        %v6607 = vunpack.c.l.b16 %v6290
        %v6608 = vunpack.c.h.b16 %v6290
        %v6609 = vunpack.c.l.b16 %v6291
        %v6610 = vunpack.c.h.b16 %v6291
        %v6611 = vunpack.c.l.b16 %v6292
        %v6612 = vunpack.c.h.b16 %v6292
        %v6613 = vunpack.c.l.b16 %v6293
        %v6614 = vunpack.c.h.b16 %v6293
        %v6615 = vunpack.c.l.b16 %v6294
        %v6616 = vunpack.c.h.b16 %v6294
        %v6617 = vunpack.c.l.b16 %v6295
        %v6618 = vunpack.c.h.b16 %v6295
        %v6619 = vunpack.c.l.b16 %v6296
        %v6620 = vunpack.c.h.b16 %v6296
        %v6621 = vunpack.c.l.b16 %v6297
        %v6622 = vunpack.c.h.b16 %v6297
        %v6623 = vunpack.c.l.b16 %v6298
        %v6624 = vunpack.c.h.b16 %v6298
        %v6625 = vunpack.c.l.b16 %v6299
        %v6626 = vunpack.c.h.b16 %v6299
        %v6627 = vunpack.c.l.b16 %v6300
        %v6628 = vunpack.c.h.b16 %v6300
        %v6629 = vunpack.c.l.b16 %v6301
        %v6630 = vunpack.c.h.b16 %v6301
        %v6631 = vunpack.c.l.b16 %v6302
        %v6632 = vunpack.c.h.b16 %v6302
        %v6633 = vunpack.c.l.b16 %v6303
        %v6634 = vunpack.c.h.b16 %v6303
        %v6635 = vunpack.c.l.b16 %v6304
        %v6636 = vunpack.c.h.b16 %v6304
        %v6637 = vunpack.c.l.b16 %v6305
        %v6638 = vunpack.c.h.b16 %v6305
        %v6639 = vunpack.c.l.b16 %v6306
        %v6640 = vunpack.c.h.b16 %v6306
        %v6641 = vunpack.c.l.b16 %v6307
        %v6642 = vunpack.c.h.b16 %v6307
        %v6643 = vunpack.c.l.b16 %v6308
        %v6644 = vunpack.c.h.b16 %v6308
        %v6645 = vunpack.c.l.b16 %v6309
        %v6646 = vunpack.c.h.b16 %v6309
        %v6647 = vunpack.c.l.b16 %v6310
        %v6648 = vunpack.c.h.b16 %v6310
        %v6649 = vunpack.c.l.b16 %v6311
        %v6650 = vunpack.c.h.b16 %v6311
        %v6651 = vunpack.c.l.b16 %v6312
        %v6652 = vunpack.c.h.b16 %v6312
        %v6653 = vunpack.c.l.b16 %v6313
        %v6654 = vunpack.c.h.b16 %v6313
        %v6655 = vunpack.c.l.b16 %v6314
        %v6656 = vunpack.c.h.b16 %v6314
        %v6657 = vunpack.c.l.b16 %v6315
        %v6658 = vunpack.c.h.b16 %v6315
        %v6659 = vunpack.c.l.b16 %v6316
        %v6660 = vunpack.c.h.b16 %v6316
        %v6661 = vunpack.c.l.b16 %v6317
        %v6662 = vunpack.c.h.b16 %v6317
        %v6663 = vunpack.c.l.b16 %v6318
        %v6664 = vunpack.c.h.b16 %v6318
        %v6665 = vunpack.c.l.b16 %v6319
        %v6666 = vunpack.c.h.b16 %v6319
        %v6667 = vunpack.c.l.b16 %v6320
        %v6668 = vunpack.c.h.b16 %v6320
        %v6669 = vunpack.c.l.b16 %v6321
        %v6670 = vunpack.c.h.b16 %v6321
        %v6671 = vunpack.c.l.b16 %v6322
        %v6672 = vunpack.c.h.b16 %v6322
        %v6673 = vunpack.c.l.b16 %v6323
        %v6674 = vunpack.c.h.b16 %v6323
        %v6675 = vunpack.c.l.b16 %v6324
        %v6676 = vunpack.c.h.b16 %v6324
        %v6677 = vunpack.c.l.b16 %v6325
        %v6678 = vunpack.c.h.b16 %v6325
        %v6679 = vunpack.c.l.b16 %v6326
        %v6680 = vunpack.c.h.b16 %v6326
        %v6681 = vunpack.c.l.b16 %v6327
        %v6682 = vunpack.c.h.b16 %v6327
        %v6683 = vunpack.c.l.b16 %v6328
        %v6684 = vunpack.c.h.b16 %v6328
        %v6685 = vunpack.c.l.b16 %v6329
        %v6686 = vunpack.c.h.b16 %v6329
        %v6687 = vunpack.c.l.b16 %v6330
        %v6688 = vunpack.c.h.b16 %v6330
        %v6689 = vunpack.c.l.b16 %v6331
        %v6690 = vunpack.c.h.b16 %v6331
        %v6691 = vunpack.c.l.b16 %v6332
        %v6692 = vunpack.c.h.b16 %v6332
        %v6693 = vunpack.c.l.b16 %v6333
        %v6694 = vunpack.c.h.b16 %v6333
        %v6695 = vunpack.c.l.b16 %v6334
        %v6696 = vunpack.c.h.b16 %v6334
        %v6697 = vunpack.c.l.b16 %v6335
        %v6698 = vunpack.c.h.b16 %v6335
        %v6699 = vunpack.c.l.b16 %v6336
        %v6700 = vunpack.c.h.b16 %v6336
        %v6701 = vunpack.c.l.b16 %v6337
        %v6702 = vunpack.c.h.b16 %v6337
        %v6703 = vunpack.c.l.b16 %v6338
        %v6704 = vunpack.c.h.b16 %v6338
        %v6705 = vunpack.c.l.b16 %v6339
        %v6706 = vunpack.c.h.b16 %v6339
        %v6707 = vunpack.c.l.b16 %v6340
        %v6708 = vunpack.c.h.b16 %v6340
        %v6709 = vunpack.c.l.b16 %v6341
        %v6710 = vunpack.c.h.b16 %v6341
        %v6711 = vunpack.c.l.b16 %v6342
        %v6712 = vunpack.c.h.b16 %v6342
        %v6713 = vunpack.c.l.b16 %v6343
        %v6714 = vunpack.c.h.b16 %v6343
        %v6715 = vunpack.c.l.b16 %v6344
        %v6716 = vunpack.c.h.b16 %v6344
        %v6717 = vunpack.c.l.b16 %v6345
        %v6718 = vunpack.c.h.b16 %v6345
        %v6719 = vunpack.c.l.b16 %v6346
        %v6720 = vunpack.c.h.b16 %v6346
        %v6721 = vunpack.c.l.b16 %v6347
        %v6722 = vunpack.c.h.b16 %v6347
        %v6723 = vunpack.c.l.b16 %v6348
        %v6724 = vunpack.c.h.b16 %v6348
        %v6725 = vunpack.c.l.b16 %v6349
        %v6726 = vunpack.c.h.b16 %v6349
        %v6727 = vunpack.c.l.b16 %v6350
        %v6728 = vunpack.c.h.b16 %v6350
        %v6729 = vunpack.c.l.b16 %v6351
        %v6730 = vunpack.c.h.b16 %v6351
        %v6731 = vunpack.c.l.b16 %v6352
        %v6732 = vunpack.c.h.b16 %v6352
        %v6733 = vunpack.c.l.b16 %v6353
        %v6734 = vunpack.c.h.b16 %v6353
        %v6735 = vunpack.c.l.b16 %v6354
        %v6736 = vunpack.c.h.b16 %v6354
        %v6737 = vunpack.c.l.b16 %v6355
        %v6738 = vunpack.c.h.b16 %v6355
        %v6739 = vunpack.c.l.b16 %v6356
        %v6740 = vunpack.c.h.b16 %v6356
        %v6741 = vpack.c.b16 %v6487, %v6485
        %v6742 = vpack.c.b16 %v6488, %v6486
        %v6743 = vpack.c.b16 %v6491, %v6489
        %v6744 = vpack.c.b16 %v6492, %v6490
        %v6745 = vpack.c.b16 %v6495, %v6493
        %v6746 = vpack.c.b16 %v6496, %v6494
        %v6747 = vpack.c.b16 %v6499, %v6497
        %v6748 = vpack.c.b16 %v6500, %v6498
        %v6749 = vpack.c.b16 %v6503, %v6501
        %v6750 = vpack.c.b16 %v6504, %v6502
        %v6751 = vpack.c.b16 %v6507, %v6505
        %v6752 = vpack.c.b16 %v6508, %v6506
        %v6753 = vpack.c.b16 %v6511, %v6509
        %v6754 = vpack.c.b16 %v6512, %v6510
        %v6755 = vpack.c.b16 %v6515, %v6513
        %v6756 = vpack.c.b16 %v6516, %v6514
        %v6757 = vpack.c.b16 %v6519, %v6517
        %v6758 = vpack.c.b16 %v6520, %v6518
        %v6759 = vpack.c.b16 %v6523, %v6521
        %v6760 = vpack.c.b16 %v6524, %v6522
        %v6761 = vpack.c.b16 %v6527, %v6525
        %v6762 = vpack.c.b16 %v6528, %v6526
        %v6763 = vpack.c.b16 %v6531, %v6529
        %v6764 = vpack.c.b16 %v6532, %v6530
        %v6765 = vpack.c.b16 %v6535, %v6533
        %v6766 = vpack.c.b16 %v6536, %v6534
        %v6767 = vpack.c.b16 %v6539, %v6537
        %v6768 = vpack.c.b16 %v6540, %v6538
        %v6769 = vpack.c.b16 %v6543, %v6541
        %v6770 = vpack.c.b16 %v6544, %v6542
        %v6771 = vpack.c.b16 %v6547, %v6545
        %v6772 = vpack.c.b16 %v6548, %v6546
        %v6773 = vpack.c.b16 %v6551, %v6549
        %v6774 = vpack.c.b16 %v6552, %v6550
        %v6775 = vpack.c.b16 %v6555, %v6553
        %v6776 = vpack.c.b16 %v6556, %v6554
        %v6777 = vpack.c.b16 %v6559, %v6557
        %v6778 = vpack.c.b16 %v6560, %v6558
        %v6779 = vpack.c.b16 %v6563, %v6561
        %v6780 = vpack.c.b16 %v6564, %v6562
        %v6781 = vpack.c.b16 %v6567, %v6565
        %v6782 = vpack.c.b16 %v6568, %v6566
        %v6783 = vpack.c.b16 %v6571, %v6569
        %v6784 = vpack.c.b16 %v6572, %v6570
        %v6785 = vpack.c.b16 %v6575, %v6573
        %v6786 = vpack.c.b16 %v6576, %v6574
        %v6787 = vpack.c.b16 %v6579, %v6577
        %v6788 = vpack.c.b16 %v6580, %v6578
        %v6789 = vpack.c.b16 %v6583, %v6581
        %v6790 = vpack.c.b16 %v6584, %v6582
        %v6791 = vpack.c.b16 %v6587, %v6585
        %v6792 = vpack.c.b16 %v6588, %v6586
        %v6793 = vpack.c.b16 %v6591, %v6589
        %v6794 = vpack.c.b16 %v6592, %v6590
        %v6795 = vpack.c.b16 %v6595, %v6593
        %v6796 = vpack.c.b16 %v6596, %v6594
        %v6797 = vpack.c.b16 %v6599, %v6597
        %v6798 = vpack.c.b16 %v6600, %v6598
        %v6799 = vpack.c.b16 %v6603, %v6601
        %v6800 = vpack.c.b16 %v6604, %v6602
        %v6801 = vpack.c.b16 %v6607, %v6605
        %v6802 = vpack.c.b16 %v6608, %v6606
        %v6803 = vpack.c.b16 %v6611, %v6609
        %v6804 = vpack.c.b16 %v6612, %v6610
        %v6805 = vpack.c.b16 %v6615, %v6613
        %v6806 = vpack.c.b16 %v6616, %v6614
        %v6807 = vpack.c.b16 %v6619, %v6617
        %v6808 = vpack.c.b16 %v6620, %v6618
        %v6809 = vpack.c.b16 %v6623, %v6621
        %v6810 = vpack.c.b16 %v6624, %v6622
        %v6811 = vpack.c.b16 %v6627, %v6625
        %v6812 = vpack.c.b16 %v6628, %v6626
        %v6813 = vpack.c.b16 %v6631, %v6629
        %v6814 = vpack.c.b16 %v6632, %v6630
        %v6815 = vpack.c.b16 %v6635, %v6633
        %v6816 = vpack.c.b16 %v6636, %v6634
        %v6817 = vpack.c.b16 %v6639, %v6637
        %v6818 = vpack.c.b16 %v6640, %v6638
        %v6819 = vpack.c.b16 %v6643, %v6641
        %v6820 = vpack.c.b16 %v6644, %v6642
        %v6821 = vpack.c.b16 %v6647, %v6645
        %v6822 = vpack.c.b16 %v6648, %v6646
        %v6823 = vpack.c.b16 %v6651, %v6649
        %v6824 = vpack.c.b16 %v6652, %v6650
        %v6825 = vpack.c.b16 %v6655, %v6653
        %v6826 = vpack.c.b16 %v6656, %v6654
        %v6827 = vpack.c.b16 %v6659, %v6657
        %v6828 = vpack.c.b16 %v6660, %v6658
        %v6829 = vpack.c.b16 %v6663, %v6661
        %v6830 = vpack.c.b16 %v6664, %v6662
        %v6831 = vpack.c.b16 %v6667, %v6665
        %v6832 = vpack.c.b16 %v6668, %v6666
        %v6833 = vpack.c.b16 %v6671, %v6669
        %v6834 = vpack.c.b16 %v6672, %v6670
        %v6835 = vpack.c.b16 %v6675, %v6673
        %v6836 = vpack.c.b16 %v6676, %v6674
        %v6837 = vpack.c.b16 %v6679, %v6677
        %v6838 = vpack.c.b16 %v6680, %v6678
        %v6839 = vpack.c.b16 %v6683, %v6681
        %v6840 = vpack.c.b16 %v6684, %v6682
        %v6841 = vpack.c.b16 %v6687, %v6685
        %v6842 = vpack.c.b16 %v6688, %v6686
        %v6843 = vpack.c.b16 %v6691, %v6689
        %v6844 = vpack.c.b16 %v6692, %v6690
        %v6845 = vpack.c.b16 %v6695, %v6693
        %v6846 = vpack.c.b16 %v6696, %v6694
        %v6847 = vpack.c.b16 %v6699, %v6697
        %v6848 = vpack.c.b16 %v6700, %v6698
        %v6849 = vpack.c.b16 %v6703, %v6701
        %v6850 = vpack.c.b16 %v6704, %v6702
        %v6851 = vpack.c.b16 %v6707, %v6705
        %v6852 = vpack.c.b16 %v6708, %v6706
        %v6853 = vpack.c.b16 %v6711, %v6709
        %v6854 = vpack.c.b16 %v6712, %v6710
        %v6855 = vpack.c.b16 %v6715, %v6713
        %v6856 = vpack.c.b16 %v6716, %v6714
        %v6857 = vpack.c.b16 %v6719, %v6717
        %v6858 = vpack.c.b16 %v6720, %v6718
        %v6859 = vpack.c.b16 %v6723, %v6721
        %v6860 = vpack.c.b16 %v6724, %v6722
        %v6861 = vpack.c.b16 %v6727, %v6725
        %v6862 = vpack.c.b16 %v6728, %v6726
        %v6863 = vpack.c.b16 %v6731, %v6729
        %v6864 = vpack.c.b16 %v6732, %v6730
        %v6865 = vpack.c.b16 %v6735, %v6733
        %v6866 = vpack.c.b16 %v6736, %v6734
        %v6867 = vpack.c.b16 %v6739, %v6737
        %v6868 = vpack.c.b16 %v6740, %v6738
        %6997 = vmatprep.subr.bf16.mxu0 %v6742
        %6998 = vmatpush1.bf16.msra.mxu0 %v6741
        %6999 = vmatprep.subr.bf16.mxu0 %v6744
        %7000 = vmatpush1.bf16.msra.mxu0 %v6743
        %7001 = vmatprep.subr.bf16.mxu0 %v6746
        %7002 = vmatpush1.bf16.msra.mxu0 %v6745
        %7003 = vmatprep.subr.bf16.mxu0 %v6748
        %7004 = vmatpush1.bf16.msra.mxu0 %v6747
        %7005 = vmatprep.subr.bf16.mxu0 %v6750
        %7006 = vmatpush1.bf16.msra.mxu0 %v6749
        %7007 = vmatprep.subr.bf16.mxu0 %v6752
        %7008 = vmatpush1.bf16.msra.mxu0 %v6751
        %7009 = vmatprep.subr.bf16.mxu0 %v6754
        %7010 = vmatpush1.bf16.msra.mxu0 %v6753
        %7011 = vmatprep.subr.bf16.mxu0 %v6756
        %7012 = vmatpush1.bf16.msra.mxu0 %v6755
        %7013 = vmatprep.subr.bf16.mxu0 %v6758
        %7014 = vmatpush1.bf16.msra.mxu0 %v6757
        %7015 = vmatprep.subr.bf16.mxu0 %v6760
        %7016 = vmatpush1.bf16.msra.mxu0 %v6759
        %7017 = vmatprep.subr.bf16.mxu0 %v6762
        %7018 = vmatpush1.bf16.msra.mxu0 %v6761
        %7019 = vmatprep.subr.bf16.mxu0 %v6764
        %7020 = vmatpush1.bf16.msra.mxu0 %v6763
        %7021 = vmatprep.subr.bf16.mxu0 %v6766
        %7022 = vmatpush1.bf16.msra.mxu0 %v6765
        %7023 = vmatprep.subr.bf16.mxu0 %v6768
        %7024 = vmatpush1.bf16.msra.mxu0 %v6767
        %7025 = vmatprep.subr.bf16.mxu0 %v6770
        %7026 = vmatpush1.bf16.msra.mxu0 %v6769
        %7027 = vmatprep.subr.bf16.mxu0 %v6772
        %7028 = vmatpush1.bf16.msra.mxu0 %v6771
        %7029 = vmatprep.mubr.bf16.mxu0 %v6221
        %7030 = vmatmul.mubr.bf16.gmra.mrb[0].mxu0 %v6220
        %v7031 = vpop.f32.mrb[0].mxu0
        %v7032 = vadd.f32 0.0, %v7031
        %v7033 = vpop.f32.mrb[0].mxu0
        %v7034 = vadd.f32 0.0, %v7033
        %v7035 = vpop.f32.mrb[0].mxu0
        %v7036 = vpop.f32.mrb[0].mxu0
        %7037 = vdwg.mxu0
        %7038 = vmatprep.subr.bf16.mxu0 %v6774
        %7039 = vmatpush1.bf16.msra.mxu0 %v6773
        %7040 = vmatprep.subr.bf16.mxu0 %v6776
        %7041 = vmatpush1.bf16.msra.mxu0 %v6775
        %7042 = vmatprep.subr.bf16.mxu0 %v6778
        %7043 = vmatpush1.bf16.msra.mxu0 %v6777
        %7044 = vmatprep.subr.bf16.mxu0 %v6780
        %7045 = vmatpush1.bf16.msra.mxu0 %v6779
        %7046 = vmatprep.subr.bf16.mxu0 %v6782
        %7047 = vmatpush1.bf16.msra.mxu0 %v6781
        %7048 = vmatprep.subr.bf16.mxu0 %v6784
        %7049 = vmatpush1.bf16.msra.mxu0 %v6783
        %7050 = vmatprep.subr.bf16.mxu0 %v6786
        %7051 = vmatpush1.bf16.msra.mxu0 %v6785
        %7052 = vmatprep.subr.bf16.mxu0 %v6788
        %7053 = vmatpush1.bf16.msra.mxu0 %v6787
        %7054 = vmatprep.subr.bf16.mxu0 %v6790
        %7055 = vmatpush1.bf16.msra.mxu0 %v6789
        %7056 = vmatprep.subr.bf16.mxu0 %v6792
        %7057 = vmatpush1.bf16.msra.mxu0 %v6791
        %7058 = vmatprep.subr.bf16.mxu0 %v6794
        %7059 = vmatpush1.bf16.msra.mxu0 %v6793
        %7060 = vmatprep.subr.bf16.mxu0 %v6796
        %7061 = vmatpush1.bf16.msra.mxu0 %v6795
        %7062 = vmatprep.subr.bf16.mxu0 %v6798
        %7063 = vmatpush1.bf16.msra.mxu0 %v6797
        %7064 = vmatprep.subr.bf16.mxu0 %v6800
        %7065 = vmatpush1.bf16.msra.mxu0 %v6799
        %7066 = vmatprep.subr.bf16.mxu0 %v6802
        %7067 = vmatpush1.bf16.msra.mxu0 %v6801
        %7068 = vmatprep.subr.bf16.mxu0 %v6804
        %7069 = vmatpush1.bf16.msra.mxu0 %v6803
        %7070 = vmatprep.mubr.bf16.mxu0 %v6223
        %7071 = vmatmul.mubr.bf16.gmra.mrb[0].mxu0 %v6222
        %v7072 = vpop.f32.mrb[0].mxu0
        %v7073 = vadd.f32 %v7032, %v7072
        %v7074 = vpop.f32.mrb[0].mxu0
        %v7075 = vadd.f32 %v7034, %v7074
        %v7076 = vpop.f32.mrb[0].mxu0
        %v7077 = vpop.f32.mrb[0].mxu0
        %7078 = vdwg.mxu0
        %7079 = vmatprep.subr.bf16.mxu0 %v6806
        %7080 = vmatpush1.bf16.msra.mxu0 %v6805
        %7081 = vmatprep.subr.bf16.mxu0 %v6808
        %7082 = vmatpush1.bf16.msra.mxu0 %v6807
        %7083 = vmatprep.subr.bf16.mxu0 %v6810
        %7084 = vmatpush1.bf16.msra.mxu0 %v6809
        %7085 = vmatprep.subr.bf16.mxu0 %v6812
        %7086 = vmatpush1.bf16.msra.mxu0 %v6811
        %7087 = vmatprep.subr.bf16.mxu0 %v6814
        %7088 = vmatpush1.bf16.msra.mxu0 %v6813
        %7089 = vmatprep.subr.bf16.mxu0 %v6816
        %7090 = vmatpush1.bf16.msra.mxu0 %v6815
        %7091 = vmatprep.subr.bf16.mxu0 %v6818
        %7092 = vmatpush1.bf16.msra.mxu0 %v6817
        %7093 = vmatprep.subr.bf16.mxu0 %v6820
        %7094 = vmatpush1.bf16.msra.mxu0 %v6819
        %7095 = vmatprep.subr.bf16.mxu0 %v6822
        %7096 = vmatpush1.bf16.msra.mxu0 %v6821
        %7097 = vmatprep.subr.bf16.mxu0 %v6824
        %7098 = vmatpush1.bf16.msra.mxu0 %v6823
        %7099 = vmatprep.subr.bf16.mxu0 %v6826
        %7100 = vmatpush1.bf16.msra.mxu0 %v6825
        %7101 = vmatprep.subr.bf16.mxu0 %v6828
        %7102 = vmatpush1.bf16.msra.mxu0 %v6827
        %7103 = vmatprep.subr.bf16.mxu0 %v6830
        %7104 = vmatpush1.bf16.msra.mxu0 %v6829
        %7105 = vmatprep.subr.bf16.mxu0 %v6832
        %7106 = vmatpush1.bf16.msra.mxu0 %v6831
        %7107 = vmatprep.subr.bf16.mxu0 %v6834
        %7108 = vmatpush1.bf16.msra.mxu0 %v6833
        %7109 = vmatprep.subr.bf16.mxu0 %v6836
        %7110 = vmatpush1.bf16.msra.mxu0 %v6835
        %7111 = vmatprep.mubr.bf16.mxu0 %v6225
        %7112 = vmatmul.mubr.bf16.gmra.mrb[0].mxu0 %v6224
        %v7113 = vpop.f32.mrb[0].mxu0
        %v7114 = vadd.f32 %v7073, %v7113
        %v7115 = vpop.f32.mrb[0].mxu0
        %v7116 = vadd.f32 %v7075, %v7115
        %v7117 = vpop.f32.mrb[0].mxu0
        %v7118 = vpop.f32.mrb[0].mxu0
        %7119 = vdwg.mxu0
        %7120 = vmatprep.subr.bf16.mxu0 %v6838
        %7121 = vmatpush1.bf16.msra.mxu0 %v6837
        %7122 = vmatprep.subr.bf16.mxu0 %v6840
        %7123 = vmatpush1.bf16.msra.mxu0 %v6839
        %7124 = vmatprep.subr.bf16.mxu0 %v6842
        %7125 = vmatpush1.bf16.msra.mxu0 %v6841
        %7126 = vmatprep.subr.bf16.mxu0 %v6844
        %7127 = vmatpush1.bf16.msra.mxu0 %v6843
        %7128 = vmatprep.subr.bf16.mxu0 %v6846
        %7129 = vmatpush1.bf16.msra.mxu0 %v6845
        %7130 = vmatprep.subr.bf16.mxu0 %v6848
        %7131 = vmatpush1.bf16.msra.mxu0 %v6847
        %7132 = vmatprep.subr.bf16.mxu0 %v6850
        %7133 = vmatpush1.bf16.msra.mxu0 %v6849
        %7134 = vmatprep.subr.bf16.mxu0 %v6852
        %7135 = vmatpush1.bf16.msra.mxu0 %v6851
        %7136 = vmatprep.subr.bf16.mxu0 %v6854
        %7137 = vmatpush1.bf16.msra.mxu0 %v6853
        %7138 = vmatprep.subr.bf16.mxu0 %v6856
        %7139 = vmatpush1.bf16.msra.mxu0 %v6855
        %7140 = vmatprep.subr.bf16.mxu0 %v6858
        %7141 = vmatpush1.bf16.msra.mxu0 %v6857
        %7142 = vmatprep.subr.bf16.mxu0 %v6860
        %7143 = vmatpush1.bf16.msra.mxu0 %v6859
        %7144 = vmatprep.subr.bf16.mxu0 %v6862
        %7145 = vmatpush1.bf16.msra.mxu0 %v6861
        %7146 = vmatprep.subr.bf16.mxu0 %v6864
        %7147 = vmatpush1.bf16.msra.mxu0 %v6863
        %7148 = vmatprep.subr.bf16.mxu0 %v6866
        %7149 = vmatpush1.bf16.msra.mxu0 %v6865
        %7150 = vmatprep.subr.bf16.mxu0 %v6868
        %7151 = vmatpush1.bf16.msra.mxu0 %v6867
        %7152 = vmatprep.mubr.bf16.mxu0 %v6227
        %7153 = vmatmul.mubr.bf16.gmra.mrb[0].mxu0 %v6226
        %v7154 = vpop.f32.mrb[0].mxu0
        %v7155 = vadd.f32 %v7114, %v7154
        %v7156 = vpop.f32.mrb[0].mxu0
        %v7157 = vadd.f32 %v7116, %v7156
        %v7158 = vpop.f32.mrb[0].mxu0
        %v7159 = vpop.f32.mrb[0].mxu0
        %7160 = vdwg.mxu0
        %v7161 = vadd.f32 %v5122, %v7155
        %v7162 = vadd.f32 %v5123, %v7157
        %s7163 = scalar_lea.vmem %s12, 2
        %v7164 = vld [vmem:[%s7163] sm:$0x3]
        %v7166 = vlaneseq
        %v7167 = vshrl.u32 %v7166, 7
        %v7168 = vsub.s32 0, %v7167
        %v7169 = vrot.slane %v7164, %v7168
        %v7170 = vlaneseq
        %v7171 = vshrl.u32 %v7170, 7
        %v7172 = vsub.s32 1, %v7171
        %v7173 = vrot.slane %v7164, %v7172
        %v7176 = vadd.f32 %v7161, %v7169
        %v7177 = vadd.f32 %v7162, %v7173
        %v7178 = vld [vmem:[%s13] sm:$0x3]
        %v7179 = vld [vmem:[%s14] sm:$0x3]
        %v7180 = vadd.f32 %v7176, %v7177
        %7181 = vadd.xlane.f32.xlu0 %v7180
        %v7182 = vpop.xlane.xlu0 %7181
        %v7183 = vmul.f32 %v7182, %v608
        %v7184 = vsub.f32 %v7176, %v7183
        %v7185 = vsub.f32 %v7177, %v7183
        %v7186 = vmul.f32 %v7184, %v7184
        %v7187 = vmul.f32 %v7185, %v7185
        %v7188 = vadd.f32 %v7186, %v7187
        %7189 = vadd.xlane.f32.xlu0 %v7188
        %v7190 = vpop.xlane.xlu0 %7189
        %v7191 = vmul.f32 %v7190, %v608
        %v7192 = vadd.f32 %v7191, 1e-05
        %v7193 = vrsqrt.pop %v7192
        %v7194 = vmul.f32 %v7184, %v7193
        %v7195 = vmul.f32 %v7185, %v7193
        %v7197 = vlaneseq
        %v7198 = vshrl.u32 %v7197, 7
        %v7199 = vsub.s32 0, %v7198
        %v7200 = vrot.slane %v7178, %v7199
        %v7201 = vlaneseq
        %v7202 = vshrl.u32 %v7201, 7
        %v7203 = vsub.s32 1, %v7202
        %v7204 = vrot.slane %v7178, %v7203
        %v7207 = vmul.f32 %v7194, %v7200
        %v7208 = vmul.f32 %v7195, %v7204
        %v7210 = vlaneseq
        %v7211 = vshrl.u32 %v7210, 7
        %v7212 = vsub.s32 0, %v7211
        %v7213 = vrot.slane %v7179, %v7212
        %v7214 = vlaneseq
        %v7215 = vshrl.u32 %v7214, 7
        %v7216 = vsub.s32 1, %v7215
        %v7217 = vrot.slane %v7179, %v7216
        %v7220 = vadd.f32 %v7207, %v7213
        %v7221 = vadd.f32 %v7208, %v7217
        %v7222 = vpack.c.bf16 %v7220, %v7220
        %v7223 = vpack.c.bf16 %v7221, %v7221
        %v7224 = vld [vmem:[#allocation10] sm:$0xff]
        %v7225 = vld [vmem:[#allocation10 + $0x8] sm:$0xf]
        %v7226 = vld [vmem:[#allocation10 + $0xc] sm:$0xff]
        %v7227 = vld [vmem:[#allocation10 + $0x14] sm:$0xf]
        %v7228 = vld [vmem:[#allocation10 + $0x18] sm:$0xff]
        %v7229 = vld [vmem:[#allocation10 + $0x20] sm:$0xf]
        %v7230 = vld [vmem:[#allocation10 + $0x24] sm:$0xff]
        %v7231 = vld [vmem:[#allocation10 + $0x2c] sm:$0xf]
        %v7232 = vld [vmem:[#allocation10 + $0x30] sm:$0xff]
        %v7233 = vld [vmem:[#allocation10 + $0x38] sm:$0xf]
        %v7234 = vld [vmem:[#allocation10 + $0x3c] sm:$0xff]
        %v7235 = vld [vmem:[#allocation10 + $0x44] sm:$0xf]
        %v7236 = vld [vmem:[#allocation10 + $0x48] sm:$0xff]
        %v7237 = vld [vmem:[#allocation10 + $0x50] sm:$0xf]
        %v7238 = vld [vmem:[#allocation10 + $0x54] sm:$0xff]
        %v7239 = vld [vmem:[#allocation10 + $0x5c] sm:$0xf]
        %v7240 = vld [vmem:[#allocation10 + $0x60] sm:$0xff]
        %v7241 = vld [vmem:[#allocation10 + $0x68] sm:$0xf]
        %v7242 = vld [vmem:[#allocation10 + $0x6c] sm:$0xff]
        %v7243 = vld [vmem:[#allocation10 + $0x74] sm:$0xf]
        %v7244 = vld [vmem:[#allocation10 + $0x78] sm:$0xff]
        %v7245 = vld [vmem:[#allocation10 + $0x80] sm:$0xf]
        %v7246 = vld [vmem:[#allocation10 + $0x84] sm:$0xff]
        %v7247 = vld [vmem:[#allocation10 + $0x8c] sm:$0xf]
        %v7248 = vld [vmem:[#allocation10 + $0x90] sm:$0xff]
        %v7249 = vld [vmem:[#allocation10 + $0x98] sm:$0xf]
        %v7250 = vld [vmem:[#allocation10 + $0x9c] sm:$0xff]
        %v7251 = vld [vmem:[#allocation10 + $0xa4] sm:$0xf]
        %v7252 = vld [vmem:[#allocation10 + $0xa8] sm:$0xff]
        %v7253 = vld [vmem:[#allocation10 + $0xb0] sm:$0xf]
        %v7254 = vld [vmem:[#allocation10 + $0xb4] sm:$0xff]
        %v7255 = vld [vmem:[#allocation10 + $0xbc] sm:$0xf]
        %v7256 = vld [vmem:[#allocation10 + $0xc0] sm:$0xff]
        %v7257 = vld [vmem:[#allocation10 + $0xc8] sm:$0xf]
        %v7258 = vld [vmem:[#allocation10 + $0xcc] sm:$0xff]
        %v7259 = vld [vmem:[#allocation10 + $0xd4] sm:$0xf]
        %v7260 = vld [vmem:[#allocation10 + $0xd8] sm:$0xff]
        %v7261 = vld [vmem:[#allocation10 + $0xe0] sm:$0xf]
        %v7262 = vld [vmem:[#allocation10 + $0xe4] sm:$0xff]
        %v7263 = vld [vmem:[#allocation10 + $0xec] sm:$0xf]
        %v7264 = vld [vmem:[#allocation10 + $0xf0] sm:$0xff]
        %v7265 = vld [vmem:[#allocation10 + $0xf8] sm:$0xf]
        %v7266 = vld [vmem:[#allocation10 + $0xfc] sm:$0xff]
        %v7267 = vld [vmem:[#allocation10 + $0x104] sm:$0xf]
        %v7268 = vld [vmem:[#allocation10 + $0x108] sm:$0xff]
        %v7269 = vld [vmem:[#allocation10 + $0x110] sm:$0xf]
        %v7270 = vld [vmem:[#allocation10 + $0x114] sm:$0xff]
        %v7271 = vld [vmem:[#allocation10 + $0x11c] sm:$0xf]
        %v7272 = vld [vmem:[#allocation10 + $0x120] sm:$0xff]
        %v7273 = vld [vmem:[#allocation10 + $0x128] sm:$0xf]
        %v7274 = vld [vmem:[#allocation10 + $0x12c] sm:$0xff]
        %v7275 = vld [vmem:[#allocation10 + $0x134] sm:$0xf]
        %v7276 = vld [vmem:[#allocation10 + $0x138] sm:$0xff]
        %v7277 = vld [vmem:[#allocation10 + $0x140] sm:$0xf]
        %v7278 = vld [vmem:[#allocation10 + $0x144] sm:$0xff]
        %v7279 = vld [vmem:[#allocation10 + $0x14c] sm:$0xf]
        %v7280 = vld [vmem:[#allocation10 + $0x150] sm:$0xff]
        %v7281 = vld [vmem:[#allocation10 + $0x158] sm:$0xf]
        %v7282 = vld [vmem:[#allocation10 + $0x15c] sm:$0xff]
        %v7283 = vld [vmem:[#allocation10 + $0x164] sm:$0xf]
        %v7284 = vld [vmem:[#allocation10 + $0x168] sm:$0xff]
        %v7285 = vld [vmem:[#allocation10 + $0x170] sm:$0xf]
        %v7286 = vld [vmem:[#allocation10 + $0x174] sm:$0xff]
        %v7287 = vld [vmem:[#allocation10 + $0x17c] sm:$0xf]
        %v7352 = vunpack.c.l.b16 %v7224
        %v7353 = vunpack.c.h.b16 %v7224
        %v7354 = vunpack.c.l.b16 %v7225
        %v7355 = vunpack.c.l.b16 %v7226
        %v7356 = vunpack.c.h.b16 %v7226
        %v7357 = vunpack.c.l.b16 %v7227
        %v7358 = vunpack.c.l.b16 %v7228
        %v7359 = vunpack.c.h.b16 %v7228
        %v7360 = vunpack.c.l.b16 %v7229
        %v7361 = vunpack.c.l.b16 %v7230
        %v7362 = vunpack.c.h.b16 %v7230
        %v7363 = vunpack.c.l.b16 %v7231
        %v7364 = vunpack.c.l.b16 %v7232
        %v7365 = vunpack.c.h.b16 %v7232
        %v7366 = vunpack.c.l.b16 %v7233
        %v7367 = vunpack.c.l.b16 %v7234
        %v7368 = vunpack.c.h.b16 %v7234
        %v7369 = vunpack.c.l.b16 %v7235
        %v7370 = vunpack.c.l.b16 %v7236
        %v7371 = vunpack.c.h.b16 %v7236
        %v7372 = vunpack.c.l.b16 %v7237
        %v7373 = vunpack.c.l.b16 %v7238
        %v7374 = vunpack.c.h.b16 %v7238
        %v7375 = vunpack.c.l.b16 %v7239
        %v7376 = vunpack.c.l.b16 %v7240
        %v7377 = vunpack.c.h.b16 %v7240
        %v7378 = vunpack.c.l.b16 %v7241
        %v7379 = vunpack.c.l.b16 %v7242
        %v7380 = vunpack.c.h.b16 %v7242
        %v7381 = vunpack.c.l.b16 %v7243
        %v7382 = vunpack.c.l.b16 %v7244
        %v7383 = vunpack.c.h.b16 %v7244
        %v7384 = vunpack.c.l.b16 %v7245
        %v7385 = vunpack.c.l.b16 %v7246
        %v7386 = vunpack.c.h.b16 %v7246
        %v7387 = vunpack.c.l.b16 %v7247
        %v7388 = vunpack.c.l.b16 %v7248
        %v7389 = vunpack.c.h.b16 %v7248
        %v7390 = vunpack.c.l.b16 %v7249
        %v7391 = vunpack.c.l.b16 %v7250
        %v7392 = vunpack.c.h.b16 %v7250
        %v7393 = vunpack.c.l.b16 %v7251
        %v7394 = vunpack.c.l.b16 %v7252
        %v7395 = vunpack.c.h.b16 %v7252
        %v7396 = vunpack.c.l.b16 %v7253
        %v7397 = vunpack.c.l.b16 %v7254
        %v7398 = vunpack.c.h.b16 %v7254
        %v7399 = vunpack.c.l.b16 %v7255
        %v7400 = vunpack.c.l.b16 %v7256
        %v7401 = vunpack.c.h.b16 %v7256
        %v7402 = vunpack.c.l.b16 %v7257
        %v7403 = vunpack.c.l.b16 %v7258
        %v7404 = vunpack.c.h.b16 %v7258
        %v7405 = vunpack.c.l.b16 %v7259
        %v7406 = vunpack.c.l.b16 %v7260
        %v7407 = vunpack.c.h.b16 %v7260
        %v7408 = vunpack.c.l.b16 %v7261
        %v7409 = vunpack.c.l.b16 %v7262
        %v7410 = vunpack.c.h.b16 %v7262
        %v7411 = vunpack.c.l.b16 %v7263
        %v7412 = vunpack.c.l.b16 %v7264
        %v7413 = vunpack.c.h.b16 %v7264
        %v7414 = vunpack.c.l.b16 %v7265
        %v7415 = vunpack.c.l.b16 %v7266
        %v7416 = vunpack.c.h.b16 %v7266
        %v7417 = vunpack.c.l.b16 %v7267
        %v7418 = vunpack.c.l.b16 %v7268
        %v7419 = vunpack.c.h.b16 %v7268
        %v7420 = vunpack.c.l.b16 %v7269
        %v7421 = vunpack.c.l.b16 %v7270
        %v7422 = vunpack.c.h.b16 %v7270
        %v7423 = vunpack.c.l.b16 %v7271
        %v7424 = vunpack.c.l.b16 %v7272
        %v7425 = vunpack.c.h.b16 %v7272
        %v7426 = vunpack.c.l.b16 %v7273
        %v7427 = vunpack.c.l.b16 %v7274
        %v7428 = vunpack.c.h.b16 %v7274
        %v7429 = vunpack.c.l.b16 %v7275
        %v7430 = vunpack.c.l.b16 %v7276
        %v7431 = vunpack.c.h.b16 %v7276
        %v7432 = vunpack.c.l.b16 %v7277
        %v7433 = vunpack.c.l.b16 %v7278
        %v7434 = vunpack.c.h.b16 %v7278
        %v7435 = vunpack.c.l.b16 %v7279
        %v7436 = vunpack.c.l.b16 %v7280
        %v7437 = vunpack.c.h.b16 %v7280
        %v7438 = vunpack.c.l.b16 %v7281
        %v7439 = vunpack.c.l.b16 %v7282
        %v7440 = vunpack.c.h.b16 %v7282
        %v7441 = vunpack.c.l.b16 %v7283
        %v7442 = vunpack.c.l.b16 %v7284
        %v7443 = vunpack.c.h.b16 %v7284
        %v7444 = vunpack.c.l.b16 %v7285
        %v7445 = vunpack.c.l.b16 %v7286
        %v7446 = vunpack.c.h.b16 %v7286
        %v7447 = vunpack.c.l.b16 %v7287
        %v7448 = vpack.c.b16 %v7355, %v7352
        %v7449 = vpack.c.b16 %v7356, %v7353
        %v7450 = vpack.c.b16 %v7357, %v7354
        %v7451 = vpack.c.b16 %v7361, %v7358
        %v7452 = vpack.c.b16 %v7362, %v7359
        %v7453 = vpack.c.b16 %v7363, %v7360
        %v7454 = vpack.c.b16 %v7367, %v7364
        %v7455 = vpack.c.b16 %v7368, %v7365
        %v7456 = vpack.c.b16 %v7369, %v7366
        %v7457 = vpack.c.b16 %v7373, %v7370
        %v7458 = vpack.c.b16 %v7374, %v7371
        %v7459 = vpack.c.b16 %v7375, %v7372
        %v7460 = vpack.c.b16 %v7379, %v7376
        %v7461 = vpack.c.b16 %v7380, %v7377
        %v7462 = vpack.c.b16 %v7381, %v7378
        %v7463 = vpack.c.b16 %v7385, %v7382
        %v7464 = vpack.c.b16 %v7386, %v7383
        %v7465 = vpack.c.b16 %v7387, %v7384
        %v7466 = vpack.c.b16 %v7391, %v7388
        %v7467 = vpack.c.b16 %v7392, %v7389
        %v7468 = vpack.c.b16 %v7393, %v7390
        %v7469 = vpack.c.b16 %v7397, %v7394
        %v7470 = vpack.c.b16 %v7398, %v7395
        %v7471 = vpack.c.b16 %v7399, %v7396
        %v7472 = vpack.c.b16 %v7403, %v7400
        %v7473 = vpack.c.b16 %v7404, %v7401
        %v7474 = vpack.c.b16 %v7405, %v7402
        %v7475 = vpack.c.b16 %v7409, %v7406
        %v7476 = vpack.c.b16 %v7410, %v7407
        %v7477 = vpack.c.b16 %v7411, %v7408
        %v7478 = vpack.c.b16 %v7415, %v7412
        %v7479 = vpack.c.b16 %v7416, %v7413
        %v7480 = vpack.c.b16 %v7417, %v7414
        %v7481 = vpack.c.b16 %v7421, %v7418
        %v7482 = vpack.c.b16 %v7422, %v7419
        %v7483 = vpack.c.b16 %v7423, %v7420
        %v7484 = vpack.c.b16 %v7427, %v7424
        %v7485 = vpack.c.b16 %v7428, %v7425
        %v7486 = vpack.c.b16 %v7429, %v7426
        %v7487 = vpack.c.b16 %v7433, %v7430
        %v7488 = vpack.c.b16 %v7434, %v7431
        %v7489 = vpack.c.b16 %v7435, %v7432
        %v7490 = vpack.c.b16 %v7439, %v7436
        %v7491 = vpack.c.b16 %v7440, %v7437
        %v7492 = vpack.c.b16 %v7441, %v7438
        %v7493 = vpack.c.b16 %v7445, %v7442
        %v7494 = vpack.c.b16 %v7446, %v7443
        %v7495 = vpack.c.b16 %v7447, %v7444
        %7544 = vmatprep.subr.bf16.mxu0 %v7449
        %7545 = vmatpush1.bf16.msra.mxu0 %v7448
        %7546 = vmatprep.subr.bf16.mxu0 %v7452
        %7547 = vmatpush1.bf16.msra.mxu0 %v7451
        %7548 = vmatprep.subr.bf16.mxu0 %v7455
        %7549 = vmatpush1.bf16.msra.mxu0 %v7454
        %7550 = vmatprep.subr.bf16.mxu0 %v7458
        %7551 = vmatpush1.bf16.msra.mxu0 %v7457
        %7552 = vmatprep.subr.bf16.mxu0 %v7461
        %7553 = vmatpush1.bf16.msra.mxu0 %v7460
        %7554 = vmatprep.subr.bf16.mxu0 %v7464
        %7555 = vmatpush1.bf16.msra.mxu0 %v7463
        %7556 = vmatprep.subr.bf16.mxu0 %v7467
        %7557 = vmatpush1.bf16.msra.mxu0 %v7466
        %7558 = vmatprep.subr.bf16.mxu0 %v7470
        %7559 = vmatpush1.bf16.msra.mxu0 %v7469
        %7560 = vmatprep.subr.bf16.mxu0 %v7473
        %7561 = vmatpush1.bf16.msra.mxu0 %v7472
        %7562 = vmatprep.subr.bf16.mxu0 %v7476
        %7563 = vmatpush1.bf16.msra.mxu0 %v7475
        %7564 = vmatprep.subr.bf16.mxu0 %v7479
        %7565 = vmatpush1.bf16.msra.mxu0 %v7478
        %7566 = vmatprep.subr.bf16.mxu0 %v7482
        %7567 = vmatpush1.bf16.msra.mxu0 %v7481
        %7568 = vmatprep.subr.bf16.mxu0 %v7485
        %7569 = vmatpush1.bf16.msra.mxu0 %v7484
        %7570 = vmatprep.subr.bf16.mxu0 %v7488
        %7571 = vmatpush1.bf16.msra.mxu0 %v7487
        %7572 = vmatprep.subr.bf16.mxu0 %v7491
        %7573 = vmatpush1.bf16.msra.mxu0 %v7490
        %7574 = vmatprep.subr.bf16.mxu0 %v7494
        %7575 = vmatpush1.bf16.msra.mxu0 %v7493
        %7576 = vmatprep.mubr.bf16.mxu0 %v7223
        %7577 = vmatmul.mubr.bf16.gmra.mrb[0].mxu0 %v7222
        %v7578 = vpop.f32.mrb[0].mxu0
        %v7579 = vadd.f32 0.0, %v7578
        %v7580 = vpop.f32.mrb[0].mxu0
        %v7581 = vadd.f32 0.0, %v7580
        %v7582 = vpop.f32.mrb[0].mxu0
        %v7583 = vpop.f32.mrb[0].mxu0
        %7584 = vdwg.mxu0
        %7585 = vmatprep.subr.bf16.mxu0 0
        %7586 = vmatpush1.bf16.msra.mxu0 %v7450
        %7587 = vmatprep.subr.bf16.mxu0 0
        %7588 = vmatpush1.bf16.msra.mxu0 %v7453
        %7589 = vmatprep.subr.bf16.mxu0 0
        %7590 = vmatpush1.bf16.msra.mxu0 %v7456
        %7591 = vmatprep.subr.bf16.mxu0 0
        %7592 = vmatpush1.bf16.msra.mxu0 %v7459
        %7593 = vmatprep.subr.bf16.mxu0 0
        %7594 = vmatpush1.bf16.msra.mxu0 %v7462
        %7595 = vmatprep.subr.bf16.mxu0 0
        %7596 = vmatpush1.bf16.msra.mxu0 %v7465
        %7597 = vmatprep.subr.bf16.mxu0 0
        %7598 = vmatpush1.bf16.msra.mxu0 %v7468
        %7599 = vmatprep.subr.bf16.mxu0 0
        %7600 = vmatpush1.bf16.msra.mxu0 %v7471
        %7601 = vmatprep.subr.bf16.mxu0 0
        %7602 = vmatpush1.bf16.msra.mxu0 %v7474
        %7603 = vmatprep.subr.bf16.mxu0 0
        %7604 = vmatpush1.bf16.msra.mxu0 %v7477
        %7605 = vmatprep.subr.bf16.mxu0 0
        %7606 = vmatpush1.bf16.msra.mxu0 %v7480
        %7607 = vmatprep.subr.bf16.mxu0 0
        %7608 = vmatpush1.bf16.msra.mxu0 %v7483
        %7609 = vmatprep.subr.bf16.mxu0 0
        %7610 = vmatpush1.bf16.msra.mxu0 %v7486
        %7611 = vmatprep.subr.bf16.mxu0 0
        %7612 = vmatpush1.bf16.msra.mxu0 %v7489
        %7613 = vmatprep.subr.bf16.mxu0 0
        %7614 = vmatpush1.bf16.msra.mxu0 %v7492
        %7615 = vmatprep.subr.bf16.mxu0 0
        %7616 = vmatpush1.bf16.msra.mxu0 %v7495
        %7617 = vmatprep.mubr.bf16.mxu0 %v7223
        %7618 = vmatmul.mubr.bf16.gmra.mrb[0].mxu0 %v7222
        %v7619 = vpop.f32.mrb[0].mxu0
        %v7620 = vadd.f32 0.0, %v7619
        %v7621 = vpop.f32.mrb[0].mxu0
        %v7622 = vpop.f32.mrb[0].mxu0
        %v7623 = vpop.f32.mrb[0].mxu0
        %7624 = vdwg.mxu0
        %7625 = vst [vmem:[%s587] sm:$0xff] %v7579
        %7626 = vst [vmem:[%s587 + $0x8] sm:$0xff] %v7581
        %7627 = vst [vmem:[%s587 + $0x10] sm:$0xff] %v7620
        %s7628 = sand.u32 %s382, 1
        %s7629 = scalar_lea.sflag [#allocation4], %s7628
        %s7630 = sand.u32 %s382, 1
        %s7631 = smul.addr %s7630, 24
        %s7632 = scalar_lea.vmem [#allocation11], %s7631
        // Predicated region
        $region105: #{gpt2_forward.1} parent=83 // pred_check
          %p7633 = pneg %p392
        $region106: #{gpt2_forward.1} parent=83 // pred_check_branch
          %7635 = sbr.rel (%p7633) target = $region108
        $region107: #{gpt2_forward.1} parent=83 // pred_region
          %s7637 = ssub.s32 384, 384
          %7638 = vsyncadd %s7629, %s7637
          %s7639 = smul.addr %s33, 3
          %s7640 = smul.addr %s7639, 128
          %s7641 = scalar_lea.hbm %s16, %s7640
          %s7643 = sshll.u32 %s7632, 4
          %s7644 = int_to_ptr.vmem [resolvable:$true] %s7643
          %7646 = dma.vmem_to_hbm [thread:$0]  %s7644, 384, %s7641, %s7629
        $region108: #{gpt2_forward.1} parent=83 // pred_fallthru
          _
      $region84: #{gpt2_forward.1} parent=5 // pred_fallthru
        _
      %p7647 = scmp.le.s32.totalorder 2, %s28
      // Predicated region
      $region109: #{gpt2_forward.1} parent=5 // pred_check
        %p7648 = pneg %p7647
      $region110: #{gpt2_forward.1} parent=5 // pred_check_branch
        %7650 = sbr.rel (%p7648) target = $region112
      $region111: #{gpt2_forward.1} parent=5 // pred_region
        %s7651 = ssub.s32 %s28, 2
        // Predicated region
        $region113: #{gpt2_forward.1} parent=111 // pred_check
          %p7652 = pneg %p398
        $region114: #{gpt2_forward.1} parent=111 // pred_check_branch
          %7654 = sbr.rel (%p7652) target = $region116
        $region115: #{gpt2_forward.1} parent=111 // pred_region
          %s7655 = sand.u32 %s383, 1
          %s7656 = scalar_lea.sflag [#allocation4], %s7655
          %s7657 = sand.u32 %s383, 1
          %s7658 = smul.addr %s7657, 24
          %s7659 = scalar_lea.vmem [#allocation11], %s7658
          %7660 = dma.done %s7656, 384
        $region116: #{gpt2_forward.1} parent=111 // pred_fallthru
          _
      $region112: #{gpt2_forward.1} parent=5 // pred_fallthru
        _
    $region6: #{gpt2_forward.1} parent=1 // loop_footer
      %s32 = sadd.s32 1, %s28
    $region7: #{gpt2_forward.1} parent=1 // loop_footer_branch
      %27 = sbr.rel target = $region3
    $region8: #{gpt2_forward.1} parent=1 // loop_exit
      _
    %7661 = vsyncpa [#allocation3], 1
    %s7662 = scalar_lea.sflag [#allocation3], 1
    %7663 = vsyncpa %s7662, 1
    %7664 = vsyncpa [#allocation6], 1
    %7665 = vsyncpa [#allocation9], 1
    %7666 = vsyncpa [#allocation4], 1
    %s7667 = scalar_lea.sflag [#allocation4], 1
    %7668 = vsyncpa %s7667, 1

</llo_original>
